<compile_context>
chip_gen: v7x
topology: tpu7x:2x2x1
jax: 0.10.0
libtpu: 0.0.40
codegen_flags: <defaults>
</compile_context>

<pallas_src>
import functools

import jax
import jax.numpy as jnp
from jax.experimental import pallas as pl
from jax.experimental.pallas import tpu as pltpu


def _round_up(n, m):
    return (n + m - 1) // m * m


def _vmem_capacity_bytes():
    try:
        return int(pltpu.get_tpu_info().vmem_capacity_bytes)
    except Exception:
        return 64 << 20  # conservative: fits every TPU generation


def _gru_kernel(gates_ref,    # (Bbk, TB, 3Hp)  precomputed x@W_i (+ folded r/z biases)
                w_h_ref,      # (Hp, 3Hp)       fused hidden-to-hidden weights
                b_hn_ref,     # (1, Hp)         b_hn (added inside tanh, per PyTorch)
                full_ref,     # (Bbk, TB, Hp)   batch-major output hidden states
                h_scratch):   # (Bbk, Hp) f32   carried hidden state across time blocks
    # h0 defaults to zeros (PyTorch GRU with no initial hidden state); reset at
    # the first time block of every batch block.
    @pl.when(pl.program_id(1) == 0)
    def _():
        h_scratch[...] = jnp.zeros_like(h_scratch)

    Hp = h_scratch.shape[-1]
    TB = gates_ref.shape[1]
    w_h = w_h_ref[...]                              # storage dtype for the MXU
    b_hn = b_hn_ref[...].astype(jnp.float32)        # (1, Hp)

    h = h_scratch[...]                              # (Bbk, Hp) f32
    for i in range(TB):                             # static unroll (TB is small)
        # Single fused hidden matmul per step: (Bbk, Hp) @ (Hp, 3Hp).
        hg = jnp.dot(h.astype(w_h.dtype), w_h,
                     preferred_element_type=jnp.float32)            # (Bbk, 3Hp)
        gx = gates_ref[:, i:i + 1, :][:, 0, :].astype(jnp.float32)  # (Bbk, 3Hp)

        r = jax.nn.sigmoid(gx[:, :Hp] + hg[:, :Hp])
        z = jax.nn.sigmoid(gx[:, Hp:2 * Hp] + hg[:, Hp:2 * Hp])
        n = jnp.tanh(gx[:, 2 * Hp:] + r * (hg[:, 2 * Hp:] + b_hn))
        h = n + z * (h - n)                         # == (1-z)*n + z*h_prev

        full_ref[:, i:i + 1, :] = h.astype(full_ref.dtype)[:, None, :]

    h_scratch[...] = h


@functools.partial(jax.jit, static_argnames=("time_block", "batch_block",
                                             "matmul_dtype", "out_dtype"))
def gru_forward(x, params, *, time_block=16, batch_block=None,
                matmul_dtype=jnp.float32, out_dtype=jnp.float32):
    """x: (B, T, I). params: PyTorch-layout GRU weights (pre-split).

    Returns (full, last): full (B, T, H) in `out_dtype`, last (1, B, H).
    On v7x with large batch, set batch_block ~= Bp/2 to shard the batch axis
    across the two TensorCores (the time recurrence stays serial per slice).
    """
    B, T, I = x.shape
    H = params["w_hr"].shape[0]

    f32 = jnp.float32
    cdt = jnp.dtype(matmul_dtype)
    odt = jnp.dtype(out_dtype)

    # Padding: H -> multiple of 128 (lane-dense), B -> multiple of 8 (16 in bf16
    # mode for full sublane packing), T -> multiple of the time block.
    Hp = _round_up(max(H, 128), 128)
    sub = 16 if cdt.itemsize == 2 else 8
    Bp = _round_up(max(B, sub), sub)
    TB = _round_up(max(int(time_block), 8), 8)
    Tp = _round_up(T, TB)
    if batch_block is None:
        Bbk = Bp
    else:
        Bbk = min(_round_up(max(int(batch_block), sub), sub), Bp)
        Bp = _round_up(Bp, Bbk)

    def pad_wi(w):  # torch (H, I) -> (I, Hp)
        return jnp.pad(w.T.astype(f32), ((0, 0), (0, Hp - H)))

    def pad_wh(w):  # torch (H, H) -> (Hp, Hp)
        return jnp.pad(w.T.astype(f32), ((0, Hp - H), (0, Hp - H)))

    def pad_b(b):
        return jnp.pad(b.astype(f32), (0, Hp - H))

    # ---- Phase 1: parallel input projections for all time steps (XLA matmul).
    w_i_cat = jnp.concatenate(
        [pad_wi(params["w_ir"]), pad_wi(params["w_iz"]), pad_wi(params["w_in"])],
        axis=1).astype(cdt)                                          # (I, 3Hp)
    b_cat = jnp.concatenate(
        [pad_b(params["b_ir"] + params["b_hr"]),
         pad_b(params["b_iz"] + params["b_hz"]),
         pad_b(params["b_in"])]).astype(cdt)                         # (3Hp,)

    # Pad + cast the (small) input before the matmul so the einsum emits the
    # final padded, final-dtype, batch-major gates tensor directly.
    x_pad = jnp.pad(x.astype(f32),
                    ((0, Bp - B), (0, Tp - T), (0, 0))).astype(cdt)  # (Bp, Tp, I)
    gates = jnp.einsum("bti,ih->bth", x_pad, w_i_cat,
                       preferred_element_type=cdt) + b_cat           # (Bp, Tp, 3Hp)

    # ---- Phase 2: fused, sequential hidden-to-hidden recurrence (Pallas).
    w_h_cat = jnp.concatenate(
        [pad_wh(params["w_hr"]), pad_wh(params["w_hz"]), pad_wh(params["w_hn"])],
        axis=1).astype(cdt)                                          # (Hp, 3Hp)
    b_hn = pad_b(params["b_hn"]).reshape(1, Hp)                      # f32

    gi = cdt.itemsize
    oi = odt.itemsize
    vmem_bytes = (2 * Bbk * TB * 3 * Hp * gi     # double-buffered gates blocks
                  + 2 * Bbk * TB * Hp * oi       # double-buffered output blocks
                  + Hp * 3 * Hp * gi             # fused W_h (single-buffered)
                  + 8 * Hp * 4                   # b_hn tile (single-buffered)
                  + Bbk * Hp * 4)                # carried h scratch
    vmem_limit = int(min(vmem_bytes + (8 << 20), _vmem_capacity_bytes()))

    out_pad = pl.pallas_call(
        _gru_kernel,
        out_shape=jax.ShapeDtypeStruct((Bp, Tp, Hp), odt),
        grid_spec=pltpu.PrefetchScalarGridSpec(
            num_scalar_prefetch=0,
            grid=(Bp // Bbk, Tp // TB),
            in_specs=[
                pl.BlockSpec((Bbk, TB, 3 * Hp), lambda b, g: (b, g, 0)),
                pl.BlockSpec((Hp, 3 * Hp), lambda b, g: (0, 0),
                             pipeline_mode=pl.Buffered(1)),   # loop-invariant
                pl.BlockSpec((1, Hp), lambda b, g: (0, 0),
                             pipeline_mode=pl.Buffered(1)),   # loop-invariant
            ],
            out_specs=pl.BlockSpec((Bbk, TB, Hp), lambda b, g: (b, g, 0)),
            scratch_shapes=[pltpu.VMEM((Bbk, Hp), jnp.float32)],
        ),
        compiler_params=pltpu.CompilerParams(
            # batch blocks are independent (megacore on v7x); time is serial.
            dimension_semantics=("parallel", "arbitrary"),
            vmem_limit_bytes=vmem_limit,
        ),
    )(gates, w_h_cat, b_hn)

    full = out_pad[:B, :T, :H]          # (B, T, H) — already batch-major
    last = full[:, -1][None]            # (1, B, H)
    return full, last


def _gru_reference(x, params):
    """Pure-JAX reference implementing torch.nn.GRU semantics (batch_first)."""
    B, T, I = x.shape
    H = params["w_hr"].shape[0]

    def step(h, x_t):
        i_r = x_t @ params["w_ir"].T + params["b_ir"]
        i_z = x_t @ params["w_iz"].T + params["b_iz"]
        i_n = x_t @ params["w_in"].T + params["b_in"]
        h_r = h @ params["w_hr"].T + params["b_hr"]
        h_z = h @ params["w_hz"].T + params["b_hz"]
        h_n = h @ params["w_hn"].T + params["b_hn"]
        r = jax.nn.sigmoid(i_r + h_r)
        z = jax.nn.sigmoid(i_z + h_z)
        n = jnp.tanh(i_n + r * h_n)
        h_new = (1.0 - z) * n + z * h
        return h_new, h_new

    h0 = jnp.zeros((B, H), jnp.float32)
    h_last, full_tm = jax.lax.scan(step, h0, jnp.transpose(x, (1, 0, 2)))
    return jnp.transpose(full_tm, (1, 0, 2)), h_last[None]


def make_params(key, input_size, hidden_size):
    """Deterministic init mirroring PyTorch's U(-1/sqrt(H), 1/sqrt(H))."""
    k = 1.0 / jnp.sqrt(jnp.float32(hidden_size))
    keys = jax.random.split(key, 12)
    names = ["w_ir", "w_iz", "w_in", "w_hr", "w_hz", "w_hn",
             "b_ir", "b_iz", "b_in", "b_hr", "b_hz", "b_hn"]
    shapes = [(hidden_size, input_size)] * 3 + [(hidden_size, hidden_size)] * 3 \
             + [(hidden_size,)] * 6
    return {n: jax.random.uniform(kk, s, jnp.float32, -k, k)
            for n, kk, s in zip(names, keys, shapes)}


if __name__ == "__main__":
    B, T, I, H = 2, 8, 16, 32
    key = jax.random.PRNGKey(0)
    kx, kp = jax.random.split(key)
    x = jax.random.normal(kx, (B, T, I), jnp.float32)
    params = make_params(kp, I, H)

    full_ref, last_ref = _gru_reference(x, params)

    # f32 matmul path (tight tolerance).
    full, last = gru_forward(x, params, time_block=16, matmul_dtype=jnp.float32)
    jax.block_until_ready((full, last))
    assert full.shape == (B, T, H) and last.shape == (1, B, H)
    assert jnp.allclose(full, full_ref, atol=1e-4, rtol=1e-4)
    assert jnp.allclose(last, last_ref, atol=1e-4, rtol=1e-4)

    # bf16 matmul/storage path (perf config for v6e/v7x); looser tolerance.
    full_bf, last_bf = gru_forward(x, params, time_block=16,
                                   matmul_dtype=jnp.bfloat16)
    jax.block_until_ready((full_bf, last_bf))
    assert jnp.allclose(full_bf, full_ref, atol=5e-2, rtol=5e-2)
    assert jnp.allclose(last_bf, last_ref, atol=5e-2, rtol=5e-2)

    print("KERNEL_OK")
</pallas_src>

<mosaic_0001>
module attributes {stable_mosaic.version = 11 : i64} {
  func.func @_gru_kernel(%arg0: i32, %arg1: i32, %arg2: memref<8x16x384xf32, #tpu.memory_space<vmem>>, %arg3: memref<128x384xf32, #tpu.memory_space<vmem>>, %arg4: memref<1x128xf32, #tpu.memory_space<vmem>>, %arg5: memref<8x16x128xf32, #tpu.memory_space<vmem>>, %arg6: memref<8x128xf32, #tpu.memory_space<vmem>>) attributes {dimension_semantics = [#tpu.dimension_semantics<parallel>, #tpu.dimension_semantics<arbitrary>], iteration_bounds = array<i64: 1, 1>, scalar_prefetch = 0 : i64, scratch_operands = 1 : i64, tpu.core_type = #tpu.core_type<tc>, window_params = [{transform_indices = @transform_0, window_bounds = array<i64: 8, 16, 384>}, {pipeline_mode = #tpu.pipeline_mode<synchronous>, transform_indices = @transform_1, window_bounds = array<i64: 128, 384>}, {pipeline_mode = #tpu.pipeline_mode<synchronous>, transform_indices = @transform_2, window_bounds = array<i64: 1, 128>}, {transform_indices = @transform_3, window_bounds = array<i64: 8, 16, 128>}]} {
    %c0_i32 = arith.constant 0 : i32
    %0 = arith.cmpi eq, %arg1, %c0_i32 : i32
    %1 = arith.extui %0 : i1 to i32
    %c0_i32_0 = arith.constant 0 : i32
    %2 = arith.cmpi ne, %1, %c0_i32_0 : i32
    scf.if %2 {
      %cst_136 = arith.constant 0.000000e+00 : f32
      %503 = vector.broadcast %cst_136 : f32 to vector<8x128xf32>
      %c0_137 = arith.constant 0 : index
      %c0_138 = arith.constant 0 : index
      %504 = vector.load %arg6[%c0_137, %c0_138] : memref<8x128xf32, #tpu.memory_space<vmem>>, vector<8x128xf32>
      tpu.vector_store %arg6[%c0_137, %c0_138], %503 {strides = array<i32>} : memref<8x128xf32, #tpu.memory_space<vmem>>, vector<8x128xf32>,
    } else {
    }
    %c0 = arith.constant 0 : index
    %c0_1 = arith.constant 0 : index
    %3 = vector.load %arg3[%c0, %c0_1] : memref<128x384xf32, #tpu.memory_space<vmem>>, vector<128x384xf32>
    %c0_2 = arith.constant 0 : index
    %c0_3 = arith.constant 0 : index
    %4 = vector.load %arg4[%c0_2, %c0_3] : memref<1x128xf32, #tpu.memory_space<vmem>>, vector<1x128xf32>
    %c0_4 = arith.constant 0 : index
    %c0_5 = arith.constant 0 : index
    %5 = vector.load %arg6[%c0_4, %c0_5] : memref<8x128xf32, #tpu.memory_space<vmem>>, vector<8x128xf32>
    %cst = arith.constant dense<0.000000e+00> : vector<8x384xf32>
    %6 = tpu.matmul %5, %3, %cst {dimension_numbers = #tpu.dot_dimension_numbers<[1], [0], [0], [1], [0, 0, 1, 1], [], []>} : vector<8x128xf32>, vector<128x384xf32>, vector<8x384xf32> -> vector<8x384xf32>
    %c0_6 = arith.constant 0 : index
    %c0_7 = arith.constant 0 : index
    %c0_8 = arith.constant 0 : index
    %7 = vector.load %arg2[%c0_6, %c0_7, %c0_8] : memref<8x16x384xf32, #tpu.memory_space<vmem>>, vector<8x1x384xf32>
    %8 = vector.shape_cast %7 : vector<8x1x384xf32> to vector<8x384xf32>
    %9 = vector.extract_strided_slice %8 {offsets = [0, 0], sizes = [8, 128], strides = [1, 1]} : vector<8x384xf32> to vector<8x128xf32>
    %10 = vector.extract_strided_slice %6 {offsets = [0, 0], sizes = [8, 128], strides = [1, 1]} : vector<8x384xf32> to vector<8x128xf32>
    %11 = arith.addf %9, %10 : vector<8x128xf32>
    %12 = arith.negf %11 : vector<8x128xf32>
    %13 = math.exp %12 : vector<8x128xf32>
    %cst_9 = arith.constant 1.000000e+00 : f32
    %14 = vector.broadcast %cst_9 : f32 to vector<8x128xf32>
    %15 = arith.addf %14, %13 : vector<8x128xf32>
    %16 = arith.divf %14, %15 : vector<8x128xf32>
    %17 = vector.extract_strided_slice %8 {offsets = [0, 128], sizes = [8, 128], strides = [1, 1]} : vector<8x384xf32> to vector<8x128xf32>
    %18 = vector.extract_strided_slice %6 {offsets = [0, 128], sizes = [8, 128], strides = [1, 1]} : vector<8x384xf32> to vector<8x128xf32>
    %19 = arith.addf %17, %18 : vector<8x128xf32>
    %20 = arith.negf %19 : vector<8x128xf32>
    %21 = math.exp %20 : vector<8x128xf32>
    %cst_10 = arith.constant 1.000000e+00 : f32
    %22 = vector.broadcast %cst_10 : f32 to vector<8x128xf32>
    %23 = arith.addf %22, %21 : vector<8x128xf32>
    %24 = arith.divf %22, %23 : vector<8x128xf32>
    %25 = vector.extract_strided_slice %8 {offsets = [0, 256], sizes = [8, 128], strides = [1, 1]} : vector<8x384xf32> to vector<8x128xf32>
    %26 = vector.extract_strided_slice %6 {offsets = [0, 256], sizes = [8, 128], strides = [1, 1]} : vector<8x384xf32> to vector<8x128xf32>
    %27 = vector.broadcast %4 : vector<1x128xf32> to vector<8x128xf32>
    %28 = arith.addf %26, %27 : vector<8x128xf32>
    %29 = arith.mulf %16, %28 : vector<8x128xf32>
    %30 = arith.addf %25, %29 : vector<8x128xf32>
    %31 = math.tanh %30 : vector<8x128xf32>
    %32 = arith.subf %5, %31 : vector<8x128xf32>
    %33 = arith.mulf %24, %32 : vector<8x128xf32>
    %34 = arith.addf %31, %33 : vector<8x128xf32>
    %35 = vector.shape_cast %34 : vector<8x128xf32> to vector<8x1x128xf32>
    %c0_11 = arith.constant 0 : index
    %c0_12 = arith.constant 0 : index
    %c0_13 = arith.constant 0 : index
    %36 = vector.load %arg5[%c0_11, %c0_12, %c0_13] : memref<8x16x128xf32, #tpu.memory_space<vmem>>, vector<8x1x128xf32>
    tpu.vector_store %arg5[%c0_11, %c0_12, %c0_13], %35 {strides = array<i32>} : memref<8x16x128xf32, #tpu.memory_space<vmem>>, vector<8x1x128xf32>,
    %cst_14 = arith.constant dense<0.000000e+00> : vector<8x384xf32>
    %37 = tpu.matmul %34, %3, %cst_14 {dimension_numbers = #tpu.dot_dimension_numbers<[1], [0], [0], [1], [0, 0, 1, 1], [], []>} : vector<8x128xf32>, vector<128x384xf32>, vector<8x384xf32> -> vector<8x384xf32>
    %c0_15 = arith.constant 0 : index
    %c1 = arith.constant 1 : index
    %c0_16 = arith.constant 0 : index
    %38 = vector.load %arg2[%c0_15, %c1, %c0_16] : memref<8x16x384xf32, #tpu.memory_space<vmem>>, vector<8x1x384xf32>
    %39 = vector.shape_cast %38 : vector<8x1x384xf32> to vector<8x384xf32>
    %40 = vector.extract_strided_slice %39 {offsets = [0, 0], sizes = [8, 128], strides = [1, 1]} : vector<8x384xf32> to vector<8x128xf32>
    %41 = vector.extract_strided_slice %37 {offsets = [0, 0], sizes = [8, 128], strides = [1, 1]} : vector<8x384xf32> to vector<8x128xf32>
    %42 = arith.addf %40, %41 : vector<8x128xf32>
    %43 = arith.negf %42 : vector<8x128xf32>
    %44 = math.exp %43 : vector<8x128xf32>
    %cst_17 = arith.constant 1.000000e+00 : f32
    %45 = vector.broadcast %cst_17 : f32 to vector<8x128xf32>
    %46 = arith.addf %45, %44 : vector<8x128xf32>
    %47 = arith.divf %45, %46 : vector<8x128xf32>
    %48 = vector.extract_strided_slice %39 {offsets = [0, 128], sizes = [8, 128], strides = [1, 1]} : vector<8x384xf32> to vector<8x128xf32>
    %49 = vector.extract_strided_slice %37 {offsets = [0, 128], sizes = [8, 128], strides = [1, 1]} : vector<8x384xf32> to vector<8x128xf32>
    %50 = arith.addf %48, %49 : vector<8x128xf32>
    %51 = arith.negf %50 : vector<8x128xf32>
    %52 = math.exp %51 : vector<8x128xf32>
    %cst_18 = arith.constant 1.000000e+00 : f32
    %53 = vector.broadcast %cst_18 : f32 to vector<8x128xf32>
    %54 = arith.addf %53, %52 : vector<8x128xf32>
    %55 = arith.divf %53, %54 : vector<8x128xf32>
    %56 = vector.extract_strided_slice %39 {offsets = [0, 256], sizes = [8, 128], strides = [1, 1]} : vector<8x384xf32> to vector<8x128xf32>
    %57 = vector.extract_strided_slice %37 {offsets = [0, 256], sizes = [8, 128], strides = [1, 1]} : vector<8x384xf32> to vector<8x128xf32>
    %58 = vector.broadcast %4 : vector<1x128xf32> to vector<8x128xf32>
    %59 = arith.addf %57, %58 : vector<8x128xf32>
    %60 = arith.mulf %47, %59 : vector<8x128xf32>
    %61 = arith.addf %56, %60 : vector<8x128xf32>
    %62 = math.tanh %61 : vector<8x128xf32>
    %63 = arith.subf %34, %62 : vector<8x128xf32>
    %64 = arith.mulf %55, %63 : vector<8x128xf32>
    %65 = arith.addf %62, %64 : vector<8x128xf32>
    %66 = vector.shape_cast %65 : vector<8x128xf32> to vector<8x1x128xf32>
    %c0_19 = arith.constant 0 : index
    %c1_20 = arith.constant 1 : index
    %c0_21 = arith.constant 0 : index
    %67 = vector.load %arg5[%c0_19, %c1_20, %c0_21] : memref<8x16x128xf32, #tpu.memory_space<vmem>>, vector<8x1x128xf32>
    tpu.vector_store %arg5[%c0_19, %c1_20, %c0_21], %66 {strides = array<i32>} : memref<8x16x128xf32, #tpu.memory_space<vmem>>, vector<8x1x128xf32>,
    %cst_22 = arith.constant dense<0.000000e+00> : vector<8x384xf32>
    %68 = tpu.matmul %65, %3, %cst_22 {dimension_numbers = #tpu.dot_dimension_numbers<[1], [0], [0], [1], [0, 0, 1, 1], [], []>} : vector<8x128xf32>, vector<128x384xf32>, vector<8x384xf32> -> vector<8x384xf32>
    %c0_23 = arith.constant 0 : index
    %c2 = arith.constant 2 : index
    %c0_24 = arith.constant 0 : index
    %69 = vector.load %arg2[%c0_23, %c2, %c0_24] : memref<8x16x384xf32, #tpu.memory_space<vmem>>, vector<8x1x384xf32>
    %70 = vector.shape_cast %69 : vector<8x1x384xf32> to vector<8x384xf32>
    %71 = vector.extract_strided_slice %70 {offsets = [0, 0], sizes = [8, 128], strides = [1, 1]} : vector<8x384xf32> to vector<8x128xf32>
    %72 = vector.extract_strided_slice %68 {offsets = [0, 0], sizes = [8, 128], strides = [1, 1]} : vector<8x384xf32> to vector<8x128xf32>
    %73 = arith.addf %71, %72 : vector<8x128xf32>
    %74 = arith.negf %73 : vector<8x128xf32>
    %75 = math.exp %74 : vector<8x128xf32>
    %cst_25 = arith.constant 1.000000e+00 : f32
    %76 = vector.broadcast %cst_25 : f32 to vector<8x128xf32>
    %77 = arith.addf %76, %75 : vector<8x128xf32>
    %78 = arith.divf %76, %77 : vector<8x128xf32>
    %79 = vector.extract_strided_slice %70 {offsets = [0, 128], sizes = [8, 128], strides = [1, 1]} : vector<8x384xf32> to vector<8x128xf32>
    %80 = vector.extract_strided_slice %68 {offsets = [0, 128], sizes = [8, 128], strides = [1, 1]} : vector<8x384xf32> to vector<8x128xf32>
    %81 = arith.addf %79, %80 : vector<8x128xf32>
    %82 = arith.negf %81 : vector<8x128xf32>
    %83 = math.exp %82 : vector<8x128xf32>
    %cst_26 = arith.constant 1.000000e+00 : f32
    %84 = vector.broadcast %cst_26 : f32 to vector<8x128xf32>
    %85 = arith.addf %84, %83 : vector<8x128xf32>
    %86 = arith.divf %84, %85 : vector<8x128xf32>
    %87 = vector.extract_strided_slice %70 {offsets = [0, 256], sizes = [8, 128], strides = [1, 1]} : vector<8x384xf32> to vector<8x128xf32>
    %88 = vector.extract_strided_slice %68 {offsets = [0, 256], sizes = [8, 128], strides = [1, 1]} : vector<8x384xf32> to vector<8x128xf32>
    %89 = vector.broadcast %4 : vector<1x128xf32> to vector<8x128xf32>
    %90 = arith.addf %88, %89 : vector<8x128xf32>
    %91 = arith.mulf %78, %90 : vector<8x128xf32>
    %92 = arith.addf %87, %91 : vector<8x128xf32>
    %93 = math.tanh %92 : vector<8x128xf32>
    %94 = arith.subf %65, %93 : vector<8x128xf32>
    %95 = arith.mulf %86, %94 : vector<8x128xf32>
    %96 = arith.addf %93, %95 : vector<8x128xf32>
    %97 = vector.shape_cast %96 : vector<8x128xf32> to vector<8x1x128xf32>
    %c0_27 = arith.constant 0 : index
    %c2_28 = arith.constant 2 : index
    %c0_29 = arith.constant 0 : index
    %98 = vector.load %arg5[%c0_27, %c2_28, %c0_29] : memref<8x16x128xf32, #tpu.memory_space<vmem>>, vector<8x1x128xf32>
    tpu.vector_store %arg5[%c0_27, %c2_28, %c0_29], %97 {strides = array<i32>} : memref<8x16x128xf32, #tpu.memory_space<vmem>>, vector<8x1x128xf32>,
    %cst_30 = arith.constant dense<0.000000e+00> : vector<8x384xf32>
    %99 = tpu.matmul %96, %3, %cst_30 {dimension_numbers = #tpu.dot_dimension_numbers<[1], [0], [0], [1], [0, 0, 1, 1], [], []>} : vector<8x128xf32>, vector<128x384xf32>, vector<8x384xf32> -> vector<8x384xf32>
    %c0_31 = arith.constant 0 : index
    %c3 = arith.constant 3 : index
    %c0_32 = arith.constant 0 : index
    %100 = vector.load %arg2[%c0_31, %c3, %c0_32] : memref<8x16x384xf32, #tpu.memory_space<vmem>>, vector<8x1x384xf32>
    %101 = vector.shape_cast %100 : vector<8x1x384xf32> to vector<8x384xf32>
    %102 = vector.extract_strided_slice %101 {offsets = [0, 0], sizes = [8, 128], strides = [1, 1]} : vector<8x384xf32> to vector<8x128xf32>
    %103 = vector.extract_strided_slice %99 {offsets = [0, 0], sizes = [8, 128], strides = [1, 1]} : vector<8x384xf32> to vector<8x128xf32>
    %104 = arith.addf %102, %103 : vector<8x128xf32>
    %105 = arith.negf %104 : vector<8x128xf32>
    %106 = math.exp %105 : vector<8x128xf32>
    %cst_33 = arith.constant 1.000000e+00 : f32
    %107 = vector.broadcast %cst_33 : f32 to vector<8x128xf32>
    %108 = arith.addf %107, %106 : vector<8x128xf32>
    %109 = arith.divf %107, %108 : vector<8x128xf32>
    %110 = vector.extract_strided_slice %101 {offsets = [0, 128], sizes = [8, 128], strides = [1, 1]} : vector<8x384xf32> to vector<8x128xf32>
    %111 = vector.extract_strided_slice %99 {offsets = [0, 128], sizes = [8, 128], strides = [1, 1]} : vector<8x384xf32> to vector<8x128xf32>
    %112 = arith.addf %110, %111 : vector<8x128xf32>
    %113 = arith.negf %112 : vector<8x128xf32>
    %114 = math.exp %113 : vector<8x128xf32>
    %cst_34 = arith.constant 1.000000e+00 : f32
    %115 = vector.broadcast %cst_34 : f32 to vector<8x128xf32>
    %116 = arith.addf %115, %114 : vector<8x128xf32>
    %117 = arith.divf %115, %116 : vector<8x128xf32>
    %118 = vector.extract_strided_slice %101 {offsets = [0, 256], sizes = [8, 128], strides = [1, 1]} : vector<8x384xf32> to vector<8x128xf32>
    %119 = vector.extract_strided_slice %99 {offsets = [0, 256], sizes = [8, 128], strides = [1, 1]} : vector<8x384xf32> to vector<8x128xf32>
    %120 = vector.broadcast %4 : vector<1x128xf32> to vector<8x128xf32>
    %121 = arith.addf %119, %120 : vector<8x128xf32>
    %122 = arith.mulf %109, %121 : vector<8x128xf32>
    %123 = arith.addf %118, %122 : vector<8x128xf32>
    %124 = math.tanh %123 : vector<8x128xf32>
    %125 = arith.subf %96, %124 : vector<8x128xf32>
    %126 = arith.mulf %117, %125 : vector<8x128xf32>
    %127 = arith.addf %124, %126 : vector<8x128xf32>
    %128 = vector.shape_cast %127 : vector<8x128xf32> to vector<8x1x128xf32>
    %c0_35 = arith.constant 0 : index
    %c3_36 = arith.constant 3 : index
    %c0_37 = arith.constant 0 : index
    %129 = vector.load %arg5[%c0_35, %c3_36, %c0_37] : memref<8x16x128xf32, #tpu.memory_space<vmem>>, vector<8x1x128xf32>
    tpu.vector_store %arg5[%c0_35, %c3_36, %c0_37], %128 {strides = array<i32>} : memref<8x16x128xf32, #tpu.memory_space<vmem>>, vector<8x1x128xf32>,
    %cst_38 = arith.constant dense<0.000000e+00> : vector<8x384xf32>
    %130 = tpu.matmul %127, %3, %cst_38 {dimension_numbers = #tpu.dot_dimension_numbers<[1], [0], [0], [1], [0, 0, 1, 1], [], []>} : vector<8x128xf32>, vector<128x384xf32>, vector<8x384xf32> -> vector<8x384xf32>
    %c0_39 = arith.constant 0 : index
    %c4 = arith.constant 4 : index
    %c0_40 = arith.constant 0 : index
    %131 = vector.load %arg2[%c0_39, %c4, %c0_40] : memref<8x16x384xf32, #tpu.memory_space<vmem>>, vector<8x1x384xf32>
    %132 = vector.shape_cast %131 : vector<8x1x384xf32> to vector<8x384xf32>
    %133 = vector.extract_strided_slice %132 {offsets = [0, 0], sizes = [8, 128], strides = [1, 1]} : vector<8x384xf32> to vector<8x128xf32>
    %134 = vector.extract_strided_slice %130 {offsets = [0, 0], sizes = [8, 128], strides = [1, 1]} : vector<8x384xf32> to vector<8x128xf32>
    %135 = arith.addf %133, %134 : vector<8x128xf32>
    %136 = arith.negf %135 : vector<8x128xf32>
    %137 = math.exp %136 : vector<8x128xf32>
    %cst_41 = arith.constant 1.000000e+00 : f32
    %138 = vector.broadcast %cst_41 : f32 to vector<8x128xf32>
    %139 = arith.addf %138, %137 : vector<8x128xf32>
    %140 = arith.divf %138, %139 : vector<8x128xf32>
    %141 = vector.extract_strided_slice %132 {offsets = [0, 128], sizes = [8, 128], strides = [1, 1]} : vector<8x384xf32> to vector<8x128xf32>
    %142 = vector.extract_strided_slice %130 {offsets = [0, 128], sizes = [8, 128], strides = [1, 1]} : vector<8x384xf32> to vector<8x128xf32>
    %143 = arith.addf %141, %142 : vector<8x128xf32>
    %144 = arith.negf %143 : vector<8x128xf32>
    %145 = math.exp %144 : vector<8x128xf32>
    %cst_42 = arith.constant 1.000000e+00 : f32
    %146 = vector.broadcast %cst_42 : f32 to vector<8x128xf32>
    %147 = arith.addf %146, %145 : vector<8x128xf32>
    %148 = arith.divf %146, %147 : vector<8x128xf32>
    %149 = vector.extract_strided_slice %132 {offsets = [0, 256], sizes = [8, 128], strides = [1, 1]} : vector<8x384xf32> to vector<8x128xf32>
    %150 = vector.extract_strided_slice %130 {offsets = [0, 256], sizes = [8, 128], strides = [1, 1]} : vector<8x384xf32> to vector<8x128xf32>
    %151 = vector.broadcast %4 : vector<1x128xf32> to vector<8x128xf32>
    %152 = arith.addf %150, %151 : vector<8x128xf32>
    %153 = arith.mulf %140, %152 : vector<8x128xf32>
    %154 = arith.addf %149, %153 : vector<8x128xf32>
    %155 = math.tanh %154 : vector<8x128xf32>
    %156 = arith.subf %127, %155 : vector<8x128xf32>
    %157 = arith.mulf %148, %156 : vector<8x128xf32>
    %158 = arith.addf %155, %157 : vector<8x128xf32>
    %159 = vector.shape_cast %158 : vector<8x128xf32> to vector<8x1x128xf32>
    %c0_43 = arith.constant 0 : index
    %c4_44 = arith.constant 4 : index
    %c0_45 = arith.constant 0 : index
    %160 = vector.load %arg5[%c0_43, %c4_44, %c0_45] : memref<8x16x128xf32, #tpu.memory_space<vmem>>, vector<8x1x128xf32>
    tpu.vector_store %arg5[%c0_43, %c4_44, %c0_45], %159 {strides = array<i32>} : memref<8x16x128xf32, #tpu.memory_space<vmem>>, vector<8x1x128xf32>,
    %cst_46 = arith.constant dense<0.000000e+00> : vector<8x384xf32>
    %161 = tpu.matmul %158, %3, %cst_46 {dimension_numbers = #tpu.dot_dimension_numbers<[1], [0], [0], [1], [0, 0, 1, 1], [], []>} : vector<8x128xf32>, vector<128x384xf32>, vector<8x384xf32> -> vector<8x384xf32>
    %c0_47 = arith.constant 0 : index
    %c5 = arith.constant 5 : index
    %c0_48 = arith.constant 0 : index
    %162 = vector.load %arg2[%c0_47, %c5, %c0_48] : memref<8x16x384xf32, #tpu.memory_space<vmem>>, vector<8x1x384xf32>
    %163 = vector.shape_cast %162 : vector<8x1x384xf32> to vector<8x384xf32>
    %164 = vector.extract_strided_slice %163 {offsets = [0, 0], sizes = [8, 128], strides = [1, 1]} : vector<8x384xf32> to vector<8x128xf32>
    %165 = vector.extract_strided_slice %161 {offsets = [0, 0], sizes = [8, 128], strides = [1, 1]} : vector<8x384xf32> to vector<8x128xf32>
    %166 = arith.addf %164, %165 : vector<8x128xf32>
    %167 = arith.negf %166 : vector<8x128xf32>
    %168 = math.exp %167 : vector<8x128xf32>
    %cst_49 = arith.constant 1.000000e+00 : f32
    %169 = vector.broadcast %cst_49 : f32 to vector<8x128xf32>
    %170 = arith.addf %169, %168 : vector<8x128xf32>
    %171 = arith.divf %169, %170 : vector<8x128xf32>
    %172 = vector.extract_strided_slice %163 {offsets = [0, 128], sizes = [8, 128], strides = [1, 1]} : vector<8x384xf32> to vector<8x128xf32>
    %173 = vector.extract_strided_slice %161 {offsets = [0, 128], sizes = [8, 128], strides = [1, 1]} : vector<8x384xf32> to vector<8x128xf32>
    %174 = arith.addf %172, %173 : vector<8x128xf32>
    %175 = arith.negf %174 : vector<8x128xf32>
    %176 = math.exp %175 : vector<8x128xf32>
    %cst_50 = arith.constant 1.000000e+00 : f32
    %177 = vector.broadcast %cst_50 : f32 to vector<8x128xf32>
    %178 = arith.addf %177, %176 : vector<8x128xf32>
    %179 = arith.divf %177, %178 : vector<8x128xf32>
    %180 = vector.extract_strided_slice %163 {offsets = [0, 256], sizes = [8, 128], strides = [1, 1]} : vector<8x384xf32> to vector<8x128xf32>
    %181 = vector.extract_strided_slice %161 {offsets = [0, 256], sizes = [8, 128], strides = [1, 1]} : vector<8x384xf32> to vector<8x128xf32>
    %182 = vector.broadcast %4 : vector<1x128xf32> to vector<8x128xf32>
    %183 = arith.addf %181, %182 : vector<8x128xf32>
    %184 = arith.mulf %171, %183 : vector<8x128xf32>
    %185 = arith.addf %180, %184 : vector<8x128xf32>
    %186 = math.tanh %185 : vector<8x128xf32>
    %187 = arith.subf %158, %186 : vector<8x128xf32>
    %188 = arith.mulf %179, %187 : vector<8x128xf32>
    %189 = arith.addf %186, %188 : vector<8x128xf32>
    %190 = vector.shape_cast %189 : vector<8x128xf32> to vector<8x1x128xf32>
    %c0_51 = arith.constant 0 : index
    %c5_52 = arith.constant 5 : index
    %c0_53 = arith.constant 0 : index
    %191 = vector.load %arg5[%c0_51, %c5_52, %c0_53] : memref<8x16x128xf32, #tpu.memory_space<vmem>>, vector<8x1x128xf32>
    tpu.vector_store %arg5[%c0_51, %c5_52, %c0_53], %190 {strides = array<i32>} : memref<8x16x128xf32, #tpu.memory_space<vmem>>, vector<8x1x128xf32>,
    %cst_54 = arith.constant dense<0.000000e+00> : vector<8x384xf32>
    %192 = tpu.matmul %189, %3, %cst_54 {dimension_numbers = #tpu.dot_dimension_numbers<[1], [0], [0], [1], [0, 0, 1, 1], [], []>} : vector<8x128xf32>, vector<128x384xf32>, vector<8x384xf32> -> vector<8x384xf32>
    %c0_55 = arith.constant 0 : index
    %c6 = arith.constant 6 : index
    %c0_56 = arith.constant 0 : index
    %193 = vector.load %arg2[%c0_55, %c6, %c0_56] : memref<8x16x384xf32, #tpu.memory_space<vmem>>, vector<8x1x384xf32>
    %194 = vector.shape_cast %193 : vector<8x1x384xf32> to vector<8x384xf32>
    %195 = vector.extract_strided_slice %194 {offsets = [0, 0], sizes = [8, 128], strides = [1, 1]} : vector<8x384xf32> to vector<8x128xf32>
    %196 = vector.extract_strided_slice %192 {offsets = [0, 0], sizes = [8, 128], strides = [1, 1]} : vector<8x384xf32> to vector<8x128xf32>
    %197 = arith.addf %195, %196 : vector<8x128xf32>
    %198 = arith.negf %197 : vector<8x128xf32>
    %199 = math.exp %198 : vector<8x128xf32>
    %cst_57 = arith.constant 1.000000e+00 : f32
    %200 = vector.broadcast %cst_57 : f32 to vector<8x128xf32>
    %201 = arith.addf %200, %199 : vector<8x128xf32>
    %202 = arith.divf %200, %201 : vector<8x128xf32>
    %203 = vector.extract_strided_slice %194 {offsets = [0, 128], sizes = [8, 128], strides = [1, 1]} : vector<8x384xf32> to vector<8x128xf32>
    %204 = vector.extract_strided_slice %192 {offsets = [0, 128], sizes = [8, 128], strides = [1, 1]} : vector<8x384xf32> to vector<8x128xf32>
    %205 = arith.addf %203, %204 : vector<8x128xf32>
    %206 = arith.negf %205 : vector<8x128xf32>
    %207 = math.exp %206 : vector<8x128xf32>
    %cst_58 = arith.constant 1.000000e+00 : f32
    %208 = vector.broadcast %cst_58 : f32 to vector<8x128xf32>
    %209 = arith.addf %208, %207 : vector<8x128xf32>
    %210 = arith.divf %208, %209 : vector<8x128xf32>
    %211 = vector.extract_strided_slice %194 {offsets = [0, 256], sizes = [8, 128], strides = [1, 1]} : vector<8x384xf32> to vector<8x128xf32>
    %212 = vector.extract_strided_slice %192 {offsets = [0, 256], sizes = [8, 128], strides = [1, 1]} : vector<8x384xf32> to vector<8x128xf32>
    %213 = vector.broadcast %4 : vector<1x128xf32> to vector<8x128xf32>
    %214 = arith.addf %212, %213 : vector<8x128xf32>
    %215 = arith.mulf %202, %214 : vector<8x128xf32>
    %216 = arith.addf %211, %215 : vector<8x128xf32>
    %217 = math.tanh %216 : vector<8x128xf32>
    %218 = arith.subf %189, %217 : vector<8x128xf32>
    %219 = arith.mulf %210, %218 : vector<8x128xf32>
    %220 = arith.addf %217, %219 : vector<8x128xf32>
    %221 = vector.shape_cast %220 : vector<8x128xf32> to vector<8x1x128xf32>
    %c0_59 = arith.constant 0 : index
    %c6_60 = arith.constant 6 : index
    %c0_61 = arith.constant 0 : index
    %222 = vector.load %arg5[%c0_59, %c6_60, %c0_61] : memref<8x16x128xf32, #tpu.memory_space<vmem>>, vector<8x1x128xf32>
    tpu.vector_store %arg5[%c0_59, %c6_60, %c0_61], %221 {strides = array<i32>} : memref<8x16x128xf32, #tpu.memory_space<vmem>>, vector<8x1x128xf32>,
    %cst_62 = arith.constant dense<0.000000e+00> : vector<8x384xf32>
    %223 = tpu.matmul %220, %3, %cst_62 {dimension_numbers = #tpu.dot_dimension_numbers<[1], [0], [0], [1], [0, 0, 1, 1], [], []>} : vector<8x128xf32>, vector<128x384xf32>, vector<8x384xf32> -> vector<8x384xf32>
    %c0_63 = arith.constant 0 : index
    %c7 = arith.constant 7 : index
    %c0_64 = arith.constant 0 : index
    %224 = vector.load %arg2[%c0_63, %c7, %c0_64] : memref<8x16x384xf32, #tpu.memory_space<vmem>>, vector<8x1x384xf32>
    %225 = vector.shape_cast %224 : vector<8x1x384xf32> to vector<8x384xf32>
    %226 = vector.extract_strided_slice %225 {offsets = [0, 0], sizes = [8, 128], strides = [1, 1]} : vector<8x384xf32> to vector<8x128xf32>
    %227 = vector.extract_strided_slice %223 {offsets = [0, 0], sizes = [8, 128], strides = [1, 1]} : vector<8x384xf32> to vector<8x128xf32>
    %228 = arith.addf %226, %227 : vector<8x128xf32>
    %229 = arith.negf %228 : vector<8x128xf32>
    %230 = math.exp %229 : vector<8x128xf32>
    %cst_65 = arith.constant 1.000000e+00 : f32
    %231 = vector.broadcast %cst_65 : f32 to vector<8x128xf32>
    %232 = arith.addf %231, %230 : vector<8x128xf32>
    %233 = arith.divf %231, %232 : vector<8x128xf32>
    %234 = vector.extract_strided_slice %225 {offsets = [0, 128], sizes = [8, 128], strides = [1, 1]} : vector<8x384xf32> to vector<8x128xf32>
    %235 = vector.extract_strided_slice %223 {offsets = [0, 128], sizes = [8, 128], strides = [1, 1]} : vector<8x384xf32> to vector<8x128xf32>
    %236 = arith.addf %234, %235 : vector<8x128xf32>
    %237 = arith.negf %236 : vector<8x128xf32>
    %238 = math.exp %237 : vector<8x128xf32>
    %cst_66 = arith.constant 1.000000e+00 : f32
    %239 = vector.broadcast %cst_66 : f32 to vector<8x128xf32>
    %240 = arith.addf %239, %238 : vector<8x128xf32>
    %241 = arith.divf %239, %240 : vector<8x128xf32>
    %242 = vector.extract_strided_slice %225 {offsets = [0, 256], sizes = [8, 128], strides = [1, 1]} : vector<8x384xf32> to vector<8x128xf32>
    %243 = vector.extract_strided_slice %223 {offsets = [0, 256], sizes = [8, 128], strides = [1, 1]} : vector<8x384xf32> to vector<8x128xf32>
    %244 = vector.broadcast %4 : vector<1x128xf32> to vector<8x128xf32>
    %245 = arith.addf %243, %244 : vector<8x128xf32>
    %246 = arith.mulf %233, %245 : vector<8x128xf32>
    %247 = arith.addf %242, %246 : vector<8x128xf32>
    %248 = math.tanh %247 : vector<8x128xf32>
    %249 = arith.subf %220, %248 : vector<8x128xf32>
    %250 = arith.mulf %241, %249 : vector<8x128xf32>
    %251 = arith.addf %248, %250 : vector<8x128xf32>
    %252 = vector.shape_cast %251 : vector<8x128xf32> to vector<8x1x128xf32>
    %c0_67 = arith.constant 0 : index
    %c7_68 = arith.constant 7 : index
    %c0_69 = arith.constant 0 : index
    %253 = vector.load %arg5[%c0_67, %c7_68, %c0_69] : memref<8x16x128xf32, #tpu.memory_space<vmem>>, vector<8x1x128xf32>
    tpu.vector_store %arg5[%c0_67, %c7_68, %c0_69], %252 {strides = array<i32>} : memref<8x16x128xf32, #tpu.memory_space<vmem>>, vector<8x1x128xf32>,
    %cst_70 = arith.constant dense<0.000000e+00> : vector<8x384xf32>
    %254 = tpu.matmul %251, %3, %cst_70 {dimension_numbers = #tpu.dot_dimension_numbers<[1], [0], [0], [1], [0, 0, 1, 1], [], []>} : vector<8x128xf32>, vector<128x384xf32>, vector<8x384xf32> -> vector<8x384xf32>
    %c0_71 = arith.constant 0 : index
    %c8 = arith.constant 8 : index
    %c0_72 = arith.constant 0 : index
    %255 = vector.load %arg2[%c0_71, %c8, %c0_72] : memref<8x16x384xf32, #tpu.memory_space<vmem>>, vector<8x1x384xf32>
    %256 = vector.shape_cast %255 : vector<8x1x384xf32> to vector<8x384xf32>
    %257 = vector.extract_strided_slice %256 {offsets = [0, 0], sizes = [8, 128], strides = [1, 1]} : vector<8x384xf32> to vector<8x128xf32>
    %258 = vector.extract_strided_slice %254 {offsets = [0, 0], sizes = [8, 128], strides = [1, 1]} : vector<8x384xf32> to vector<8x128xf32>
    %259 = arith.addf %257, %258 : vector<8x128xf32>
    %260 = arith.negf %259 : vector<8x128xf32>
    %261 = math.exp %260 : vector<8x128xf32>
    %cst_73 = arith.constant 1.000000e+00 : f32
    %262 = vector.broadcast %cst_73 : f32 to vector<8x128xf32>
    %263 = arith.addf %262, %261 : vector<8x128xf32>
    %264 = arith.divf %262, %263 : vector<8x128xf32>
    %265 = vector.extract_strided_slice %256 {offsets = [0, 128], sizes = [8, 128], strides = [1, 1]} : vector<8x384xf32> to vector<8x128xf32>
    %266 = vector.extract_strided_slice %254 {offsets = [0, 128], sizes = [8, 128], strides = [1, 1]} : vector<8x384xf32> to vector<8x128xf32>
    %267 = arith.addf %265, %266 : vector<8x128xf32>
    %268 = arith.negf %267 : vector<8x128xf32>
    %269 = math.exp %268 : vector<8x128xf32>
    %cst_74 = arith.constant 1.000000e+00 : f32
    %270 = vector.broadcast %cst_74 : f32 to vector<8x128xf32>
    %271 = arith.addf %270, %269 : vector<8x128xf32>
    %272 = arith.divf %270, %271 : vector<8x128xf32>
    %273 = vector.extract_strided_slice %256 {offsets = [0, 256], sizes = [8, 128], strides = [1, 1]} : vector<8x384xf32> to vector<8x128xf32>
    %274 = vector.extract_strided_slice %254 {offsets = [0, 256], sizes = [8, 128], strides = [1, 1]} : vector<8x384xf32> to vector<8x128xf32>
    %275 = vector.broadcast %4 : vector<1x128xf32> to vector<8x128xf32>
    %276 = arith.addf %274, %275 : vector<8x128xf32>
    %277 = arith.mulf %264, %276 : vector<8x128xf32>
    %278 = arith.addf %273, %277 : vector<8x128xf32>
    %279 = math.tanh %278 : vector<8x128xf32>
    %280 = arith.subf %251, %279 : vector<8x128xf32>
    %281 = arith.mulf %272, %280 : vector<8x128xf32>
    %282 = arith.addf %279, %281 : vector<8x128xf32>
    %283 = vector.shape_cast %282 : vector<8x128xf32> to vector<8x1x128xf32>
    %c0_75 = arith.constant 0 : index
    %c8_76 = arith.constant 8 : index
    %c0_77 = arith.constant 0 : index
    %284 = vector.load %arg5[%c0_75, %c8_76, %c0_77] : memref<8x16x128xf32, #tpu.memory_space<vmem>>, vector<8x1x128xf32>
    tpu.vector_store %arg5[%c0_75, %c8_76, %c0_77], %283 {strides = array<i32>} : memref<8x16x128xf32, #tpu.memory_space<vmem>>, vector<8x1x128xf32>,
    %cst_78 = arith.constant dense<0.000000e+00> : vector<8x384xf32>
    %285 = tpu.matmul %282, %3, %cst_78 {dimension_numbers = #tpu.dot_dimension_numbers<[1], [0], [0], [1], [0, 0, 1, 1], [], []>} : vector<8x128xf32>, vector<128x384xf32>, vector<8x384xf32> -> vector<8x384xf32>
    %c0_79 = arith.constant 0 : index
    %c9 = arith.constant 9 : index
    %c0_80 = arith.constant 0 : index
    %286 = vector.load %arg2[%c0_79, %c9, %c0_80] : memref<8x16x384xf32, #tpu.memory_space<vmem>>, vector<8x1x384xf32>
    %287 = vector.shape_cast %286 : vector<8x1x384xf32> to vector<8x384xf32>
    %288 = vector.extract_strided_slice %287 {offsets = [0, 0], sizes = [8, 128], strides = [1, 1]} : vector<8x384xf32> to vector<8x128xf32>
    %289 = vector.extract_strided_slice %285 {offsets = [0, 0], sizes = [8, 128], strides = [1, 1]} : vector<8x384xf32> to vector<8x128xf32>
    %290 = arith.addf %288, %289 : vector<8x128xf32>
    %291 = arith.negf %290 : vector<8x128xf32>
    %292 = math.exp %291 : vector<8x128xf32>
    %cst_81 = arith.constant 1.000000e+00 : f32
    %293 = vector.broadcast %cst_81 : f32 to vector<8x128xf32>
    %294 = arith.addf %293, %292 : vector<8x128xf32>
    %295 = arith.divf %293, %294 : vector<8x128xf32>
    %296 = vector.extract_strided_slice %287 {offsets = [0, 128], sizes = [8, 128], strides = [1, 1]} : vector<8x384xf32> to vector<8x128xf32>
    %297 = vector.extract_strided_slice %285 {offsets = [0, 128], sizes = [8, 128], strides = [1, 1]} : vector<8x384xf32> to vector<8x128xf32>
    %298 = arith.addf %296, %297 : vector<8x128xf32>
    %299 = arith.negf %298 : vector<8x128xf32>
    %300 = math.exp %299 : vector<8x128xf32>
    %cst_82 = arith.constant 1.000000e+00 : f32
    %301 = vector.broadcast %cst_82 : f32 to vector<8x128xf32>
    %302 = arith.addf %301, %300 : vector<8x128xf32>
    %303 = arith.divf %301, %302 : vector<8x128xf32>
    %304 = vector.extract_strided_slice %287 {offsets = [0, 256], sizes = [8, 128], strides = [1, 1]} : vector<8x384xf32> to vector<8x128xf32>
    %305 = vector.extract_strided_slice %285 {offsets = [0, 256], sizes = [8, 128], strides = [1, 1]} : vector<8x384xf32> to vector<8x128xf32>
    %306 = vector.broadcast %4 : vector<1x128xf32> to vector<8x128xf32>
    %307 = arith.addf %305, %306 : vector<8x128xf32>
    %308 = arith.mulf %295, %307 : vector<8x128xf32>
    %309 = arith.addf %304, %308 : vector<8x128xf32>
    %310 = math.tanh %309 : vector<8x128xf32>
    %311 = arith.subf %282, %310 : vector<8x128xf32>
    %312 = arith.mulf %303, %311 : vector<8x128xf32>
    %313 = arith.addf %310, %312 : vector<8x128xf32>
    %314 = vector.shape_cast %313 : vector<8x128xf32> to vector<8x1x128xf32>
    %c0_83 = arith.constant 0 : index
    %c9_84 = arith.constant 9 : index
    %c0_85 = arith.constant 0 : index
    %315 = vector.load %arg5[%c0_83, %c9_84, %c0_85] : memref<8x16x128xf32, #tpu.memory_space<vmem>>, vector<8x1x128xf32>
    tpu.vector_store %arg5[%c0_83, %c9_84, %c0_85], %314 {strides = array<i32>} : memref<8x16x128xf32, #tpu.memory_space<vmem>>, vector<8x1x128xf32>,
    %cst_86 = arith.constant dense<0.000000e+00> : vector<8x384xf32>
    %316 = tpu.matmul %313, %3, %cst_86 {dimension_numbers = #tpu.dot_dimension_numbers<[1], [0], [0], [1], [0, 0, 1, 1], [], []>} : vector<8x128xf32>, vector<128x384xf32>, vector<8x384xf32> -> vector<8x384xf32>
    %c0_87 = arith.constant 0 : index
    %c10 = arith.constant 10 : index
    %c0_88 = arith.constant 0 : index
    %317 = vector.load %arg2[%c0_87, %c10, %c0_88] : memref<8x16x384xf32, #tpu.memory_space<vmem>>, vector<8x1x384xf32>
    %318 = vector.shape_cast %317 : vector<8x1x384xf32> to vector<8x384xf32>
    %319 = vector.extract_strided_slice %318 {offsets = [0, 0], sizes = [8, 128], strides = [1, 1]} : vector<8x384xf32> to vector<8x128xf32>
    %320 = vector.extract_strided_slice %316 {offsets = [0, 0], sizes = [8, 128], strides = [1, 1]} : vector<8x384xf32> to vector<8x128xf32>
    %321 = arith.addf %319, %320 : vector<8x128xf32>
    %322 = arith.negf %321 : vector<8x128xf32>
    %323 = math.exp %322 : vector<8x128xf32>
    %cst_89 = arith.constant 1.000000e+00 : f32
    %324 = vector.broadcast %cst_89 : f32 to vector<8x128xf32>
    %325 = arith.addf %324, %323 : vector<8x128xf32>
    %326 = arith.divf %324, %325 : vector<8x128xf32>
    %327 = vector.extract_strided_slice %318 {offsets = [0, 128], sizes = [8, 128], strides = [1, 1]} : vector<8x384xf32> to vector<8x128xf32>
    %328 = vector.extract_strided_slice %316 {offsets = [0, 128], sizes = [8, 128], strides = [1, 1]} : vector<8x384xf32> to vector<8x128xf32>
    %329 = arith.addf %327, %328 : vector<8x128xf32>
    %330 = arith.negf %329 : vector<8x128xf32>
    %331 = math.exp %330 : vector<8x128xf32>
    %cst_90 = arith.constant 1.000000e+00 : f32
    %332 = vector.broadcast %cst_90 : f32 to vector<8x128xf32>
    %333 = arith.addf %332, %331 : vector<8x128xf32>
    %334 = arith.divf %332, %333 : vector<8x128xf32>
    %335 = vector.extract_strided_slice %318 {offsets = [0, 256], sizes = [8, 128], strides = [1, 1]} : vector<8x384xf32> to vector<8x128xf32>
    %336 = vector.extract_strided_slice %316 {offsets = [0, 256], sizes = [8, 128], strides = [1, 1]} : vector<8x384xf32> to vector<8x128xf32>
    %337 = vector.broadcast %4 : vector<1x128xf32> to vector<8x128xf32>
    %338 = arith.addf %336, %337 : vector<8x128xf32>
    %339 = arith.mulf %326, %338 : vector<8x128xf32>
    %340 = arith.addf %335, %339 : vector<8x128xf32>
    %341 = math.tanh %340 : vector<8x128xf32>
    %342 = arith.subf %313, %341 : vector<8x128xf32>
    %343 = arith.mulf %334, %342 : vector<8x128xf32>
    %344 = arith.addf %341, %343 : vector<8x128xf32>
    %345 = vector.shape_cast %344 : vector<8x128xf32> to vector<8x1x128xf32>
    %c0_91 = arith.constant 0 : index
    %c10_92 = arith.constant 10 : index
    %c0_93 = arith.constant 0 : index
    %346 = vector.load %arg5[%c0_91, %c10_92, %c0_93] : memref<8x16x128xf32, #tpu.memory_space<vmem>>, vector<8x1x128xf32>
    tpu.vector_store %arg5[%c0_91, %c10_92, %c0_93], %345 {strides = array<i32>} : memref<8x16x128xf32, #tpu.memory_space<vmem>>, vector<8x1x128xf32>,
    %cst_94 = arith.constant dense<0.000000e+00> : vector<8x384xf32>
    %347 = tpu.matmul %344, %3, %cst_94 {dimension_numbers = #tpu.dot_dimension_numbers<[1], [0], [0], [1], [0, 0, 1, 1], [], []>} : vector<8x128xf32>, vector<128x384xf32>, vector<8x384xf32> -> vector<8x384xf32>
    %c0_95 = arith.constant 0 : index
    %c11 = arith.constant 11 : index
    %c0_96 = arith.constant 0 : index
    %348 = vector.load %arg2[%c0_95, %c11, %c0_96] : memref<8x16x384xf32, #tpu.memory_space<vmem>>, vector<8x1x384xf32>
    %349 = vector.shape_cast %348 : vector<8x1x384xf32> to vector<8x384xf32>
    %350 = vector.extract_strided_slice %349 {offsets = [0, 0], sizes = [8, 128], strides = [1, 1]} : vector<8x384xf32> to vector<8x128xf32>
    %351 = vector.extract_strided_slice %347 {offsets = [0, 0], sizes = [8, 128], strides = [1, 1]} : vector<8x384xf32> to vector<8x128xf32>
    %352 = arith.addf %350, %351 : vector<8x128xf32>
    %353 = arith.negf %352 : vector<8x128xf32>
    %354 = math.exp %353 : vector<8x128xf32>
    %cst_97 = arith.constant 1.000000e+00 : f32
    %355 = vector.broadcast %cst_97 : f32 to vector<8x128xf32>
    %356 = arith.addf %355, %354 : vector<8x128xf32>
    %357 = arith.divf %355, %356 : vector<8x128xf32>
    %358 = vector.extract_strided_slice %349 {offsets = [0, 128], sizes = [8, 128], strides = [1, 1]} : vector<8x384xf32> to vector<8x128xf32>
    %359 = vector.extract_strided_slice %347 {offsets = [0, 128], sizes = [8, 128], strides = [1, 1]} : vector<8x384xf32> to vector<8x128xf32>
    %360 = arith.addf %358, %359 : vector<8x128xf32>
    %361 = arith.negf %360 : vector<8x128xf32>
    %362 = math.exp %361 : vector<8x128xf32>
    %cst_98 = arith.constant 1.000000e+00 : f32
    %363 = vector.broadcast %cst_98 : f32 to vector<8x128xf32>
    %364 = arith.addf %363, %362 : vector<8x128xf32>
    %365 = arith.divf %363, %364 : vector<8x128xf32>
    %366 = vector.extract_strided_slice %349 {offsets = [0, 256], sizes = [8, 128], strides = [1, 1]} : vector<8x384xf32> to vector<8x128xf32>
    %367 = vector.extract_strided_slice %347 {offsets = [0, 256], sizes = [8, 128], strides = [1, 1]} : vector<8x384xf32> to vector<8x128xf32>
    %368 = vector.broadcast %4 : vector<1x128xf32> to vector<8x128xf32>
    %369 = arith.addf %367, %368 : vector<8x128xf32>
    %370 = arith.mulf %357, %369 : vector<8x128xf32>
    %371 = arith.addf %366, %370 : vector<8x128xf32>
    %372 = math.tanh %371 : vector<8x128xf32>
    %373 = arith.subf %344, %372 : vector<8x128xf32>
    %374 = arith.mulf %365, %373 : vector<8x128xf32>
    %375 = arith.addf %372, %374 : vector<8x128xf32>
    %376 = vector.shape_cast %375 : vector<8x128xf32> to vector<8x1x128xf32>
    %c0_99 = arith.constant 0 : index
    %c11_100 = arith.constant 11 : index
    %c0_101 = arith.constant 0 : index
    %377 = vector.load %arg5[%c0_99, %c11_100, %c0_101] : memref<8x16x128xf32, #tpu.memory_space<vmem>>, vector<8x1x128xf32>
    tpu.vector_store %arg5[%c0_99, %c11_100, %c0_101], %376 {strides = array<i32>} : memref<8x16x128xf32, #tpu.memory_space<vmem>>, vector<8x1x128xf32>,
    %cst_102 = arith.constant dense<0.000000e+00> : vector<8x384xf32>
    %378 = tpu.matmul %375, %3, %cst_102 {dimension_numbers = #tpu.dot_dimension_numbers<[1], [0], [0], [1], [0, 0, 1, 1], [], []>} : vector<8x128xf32>, vector<128x384xf32>, vector<8x384xf32> -> vector<8x384xf32>
    %c0_103 = arith.constant 0 : index
    %c12 = arith.constant 12 : index
    %c0_104 = arith.constant 0 : index
    %379 = vector.load %arg2[%c0_103, %c12, %c0_104] : memref<8x16x384xf32, #tpu.memory_space<vmem>>, vector<8x1x384xf32>
    %380 = vector.shape_cast %379 : vector<8x1x384xf32> to vector<8x384xf32>
    %381 = vector.extract_strided_slice %380 {offsets = [0, 0], sizes = [8, 128], strides = [1, 1]} : vector<8x384xf32> to vector<8x128xf32>
    %382 = vector.extract_strided_slice %378 {offsets = [0, 0], sizes = [8, 128], strides = [1, 1]} : vector<8x384xf32> to vector<8x128xf32>
    %383 = arith.addf %381, %382 : vector<8x128xf32>
    %384 = arith.negf %383 : vector<8x128xf32>
    %385 = math.exp %384 : vector<8x128xf32>
    %cst_105 = arith.constant 1.000000e+00 : f32
    %386 = vector.broadcast %cst_105 : f32 to vector<8x128xf32>
    %387 = arith.addf %386, %385 : vector<8x128xf32>
    %388 = arith.divf %386, %387 : vector<8x128xf32>
    %389 = vector.extract_strided_slice %380 {offsets = [0, 128], sizes = [8, 128], strides = [1, 1]} : vector<8x384xf32> to vector<8x128xf32>
    %390 = vector.extract_strided_slice %378 {offsets = [0, 128], sizes = [8, 128], strides = [1, 1]} : vector<8x384xf32> to vector<8x128xf32>
    %391 = arith.addf %389, %390 : vector<8x128xf32>
    %392 = arith.negf %391 : vector<8x128xf32>
    %393 = math.exp %392 : vector<8x128xf32>
    %cst_106 = arith.constant 1.000000e+00 : f32
    %394 = vector.broadcast %cst_106 : f32 to vector<8x128xf32>
    %395 = arith.addf %394, %393 : vector<8x128xf32>
    %396 = arith.divf %394, %395 : vector<8x128xf32>
    %397 = vector.extract_strided_slice %380 {offsets = [0, 256], sizes = [8, 128], strides = [1, 1]} : vector<8x384xf32> to vector<8x128xf32>
    %398 = vector.extract_strided_slice %378 {offsets = [0, 256], sizes = [8, 128], strides = [1, 1]} : vector<8x384xf32> to vector<8x128xf32>
    %399 = vector.broadcast %4 : vector<1x128xf32> to vector<8x128xf32>
    %400 = arith.addf %398, %399 : vector<8x128xf32>
    %401 = arith.mulf %388, %400 : vector<8x128xf32>
    %402 = arith.addf %397, %401 : vector<8x128xf32>
    %403 = math.tanh %402 : vector<8x128xf32>
    %404 = arith.subf %375, %403 : vector<8x128xf32>
    %405 = arith.mulf %396, %404 : vector<8x128xf32>
    %406 = arith.addf %403, %405 : vector<8x128xf32>
    %407 = vector.shape_cast %406 : vector<8x128xf32> to vector<8x1x128xf32>
    %c0_107 = arith.constant 0 : index
    %c12_108 = arith.constant 12 : index
    %c0_109 = arith.constant 0 : index
    %408 = vector.load %arg5[%c0_107, %c12_108, %c0_109] : memref<8x16x128xf32, #tpu.memory_space<vmem>>, vector<8x1x128xf32>
    tpu.vector_store %arg5[%c0_107, %c12_108, %c0_109], %407 {strides = array<i32>} : memref<8x16x128xf32, #tpu.memory_space<vmem>>, vector<8x1x128xf32>,
    %cst_110 = arith.constant dense<0.000000e+00> : vector<8x384xf32>
    %409 = tpu.matmul %406, %3, %cst_110 {dimension_numbers = #tpu.dot_dimension_numbers<[1], [0], [0], [1], [0, 0, 1, 1], [], []>} : vector<8x128xf32>, vector<128x384xf32>, vector<8x384xf32> -> vector<8x384xf32>
    %c0_111 = arith.constant 0 : index
    %c13 = arith.constant 13 : index
    %c0_112 = arith.constant 0 : index
    %410 = vector.load %arg2[%c0_111, %c13, %c0_112] : memref<8x16x384xf32, #tpu.memory_space<vmem>>, vector<8x1x384xf32>
    %411 = vector.shape_cast %410 : vector<8x1x384xf32> to vector<8x384xf32>
    %412 = vector.extract_strided_slice %411 {offsets = [0, 0], sizes = [8, 128], strides = [1, 1]} : vector<8x384xf32> to vector<8x128xf32>
    %413 = vector.extract_strided_slice %409 {offsets = [0, 0], sizes = [8, 128], strides = [1, 1]} : vector<8x384xf32> to vector<8x128xf32>
    %414 = arith.addf %412, %413 : vector<8x128xf32>
    %415 = arith.negf %414 : vector<8x128xf32>
    %416 = math.exp %415 : vector<8x128xf32>
    %cst_113 = arith.constant 1.000000e+00 : f32
    %417 = vector.broadcast %cst_113 : f32 to vector<8x128xf32>
    %418 = arith.addf %417, %416 : vector<8x128xf32>
    %419 = arith.divf %417, %418 : vector<8x128xf32>
    %420 = vector.extract_strided_slice %411 {offsets = [0, 128], sizes = [8, 128], strides = [1, 1]} : vector<8x384xf32> to vector<8x128xf32>
    %421 = vector.extract_strided_slice %409 {offsets = [0, 128], sizes = [8, 128], strides = [1, 1]} : vector<8x384xf32> to vector<8x128xf32>
    %422 = arith.addf %420, %421 : vector<8x128xf32>
    %423 = arith.negf %422 : vector<8x128xf32>
    %424 = math.exp %423 : vector<8x128xf32>
    %cst_114 = arith.constant 1.000000e+00 : f32
    %425 = vector.broadcast %cst_114 : f32 to vector<8x128xf32>
    %426 = arith.addf %425, %424 : vector<8x128xf32>
    %427 = arith.divf %425, %426 : vector<8x128xf32>
    %428 = vector.extract_strided_slice %411 {offsets = [0, 256], sizes = [8, 128], strides = [1, 1]} : vector<8x384xf32> to vector<8x128xf32>
    %429 = vector.extract_strided_slice %409 {offsets = [0, 256], sizes = [8, 128], strides = [1, 1]} : vector<8x384xf32> to vector<8x128xf32>
    %430 = vector.broadcast %4 : vector<1x128xf32> to vector<8x128xf32>
    %431 = arith.addf %429, %430 : vector<8x128xf32>
    %432 = arith.mulf %419, %431 : vector<8x128xf32>
    %433 = arith.addf %428, %432 : vector<8x128xf32>
    %434 = math.tanh %433 : vector<8x128xf32>
    %435 = arith.subf %406, %434 : vector<8x128xf32>
    %436 = arith.mulf %427, %435 : vector<8x128xf32>
    %437 = arith.addf %434, %436 : vector<8x128xf32>
    %438 = vector.shape_cast %437 : vector<8x128xf32> to vector<8x1x128xf32>
    %c0_115 = arith.constant 0 : index
    %c13_116 = arith.constant 13 : index
    %c0_117 = arith.constant 0 : index
    %439 = vector.load %arg5[%c0_115, %c13_116, %c0_117] : memref<8x16x128xf32, #tpu.memory_space<vmem>>, vector<8x1x128xf32>
    tpu.vector_store %arg5[%c0_115, %c13_116, %c0_117], %438 {strides = array<i32>} : memref<8x16x128xf32, #tpu.memory_space<vmem>>, vector<8x1x128xf32>,
    %cst_118 = arith.constant dense<0.000000e+00> : vector<8x384xf32>
    %440 = tpu.matmul %437, %3, %cst_118 {dimension_numbers = #tpu.dot_dimension_numbers<[1], [0], [0], [1], [0, 0, 1, 1], [], []>} : vector<8x128xf32>, vector<128x384xf32>, vector<8x384xf32> -> vector<8x384xf32>
    %c0_119 = arith.constant 0 : index
    %c14 = arith.constant 14 : index
    %c0_120 = arith.constant 0 : index
    %441 = vector.load %arg2[%c0_119, %c14, %c0_120] : memref<8x16x384xf32, #tpu.memory_space<vmem>>, vector<8x1x384xf32>
    %442 = vector.shape_cast %441 : vector<8x1x384xf32> to vector<8x384xf32>
    %443 = vector.extract_strided_slice %442 {offsets = [0, 0], sizes = [8, 128], strides = [1, 1]} : vector<8x384xf32> to vector<8x128xf32>
    %444 = vector.extract_strided_slice %440 {offsets = [0, 0], sizes = [8, 128], strides = [1, 1]} : vector<8x384xf32> to vector<8x128xf32>
    %445 = arith.addf %443, %444 : vector<8x128xf32>
    %446 = arith.negf %445 : vector<8x128xf32>
    %447 = math.exp %446 : vector<8x128xf32>
    %cst_121 = arith.constant 1.000000e+00 : f32
    %448 = vector.broadcast %cst_121 : f32 to vector<8x128xf32>
    %449 = arith.addf %448, %447 : vector<8x128xf32>
    %450 = arith.divf %448, %449 : vector<8x128xf32>
    %451 = vector.extract_strided_slice %442 {offsets = [0, 128], sizes = [8, 128], strides = [1, 1]} : vector<8x384xf32> to vector<8x128xf32>
    %452 = vector.extract_strided_slice %440 {offsets = [0, 128], sizes = [8, 128], strides = [1, 1]} : vector<8x384xf32> to vector<8x128xf32>
    %453 = arith.addf %451, %452 : vector<8x128xf32>
    %454 = arith.negf %453 : vector<8x128xf32>
    %455 = math.exp %454 : vector<8x128xf32>
    %cst_122 = arith.constant 1.000000e+00 : f32
    %456 = vector.broadcast %cst_122 : f32 to vector<8x128xf32>
    %457 = arith.addf %456, %455 : vector<8x128xf32>
    %458 = arith.divf %456, %457 : vector<8x128xf32>
    %459 = vector.extract_strided_slice %442 {offsets = [0, 256], sizes = [8, 128], strides = [1, 1]} : vector<8x384xf32> to vector<8x128xf32>
    %460 = vector.extract_strided_slice %440 {offsets = [0, 256], sizes = [8, 128], strides = [1, 1]} : vector<8x384xf32> to vector<8x128xf32>
    %461 = vector.broadcast %4 : vector<1x128xf32> to vector<8x128xf32>
    %462 = arith.addf %460, %461 : vector<8x128xf32>
    %463 = arith.mulf %450, %462 : vector<8x128xf32>
    %464 = arith.addf %459, %463 : vector<8x128xf32>
    %465 = math.tanh %464 : vector<8x128xf32>
    %466 = arith.subf %437, %465 : vector<8x128xf32>
    %467 = arith.mulf %458, %466 : vector<8x128xf32>
    %468 = arith.addf %465, %467 : vector<8x128xf32>
    %469 = vector.shape_cast %468 : vector<8x128xf32> to vector<8x1x128xf32>
    %c0_123 = arith.constant 0 : index
    %c14_124 = arith.constant 14 : index
    %c0_125 = arith.constant 0 : index
    %470 = vector.load %arg5[%c0_123, %c14_124, %c0_125] : memref<8x16x128xf32, #tpu.memory_space<vmem>>, vector<8x1x128xf32>
    tpu.vector_store %arg5[%c0_123, %c14_124, %c0_125], %469 {strides = array<i32>} : memref<8x16x128xf32, #tpu.memory_space<vmem>>, vector<8x1x128xf32>,
    %cst_126 = arith.constant dense<0.000000e+00> : vector<8x384xf32>
    %471 = tpu.matmul %468, %3, %cst_126 {dimension_numbers = #tpu.dot_dimension_numbers<[1], [0], [0], [1], [0, 0, 1, 1], [], []>} : vector<8x128xf32>, vector<128x384xf32>, vector<8x384xf32> -> vector<8x384xf32>
    %c0_127 = arith.constant 0 : index
    %c15 = arith.constant 15 : index
    %c0_128 = arith.constant 0 : index
    %472 = vector.load %arg2[%c0_127, %c15, %c0_128] : memref<8x16x384xf32, #tpu.memory_space<vmem>>, vector<8x1x384xf32>
    %473 = vector.shape_cast %472 : vector<8x1x384xf32> to vector<8x384xf32>
    %474 = vector.extract_strided_slice %473 {offsets = [0, 0], sizes = [8, 128], strides = [1, 1]} : vector<8x384xf32> to vector<8x128xf32>
    %475 = vector.extract_strided_slice %471 {offsets = [0, 0], sizes = [8, 128], strides = [1, 1]} : vector<8x384xf32> to vector<8x128xf32>
    %476 = arith.addf %474, %475 : vector<8x128xf32>
    %477 = arith.negf %476 : vector<8x128xf32>
    %478 = math.exp %477 : vector<8x128xf32>
    %cst_129 = arith.constant 1.000000e+00 : f32
    %479 = vector.broadcast %cst_129 : f32 to vector<8x128xf32>
    %480 = arith.addf %479, %478 : vector<8x128xf32>
    %481 = arith.divf %479, %480 : vector<8x128xf32>
    %482 = vector.extract_strided_slice %473 {offsets = [0, 128], sizes = [8, 128], strides = [1, 1]} : vector<8x384xf32> to vector<8x128xf32>
    %483 = vector.extract_strided_slice %471 {offsets = [0, 128], sizes = [8, 128], strides = [1, 1]} : vector<8x384xf32> to vector<8x128xf32>
    %484 = arith.addf %482, %483 : vector<8x128xf32>
    %485 = arith.negf %484 : vector<8x128xf32>
    %486 = math.exp %485 : vector<8x128xf32>
    %cst_130 = arith.constant 1.000000e+00 : f32
    %487 = vector.broadcast %cst_130 : f32 to vector<8x128xf32>
    %488 = arith.addf %487, %486 : vector<8x128xf32>
    %489 = arith.divf %487, %488 : vector<8x128xf32>
    %490 = vector.extract_strided_slice %473 {offsets = [0, 256], sizes = [8, 128], strides = [1, 1]} : vector<8x384xf32> to vector<8x128xf32>
    %491 = vector.extract_strided_slice %471 {offsets = [0, 256], sizes = [8, 128], strides = [1, 1]} : vector<8x384xf32> to vector<8x128xf32>
    %492 = vector.broadcast %4 : vector<1x128xf32> to vector<8x128xf32>
    %493 = arith.addf %491, %492 : vector<8x128xf32>
    %494 = arith.mulf %481, %493 : vector<8x128xf32>
    %495 = arith.addf %490, %494 : vector<8x128xf32>
    %496 = math.tanh %495 : vector<8x128xf32>
    %497 = arith.subf %468, %496 : vector<8x128xf32>
    %498 = arith.mulf %489, %497 : vector<8x128xf32>
    %499 = arith.addf %496, %498 : vector<8x128xf32>
    %500 = vector.shape_cast %499 : vector<8x128xf32> to vector<8x1x128xf32>
    %c0_131 = arith.constant 0 : index
    %c15_132 = arith.constant 15 : index
    %c0_133 = arith.constant 0 : index
    %501 = vector.load %arg5[%c0_131, %c15_132, %c0_133] : memref<8x16x128xf32, #tpu.memory_space<vmem>>, vector<8x1x128xf32>
    tpu.vector_store %arg5[%c0_131, %c15_132, %c0_133], %500 {strides = array<i32>} : memref<8x16x128xf32, #tpu.memory_space<vmem>>, vector<8x1x128xf32>,
    %c0_134 = arith.constant 0 : index
    %c0_135 = arith.constant 0 : index
    %502 = vector.load %arg6[%c0_134, %c0_135] : memref<8x128xf32, #tpu.memory_space<vmem>>, vector<8x128xf32>
    tpu.vector_store %arg6[%c0_134, %c0_135], %499 {strides = array<i32>} : memref<8x128xf32, #tpu.memory_space<vmem>>, vector<8x128xf32>,
    return
  }
  func.func @transform_0(%arg0: i32, %arg1: i32) -> (i32, i32, i32) {
    %c0_i32 = arith.constant 0 : i32
    %c0_i32_0 = arith.constant 0 : i32
    return %arg0, %arg1, %c0_i32 : i32, i32, i32
  }
  func.func @transform_1(%arg0: i32, %arg1: i32) -> (i32, i32) {
    %c0_i32 = arith.constant 0 : i32
    %c0_i32_0 = arith.constant 0 : i32
    %c0_i32_1 = arith.constant 0 : i32
    return %c0_i32, %c0_i32_0 : i32, i32
  }
  func.func @transform_2(%arg0: i32, %arg1: i32) -> (i32, i32) {
    %c0_i32 = arith.constant 0 : i32
    %c0_i32_0 = arith.constant 0 : i32
    %c0_i32_1 = arith.constant 0 : i32
    return %c0_i32, %c0_i32_0 : i32, i32
  }
  func.func @transform_3(%arg0: i32, %arg1: i32) -> (i32, i32, i32) {
    %c0_i32 = arith.constant 0 : i32
    %c0_i32_0 = arith.constant 0 : i32
    return %arg0, %arg1, %c0_i32 : i32, i32, i32
  }
}

</mosaic_0001>

<llo_original>
// kernel: gru_forward.1
$region0: #{gru_forward.1}
  #allocation0 [shape = 'u32[]', space=smem, size = 0x4, offset = 0x4, fixed_abs, tag = 'smem constant byte address 0x4 - core index']
  #allocation1 [shape = 'u32[144,128]{1,0:T(1,128)}', space=vmem, size = 0x12000, scoped, tag = 'internal scratch']
  #allocation2 [shape = 'f32[8,128]{1,0:T(8,128)}', space=vmem, size = 0x1000, scoped, tag = 'scratch operand']
  %s0 = inlined_call_operand.vmem [shape: f32[8,16,384], index: 0, kind: input, shape index: {}]
  %s1 = inlined_call_operand.vmem [shape: f32[128,384], index: 1, kind: input, shape index: {}]
  %s2 = inlined_call_operand.vmem [shape: f32[1,128], index: 2, kind: input, shape index: {}]
  %s3 = inlined_call_operand.vmem [shape: f32[8,16,128], index: 3, kind: output, shape index: {}]
  %s4 = sld [smem:[#allocation0]]
  $region26: #{gru_forward.1} parent=0
    _
  %s6 = ssub.s32 1, %s4
  %s7 = scalar_select 0, %s6, %s4
  // Predicated region
  $region2: #{gru_forward.1} parent=0 // pred_check
    _
  $region3: #{gru_forward.1} parent=0 // pred_check_branch
    %9 = sbr.rel (0) target = $region5
  $region4: #{gru_forward.1} parent=0 // pred_region
    _
  $region5: #{gru_forward.1} parent=0 // pred_fallthru
    _
  // Predicated region
  $region6: #{gru_forward.1} parent=0 // pred_check
    _
  $region7: #{gru_forward.1} parent=0 // pred_check_branch
    %11 = sbr.rel (0) target = $region9
  $region8: #{gru_forward.1} parent=0 // pred_region
    _
  $region9: #{gru_forward.1} parent=0 // pred_fallthru
    _
  // Predicated region
  $region10: #{gru_forward.1} parent=0 // pred_check
    _
  $region11: #{gru_forward.1} parent=0 // pred_check_branch
    %13 = sbr.rel (0) target = $region13
  $region12: #{gru_forward.1} parent=0 // pred_region
    _
  $region13: #{gru_forward.1} parent=0 // pred_fallthru
    _
  %p14 = scmp.eq.s32.totalorder 0, 0
  // Predicated region
  $region14: #{gru_forward.1} parent=0 // pred_check
    %p15 = pneg %p14
  $region15: #{gru_forward.1} parent=0 // pred_check_branch
    %17 = sbr.rel (%p15) target = $region17
  $region16: #{gru_forward.1} parent=0 // pred_region
    %18 = vst [vmem:[#allocation2] sm:$0xff] 0.0
  $region17: #{gru_forward.1} parent=0 // pred_fallthru
    _
  %v19 = vld [vmem:[%s1] sm:$0xff]
  %v20 = vld [vmem:[%s1 + $0x8] sm:$0xff]
  %v21 = vld [vmem:[%s1 + $0x10] sm:$0xff]
  %v22 = vld [vmem:[%s1 + $0x18] sm:$0xff]
  %v23 = vld [vmem:[%s1 + $0x20] sm:$0xff]
  %v24 = vld [vmem:[%s1 + $0x28] sm:$0xff]
  %v25 = vld [vmem:[%s1 + $0x30] sm:$0xff]
  %v26 = vld [vmem:[%s1 + $0x38] sm:$0xff]
  %v27 = vld [vmem:[%s1 + $0x40] sm:$0xff]
  %v28 = vld [vmem:[%s1 + $0x48] sm:$0xff]
  %v29 = vld [vmem:[%s1 + $0x50] sm:$0xff]
  %v30 = vld [vmem:[%s1 + $0x58] sm:$0xff]
  %v31 = vld [vmem:[%s1 + $0x60] sm:$0xff]
  %v32 = vld [vmem:[%s1 + $0x68] sm:$0xff]
  %v33 = vld [vmem:[%s1 + $0x70] sm:$0xff]
  %v34 = vld [vmem:[%s1 + $0x78] sm:$0xff]
  %v35 = vld [vmem:[%s1 + $0x80] sm:$0xff]
  %v36 = vld [vmem:[%s1 + $0x88] sm:$0xff]
  %v37 = vld [vmem:[%s1 + $0x90] sm:$0xff]
  %v38 = vld [vmem:[%s1 + $0x98] sm:$0xff]
  %v39 = vld [vmem:[%s1 + $0xa0] sm:$0xff]
  %v40 = vld [vmem:[%s1 + $0xa8] sm:$0xff]
  %v41 = vld [vmem:[%s1 + $0xb0] sm:$0xff]
  %v42 = vld [vmem:[%s1 + $0xb8] sm:$0xff]
  %v43 = vld [vmem:[%s1 + $0xc0] sm:$0xff]
  %v44 = vld [vmem:[%s1 + $0xc8] sm:$0xff]
  %v45 = vld [vmem:[%s1 + $0xd0] sm:$0xff]
  %v46 = vld [vmem:[%s1 + $0xd8] sm:$0xff]
  %v47 = vld [vmem:[%s1 + $0xe0] sm:$0xff]
  %v48 = vld [vmem:[%s1 + $0xe8] sm:$0xff]
  %v49 = vld [vmem:[%s1 + $0xf0] sm:$0xff]
  %v50 = vld [vmem:[%s1 + $0xf8] sm:$0xff]
  %v51 = vld [vmem:[%s1 + $0x100] sm:$0xff]
  %v52 = vld [vmem:[%s1 + $0x108] sm:$0xff]
  %v53 = vld [vmem:[%s1 + $0x110] sm:$0xff]
  %v54 = vld [vmem:[%s1 + $0x118] sm:$0xff]
  %v55 = vld [vmem:[%s1 + $0x120] sm:$0xff]
  %v56 = vld [vmem:[%s1 + $0x128] sm:$0xff]
  %v57 = vld [vmem:[%s1 + $0x130] sm:$0xff]
  %v58 = vld [vmem:[%s1 + $0x138] sm:$0xff]
  %v59 = vld [vmem:[%s1 + $0x140] sm:$0xff]
  %v60 = vld [vmem:[%s1 + $0x148] sm:$0xff]
  %v61 = vld [vmem:[%s1 + $0x150] sm:$0xff]
  %v62 = vld [vmem:[%s1 + $0x158] sm:$0xff]
  %v63 = vld [vmem:[%s1 + $0x160] sm:$0xff]
  %v64 = vld [vmem:[%s1 + $0x168] sm:$0xff]
  %v65 = vld [vmem:[%s1 + $0x170] sm:$0xff]
  %v66 = vld [vmem:[%s1 + $0x178] sm:$0xff]
  %v67 = vld [vmem:[%s2] sm:$0x1]
  %v68 = vld [vmem:[#allocation2] sm:$0xff]
  %69 = vmatprep.subr.mxu0 %v20
  %70 = vmatpush1.msra.mxu0 %v19
  %71 = vmatprep.subr.mxu0 %v23
  %72 = vmatpush1.msra.mxu0 %v22
  %73 = vmatprep.subr.mxu0 %v26
  %74 = vmatpush1.msra.mxu0 %v25
  %75 = vmatprep.subr.mxu0 %v29
  %76 = vmatpush1.msra.mxu0 %v28
  %77 = vmatprep.subr.mxu0 %v32
  %78 = vmatpush1.msra.mxu0 %v31
  %79 = vmatprep.subr.mxu0 %v35
  %80 = vmatpush1.msra.mxu0 %v34
  %81 = vmatprep.subr.mxu0 %v38
  %82 = vmatpush1.msra.mxu0 %v37
  %83 = vmatprep.subr.mxu0 %v41
  %84 = vmatpush1.msra.mxu0 %v40
  %85 = vmatprep.subr.mxu0 %v44
  %86 = vmatpush1.msra.mxu0 %v43
  %87 = vmatprep.subr.mxu0 %v47
  %88 = vmatpush1.msra.mxu0 %v46
  %89 = vmatprep.subr.mxu0 %v50
  %90 = vmatpush1.msra.mxu0 %v49
  %91 = vmatprep.subr.mxu0 %v53
  %92 = vmatpush1.msra.mxu0 %v52
  %93 = vmatprep.subr.mxu0 %v56
  %94 = vmatpush1.msra.mxu0 %v55
  %95 = vmatprep.subr.mxu0 %v59
  %96 = vmatpush1.msra.mxu0 %v58
  %97 = vmatprep.subr.mxu0 %v62
  %98 = vmatpush1.msra.mxu0 %v61
  %99 = vmatprep.subr.mxu0 %v65
  %100 = vmatpush1.msra.mxu0 %v64
  %101 = vmatprep.subr.mxu0 0.0
  %102 = vmatpush1.msra.mxu0 0.0
  %103 = vmatprep.subr.mxu0 0.0
  %104 = vmatpush1.msra.mxu0 0.0
  %105 = vmatprep.subr.mxu0 0.0
  %106 = vmatpush1.msra.mxu0 0.0
  %107 = vmatprep.subr.mxu0 0.0
  %108 = vmatpush1.msra.mxu0 0.0
  %109 = vmatprep.subr.mxu0 0.0
  %110 = vmatpush1.msra.mxu0 0.0
  %111 = vmatprep.subr.mxu0 0.0
  %112 = vmatpush1.msra.mxu0 0.0
  %113 = vmatprep.subr.mxu0 0.0
  %114 = vmatpush1.msra.mxu0 0.0
  %115 = vmatprep.subr.mxu0 0.0
  %116 = vmatpush1.msra.mxu0 0.0
  %117 = vmatprep.subr.mxu0 0.0
  %118 = vmatpush1.msra.mxu0 0.0
  %119 = vmatprep.subr.mxu0 0.0
  %120 = vmatpush1.msra.mxu0 0.0
  %121 = vmatprep.subr.mxu0 0.0
  %122 = vmatpush1.msra.mxu0 0.0
  %123 = vmatprep.subr.mxu0 0.0
  %124 = vmatpush1.msra.mxu0 0.0
  %125 = vmatprep.subr.mxu0 0.0
  %126 = vmatpush1.msra.mxu0 0.0
  %127 = vmatprep.subr.mxu0 0.0
  %128 = vmatpush1.msra.mxu0 0.0
  %129 = vmatprep.subr.mxu0 0.0
  %130 = vmatpush1.msra.mxu0 0.0
  %131 = vmatprep.subr.mxu0 0.0
  %132 = vmatpush1.msra.mxu0 0.0
  %133 = vmatprep.mubr.f32.mxu0 0.0
  %134 = vmatmul.mubr.f32.gmra.mrb[0].mxu0 %v68
  %v135 = vpop.f32.mrb[0].mxu0
  %v136 = vadd.f32 0.0, %v135
  %v137 = vpop.f32.mrb[0].mxu0
  %v138 = vadd.f32 0.0, %v137
  %139 = vdwg.mxu0
  %140 = vmatprep.subr.mxu0 0.0
  %141 = vmatpush1.msra.mxu0 %v21
  %142 = vmatprep.subr.mxu0 0.0
  %143 = vmatpush1.msra.mxu0 %v24
  %144 = vmatprep.subr.mxu0 0.0
  %145 = vmatpush1.msra.mxu0 %v27
  %146 = vmatprep.subr.mxu0 0.0
  %147 = vmatpush1.msra.mxu0 %v30
  %148 = vmatprep.subr.mxu0 0.0
  %149 = vmatpush1.msra.mxu0 %v33
  %150 = vmatprep.subr.mxu0 0.0
  %151 = vmatpush1.msra.mxu0 %v36
  %152 = vmatprep.subr.mxu0 0.0
  %153 = vmatpush1.msra.mxu0 %v39
  %154 = vmatprep.subr.mxu0 0.0
  %155 = vmatpush1.msra.mxu0 %v42
  %156 = vmatprep.subr.mxu0 0.0
  %157 = vmatpush1.msra.mxu0 %v45
  %158 = vmatprep.subr.mxu0 0.0
  %159 = vmatpush1.msra.mxu0 %v48
  %160 = vmatprep.subr.mxu0 0.0
  %161 = vmatpush1.msra.mxu0 %v51
  %162 = vmatprep.subr.mxu0 0.0
  %163 = vmatpush1.msra.mxu0 %v54
  %164 = vmatprep.subr.mxu0 0.0
  %165 = vmatpush1.msra.mxu0 %v57
  %166 = vmatprep.subr.mxu0 0.0
  %167 = vmatpush1.msra.mxu0 %v60
  %168 = vmatprep.subr.mxu0 0.0
  %169 = vmatpush1.msra.mxu0 %v63
  %170 = vmatprep.subr.mxu0 0.0
  %171 = vmatpush1.msra.mxu0 %v66
  %172 = vmatprep.subr.mxu0 0.0
  %173 = vmatpush1.msra.mxu0 0.0
  %174 = vmatprep.subr.mxu0 0.0
  %175 = vmatpush1.msra.mxu0 0.0
  %176 = vmatprep.subr.mxu0 0.0
  %177 = vmatpush1.msra.mxu0 0.0
  %178 = vmatprep.subr.mxu0 0.0
  %179 = vmatpush1.msra.mxu0 0.0
  %180 = vmatprep.subr.mxu0 0.0
  %181 = vmatpush1.msra.mxu0 0.0
  %182 = vmatprep.subr.mxu0 0.0
  %183 = vmatpush1.msra.mxu0 0.0
  %184 = vmatprep.subr.mxu0 0.0
  %185 = vmatpush1.msra.mxu0 0.0
  %186 = vmatprep.subr.mxu0 0.0
  %187 = vmatpush1.msra.mxu0 0.0
  %188 = vmatprep.subr.mxu0 0.0
  %189 = vmatpush1.msra.mxu0 0.0
  %190 = vmatprep.subr.mxu0 0.0
  %191 = vmatpush1.msra.mxu0 0.0
  %192 = vmatprep.subr.mxu0 0.0
  %193 = vmatpush1.msra.mxu0 0.0
  %194 = vmatprep.subr.mxu0 0.0
  %195 = vmatpush1.msra.mxu0 0.0
  %196 = vmatprep.subr.mxu0 0.0
  %197 = vmatpush1.msra.mxu0 0.0
  %198 = vmatprep.subr.mxu0 0.0
  %199 = vmatpush1.msra.mxu0 0.0
  %200 = vmatprep.subr.mxu0 0.0
  %201 = vmatpush1.msra.mxu0 0.0
  %202 = vmatprep.subr.mxu0 0.0
  %203 = vmatpush1.msra.mxu0 0.0
  %204 = vmatprep.mubr.f32.mxu0 0.0
  %205 = vmatmul.mubr.f32.gmra.mrb[0].mxu0 %v68
  %v206 = vpop.f32.mrb[0].mxu0
  %v207 = vadd.f32 0.0, %v206
  %v208 = vpop.f32.mrb[0].mxu0
  %209 = vdwg.mxu0
  %v210 = vld [vmem:[%s0] ss:$8 sm:$0x7]
  %s211 = scalar_lea.vmem %s0, 48
  %v212 = vld [vmem:[%s211] ss:$8 sm:$0x7]
  %s213 = scalar_lea.vmem %s0, 96
  %v214 = vld [vmem:[%s213] ss:$8 sm:$0x7]
  %s215 = scalar_lea.vmem %s0, 144
  %v216 = vld [vmem:[%s215] ss:$8 sm:$0x7]
  %s217 = scalar_lea.vmem %s0, 192
  %v218 = vld [vmem:[%s217] ss:$8 sm:$0x7]
  %s219 = scalar_lea.vmem %s0, 240
  %v220 = vld [vmem:[%s219] ss:$8 sm:$0x7]
  %s221 = scalar_lea.vmem %s0, 288
  %v222 = vld [vmem:[%s221] ss:$8 sm:$0x7]
  %s223 = scalar_lea.vmem %s0, 336
  %v224 = vld [vmem:[%s223] ss:$8 sm:$0x7]
  %v226 = vcombine.high %v136, %v136
  %v228 = vunpack.c.l.s4 1966171168
  %v229 = vunpack.c.0.s8 %v228
  %v230 = vlaneseq
  %v231 = vshrl.u32 %v230, 7
  %v232 = vsub.s32 %v229, %v231
  %v233 = vrot.slane %v136, %v232
  %v235 = vunpack.c.l.s4 1966171168
  %v236 = vunpack.c.0.s8 %v235
  %v237 = vlaneseq
  %v238 = vshrl.u32 %v237, 7
  %v239 = vsub.s32 %v236, %v238
  %v240 = vrot.slane %v226, %v239
  %v241 = vcombine.high %v233, %v233
  %v242 = vcombine.high %v240, %v240
  %v244 = vunpack.c.l.s4 1966171168
  %v245 = vunpack.c.0.s8 %v244
  %v246 = vlaneseq
  %v247 = vshrl.u32 %v246, 7
  %v248 = vsub.s32 %v245, %v247
  %v249 = vrot.slane %v233, %v248
  %v251 = vunpack.c.l.s4 1966171168
  %v252 = vunpack.c.0.s8 %v251
  %v253 = vlaneseq
  %v254 = vshrl.u32 %v253, 7
  %v255 = vsub.s32 %v252, %v254
  %v256 = vrot.slane %v240, %v255
  %v258 = vunpack.c.l.s4 1966171168
  %v259 = vunpack.c.0.s8 %v258
  %v260 = vlaneseq
  %v261 = vshrl.u32 %v260, 7
  %v262 = vsub.s32 %v259, %v261
  %v263 = vrot.slane %v241, %v262
  %v265 = vunpack.c.l.s4 1966171168
  %v266 = vunpack.c.0.s8 %v265
  %v267 = vlaneseq
  %v268 = vshrl.u32 %v267, 7
  %v269 = vsub.s32 %v266, %v268
  %v270 = vrot.slane %v242, %v269
  %v271 = vcombine.high %v249, %v249
  %v272 = vcombine.high %v256, %v256
  %v273 = vcombine.high %v263, %v263
  %v274 = vcombine.high %v270, %v270
  %v283 = vadd.f32 %v210, %v249
  %v284 = vadd.f32 %v212, %v263
  %v285 = vadd.f32 %v214, %v271
  %v286 = vadd.f32 %v216, %v273
  %v287 = vadd.f32 %v218, %v256
  %v288 = vadd.f32 %v220, %v270
  %v289 = vadd.f32 %v222, %v272
  %v290 = vadd.f32 %v224, %v274
  %v291 = vxor.u32 %v283, 2147483648
  %v292 = vxor.u32 %v284, 2147483648
  %v293 = vxor.u32 %v285, 2147483648
  %v294 = vxor.u32 %v286, 2147483648
  %v295 = vxor.u32 %v287, 2147483648
  %v296 = vxor.u32 %v288, 2147483648
  %v297 = vxor.u32 %v289, 2147483648
  %v298 = vxor.u32 %v290, 2147483648
  %v299 = vmul.f32 %v291, 1.442695
  %v300 = vpow.pop %v299
  %v301 = vmul.f32 %v292, 1.442695
  %v302 = vpow.pop %v301
  %v303 = vmul.f32 %v293, 1.442695
  %v304 = vpow.pop %v303
  %v305 = vmul.f32 %v294, 1.442695
  %v306 = vpow.pop %v305
  %v307 = vmul.f32 %v295, 1.442695
  %v308 = vpow.pop %v307
  %v309 = vmul.f32 %v296, 1.442695
  %v310 = vpow.pop %v309
  %v311 = vmul.f32 %v297, 1.442695
  %v312 = vpow.pop %v311
  %v313 = vmul.f32 %v298, 1.442695
  %v314 = vpow.pop %v313
  %v315 = vadd.f32 %v300, 1.0
  %v316 = vadd.f32 %v302, 1.0
  %v317 = vadd.f32 %v304, 1.0
  %v318 = vadd.f32 %v306, 1.0
  %v319 = vadd.f32 %v308, 1.0
  %v320 = vadd.f32 %v310, 1.0
  %v321 = vadd.f32 %v312, 1.0
  %v322 = vadd.f32 %v314, 1.0
  %v323 = vrcp.pop %v315
  %v324 = vmul.f32 1.0, %v323
  %v325 = vrcp.pop %v316
  %v326 = vmul.f32 1.0, %v325
  %v327 = vrcp.pop %v317
  %v328 = vmul.f32 1.0, %v327
  %v329 = vrcp.pop %v318
  %v330 = vmul.f32 1.0, %v329
  %v331 = vrcp.pop %v319
  %v332 = vmul.f32 1.0, %v331
  %v333 = vrcp.pop %v320
  %v334 = vmul.f32 1.0, %v333
  %v335 = vrcp.pop %v321
  %v336 = vmul.f32 1.0, %v335
  %v337 = vrcp.pop %v322
  %v338 = vmul.f32 1.0, %v337
  %v347 = vrot.slane %v210, 1
  %v348 = vrot.slane %v212, 1
  %v349 = vrot.slane %v214, 1
  %v350 = vrot.slane %v216, 1
  %v351 = vrot.slane %v218, 1
  %v352 = vrot.slane %v220, 1
  %v353 = vrot.slane %v222, 1
  %v354 = vrot.slane %v224, 1
  %v364 = vcombine.high %v138, %v138
  %v366 = vunpack.c.l.s4 1966171168
  %v367 = vunpack.c.0.s8 %v366
  %v368 = vlaneseq
  %v369 = vshrl.u32 %v368, 7
  %v370 = vsub.s32 %v367, %v369
  %v371 = vrot.slane %v138, %v370
  %v373 = vunpack.c.l.s4 1966171168
  %v374 = vunpack.c.0.s8 %v373
  %v375 = vlaneseq
  %v376 = vshrl.u32 %v375, 7
  %v377 = vsub.s32 %v374, %v376
  %v378 = vrot.slane %v364, %v377
  %v379 = vcombine.high %v371, %v371
  %v380 = vcombine.high %v378, %v378
  %v382 = vunpack.c.l.s4 1966171168
  %v383 = vunpack.c.0.s8 %v382
  %v384 = vlaneseq
  %v385 = vshrl.u32 %v384, 7
  %v386 = vsub.s32 %v383, %v385
  %v387 = vrot.slane %v371, %v386
  %v389 = vunpack.c.l.s4 1966171168
  %v390 = vunpack.c.0.s8 %v389
  %v391 = vlaneseq
  %v392 = vshrl.u32 %v391, 7
  %v393 = vsub.s32 %v390, %v392
  %v394 = vrot.slane %v378, %v393
  %v396 = vunpack.c.l.s4 1966171168
  %v397 = vunpack.c.0.s8 %v396
  %v398 = vlaneseq
  %v399 = vshrl.u32 %v398, 7
  %v400 = vsub.s32 %v397, %v399
  %v401 = vrot.slane %v379, %v400
  %v403 = vunpack.c.l.s4 1966171168
  %v404 = vunpack.c.0.s8 %v403
  %v405 = vlaneseq
  %v406 = vshrl.u32 %v405, 7
  %v407 = vsub.s32 %v404, %v406
  %v408 = vrot.slane %v380, %v407
  %v409 = vcombine.high %v387, %v387
  %v410 = vcombine.high %v394, %v394
  %v411 = vcombine.high %v401, %v401
  %v412 = vcombine.high %v408, %v408
  %v421 = vadd.f32 %v347, %v387
  %v422 = vadd.f32 %v348, %v401
  %v423 = vadd.f32 %v349, %v409
  %v424 = vadd.f32 %v350, %v411
  %v425 = vadd.f32 %v351, %v394
  %v426 = vadd.f32 %v352, %v408
  %v427 = vadd.f32 %v353, %v410
  %v428 = vadd.f32 %v354, %v412
  %v429 = vxor.u32 %v421, 2147483648
  %v430 = vxor.u32 %v422, 2147483648
  %v431 = vxor.u32 %v423, 2147483648
  %v432 = vxor.u32 %v424, 2147483648
  %v433 = vxor.u32 %v425, 2147483648
  %v434 = vxor.u32 %v426, 2147483648
  %v435 = vxor.u32 %v427, 2147483648
  %v436 = vxor.u32 %v428, 2147483648
  %v437 = vmul.f32 %v429, 1.442695
  %v438 = vpow.pop %v437
  %v439 = vmul.f32 %v430, 1.442695
  %v440 = vpow.pop %v439
  %v441 = vmul.f32 %v431, 1.442695
  %v442 = vpow.pop %v441
  %v443 = vmul.f32 %v432, 1.442695
  %v444 = vpow.pop %v443
  %v445 = vmul.f32 %v433, 1.442695
  %v446 = vpow.pop %v445
  %v447 = vmul.f32 %v434, 1.442695
  %v448 = vpow.pop %v447
  %v449 = vmul.f32 %v435, 1.442695
  %v450 = vpow.pop %v449
  %v451 = vmul.f32 %v436, 1.442695
  %v452 = vpow.pop %v451
  %v453 = vadd.f32 %v438, 1.0
  %v454 = vadd.f32 %v440, 1.0
  %v455 = vadd.f32 %v442, 1.0
  %v456 = vadd.f32 %v444, 1.0
  %v457 = vadd.f32 %v446, 1.0
  %v458 = vadd.f32 %v448, 1.0
  %v459 = vadd.f32 %v450, 1.0
  %v460 = vadd.f32 %v452, 1.0
  %v461 = vrcp.pop %v453
  %v462 = vmul.f32 1.0, %v461
  %v463 = vrcp.pop %v454
  %v464 = vmul.f32 1.0, %v463
  %v465 = vrcp.pop %v455
  %v466 = vmul.f32 1.0, %v465
  %v467 = vrcp.pop %v456
  %v468 = vmul.f32 1.0, %v467
  %v469 = vrcp.pop %v457
  %v470 = vmul.f32 1.0, %v469
  %v471 = vrcp.pop %v458
  %v472 = vmul.f32 1.0, %v471
  %v473 = vrcp.pop %v459
  %v474 = vmul.f32 1.0, %v473
  %v475 = vrcp.pop %v460
  %v476 = vmul.f32 1.0, %v475
  %v478 = vlaneseq
  %v479 = vshrl.u32 %v478, 7
  %v480 = vsub.s32 0, %v479
  %v481 = vrot.slane %v67, %v480
  %v483 = vadd.f32 %v207, %v481
  %v485 = vcombine.high %v483, %v483
  %v487 = vunpack.c.l.s4 1966171168
  %v488 = vunpack.c.0.s8 %v487
  %v489 = vlaneseq
  %v490 = vshrl.u32 %v489, 7
  %v491 = vsub.s32 %v488, %v490
  %v492 = vrot.slane %v483, %v491
  %v494 = vunpack.c.l.s4 1966171168
  %v495 = vunpack.c.0.s8 %v494
  %v496 = vlaneseq
  %v497 = vshrl.u32 %v496, 7
  %v498 = vsub.s32 %v495, %v497
  %v499 = vrot.slane %v485, %v498
  %v500 = vcombine.high %v492, %v492
  %v501 = vcombine.high %v499, %v499
  %v503 = vunpack.c.l.s4 1966171168
  %v504 = vunpack.c.0.s8 %v503
  %v505 = vlaneseq
  %v506 = vshrl.u32 %v505, 7
  %v507 = vsub.s32 %v504, %v506
  %v508 = vrot.slane %v492, %v507
  %v510 = vunpack.c.l.s4 1966171168
  %v511 = vunpack.c.0.s8 %v510
  %v512 = vlaneseq
  %v513 = vshrl.u32 %v512, 7
  %v514 = vsub.s32 %v511, %v513
  %v515 = vrot.slane %v499, %v514
  %v517 = vunpack.c.l.s4 1966171168
  %v518 = vunpack.c.0.s8 %v517
  %v519 = vlaneseq
  %v520 = vshrl.u32 %v519, 7
  %v521 = vsub.s32 %v518, %v520
  %v522 = vrot.slane %v500, %v521
  %v524 = vunpack.c.l.s4 1966171168
  %v525 = vunpack.c.0.s8 %v524
  %v526 = vlaneseq
  %v527 = vshrl.u32 %v526, 7
  %v528 = vsub.s32 %v525, %v527
  %v529 = vrot.slane %v501, %v528
  %v530 = vcombine.high %v508, %v508
  %v531 = vcombine.high %v515, %v515
  %v532 = vcombine.high %v522, %v522
  %v533 = vcombine.high %v529, %v529
  %v542 = vmul.f32 %v324, %v508
  %v543 = vmul.f32 %v326, %v522
  %v544 = vmul.f32 %v328, %v530
  %v545 = vmul.f32 %v330, %v532
  %v546 = vmul.f32 %v332, %v515
  %v547 = vmul.f32 %v334, %v529
  %v548 = vmul.f32 %v336, %v531
  %v549 = vmul.f32 %v338, %v533
  %v550 = vrot.slane %v210, 2
  %v551 = vrot.slane %v212, 2
  %v552 = vrot.slane %v214, 2
  %v553 = vrot.slane %v216, 2
  %v554 = vrot.slane %v218, 2
  %v555 = vrot.slane %v220, 2
  %v556 = vrot.slane %v222, 2
  %v557 = vrot.slane %v224, 2
  %v566 = vadd.f32 %v550, %v542
  %v567 = vadd.f32 %v551, %v543
  %v568 = vadd.f32 %v552, %v544
  %v569 = vadd.f32 %v553, %v545
  %v570 = vadd.f32 %v554, %v546
  %v571 = vadd.f32 %v555, %v547
  %v572 = vadd.f32 %v556, %v548
  %v573 = vadd.f32 %v557, %v549
  %v574 = vtanh.pop %v566
  %v575 = vtanh.pop %v567
  %v576 = vtanh.pop %v568
  %v577 = vtanh.pop %v569
  %v578 = vtanh.pop %v570
  %v579 = vtanh.pop %v571
  %v580 = vtanh.pop %v572
  %v581 = vtanh.pop %v573
  %v590 = vcombine.low %v574, %v575
  %v591 = vcombine.low %v576, %v577
  %v592 = vcombine.low %v578, %v579
  %v593 = vcombine.low %v580, %v581
  %v595 = vunpack.c.l.s4 1966171168
  %v596 = vunpack.c.0.s8 %v595
  %v597 = vlaneseq
  %v598 = vshrl.u32 %v597, 7
  %v599 = vsub.s32 %v596, %v598
  %v600 = vrot.slane %v590, %v599
  %v602 = vunpack.c.l.s4 1966171168
  %v603 = vunpack.c.0.s8 %v602
  %v604 = vlaneseq
  %v605 = vshrl.u32 %v604, 7
  %v606 = vsub.s32 %v603, %v605
  %v607 = vrot.slane %v591, %v606
  %v609 = vunpack.c.l.s4 1966171168
  %v610 = vunpack.c.0.s8 %v609
  %v611 = vlaneseq
  %v612 = vshrl.u32 %v611, 7
  %v613 = vsub.s32 %v610, %v612
  %v614 = vrot.slane %v592, %v613
  %v616 = vunpack.c.l.s4 1966171168
  %v617 = vunpack.c.0.s8 %v616
  %v618 = vlaneseq
  %v619 = vshrl.u32 %v618, 7
  %v620 = vsub.s32 %v617, %v619
  %v621 = vrot.slane %v593, %v620
  %v622 = vcombine.low %v600, %v607
  %v623 = vcombine.low %v614, %v621
  %v625 = vunpack.c.l.s4 1966171168
  %v626 = vunpack.c.0.s8 %v625
  %v627 = vlaneseq
  %v628 = vshrl.u32 %v627, 7
  %v629 = vsub.s32 %v626, %v628
  %v630 = vrot.slane %v622, %v629
  %v632 = vunpack.c.l.s4 1966171168
  %v633 = vunpack.c.0.s8 %v632
  %v634 = vlaneseq
  %v635 = vshrl.u32 %v634, 7
  %v636 = vsub.s32 %v633, %v635
  %v637 = vrot.slane %v623, %v636
  %v638 = vcombine.low %v630, %v637
  %v640 = vsub.f32 %v68, %v638
  %v642 = vcombine.high %v640, %v640
  %v644 = vunpack.c.l.s4 1966171168
  %v645 = vunpack.c.0.s8 %v644
  %v646 = vlaneseq
  %v647 = vshrl.u32 %v646, 7
  %v648 = vsub.s32 %v645, %v647
  %v649 = vrot.slane %v640, %v648
  %v651 = vunpack.c.l.s4 1966171168
  %v652 = vunpack.c.0.s8 %v651
  %v653 = vlaneseq
  %v654 = vshrl.u32 %v653, 7
  %v655 = vsub.s32 %v652, %v654
  %v656 = vrot.slane %v642, %v655
  %v657 = vcombine.high %v649, %v649
  %v658 = vcombine.high %v656, %v656
  %v660 = vunpack.c.l.s4 1966171168
  %v661 = vunpack.c.0.s8 %v660
  %v662 = vlaneseq
  %v663 = vshrl.u32 %v662, 7
  %v664 = vsub.s32 %v661, %v663
  %v665 = vrot.slane %v649, %v664
  %v667 = vunpack.c.l.s4 1966171168
  %v668 = vunpack.c.0.s8 %v667
  %v669 = vlaneseq
  %v670 = vshrl.u32 %v669, 7
  %v671 = vsub.s32 %v668, %v670
  %v672 = vrot.slane %v656, %v671
  %v674 = vunpack.c.l.s4 1966171168
  %v675 = vunpack.c.0.s8 %v674
  %v676 = vlaneseq
  %v677 = vshrl.u32 %v676, 7
  %v678 = vsub.s32 %v675, %v677
  %v679 = vrot.slane %v657, %v678
  %v681 = vunpack.c.l.s4 1966171168
  %v682 = vunpack.c.0.s8 %v681
  %v683 = vlaneseq
  %v684 = vshrl.u32 %v683, 7
  %v685 = vsub.s32 %v682, %v684
  %v686 = vrot.slane %v658, %v685
  %v687 = vcombine.high %v665, %v665
  %v688 = vcombine.high %v672, %v672
  %v689 = vcombine.high %v679, %v679
  %v690 = vcombine.high %v686, %v686
  %v699 = vmul.f32 %v462, %v665
  %v700 = vmul.f32 %v464, %v679
  %v701 = vmul.f32 %v466, %v687
  %v702 = vmul.f32 %v468, %v689
  %v703 = vmul.f32 %v470, %v672
  %v704 = vmul.f32 %v472, %v686
  %v705 = vmul.f32 %v474, %v688
  %v706 = vmul.f32 %v476, %v690
  %v707 = vadd.f32 %v574, %v699
  %v708 = vadd.f32 %v575, %v700
  %v709 = vadd.f32 %v576, %v701
  %v710 = vadd.f32 %v577, %v702
  %v711 = vadd.f32 %v578, %v703
  %v712 = vadd.f32 %v579, %v704
  %v713 = vadd.f32 %v580, %v705
  %v714 = vadd.f32 %v581, %v706
  %715 = vst [vmem:[%s3] sm:$0x1] %v707
  %716 = vst [vmem:[%s3 + $0x10] sm:$0x1] %v708
  %717 = vst [vmem:[%s3 + $0x20] sm:$0x1] %v709
  %718 = vst [vmem:[%s3 + $0x30] sm:$0x1] %v710
  %719 = vst [vmem:[%s3 + $0x40] sm:$0x1] %v711
  %720 = vst [vmem:[%s3 + $0x50] sm:$0x1] %v712
  %721 = vst [vmem:[%s3 + $0x60] sm:$0x1] %v713
  %722 = vst [vmem:[%s3 + $0x70] sm:$0x1] %v714
  %v731 = vcombine.low %v707, %v708
  %v732 = vcombine.low %v709, %v710
  %v733 = vcombine.low %v711, %v712
  %v734 = vcombine.low %v713, %v714
  %v736 = vunpack.c.l.s4 1966171168
  %v737 = vunpack.c.0.s8 %v736
  %v738 = vlaneseq
  %v739 = vshrl.u32 %v738, 7
  %v740 = vsub.s32 %v737, %v739
  %v741 = vrot.slane %v731, %v740
  %v743 = vunpack.c.l.s4 1966171168
  %v744 = vunpack.c.0.s8 %v743
  %v745 = vlaneseq
  %v746 = vshrl.u32 %v745, 7
  %v747 = vsub.s32 %v744, %v746
  %v748 = vrot.slane %v732, %v747
  %v750 = vunpack.c.l.s4 1966171168
  %v751 = vunpack.c.0.s8 %v750
  %v752 = vlaneseq
  %v753 = vshrl.u32 %v752, 7
  %v754 = vsub.s32 %v751, %v753
  %v755 = vrot.slane %v733, %v754
  %v757 = vunpack.c.l.s4 1966171168
  %v758 = vunpack.c.0.s8 %v757
  %v759 = vlaneseq
  %v760 = vshrl.u32 %v759, 7
  %v761 = vsub.s32 %v758, %v760
  %v762 = vrot.slane %v734, %v761
  %v763 = vcombine.low %v741, %v748
  %v764 = vcombine.low %v755, %v762
  %v766 = vunpack.c.l.s4 1966171168
  %v767 = vunpack.c.0.s8 %v766
  %v768 = vlaneseq
  %v769 = vshrl.u32 %v768, 7
  %v770 = vsub.s32 %v767, %v769
  %v771 = vrot.slane %v763, %v770
  %v773 = vunpack.c.l.s4 1966171168
  %v774 = vunpack.c.0.s8 %v773
  %v775 = vlaneseq
  %v776 = vshrl.u32 %v775, 7
  %v777 = vsub.s32 %v774, %v776
  %v778 = vrot.slane %v764, %v777
  %v779 = vcombine.low %v771, %v778
  %781 = vmatprep.subr.mxu0 %v20
  %782 = vmatpush1.msra.mxu0 %v19
  %783 = vmatprep.subr.mxu0 %v23
  %784 = vmatpush1.msra.mxu0 %v22
  %785 = vmatprep.subr.mxu0 %v26
  %786 = vmatpush1.msra.mxu0 %v25
  %787 = vmatprep.subr.mxu0 %v29
  %788 = vmatpush1.msra.mxu0 %v28
  %789 = vmatprep.subr.mxu0 %v32
  %790 = vmatpush1.msra.mxu0 %v31
  %791 = vmatprep.subr.mxu0 %v35
  %792 = vmatpush1.msra.mxu0 %v34
  %793 = vmatprep.subr.mxu0 %v38
  %794 = vmatpush1.msra.mxu0 %v37
  %795 = vmatprep.subr.mxu0 %v41
  %796 = vmatpush1.msra.mxu0 %v40
  %797 = vmatprep.subr.mxu0 %v44
  %798 = vmatpush1.msra.mxu0 %v43
  %799 = vmatprep.subr.mxu0 %v47
  %800 = vmatpush1.msra.mxu0 %v46
  %801 = vmatprep.subr.mxu0 %v50
  %802 = vmatpush1.msra.mxu0 %v49
  %803 = vmatprep.subr.mxu0 %v53
  %804 = vmatpush1.msra.mxu0 %v52
  %805 = vmatprep.subr.mxu0 %v56
  %806 = vmatpush1.msra.mxu0 %v55
  %807 = vmatprep.subr.mxu0 %v59
  %808 = vmatpush1.msra.mxu0 %v58
  %809 = vmatprep.subr.mxu0 %v62
  %810 = vmatpush1.msra.mxu0 %v61
  %811 = vmatprep.subr.mxu0 %v65
  %812 = vmatpush1.msra.mxu0 %v64
  %813 = vmatprep.subr.mxu0 0.0
  %814 = vmatpush1.msra.mxu0 0.0
  %815 = vmatprep.subr.mxu0 0.0
  %816 = vmatpush1.msra.mxu0 0.0
  %817 = vmatprep.subr.mxu0 0.0
  %818 = vmatpush1.msra.mxu0 0.0
  %819 = vmatprep.subr.mxu0 0.0
  %820 = vmatpush1.msra.mxu0 0.0
  %821 = vmatprep.subr.mxu0 0.0
  %822 = vmatpush1.msra.mxu0 0.0
  %823 = vmatprep.subr.mxu0 0.0
  %824 = vmatpush1.msra.mxu0 0.0
  %825 = vmatprep.subr.mxu0 0.0
  %826 = vmatpush1.msra.mxu0 0.0
  %827 = vmatprep.subr.mxu0 0.0
  %828 = vmatpush1.msra.mxu0 0.0
  %829 = vmatprep.subr.mxu0 0.0
  %830 = vmatpush1.msra.mxu0 0.0
  %831 = vmatprep.subr.mxu0 0.0
  %832 = vmatpush1.msra.mxu0 0.0
  %833 = vmatprep.subr.mxu0 0.0
  %834 = vmatpush1.msra.mxu0 0.0
  %835 = vmatprep.subr.mxu0 0.0
  %836 = vmatpush1.msra.mxu0 0.0
  %837 = vmatprep.subr.mxu0 0.0
  %838 = vmatpush1.msra.mxu0 0.0
  %839 = vmatprep.subr.mxu0 0.0
  %840 = vmatpush1.msra.mxu0 0.0
  %841 = vmatprep.subr.mxu0 0.0
  %842 = vmatpush1.msra.mxu0 0.0
  %843 = vmatprep.subr.mxu0 0.0
  %844 = vmatpush1.msra.mxu0 0.0
  %845 = vmatprep.mubr.f32.mxu0 0.0
  %846 = vmatmul.mubr.f32.gmra.mrb[0].mxu0 %v779
  %v847 = vpop.f32.mrb[0].mxu0
  %v848 = vadd.f32 0.0, %v847
  %v849 = vpop.f32.mrb[0].mxu0
  %v850 = vadd.f32 0.0, %v849
  %851 = vdwg.mxu0
  %852 = vmatprep.subr.mxu0 0.0
  %853 = vmatpush1.msra.mxu0 %v21
  %854 = vmatprep.subr.mxu0 0.0
  %855 = vmatpush1.msra.mxu0 %v24
  %856 = vmatprep.subr.mxu0 0.0
  %857 = vmatpush1.msra.mxu0 %v27
  %858 = vmatprep.subr.mxu0 0.0
  %859 = vmatpush1.msra.mxu0 %v30
  %860 = vmatprep.subr.mxu0 0.0
  %861 = vmatpush1.msra.mxu0 %v33
  %862 = vmatprep.subr.mxu0 0.0
  %863 = vmatpush1.msra.mxu0 %v36
  %864 = vmatprep.subr.mxu0 0.0
  %865 = vmatpush1.msra.mxu0 %v39
  %866 = vmatprep.subr.mxu0 0.0
  %867 = vmatpush1.msra.mxu0 %v42
  %868 = vmatprep.subr.mxu0 0.0
  %869 = vmatpush1.msra.mxu0 %v45
  %870 = vmatprep.subr.mxu0 0.0
  %871 = vmatpush1.msra.mxu0 %v48
  %872 = vmatprep.subr.mxu0 0.0
  %873 = vmatpush1.msra.mxu0 %v51
  %874 = vmatprep.subr.mxu0 0.0
  %875 = vmatpush1.msra.mxu0 %v54
  %876 = vmatprep.subr.mxu0 0.0
  %877 = vmatpush1.msra.mxu0 %v57
  %878 = vmatprep.subr.mxu0 0.0
  %879 = vmatpush1.msra.mxu0 %v60
  %880 = vmatprep.subr.mxu0 0.0
  %881 = vmatpush1.msra.mxu0 %v63
  %882 = vmatprep.subr.mxu0 0.0
  %883 = vmatpush1.msra.mxu0 %v66
  %884 = vmatprep.subr.mxu0 0.0
  %885 = vmatpush1.msra.mxu0 0.0
  %886 = vmatprep.subr.mxu0 0.0
  %887 = vmatpush1.msra.mxu0 0.0
  %888 = vmatprep.subr.mxu0 0.0
  %889 = vmatpush1.msra.mxu0 0.0
  %890 = vmatprep.subr.mxu0 0.0
  %891 = vmatpush1.msra.mxu0 0.0
  %892 = vmatprep.subr.mxu0 0.0
  %893 = vmatpush1.msra.mxu0 0.0
  %894 = vmatprep.subr.mxu0 0.0
  %895 = vmatpush1.msra.mxu0 0.0
  %896 = vmatprep.subr.mxu0 0.0
  %897 = vmatpush1.msra.mxu0 0.0
  %898 = vmatprep.subr.mxu0 0.0
  %899 = vmatpush1.msra.mxu0 0.0
  %900 = vmatprep.subr.mxu0 0.0
  %901 = vmatpush1.msra.mxu0 0.0
  %902 = vmatprep.subr.mxu0 0.0
  %903 = vmatpush1.msra.mxu0 0.0
  %904 = vmatprep.subr.mxu0 0.0
  %905 = vmatpush1.msra.mxu0 0.0
  %906 = vmatprep.subr.mxu0 0.0
  %907 = vmatpush1.msra.mxu0 0.0
  %908 = vmatprep.subr.mxu0 0.0
  %909 = vmatpush1.msra.mxu0 0.0
  %910 = vmatprep.subr.mxu0 0.0
  %911 = vmatpush1.msra.mxu0 0.0
  %912 = vmatprep.subr.mxu0 0.0
  %913 = vmatpush1.msra.mxu0 0.0
  %914 = vmatprep.subr.mxu0 0.0
  %915 = vmatpush1.msra.mxu0 0.0
  %916 = vmatprep.mubr.f32.mxu0 0.0
  %917 = vmatmul.mubr.f32.gmra.mrb[0].mxu0 %v779
  %v918 = vpop.f32.mrb[0].mxu0
  %v919 = vadd.f32 0.0, %v918
  %v920 = vpop.f32.mrb[0].mxu0
  %921 = vdwg.mxu0
  %s922 = scalar_lea.vmem %s0, 1
  %v923 = vld [vmem:[%s922] ss:$8 sm:$0x7]
  %s924 = scalar_lea.vmem %s0, 49
  %v925 = vld [vmem:[%s924] ss:$8 sm:$0x7]
  %s926 = scalar_lea.vmem %s0, 97
  %v927 = vld [vmem:[%s926] ss:$8 sm:$0x7]
  %s928 = scalar_lea.vmem %s0, 145
  %v929 = vld [vmem:[%s928] ss:$8 sm:$0x7]
  %s930 = scalar_lea.vmem %s0, 193
  %v931 = vld [vmem:[%s930] ss:$8 sm:$0x7]
  %s932 = scalar_lea.vmem %s0, 241
  %v933 = vld [vmem:[%s932] ss:$8 sm:$0x7]
  %s934 = scalar_lea.vmem %s0, 289
  %v935 = vld [vmem:[%s934] ss:$8 sm:$0x7]
  %s936 = scalar_lea.vmem %s0, 337
  %v937 = vld [vmem:[%s936] ss:$8 sm:$0x7]
  %v939 = vcombine.high %v848, %v848
  %v941 = vunpack.c.l.s4 1966171168
  %v942 = vunpack.c.0.s8 %v941
  %v943 = vlaneseq
  %v944 = vshrl.u32 %v943, 7
  %v945 = vsub.s32 %v942, %v944
  %v946 = vrot.slane %v848, %v945
  %v948 = vunpack.c.l.s4 1966171168
  %v949 = vunpack.c.0.s8 %v948
  %v950 = vlaneseq
  %v951 = vshrl.u32 %v950, 7
  %v952 = vsub.s32 %v949, %v951
  %v953 = vrot.slane %v939, %v952
  %v954 = vcombine.high %v946, %v946
  %v955 = vcombine.high %v953, %v953
  %v957 = vunpack.c.l.s4 1966171168
  %v958 = vunpack.c.0.s8 %v957
  %v959 = vlaneseq
  %v960 = vshrl.u32 %v959, 7
  %v961 = vsub.s32 %v958, %v960
  %v962 = vrot.slane %v946, %v961
  %v964 = vunpack.c.l.s4 1966171168
  %v965 = vunpack.c.0.s8 %v964
  %v966 = vlaneseq
  %v967 = vshrl.u32 %v966, 7
  %v968 = vsub.s32 %v965, %v967
  %v969 = vrot.slane %v953, %v968
  %v971 = vunpack.c.l.s4 1966171168
  %v972 = vunpack.c.0.s8 %v971
  %v973 = vlaneseq
  %v974 = vshrl.u32 %v973, 7
  %v975 = vsub.s32 %v972, %v974
  %v976 = vrot.slane %v954, %v975
  %v978 = vunpack.c.l.s4 1966171168
  %v979 = vunpack.c.0.s8 %v978
  %v980 = vlaneseq
  %v981 = vshrl.u32 %v980, 7
  %v982 = vsub.s32 %v979, %v981
  %v983 = vrot.slane %v955, %v982
  %v984 = vcombine.high %v962, %v962
  %v985 = vcombine.high %v969, %v969
  %v986 = vcombine.high %v976, %v976
  %v987 = vcombine.high %v983, %v983
  %v996 = vadd.f32 %v923, %v962
  %v997 = vadd.f32 %v925, %v976
  %v998 = vadd.f32 %v927, %v984
  %v999 = vadd.f32 %v929, %v986
  %v1000 = vadd.f32 %v931, %v969
  %v1001 = vadd.f32 %v933, %v983
  %v1002 = vadd.f32 %v935, %v985
  %v1003 = vadd.f32 %v937, %v987
  %v1004 = vxor.u32 %v996, 2147483648
  %v1005 = vxor.u32 %v997, 2147483648
  %v1006 = vxor.u32 %v998, 2147483648
  %v1007 = vxor.u32 %v999, 2147483648
  %v1008 = vxor.u32 %v1000, 2147483648
  %v1009 = vxor.u32 %v1001, 2147483648
  %v1010 = vxor.u32 %v1002, 2147483648
  %v1011 = vxor.u32 %v1003, 2147483648
  %v1012 = vmul.f32 %v1004, 1.442695
  %v1013 = vpow.pop %v1012
  %v1014 = vmul.f32 %v1005, 1.442695
  %v1015 = vpow.pop %v1014
  %v1016 = vmul.f32 %v1006, 1.442695
  %v1017 = vpow.pop %v1016
  %v1018 = vmul.f32 %v1007, 1.442695
  %v1019 = vpow.pop %v1018
  %v1020 = vmul.f32 %v1008, 1.442695
  %v1021 = vpow.pop %v1020
  %v1022 = vmul.f32 %v1009, 1.442695
  %v1023 = vpow.pop %v1022
  %v1024 = vmul.f32 %v1010, 1.442695
  %v1025 = vpow.pop %v1024
  %v1026 = vmul.f32 %v1011, 1.442695
  %v1027 = vpow.pop %v1026
  %v1028 = vadd.f32 %v1013, 1.0
  %v1029 = vadd.f32 %v1015, 1.0
  %v1030 = vadd.f32 %v1017, 1.0
  %v1031 = vadd.f32 %v1019, 1.0
  %v1032 = vadd.f32 %v1021, 1.0
  %v1033 = vadd.f32 %v1023, 1.0
  %v1034 = vadd.f32 %v1025, 1.0
  %v1035 = vadd.f32 %v1027, 1.0
  %v1036 = vrcp.pop %v1028
  %v1037 = vmul.f32 1.0, %v1036
  %v1038 = vrcp.pop %v1029
  %v1039 = vmul.f32 1.0, %v1038
  %v1040 = vrcp.pop %v1030
  %v1041 = vmul.f32 1.0, %v1040
  %v1042 = vrcp.pop %v1031
  %v1043 = vmul.f32 1.0, %v1042
  %v1044 = vrcp.pop %v1032
  %v1045 = vmul.f32 1.0, %v1044
  %v1046 = vrcp.pop %v1033
  %v1047 = vmul.f32 1.0, %v1046
  %v1048 = vrcp.pop %v1034
  %v1049 = vmul.f32 1.0, %v1048
  %v1050 = vrcp.pop %v1035
  %v1051 = vmul.f32 1.0, %v1050
  %v1060 = vrot.slane %v923, 1
  %v1061 = vrot.slane %v925, 1
  %v1062 = vrot.slane %v927, 1
  %v1063 = vrot.slane %v929, 1
  %v1064 = vrot.slane %v931, 1
  %v1065 = vrot.slane %v933, 1
  %v1066 = vrot.slane %v935, 1
  %v1067 = vrot.slane %v937, 1
  %v1077 = vcombine.high %v850, %v850
  %v1079 = vunpack.c.l.s4 1966171168
  %v1080 = vunpack.c.0.s8 %v1079
  %v1081 = vlaneseq
  %v1082 = vshrl.u32 %v1081, 7
  %v1083 = vsub.s32 %v1080, %v1082
  %v1084 = vrot.slane %v850, %v1083
  %v1086 = vunpack.c.l.s4 1966171168
  %v1087 = vunpack.c.0.s8 %v1086
  %v1088 = vlaneseq
  %v1089 = vshrl.u32 %v1088, 7
  %v1090 = vsub.s32 %v1087, %v1089
  %v1091 = vrot.slane %v1077, %v1090
  %v1092 = vcombine.high %v1084, %v1084
  %v1093 = vcombine.high %v1091, %v1091
  %v1095 = vunpack.c.l.s4 1966171168
  %v1096 = vunpack.c.0.s8 %v1095
  %v1097 = vlaneseq
  %v1098 = vshrl.u32 %v1097, 7
  %v1099 = vsub.s32 %v1096, %v1098
  %v1100 = vrot.slane %v1084, %v1099
  %v1102 = vunpack.c.l.s4 1966171168
  %v1103 = vunpack.c.0.s8 %v1102
  %v1104 = vlaneseq
  %v1105 = vshrl.u32 %v1104, 7
  %v1106 = vsub.s32 %v1103, %v1105
  %v1107 = vrot.slane %v1091, %v1106
  %v1109 = vunpack.c.l.s4 1966171168
  %v1110 = vunpack.c.0.s8 %v1109
  %v1111 = vlaneseq
  %v1112 = vshrl.u32 %v1111, 7
  %v1113 = vsub.s32 %v1110, %v1112
  %v1114 = vrot.slane %v1092, %v1113
  %v1116 = vunpack.c.l.s4 1966171168
  %v1117 = vunpack.c.0.s8 %v1116
  %v1118 = vlaneseq
  %v1119 = vshrl.u32 %v1118, 7
  %v1120 = vsub.s32 %v1117, %v1119
  %v1121 = vrot.slane %v1093, %v1120
  %v1122 = vcombine.high %v1100, %v1100
  %v1123 = vcombine.high %v1107, %v1107
  %v1124 = vcombine.high %v1114, %v1114
  %v1125 = vcombine.high %v1121, %v1121
  %v1134 = vadd.f32 %v1060, %v1100
  %v1135 = vadd.f32 %v1061, %v1114
  %v1136 = vadd.f32 %v1062, %v1122
  %v1137 = vadd.f32 %v1063, %v1124
  %v1138 = vadd.f32 %v1064, %v1107
  %v1139 = vadd.f32 %v1065, %v1121
  %v1140 = vadd.f32 %v1066, %v1123
  %v1141 = vadd.f32 %v1067, %v1125
  %v1142 = vxor.u32 %v1134, 2147483648
  %v1143 = vxor.u32 %v1135, 2147483648
  %v1144 = vxor.u32 %v1136, 2147483648
  %v1145 = vxor.u32 %v1137, 2147483648
  %v1146 = vxor.u32 %v1138, 2147483648
  %v1147 = vxor.u32 %v1139, 2147483648
  %v1148 = vxor.u32 %v1140, 2147483648
  %v1149 = vxor.u32 %v1141, 2147483648
  %v1150 = vmul.f32 %v1142, 1.442695
  %v1151 = vpow.pop %v1150
  %v1152 = vmul.f32 %v1143, 1.442695
  %v1153 = vpow.pop %v1152
  %v1154 = vmul.f32 %v1144, 1.442695
  %v1155 = vpow.pop %v1154
  %v1156 = vmul.f32 %v1145, 1.442695
  %v1157 = vpow.pop %v1156
  %v1158 = vmul.f32 %v1146, 1.442695
  %v1159 = vpow.pop %v1158
  %v1160 = vmul.f32 %v1147, 1.442695
  %v1161 = vpow.pop %v1160
  %v1162 = vmul.f32 %v1148, 1.442695
  %v1163 = vpow.pop %v1162
  %v1164 = vmul.f32 %v1149, 1.442695
  %v1165 = vpow.pop %v1164
  %v1166 = vadd.f32 %v1151, 1.0
  %v1167 = vadd.f32 %v1153, 1.0
  %v1168 = vadd.f32 %v1155, 1.0
  %v1169 = vadd.f32 %v1157, 1.0
  %v1170 = vadd.f32 %v1159, 1.0
  %v1171 = vadd.f32 %v1161, 1.0
  %v1172 = vadd.f32 %v1163, 1.0
  %v1173 = vadd.f32 %v1165, 1.0
  %v1174 = vrcp.pop %v1166
  %v1175 = vmul.f32 1.0, %v1174
  %v1176 = vrcp.pop %v1167
  %v1177 = vmul.f32 1.0, %v1176
  %v1178 = vrcp.pop %v1168
  %v1179 = vmul.f32 1.0, %v1178
  %v1180 = vrcp.pop %v1169
  %v1181 = vmul.f32 1.0, %v1180
  %v1182 = vrcp.pop %v1170
  %v1183 = vmul.f32 1.0, %v1182
  %v1184 = vrcp.pop %v1171
  %v1185 = vmul.f32 1.0, %v1184
  %v1186 = vrcp.pop %v1172
  %v1187 = vmul.f32 1.0, %v1186
  %v1188 = vrcp.pop %v1173
  %v1189 = vmul.f32 1.0, %v1188
  %v1190 = vadd.f32 %v919, %v481
  %v1192 = vcombine.high %v1190, %v1190
  %v1194 = vunpack.c.l.s4 1966171168
  %v1195 = vunpack.c.0.s8 %v1194
  %v1196 = vlaneseq
  %v1197 = vshrl.u32 %v1196, 7
  %v1198 = vsub.s32 %v1195, %v1197
  %v1199 = vrot.slane %v1190, %v1198
  %v1201 = vunpack.c.l.s4 1966171168
  %v1202 = vunpack.c.0.s8 %v1201
  %v1203 = vlaneseq
  %v1204 = vshrl.u32 %v1203, 7
  %v1205 = vsub.s32 %v1202, %v1204
  %v1206 = vrot.slane %v1192, %v1205
  %v1207 = vcombine.high %v1199, %v1199
  %v1208 = vcombine.high %v1206, %v1206
  %v1210 = vunpack.c.l.s4 1966171168
  %v1211 = vunpack.c.0.s8 %v1210
  %v1212 = vlaneseq
  %v1213 = vshrl.u32 %v1212, 7
  %v1214 = vsub.s32 %v1211, %v1213
  %v1215 = vrot.slane %v1199, %v1214
  %v1217 = vunpack.c.l.s4 1966171168
  %v1218 = vunpack.c.0.s8 %v1217
  %v1219 = vlaneseq
  %v1220 = vshrl.u32 %v1219, 7
  %v1221 = vsub.s32 %v1218, %v1220
  %v1222 = vrot.slane %v1206, %v1221
  %v1224 = vunpack.c.l.s4 1966171168
  %v1225 = vunpack.c.0.s8 %v1224
  %v1226 = vlaneseq
  %v1227 = vshrl.u32 %v1226, 7
  %v1228 = vsub.s32 %v1225, %v1227
  %v1229 = vrot.slane %v1207, %v1228
  %v1231 = vunpack.c.l.s4 1966171168
  %v1232 = vunpack.c.0.s8 %v1231
  %v1233 = vlaneseq
  %v1234 = vshrl.u32 %v1233, 7
  %v1235 = vsub.s32 %v1232, %v1234
  %v1236 = vrot.slane %v1208, %v1235
  %v1237 = vcombine.high %v1215, %v1215
  %v1238 = vcombine.high %v1222, %v1222
  %v1239 = vcombine.high %v1229, %v1229
  %v1240 = vcombine.high %v1236, %v1236
  %v1249 = vmul.f32 %v1037, %v1215
  %v1250 = vmul.f32 %v1039, %v1229
  %v1251 = vmul.f32 %v1041, %v1237
  %v1252 = vmul.f32 %v1043, %v1239
  %v1253 = vmul.f32 %v1045, %v1222
  %v1254 = vmul.f32 %v1047, %v1236
  %v1255 = vmul.f32 %v1049, %v1238
  %v1256 = vmul.f32 %v1051, %v1240
  %v1257 = vrot.slane %v923, 2
  %v1258 = vrot.slane %v925, 2
  %v1259 = vrot.slane %v927, 2
  %v1260 = vrot.slane %v929, 2
  %v1261 = vrot.slane %v931, 2
  %v1262 = vrot.slane %v933, 2
  %v1263 = vrot.slane %v935, 2
  %v1264 = vrot.slane %v937, 2
  %v1273 = vadd.f32 %v1257, %v1249
  %v1274 = vadd.f32 %v1258, %v1250
  %v1275 = vadd.f32 %v1259, %v1251
  %v1276 = vadd.f32 %v1260, %v1252
  %v1277 = vadd.f32 %v1261, %v1253
  %v1278 = vadd.f32 %v1262, %v1254
  %v1279 = vadd.f32 %v1263, %v1255
  %v1280 = vadd.f32 %v1264, %v1256
  %v1281 = vtanh.pop %v1273
  %v1282 = vtanh.pop %v1274
  %v1283 = vtanh.pop %v1275
  %v1284 = vtanh.pop %v1276
  %v1285 = vtanh.pop %v1277
  %v1286 = vtanh.pop %v1278
  %v1287 = vtanh.pop %v1279
  %v1288 = vtanh.pop %v1280
  %v1289 = vsub.f32 %v707, %v1281
  %v1290 = vsub.f32 %v708, %v1282
  %v1291 = vsub.f32 %v709, %v1283
  %v1292 = vsub.f32 %v710, %v1284
  %v1293 = vsub.f32 %v711, %v1285
  %v1294 = vsub.f32 %v712, %v1286
  %v1295 = vsub.f32 %v713, %v1287
  %v1296 = vsub.f32 %v714, %v1288
  %v1297 = vmul.f32 %v1175, %v1289
  %v1298 = vmul.f32 %v1177, %v1290
  %v1299 = vmul.f32 %v1179, %v1291
  %v1300 = vmul.f32 %v1181, %v1292
  %v1301 = vmul.f32 %v1183, %v1293
  %v1302 = vmul.f32 %v1185, %v1294
  %v1303 = vmul.f32 %v1187, %v1295
  %v1304 = vmul.f32 %v1189, %v1296
  %v1305 = vadd.f32 %v1281, %v1297
  %v1306 = vadd.f32 %v1282, %v1298
  %v1307 = vadd.f32 %v1283, %v1299
  %v1308 = vadd.f32 %v1284, %v1300
  %v1309 = vadd.f32 %v1285, %v1301
  %v1310 = vadd.f32 %v1286, %v1302
  %v1311 = vadd.f32 %v1287, %v1303
  %v1312 = vadd.f32 %v1288, %v1304
  %1313 = vst [vmem:[%s3 + $0x1] sm:$0x1] %v1305
  %1314 = vst [vmem:[%s3 + $0x11] sm:$0x1] %v1306
  %1315 = vst [vmem:[%s3 + $0x21] sm:$0x1] %v1307
  %1316 = vst [vmem:[%s3 + $0x31] sm:$0x1] %v1308
  %1317 = vst [vmem:[%s3 + $0x41] sm:$0x1] %v1309
  %1318 = vst [vmem:[%s3 + $0x51] sm:$0x1] %v1310
  %1319 = vst [vmem:[%s3 + $0x61] sm:$0x1] %v1311
  %1320 = vst [vmem:[%s3 + $0x71] sm:$0x1] %v1312
  %v1329 = vcombine.low %v1305, %v1306
  %v1330 = vcombine.low %v1307, %v1308
  %v1331 = vcombine.low %v1309, %v1310
  %v1332 = vcombine.low %v1311, %v1312
  %v1334 = vunpack.c.l.s4 1966171168
  %v1335 = vunpack.c.0.s8 %v1334
  %v1336 = vlaneseq
  %v1337 = vshrl.u32 %v1336, 7
  %v1338 = vsub.s32 %v1335, %v1337
  %v1339 = vrot.slane %v1329, %v1338
  %v1341 = vunpack.c.l.s4 1966171168
  %v1342 = vunpack.c.0.s8 %v1341
  %v1343 = vlaneseq
  %v1344 = vshrl.u32 %v1343, 7
  %v1345 = vsub.s32 %v1342, %v1344
  %v1346 = vrot.slane %v1330, %v1345
  %v1348 = vunpack.c.l.s4 1966171168
  %v1349 = vunpack.c.0.s8 %v1348
  %v1350 = vlaneseq
  %v1351 = vshrl.u32 %v1350, 7
  %v1352 = vsub.s32 %v1349, %v1351
  %v1353 = vrot.slane %v1331, %v1352
  %v1355 = vunpack.c.l.s4 1966171168
  %v1356 = vunpack.c.0.s8 %v1355
  %v1357 = vlaneseq
  %v1358 = vshrl.u32 %v1357, 7
  %v1359 = vsub.s32 %v1356, %v1358
  %v1360 = vrot.slane %v1332, %v1359
  %v1361 = vcombine.low %v1339, %v1346
  %v1362 = vcombine.low %v1353, %v1360
  %v1364 = vunpack.c.l.s4 1966171168
  %v1365 = vunpack.c.0.s8 %v1364
  %v1366 = vlaneseq
  %v1367 = vshrl.u32 %v1366, 7
  %v1368 = vsub.s32 %v1365, %v1367
  %v1369 = vrot.slane %v1361, %v1368
  %v1371 = vunpack.c.l.s4 1966171168
  %v1372 = vunpack.c.0.s8 %v1371
  %v1373 = vlaneseq
  %v1374 = vshrl.u32 %v1373, 7
  %v1375 = vsub.s32 %v1372, %v1374
  %v1376 = vrot.slane %v1362, %v1375
  %v1377 = vcombine.low %v1369, %v1376
  %1379 = vmatprep.subr.mxu0 %v20
  %1380 = vmatpush1.msra.mxu0 %v19
  %1381 = vmatprep.subr.mxu0 %v23
  %1382 = vmatpush1.msra.mxu0 %v22
  %1383 = vmatprep.subr.mxu0 %v26
  %1384 = vmatpush1.msra.mxu0 %v25
  %1385 = vmatprep.subr.mxu0 %v29
  %1386 = vmatpush1.msra.mxu0 %v28
  %1387 = vmatprep.subr.mxu0 %v32
  %1388 = vmatpush1.msra.mxu0 %v31
  %1389 = vmatprep.subr.mxu0 %v35
  %1390 = vmatpush1.msra.mxu0 %v34
  %1391 = vmatprep.subr.mxu0 %v38
  %1392 = vmatpush1.msra.mxu0 %v37
  %1393 = vmatprep.subr.mxu0 %v41
  %1394 = vmatpush1.msra.mxu0 %v40
  %1395 = vmatprep.subr.mxu0 %v44
  %1396 = vmatpush1.msra.mxu0 %v43
  %1397 = vmatprep.subr.mxu0 %v47
  %1398 = vmatpush1.msra.mxu0 %v46
  %1399 = vmatprep.subr.mxu0 %v50
  %1400 = vmatpush1.msra.mxu0 %v49
  %1401 = vmatprep.subr.mxu0 %v53
  %1402 = vmatpush1.msra.mxu0 %v52
  %1403 = vmatprep.subr.mxu0 %v56
  %1404 = vmatpush1.msra.mxu0 %v55
  %1405 = vmatprep.subr.mxu0 %v59
  %1406 = vmatpush1.msra.mxu0 %v58
  %1407 = vmatprep.subr.mxu0 %v62
  %1408 = vmatpush1.msra.mxu0 %v61
  %1409 = vmatprep.subr.mxu0 %v65
  %1410 = vmatpush1.msra.mxu0 %v64
  %1411 = vmatprep.subr.mxu0 0.0
  %1412 = vmatpush1.msra.mxu0 0.0
  %1413 = vmatprep.subr.mxu0 0.0
  %1414 = vmatpush1.msra.mxu0 0.0
  %1415 = vmatprep.subr.mxu0 0.0
  %1416 = vmatpush1.msra.mxu0 0.0
  %1417 = vmatprep.subr.mxu0 0.0
  %1418 = vmatpush1.msra.mxu0 0.0
  %1419 = vmatprep.subr.mxu0 0.0
  %1420 = vmatpush1.msra.mxu0 0.0
  %1421 = vmatprep.subr.mxu0 0.0
  %1422 = vmatpush1.msra.mxu0 0.0
  %1423 = vmatprep.subr.mxu0 0.0
  %1424 = vmatpush1.msra.mxu0 0.0
  %1425 = vmatprep.subr.mxu0 0.0
  %1426 = vmatpush1.msra.mxu0 0.0
  %1427 = vmatprep.subr.mxu0 0.0
  %1428 = vmatpush1.msra.mxu0 0.0
  %1429 = vmatprep.subr.mxu0 0.0
  %1430 = vmatpush1.msra.mxu0 0.0
  %1431 = vmatprep.subr.mxu0 0.0
  %1432 = vmatpush1.msra.mxu0 0.0
  %1433 = vmatprep.subr.mxu0 0.0
  %1434 = vmatpush1.msra.mxu0 0.0
  %1435 = vmatprep.subr.mxu0 0.0
  %1436 = vmatpush1.msra.mxu0 0.0
  %1437 = vmatprep.subr.mxu0 0.0
  %1438 = vmatpush1.msra.mxu0 0.0
  %1439 = vmatprep.subr.mxu0 0.0
  %1440 = vmatpush1.msra.mxu0 0.0
  %1441 = vmatprep.subr.mxu0 0.0
  %1442 = vmatpush1.msra.mxu0 0.0
  %1443 = vmatprep.mubr.f32.mxu0 0.0
  %1444 = vmatmul.mubr.f32.gmra.mrb[0].mxu0 %v1377
  %v1445 = vpop.f32.mrb[0].mxu0
  %v1446 = vadd.f32 0.0, %v1445
  %v1447 = vpop.f32.mrb[0].mxu0
  %v1448 = vadd.f32 0.0, %v1447
  %1449 = vdwg.mxu0
  %1450 = vmatprep.subr.mxu0 0.0
  %1451 = vmatpush1.msra.mxu0 %v21
  %1452 = vmatprep.subr.mxu0 0.0
  %1453 = vmatpush1.msra.mxu0 %v24
  %1454 = vmatprep.subr.mxu0 0.0
  %1455 = vmatpush1.msra.mxu0 %v27
  %1456 = vmatprep.subr.mxu0 0.0
  %1457 = vmatpush1.msra.mxu0 %v30
  %1458 = vmatprep.subr.mxu0 0.0
  %1459 = vmatpush1.msra.mxu0 %v33
  %1460 = vmatprep.subr.mxu0 0.0
  %1461 = vmatpush1.msra.mxu0 %v36
  %1462 = vmatprep.subr.mxu0 0.0
  %1463 = vmatpush1.msra.mxu0 %v39
  %1464 = vmatprep.subr.mxu0 0.0
  %1465 = vmatpush1.msra.mxu0 %v42
  %1466 = vmatprep.subr.mxu0 0.0
  %1467 = vmatpush1.msra.mxu0 %v45
  %1468 = vmatprep.subr.mxu0 0.0
  %1469 = vmatpush1.msra.mxu0 %v48
  %1470 = vmatprep.subr.mxu0 0.0
  %1471 = vmatpush1.msra.mxu0 %v51
  %1472 = vmatprep.subr.mxu0 0.0
  %1473 = vmatpush1.msra.mxu0 %v54
  %1474 = vmatprep.subr.mxu0 0.0
  %1475 = vmatpush1.msra.mxu0 %v57
  %1476 = vmatprep.subr.mxu0 0.0
  %1477 = vmatpush1.msra.mxu0 %v60
  %1478 = vmatprep.subr.mxu0 0.0
  %1479 = vmatpush1.msra.mxu0 %v63
  %1480 = vmatprep.subr.mxu0 0.0
  %1481 = vmatpush1.msra.mxu0 %v66
  %1482 = vmatprep.subr.mxu0 0.0
  %1483 = vmatpush1.msra.mxu0 0.0
  %1484 = vmatprep.subr.mxu0 0.0
  %1485 = vmatpush1.msra.mxu0 0.0
  %1486 = vmatprep.subr.mxu0 0.0
  %1487 = vmatpush1.msra.mxu0 0.0
  %1488 = vmatprep.subr.mxu0 0.0
  %1489 = vmatpush1.msra.mxu0 0.0
  %1490 = vmatprep.subr.mxu0 0.0
  %1491 = vmatpush1.msra.mxu0 0.0
  %1492 = vmatprep.subr.mxu0 0.0
  %1493 = vmatpush1.msra.mxu0 0.0
  %1494 = vmatprep.subr.mxu0 0.0
  %1495 = vmatpush1.msra.mxu0 0.0
  %1496 = vmatprep.subr.mxu0 0.0
  %1497 = vmatpush1.msra.mxu0 0.0
  %1498 = vmatprep.subr.mxu0 0.0
  %1499 = vmatpush1.msra.mxu0 0.0
  %1500 = vmatprep.subr.mxu0 0.0
  %1501 = vmatpush1.msra.mxu0 0.0
  %1502 = vmatprep.subr.mxu0 0.0
  %1503 = vmatpush1.msra.mxu0 0.0
  %1504 = vmatprep.subr.mxu0 0.0
  %1505 = vmatpush1.msra.mxu0 0.0
  %1506 = vmatprep.subr.mxu0 0.0
  %1507 = vmatpush1.msra.mxu0 0.0
  %1508 = vmatprep.subr.mxu0 0.0
  %1509 = vmatpush1.msra.mxu0 0.0
  %1510 = vmatprep.subr.mxu0 0.0
  %1511 = vmatpush1.msra.mxu0 0.0
  %1512 = vmatprep.subr.mxu0 0.0
  %1513 = vmatpush1.msra.mxu0 0.0
  %1514 = vmatprep.mubr.f32.mxu0 0.0
  %1515 = vmatmul.mubr.f32.gmra.mrb[0].mxu0 %v1377
  %v1516 = vpop.f32.mrb[0].mxu0
  %v1517 = vadd.f32 0.0, %v1516
  %v1518 = vpop.f32.mrb[0].mxu0
  %1519 = vdwg.mxu0
  %s1520 = scalar_lea.vmem %s0, 2
  %v1521 = vld [vmem:[%s1520] ss:$8 sm:$0x7]
  %s1522 = scalar_lea.vmem %s0, 50
  %v1523 = vld [vmem:[%s1522] ss:$8 sm:$0x7]
  %s1524 = scalar_lea.vmem %s0, 98
  %v1525 = vld [vmem:[%s1524] ss:$8 sm:$0x7]
  %s1526 = scalar_lea.vmem %s0, 146
  %v1527 = vld [vmem:[%s1526] ss:$8 sm:$0x7]
  %s1528 = scalar_lea.vmem %s0, 194
  %v1529 = vld [vmem:[%s1528] ss:$8 sm:$0x7]
  %s1530 = scalar_lea.vmem %s0, 242
  %v1531 = vld [vmem:[%s1530] ss:$8 sm:$0x7]
  %s1532 = scalar_lea.vmem %s0, 290
  %v1533 = vld [vmem:[%s1532] ss:$8 sm:$0x7]
  %s1534 = scalar_lea.vmem %s0, 338
  %v1535 = vld [vmem:[%s1534] ss:$8 sm:$0x7]
  %v1537 = vcombine.high %v1446, %v1446
  %v1539 = vunpack.c.l.s4 1966171168
  %v1540 = vunpack.c.0.s8 %v1539
  %v1541 = vlaneseq
  %v1542 = vshrl.u32 %v1541, 7
  %v1543 = vsub.s32 %v1540, %v1542
  %v1544 = vrot.slane %v1446, %v1543
  %v1546 = vunpack.c.l.s4 1966171168
  %v1547 = vunpack.c.0.s8 %v1546
  %v1548 = vlaneseq
  %v1549 = vshrl.u32 %v1548, 7
  %v1550 = vsub.s32 %v1547, %v1549
  %v1551 = vrot.slane %v1537, %v1550
  %v1552 = vcombine.high %v1544, %v1544
  %v1553 = vcombine.high %v1551, %v1551
  %v1555 = vunpack.c.l.s4 1966171168
  %v1556 = vunpack.c.0.s8 %v1555
  %v1557 = vlaneseq
  %v1558 = vshrl.u32 %v1557, 7
  %v1559 = vsub.s32 %v1556, %v1558
  %v1560 = vrot.slane %v1544, %v1559
  %v1562 = vunpack.c.l.s4 1966171168
  %v1563 = vunpack.c.0.s8 %v1562
  %v1564 = vlaneseq
  %v1565 = vshrl.u32 %v1564, 7
  %v1566 = vsub.s32 %v1563, %v1565
  %v1567 = vrot.slane %v1551, %v1566
  %v1569 = vunpack.c.l.s4 1966171168
  %v1570 = vunpack.c.0.s8 %v1569
  %v1571 = vlaneseq
  %v1572 = vshrl.u32 %v1571, 7
  %v1573 = vsub.s32 %v1570, %v1572
  %v1574 = vrot.slane %v1552, %v1573
  %v1576 = vunpack.c.l.s4 1966171168
  %v1577 = vunpack.c.0.s8 %v1576
  %v1578 = vlaneseq
  %v1579 = vshrl.u32 %v1578, 7
  %v1580 = vsub.s32 %v1577, %v1579
  %v1581 = vrot.slane %v1553, %v1580
  %v1582 = vcombine.high %v1560, %v1560
  %v1583 = vcombine.high %v1567, %v1567
  %v1584 = vcombine.high %v1574, %v1574
  %v1585 = vcombine.high %v1581, %v1581
  %v1594 = vadd.f32 %v1521, %v1560
  %v1595 = vadd.f32 %v1523, %v1574
  %v1596 = vadd.f32 %v1525, %v1582
  %v1597 = vadd.f32 %v1527, %v1584
  %v1598 = vadd.f32 %v1529, %v1567
  %v1599 = vadd.f32 %v1531, %v1581
  %v1600 = vadd.f32 %v1533, %v1583
  %v1601 = vadd.f32 %v1535, %v1585
  %v1602 = vxor.u32 %v1594, 2147483648
  %v1603 = vxor.u32 %v1595, 2147483648
  %v1604 = vxor.u32 %v1596, 2147483648
  %v1605 = vxor.u32 %v1597, 2147483648
  %v1606 = vxor.u32 %v1598, 2147483648
  %v1607 = vxor.u32 %v1599, 2147483648
  %v1608 = vxor.u32 %v1600, 2147483648
  %v1609 = vxor.u32 %v1601, 2147483648
  %v1610 = vmul.f32 %v1602, 1.442695
  %v1611 = vpow.pop %v1610
  %v1612 = vmul.f32 %v1603, 1.442695
  %v1613 = vpow.pop %v1612
  %v1614 = vmul.f32 %v1604, 1.442695
  %v1615 = vpow.pop %v1614
  %v1616 = vmul.f32 %v1605, 1.442695
  %v1617 = vpow.pop %v1616
  %v1618 = vmul.f32 %v1606, 1.442695
  %v1619 = vpow.pop %v1618
  %v1620 = vmul.f32 %v1607, 1.442695
  %v1621 = vpow.pop %v1620
  %v1622 = vmul.f32 %v1608, 1.442695
  %v1623 = vpow.pop %v1622
  %v1624 = vmul.f32 %v1609, 1.442695
  %v1625 = vpow.pop %v1624
  %v1626 = vadd.f32 %v1611, 1.0
  %v1627 = vadd.f32 %v1613, 1.0
  %v1628 = vadd.f32 %v1615, 1.0
  %v1629 = vadd.f32 %v1617, 1.0
  %v1630 = vadd.f32 %v1619, 1.0
  %v1631 = vadd.f32 %v1621, 1.0
  %v1632 = vadd.f32 %v1623, 1.0
  %v1633 = vadd.f32 %v1625, 1.0
  %v1634 = vrcp.pop %v1626
  %v1635 = vmul.f32 1.0, %v1634
  %v1636 = vrcp.pop %v1627
  %v1637 = vmul.f32 1.0, %v1636
  %v1638 = vrcp.pop %v1628
  %v1639 = vmul.f32 1.0, %v1638
  %v1640 = vrcp.pop %v1629
  %v1641 = vmul.f32 1.0, %v1640
  %v1642 = vrcp.pop %v1630
  %v1643 = vmul.f32 1.0, %v1642
  %v1644 = vrcp.pop %v1631
  %v1645 = vmul.f32 1.0, %v1644
  %v1646 = vrcp.pop %v1632
  %v1647 = vmul.f32 1.0, %v1646
  %v1648 = vrcp.pop %v1633
  %v1649 = vmul.f32 1.0, %v1648
  %v1658 = vrot.slane %v1521, 1
  %v1659 = vrot.slane %v1523, 1
  %v1660 = vrot.slane %v1525, 1
  %v1661 = vrot.slane %v1527, 1
  %v1662 = vrot.slane %v1529, 1
  %v1663 = vrot.slane %v1531, 1
  %v1664 = vrot.slane %v1533, 1
  %v1665 = vrot.slane %v1535, 1
  %v1675 = vcombine.high %v1448, %v1448
  %v1677 = vunpack.c.l.s4 1966171168
  %v1678 = vunpack.c.0.s8 %v1677
  %v1679 = vlaneseq
  %v1680 = vshrl.u32 %v1679, 7
  %v1681 = vsub.s32 %v1678, %v1680
  %v1682 = vrot.slane %v1448, %v1681
  %v1684 = vunpack.c.l.s4 1966171168
  %v1685 = vunpack.c.0.s8 %v1684
  %v1686 = vlaneseq
  %v1687 = vshrl.u32 %v1686, 7
  %v1688 = vsub.s32 %v1685, %v1687
  %v1689 = vrot.slane %v1675, %v1688
  %v1690 = vcombine.high %v1682, %v1682
  %v1691 = vcombine.high %v1689, %v1689
  %v1693 = vunpack.c.l.s4 1966171168
  %v1694 = vunpack.c.0.s8 %v1693
  %v1695 = vlaneseq
  %v1696 = vshrl.u32 %v1695, 7
  %v1697 = vsub.s32 %v1694, %v1696
  %v1698 = vrot.slane %v1682, %v1697
  %v1700 = vunpack.c.l.s4 1966171168
  %v1701 = vunpack.c.0.s8 %v1700
  %v1702 = vlaneseq
  %v1703 = vshrl.u32 %v1702, 7
  %v1704 = vsub.s32 %v1701, %v1703
  %v1705 = vrot.slane %v1689, %v1704
  %v1707 = vunpack.c.l.s4 1966171168
  %v1708 = vunpack.c.0.s8 %v1707
  %v1709 = vlaneseq
  %v1710 = vshrl.u32 %v1709, 7
  %v1711 = vsub.s32 %v1708, %v1710
  %v1712 = vrot.slane %v1690, %v1711
  %v1714 = vunpack.c.l.s4 1966171168
  %v1715 = vunpack.c.0.s8 %v1714
  %v1716 = vlaneseq
  %v1717 = vshrl.u32 %v1716, 7
  %v1718 = vsub.s32 %v1715, %v1717
  %v1719 = vrot.slane %v1691, %v1718
  %v1720 = vcombine.high %v1698, %v1698
  %v1721 = vcombine.high %v1705, %v1705
  %v1722 = vcombine.high %v1712, %v1712
  %v1723 = vcombine.high %v1719, %v1719
  %v1732 = vadd.f32 %v1658, %v1698
  %v1733 = vadd.f32 %v1659, %v1712
  %v1734 = vadd.f32 %v1660, %v1720
  %v1735 = vadd.f32 %v1661, %v1722
  %v1736 = vadd.f32 %v1662, %v1705
  %v1737 = vadd.f32 %v1663, %v1719
  %v1738 = vadd.f32 %v1664, %v1721
  %v1739 = vadd.f32 %v1665, %v1723
  %v1740 = vxor.u32 %v1732, 2147483648
  %v1741 = vxor.u32 %v1733, 2147483648
  %v1742 = vxor.u32 %v1734, 2147483648
  %v1743 = vxor.u32 %v1735, 2147483648
  %v1744 = vxor.u32 %v1736, 2147483648
  %v1745 = vxor.u32 %v1737, 2147483648
  %v1746 = vxor.u32 %v1738, 2147483648
  %v1747 = vxor.u32 %v1739, 2147483648
  %v1748 = vmul.f32 %v1740, 1.442695
  %v1749 = vpow.pop %v1748
  %v1750 = vmul.f32 %v1741, 1.442695
  %v1751 = vpow.pop %v1750
  %v1752 = vmul.f32 %v1742, 1.442695
  %v1753 = vpow.pop %v1752
  %v1754 = vmul.f32 %v1743, 1.442695
  %v1755 = vpow.pop %v1754
  %v1756 = vmul.f32 %v1744, 1.442695
  %v1757 = vpow.pop %v1756
  %v1758 = vmul.f32 %v1745, 1.442695
  %v1759 = vpow.pop %v1758
  %v1760 = vmul.f32 %v1746, 1.442695
  %v1761 = vpow.pop %v1760
  %v1762 = vmul.f32 %v1747, 1.442695
  %v1763 = vpow.pop %v1762
  %v1764 = vadd.f32 %v1749, 1.0
  %v1765 = vadd.f32 %v1751, 1.0
  %v1766 = vadd.f32 %v1753, 1.0
  %v1767 = vadd.f32 %v1755, 1.0
  %v1768 = vadd.f32 %v1757, 1.0
  %v1769 = vadd.f32 %v1759, 1.0
  %v1770 = vadd.f32 %v1761, 1.0
  %v1771 = vadd.f32 %v1763, 1.0
  %v1772 = vrcp.pop %v1764
  %v1773 = vmul.f32 1.0, %v1772
  %v1774 = vrcp.pop %v1765
  %v1775 = vmul.f32 1.0, %v1774
  %v1776 = vrcp.pop %v1766
  %v1777 = vmul.f32 1.0, %v1776
  %v1778 = vrcp.pop %v1767
  %v1779 = vmul.f32 1.0, %v1778
  %v1780 = vrcp.pop %v1768
  %v1781 = vmul.f32 1.0, %v1780
  %v1782 = vrcp.pop %v1769
  %v1783 = vmul.f32 1.0, %v1782
  %v1784 = vrcp.pop %v1770
  %v1785 = vmul.f32 1.0, %v1784
  %v1786 = vrcp.pop %v1771
  %v1787 = vmul.f32 1.0, %v1786
  %v1788 = vadd.f32 %v1517, %v481
  %v1790 = vcombine.high %v1788, %v1788
  %v1792 = vunpack.c.l.s4 1966171168
  %v1793 = vunpack.c.0.s8 %v1792
  %v1794 = vlaneseq
  %v1795 = vshrl.u32 %v1794, 7
  %v1796 = vsub.s32 %v1793, %v1795
  %v1797 = vrot.slane %v1788, %v1796
  %v1799 = vunpack.c.l.s4 1966171168
  %v1800 = vunpack.c.0.s8 %v1799
  %v1801 = vlaneseq
  %v1802 = vshrl.u32 %v1801, 7
  %v1803 = vsub.s32 %v1800, %v1802
  %v1804 = vrot.slane %v1790, %v1803
  %v1805 = vcombine.high %v1797, %v1797
  %v1806 = vcombine.high %v1804, %v1804
  %v1808 = vunpack.c.l.s4 1966171168
  %v1809 = vunpack.c.0.s8 %v1808
  %v1810 = vlaneseq
  %v1811 = vshrl.u32 %v1810, 7
  %v1812 = vsub.s32 %v1809, %v1811
  %v1813 = vrot.slane %v1797, %v1812
  %v1815 = vunpack.c.l.s4 1966171168
  %v1816 = vunpack.c.0.s8 %v1815
  %v1817 = vlaneseq
  %v1818 = vshrl.u32 %v1817, 7
  %v1819 = vsub.s32 %v1816, %v1818
  %v1820 = vrot.slane %v1804, %v1819
  %v1822 = vunpack.c.l.s4 1966171168
  %v1823 = vunpack.c.0.s8 %v1822
  %v1824 = vlaneseq
  %v1825 = vshrl.u32 %v1824, 7
  %v1826 = vsub.s32 %v1823, %v1825
  %v1827 = vrot.slane %v1805, %v1826
  %v1829 = vunpack.c.l.s4 1966171168
  %v1830 = vunpack.c.0.s8 %v1829
  %v1831 = vlaneseq
  %v1832 = vshrl.u32 %v1831, 7
  %v1833 = vsub.s32 %v1830, %v1832
  %v1834 = vrot.slane %v1806, %v1833
  %v1835 = vcombine.high %v1813, %v1813
  %v1836 = vcombine.high %v1820, %v1820
  %v1837 = vcombine.high %v1827, %v1827
  %v1838 = vcombine.high %v1834, %v1834
  %v1847 = vmul.f32 %v1635, %v1813
  %v1848 = vmul.f32 %v1637, %v1827
  %v1849 = vmul.f32 %v1639, %v1835
  %v1850 = vmul.f32 %v1641, %v1837
  %v1851 = vmul.f32 %v1643, %v1820
  %v1852 = vmul.f32 %v1645, %v1834
  %v1853 = vmul.f32 %v1647, %v1836
  %v1854 = vmul.f32 %v1649, %v1838
  %v1855 = vrot.slane %v1521, 2
  %v1856 = vrot.slane %v1523, 2
  %v1857 = vrot.slane %v1525, 2
  %v1858 = vrot.slane %v1527, 2
  %v1859 = vrot.slane %v1529, 2
  %v1860 = vrot.slane %v1531, 2
  %v1861 = vrot.slane %v1533, 2
  %v1862 = vrot.slane %v1535, 2
  %v1871 = vadd.f32 %v1855, %v1847
  %v1872 = vadd.f32 %v1856, %v1848
  %v1873 = vadd.f32 %v1857, %v1849
  %v1874 = vadd.f32 %v1858, %v1850
  %v1875 = vadd.f32 %v1859, %v1851
  %v1876 = vadd.f32 %v1860, %v1852
  %v1877 = vadd.f32 %v1861, %v1853
  %v1878 = vadd.f32 %v1862, %v1854
  %v1879 = vtanh.pop %v1871
  %v1880 = vtanh.pop %v1872
  %v1881 = vtanh.pop %v1873
  %v1882 = vtanh.pop %v1874
  %v1883 = vtanh.pop %v1875
  %v1884 = vtanh.pop %v1876
  %v1885 = vtanh.pop %v1877
  %v1886 = vtanh.pop %v1878
  %v1887 = vsub.f32 %v1305, %v1879
  %v1888 = vsub.f32 %v1306, %v1880
  %v1889 = vsub.f32 %v1307, %v1881
  %v1890 = vsub.f32 %v1308, %v1882
  %v1891 = vsub.f32 %v1309, %v1883
  %v1892 = vsub.f32 %v1310, %v1884
  %v1893 = vsub.f32 %v1311, %v1885
  %v1894 = vsub.f32 %v1312, %v1886
  %v1895 = vmul.f32 %v1773, %v1887
  %v1896 = vmul.f32 %v1775, %v1888
  %v1897 = vmul.f32 %v1777, %v1889
  %v1898 = vmul.f32 %v1779, %v1890
  %v1899 = vmul.f32 %v1781, %v1891
  %v1900 = vmul.f32 %v1783, %v1892
  %v1901 = vmul.f32 %v1785, %v1893
  %v1902 = vmul.f32 %v1787, %v1894
  %v1903 = vadd.f32 %v1879, %v1895
  %v1904 = vadd.f32 %v1880, %v1896
  %v1905 = vadd.f32 %v1881, %v1897
  %v1906 = vadd.f32 %v1882, %v1898
  %v1907 = vadd.f32 %v1883, %v1899
  %v1908 = vadd.f32 %v1884, %v1900
  %v1909 = vadd.f32 %v1885, %v1901
  %v1910 = vadd.f32 %v1886, %v1902
  %1911 = vst [vmem:[%s3 + $0x2] sm:$0x1] %v1903
  %1912 = vst [vmem:[%s3 + $0x12] sm:$0x1] %v1904
  %1913 = vst [vmem:[%s3 + $0x22] sm:$0x1] %v1905
  %1914 = vst [vmem:[%s3 + $0x32] sm:$0x1] %v1906
  %1915 = vst [vmem:[%s3 + $0x42] sm:$0x1] %v1907
  %1916 = vst [vmem:[%s3 + $0x52] sm:$0x1] %v1908
  %1917 = vst [vmem:[%s3 + $0x62] sm:$0x1] %v1909
  %1918 = vst [vmem:[%s3 + $0x72] sm:$0x1] %v1910
  %v1927 = vcombine.low %v1903, %v1904
  %v1928 = vcombine.low %v1905, %v1906
  %v1929 = vcombine.low %v1907, %v1908
  %v1930 = vcombine.low %v1909, %v1910
  %v1932 = vunpack.c.l.s4 1966171168
  %v1933 = vunpack.c.0.s8 %v1932
  %v1934 = vlaneseq
  %v1935 = vshrl.u32 %v1934, 7
  %v1936 = vsub.s32 %v1933, %v1935
  %v1937 = vrot.slane %v1927, %v1936
  %v1939 = vunpack.c.l.s4 1966171168
  %v1940 = vunpack.c.0.s8 %v1939
  %v1941 = vlaneseq
  %v1942 = vshrl.u32 %v1941, 7
  %v1943 = vsub.s32 %v1940, %v1942
  %v1944 = vrot.slane %v1928, %v1943
  %v1946 = vunpack.c.l.s4 1966171168
  %v1947 = vunpack.c.0.s8 %v1946
  %v1948 = vlaneseq
  %v1949 = vshrl.u32 %v1948, 7
  %v1950 = vsub.s32 %v1947, %v1949
  %v1951 = vrot.slane %v1929, %v1950
  %v1953 = vunpack.c.l.s4 1966171168
  %v1954 = vunpack.c.0.s8 %v1953
  %v1955 = vlaneseq
  %v1956 = vshrl.u32 %v1955, 7
  %v1957 = vsub.s32 %v1954, %v1956
  %v1958 = vrot.slane %v1930, %v1957
  %v1959 = vcombine.low %v1937, %v1944
  %v1960 = vcombine.low %v1951, %v1958
  %v1962 = vunpack.c.l.s4 1966171168
  %v1963 = vunpack.c.0.s8 %v1962
  %v1964 = vlaneseq
  %v1965 = vshrl.u32 %v1964, 7
  %v1966 = vsub.s32 %v1963, %v1965
  %v1967 = vrot.slane %v1959, %v1966
  %v1969 = vunpack.c.l.s4 1966171168
  %v1970 = vunpack.c.0.s8 %v1969
  %v1971 = vlaneseq
  %v1972 = vshrl.u32 %v1971, 7
  %v1973 = vsub.s32 %v1970, %v1972
  %v1974 = vrot.slane %v1960, %v1973
  %v1975 = vcombine.low %v1967, %v1974
  %1977 = vmatprep.subr.mxu0 %v20
  %1978 = vmatpush1.msra.mxu0 %v19
  %1979 = vmatprep.subr.mxu0 %v23
  %1980 = vmatpush1.msra.mxu0 %v22
  %1981 = vmatprep.subr.mxu0 %v26
  %1982 = vmatpush1.msra.mxu0 %v25
  %1983 = vmatprep.subr.mxu0 %v29
  %1984 = vmatpush1.msra.mxu0 %v28
  %1985 = vmatprep.subr.mxu0 %v32
  %1986 = vmatpush1.msra.mxu0 %v31
  %1987 = vmatprep.subr.mxu0 %v35
  %1988 = vmatpush1.msra.mxu0 %v34
  %1989 = vmatprep.subr.mxu0 %v38
  %1990 = vmatpush1.msra.mxu0 %v37
  %1991 = vmatprep.subr.mxu0 %v41
  %1992 = vmatpush1.msra.mxu0 %v40
  %1993 = vmatprep.subr.mxu0 %v44
  %1994 = vmatpush1.msra.mxu0 %v43
  %1995 = vmatprep.subr.mxu0 %v47
  %1996 = vmatpush1.msra.mxu0 %v46
  %1997 = vmatprep.subr.mxu0 %v50
  %1998 = vmatpush1.msra.mxu0 %v49
  %1999 = vmatprep.subr.mxu0 %v53
  %2000 = vmatpush1.msra.mxu0 %v52
  %2001 = vmatprep.subr.mxu0 %v56
  %2002 = vmatpush1.msra.mxu0 %v55
  %2003 = vmatprep.subr.mxu0 %v59
  %2004 = vmatpush1.msra.mxu0 %v58
  %2005 = vmatprep.subr.mxu0 %v62
  %2006 = vmatpush1.msra.mxu0 %v61
  %2007 = vmatprep.subr.mxu0 %v65
  %2008 = vmatpush1.msra.mxu0 %v64
  %2009 = vmatprep.subr.mxu0 0.0
  %2010 = vmatpush1.msra.mxu0 0.0
  %2011 = vmatprep.subr.mxu0 0.0
  %2012 = vmatpush1.msra.mxu0 0.0
  %2013 = vmatprep.subr.mxu0 0.0
  %2014 = vmatpush1.msra.mxu0 0.0
  %2015 = vmatprep.subr.mxu0 0.0
  %2016 = vmatpush1.msra.mxu0 0.0
  %2017 = vmatprep.subr.mxu0 0.0
  %2018 = vmatpush1.msra.mxu0 0.0
  %2019 = vmatprep.subr.mxu0 0.0
  %2020 = vmatpush1.msra.mxu0 0.0
  %2021 = vmatprep.subr.mxu0 0.0
  %2022 = vmatpush1.msra.mxu0 0.0
  %2023 = vmatprep.subr.mxu0 0.0
  %2024 = vmatpush1.msra.mxu0 0.0
  %2025 = vmatprep.subr.mxu0 0.0
  %2026 = vmatpush1.msra.mxu0 0.0
  %2027 = vmatprep.subr.mxu0 0.0
  %2028 = vmatpush1.msra.mxu0 0.0
  %2029 = vmatprep.subr.mxu0 0.0
  %2030 = vmatpush1.msra.mxu0 0.0
  %2031 = vmatprep.subr.mxu0 0.0
  %2032 = vmatpush1.msra.mxu0 0.0
  %2033 = vmatprep.subr.mxu0 0.0
  %2034 = vmatpush1.msra.mxu0 0.0
  %2035 = vmatprep.subr.mxu0 0.0
  %2036 = vmatpush1.msra.mxu0 0.0
  %2037 = vmatprep.subr.mxu0 0.0
  %2038 = vmatpush1.msra.mxu0 0.0
  %2039 = vmatprep.subr.mxu0 0.0
  %2040 = vmatpush1.msra.mxu0 0.0
  %2041 = vmatprep.mubr.f32.mxu0 0.0
  %2042 = vmatmul.mubr.f32.gmra.mrb[0].mxu0 %v1975
  %v2043 = vpop.f32.mrb[0].mxu0
  %v2044 = vadd.f32 0.0, %v2043
  %v2045 = vpop.f32.mrb[0].mxu0
  %v2046 = vadd.f32 0.0, %v2045
  %2047 = vdwg.mxu0
  %2048 = vmatprep.subr.mxu0 0.0
  %2049 = vmatpush1.msra.mxu0 %v21
  %2050 = vmatprep.subr.mxu0 0.0
  %2051 = vmatpush1.msra.mxu0 %v24
  %2052 = vmatprep.subr.mxu0 0.0
  %2053 = vmatpush1.msra.mxu0 %v27
  %2054 = vmatprep.subr.mxu0 0.0
  %2055 = vmatpush1.msra.mxu0 %v30
  %2056 = vmatprep.subr.mxu0 0.0
  %2057 = vmatpush1.msra.mxu0 %v33
  %2058 = vmatprep.subr.mxu0 0.0
  %2059 = vmatpush1.msra.mxu0 %v36
  %2060 = vmatprep.subr.mxu0 0.0
  %2061 = vmatpush1.msra.mxu0 %v39
  %2062 = vmatprep.subr.mxu0 0.0
  %2063 = vmatpush1.msra.mxu0 %v42
  %2064 = vmatprep.subr.mxu0 0.0
  %2065 = vmatpush1.msra.mxu0 %v45
  %2066 = vmatprep.subr.mxu0 0.0
  %2067 = vmatpush1.msra.mxu0 %v48
  %2068 = vmatprep.subr.mxu0 0.0
  %2069 = vmatpush1.msra.mxu0 %v51
  %2070 = vmatprep.subr.mxu0 0.0
  %2071 = vmatpush1.msra.mxu0 %v54
  %2072 = vmatprep.subr.mxu0 0.0
  %2073 = vmatpush1.msra.mxu0 %v57
  %2074 = vmatprep.subr.mxu0 0.0
  %2075 = vmatpush1.msra.mxu0 %v60
  %2076 = vmatprep.subr.mxu0 0.0
  %2077 = vmatpush1.msra.mxu0 %v63
  %2078 = vmatprep.subr.mxu0 0.0
  %2079 = vmatpush1.msra.mxu0 %v66
  %2080 = vmatprep.subr.mxu0 0.0
  %2081 = vmatpush1.msra.mxu0 0.0
  %2082 = vmatprep.subr.mxu0 0.0
  %2083 = vmatpush1.msra.mxu0 0.0
  %2084 = vmatprep.subr.mxu0 0.0
  %2085 = vmatpush1.msra.mxu0 0.0
  %2086 = vmatprep.subr.mxu0 0.0
  %2087 = vmatpush1.msra.mxu0 0.0
  %2088 = vmatprep.subr.mxu0 0.0
  %2089 = vmatpush1.msra.mxu0 0.0
  %2090 = vmatprep.subr.mxu0 0.0
  %2091 = vmatpush1.msra.mxu0 0.0
  %2092 = vmatprep.subr.mxu0 0.0
  %2093 = vmatpush1.msra.mxu0 0.0
  %2094 = vmatprep.subr.mxu0 0.0
  %2095 = vmatpush1.msra.mxu0 0.0
  %2096 = vmatprep.subr.mxu0 0.0
  %2097 = vmatpush1.msra.mxu0 0.0
  %2098 = vmatprep.subr.mxu0 0.0
  %2099 = vmatpush1.msra.mxu0 0.0
  %2100 = vmatprep.subr.mxu0 0.0
  %2101 = vmatpush1.msra.mxu0 0.0
  %2102 = vmatprep.subr.mxu0 0.0
  %2103 = vmatpush1.msra.mxu0 0.0
  %2104 = vmatprep.subr.mxu0 0.0
  %2105 = vmatpush1.msra.mxu0 0.0
  %2106 = vmatprep.subr.mxu0 0.0
  %2107 = vmatpush1.msra.mxu0 0.0
  %2108 = vmatprep.subr.mxu0 0.0
  %2109 = vmatpush1.msra.mxu0 0.0
  %2110 = vmatprep.subr.mxu0 0.0
  %2111 = vmatpush1.msra.mxu0 0.0
  %2112 = vmatprep.mubr.f32.mxu0 0.0
  %2113 = vmatmul.mubr.f32.gmra.mrb[0].mxu0 %v1975
  %v2114 = vpop.f32.mrb[0].mxu0
  %v2115 = vadd.f32 0.0, %v2114
  %v2116 = vpop.f32.mrb[0].mxu0
  %2117 = vdwg.mxu0
  %s2118 = scalar_lea.vmem %s0, 3
  %v2119 = vld [vmem:[%s2118] ss:$8 sm:$0x7]
  %s2120 = scalar_lea.vmem %s0, 51
  %v2121 = vld [vmem:[%s2120] ss:$8 sm:$0x7]
  %s2122 = scalar_lea.vmem %s0, 99
  %v2123 = vld [vmem:[%s2122] ss:$8 sm:$0x7]
  %s2124 = scalar_lea.vmem %s0, 147
  %v2125 = vld [vmem:[%s2124] ss:$8 sm:$0x7]
  %s2126 = scalar_lea.vmem %s0, 195
  %v2127 = vld [vmem:[%s2126] ss:$8 sm:$0x7]
  %s2128 = scalar_lea.vmem %s0, 243
  %v2129 = vld [vmem:[%s2128] ss:$8 sm:$0x7]
  %s2130 = scalar_lea.vmem %s0, 291
  %v2131 = vld [vmem:[%s2130] ss:$8 sm:$0x7]
  %s2132 = scalar_lea.vmem %s0, 339
  %v2133 = vld [vmem:[%s2132] ss:$8 sm:$0x7]
  %v2135 = vcombine.high %v2044, %v2044
  %v2137 = vunpack.c.l.s4 1966171168
  %v2138 = vunpack.c.0.s8 %v2137
  %v2139 = vlaneseq
  %v2140 = vshrl.u32 %v2139, 7
  %v2141 = vsub.s32 %v2138, %v2140
  %v2142 = vrot.slane %v2044, %v2141
  %v2144 = vunpack.c.l.s4 1966171168
  %v2145 = vunpack.c.0.s8 %v2144
  %v2146 = vlaneseq
  %v2147 = vshrl.u32 %v2146, 7
  %v2148 = vsub.s32 %v2145, %v2147
  %v2149 = vrot.slane %v2135, %v2148
  %v2150 = vcombine.high %v2142, %v2142
  %v2151 = vcombine.high %v2149, %v2149
  %v2153 = vunpack.c.l.s4 1966171168
  %v2154 = vunpack.c.0.s8 %v2153
  %v2155 = vlaneseq
  %v2156 = vshrl.u32 %v2155, 7
  %v2157 = vsub.s32 %v2154, %v2156
  %v2158 = vrot.slane %v2142, %v2157
  %v2160 = vunpack.c.l.s4 1966171168
  %v2161 = vunpack.c.0.s8 %v2160
  %v2162 = vlaneseq
  %v2163 = vshrl.u32 %v2162, 7
  %v2164 = vsub.s32 %v2161, %v2163
  %v2165 = vrot.slane %v2149, %v2164
  %v2167 = vunpack.c.l.s4 1966171168
  %v2168 = vunpack.c.0.s8 %v2167
  %v2169 = vlaneseq
  %v2170 = vshrl.u32 %v2169, 7
  %v2171 = vsub.s32 %v2168, %v2170
  %v2172 = vrot.slane %v2150, %v2171
  %v2174 = vunpack.c.l.s4 1966171168
  %v2175 = vunpack.c.0.s8 %v2174
  %v2176 = vlaneseq
  %v2177 = vshrl.u32 %v2176, 7
  %v2178 = vsub.s32 %v2175, %v2177
  %v2179 = vrot.slane %v2151, %v2178
  %v2180 = vcombine.high %v2158, %v2158
  %v2181 = vcombine.high %v2165, %v2165
  %v2182 = vcombine.high %v2172, %v2172
  %v2183 = vcombine.high %v2179, %v2179
  %v2192 = vadd.f32 %v2119, %v2158
  %v2193 = vadd.f32 %v2121, %v2172
  %v2194 = vadd.f32 %v2123, %v2180
  %v2195 = vadd.f32 %v2125, %v2182
  %v2196 = vadd.f32 %v2127, %v2165
  %v2197 = vadd.f32 %v2129, %v2179
  %v2198 = vadd.f32 %v2131, %v2181
  %v2199 = vadd.f32 %v2133, %v2183
  %v2200 = vxor.u32 %v2192, 2147483648
  %v2201 = vxor.u32 %v2193, 2147483648
  %v2202 = vxor.u32 %v2194, 2147483648
  %v2203 = vxor.u32 %v2195, 2147483648
  %v2204 = vxor.u32 %v2196, 2147483648
  %v2205 = vxor.u32 %v2197, 2147483648
  %v2206 = vxor.u32 %v2198, 2147483648
  %v2207 = vxor.u32 %v2199, 2147483648
  %v2208 = vmul.f32 %v2200, 1.442695
  %v2209 = vpow.pop %v2208
  %v2210 = vmul.f32 %v2201, 1.442695
  %v2211 = vpow.pop %v2210
  %v2212 = vmul.f32 %v2202, 1.442695
  %v2213 = vpow.pop %v2212
  %v2214 = vmul.f32 %v2203, 1.442695
  %v2215 = vpow.pop %v2214
  %v2216 = vmul.f32 %v2204, 1.442695
  %v2217 = vpow.pop %v2216
  %v2218 = vmul.f32 %v2205, 1.442695
  %v2219 = vpow.pop %v2218
  %v2220 = vmul.f32 %v2206, 1.442695
  %v2221 = vpow.pop %v2220
  %v2222 = vmul.f32 %v2207, 1.442695
  %v2223 = vpow.pop %v2222
  %v2224 = vadd.f32 %v2209, 1.0
  %v2225 = vadd.f32 %v2211, 1.0
  %v2226 = vadd.f32 %v2213, 1.0
  %v2227 = vadd.f32 %v2215, 1.0
  %v2228 = vadd.f32 %v2217, 1.0
  %v2229 = vadd.f32 %v2219, 1.0
  %v2230 = vadd.f32 %v2221, 1.0
  %v2231 = vadd.f32 %v2223, 1.0
  %v2232 = vrcp.pop %v2224
  %v2233 = vmul.f32 1.0, %v2232
  %v2234 = vrcp.pop %v2225
  %v2235 = vmul.f32 1.0, %v2234
  %v2236 = vrcp.pop %v2226
  %v2237 = vmul.f32 1.0, %v2236
  %v2238 = vrcp.pop %v2227
  %v2239 = vmul.f32 1.0, %v2238
  %v2240 = vrcp.pop %v2228
  %v2241 = vmul.f32 1.0, %v2240
  %v2242 = vrcp.pop %v2229
  %v2243 = vmul.f32 1.0, %v2242
  %v2244 = vrcp.pop %v2230
  %v2245 = vmul.f32 1.0, %v2244
  %v2246 = vrcp.pop %v2231
  %v2247 = vmul.f32 1.0, %v2246
  %v2256 = vrot.slane %v2119, 1
  %v2257 = vrot.slane %v2121, 1
  %v2258 = vrot.slane %v2123, 1
  %v2259 = vrot.slane %v2125, 1
  %v2260 = vrot.slane %v2127, 1
  %v2261 = vrot.slane %v2129, 1
  %v2262 = vrot.slane %v2131, 1
  %v2263 = vrot.slane %v2133, 1
  %v2273 = vcombine.high %v2046, %v2046
  %v2275 = vunpack.c.l.s4 1966171168
  %v2276 = vunpack.c.0.s8 %v2275
  %v2277 = vlaneseq
  %v2278 = vshrl.u32 %v2277, 7
  %v2279 = vsub.s32 %v2276, %v2278
  %v2280 = vrot.slane %v2046, %v2279
  %v2282 = vunpack.c.l.s4 1966171168
  %v2283 = vunpack.c.0.s8 %v2282
  %v2284 = vlaneseq
  %v2285 = vshrl.u32 %v2284, 7
  %v2286 = vsub.s32 %v2283, %v2285
  %v2287 = vrot.slane %v2273, %v2286
  %v2288 = vcombine.high %v2280, %v2280
  %v2289 = vcombine.high %v2287, %v2287
  %v2291 = vunpack.c.l.s4 1966171168
  %v2292 = vunpack.c.0.s8 %v2291
  %v2293 = vlaneseq
  %v2294 = vshrl.u32 %v2293, 7
  %v2295 = vsub.s32 %v2292, %v2294
  %v2296 = vrot.slane %v2280, %v2295
  %v2298 = vunpack.c.l.s4 1966171168
  %v2299 = vunpack.c.0.s8 %v2298
  %v2300 = vlaneseq
  %v2301 = vshrl.u32 %v2300, 7
  %v2302 = vsub.s32 %v2299, %v2301
  %v2303 = vrot.slane %v2287, %v2302
  %v2305 = vunpack.c.l.s4 1966171168
  %v2306 = vunpack.c.0.s8 %v2305
  %v2307 = vlaneseq
  %v2308 = vshrl.u32 %v2307, 7
  %v2309 = vsub.s32 %v2306, %v2308
  %v2310 = vrot.slane %v2288, %v2309
  %v2312 = vunpack.c.l.s4 1966171168
  %v2313 = vunpack.c.0.s8 %v2312
  %v2314 = vlaneseq
  %v2315 = vshrl.u32 %v2314, 7
  %v2316 = vsub.s32 %v2313, %v2315
  %v2317 = vrot.slane %v2289, %v2316
  %v2318 = vcombine.high %v2296, %v2296
  %v2319 = vcombine.high %v2303, %v2303
  %v2320 = vcombine.high %v2310, %v2310
  %v2321 = vcombine.high %v2317, %v2317
  %v2330 = vadd.f32 %v2256, %v2296
  %v2331 = vadd.f32 %v2257, %v2310
  %v2332 = vadd.f32 %v2258, %v2318
  %v2333 = vadd.f32 %v2259, %v2320
  %v2334 = vadd.f32 %v2260, %v2303
  %v2335 = vadd.f32 %v2261, %v2317
  %v2336 = vadd.f32 %v2262, %v2319
  %v2337 = vadd.f32 %v2263, %v2321
  %v2338 = vxor.u32 %v2330, 2147483648
  %v2339 = vxor.u32 %v2331, 2147483648
  %v2340 = vxor.u32 %v2332, 2147483648
  %v2341 = vxor.u32 %v2333, 2147483648
  %v2342 = vxor.u32 %v2334, 2147483648
  %v2343 = vxor.u32 %v2335, 2147483648
  %v2344 = vxor.u32 %v2336, 2147483648
  %v2345 = vxor.u32 %v2337, 2147483648
  %v2346 = vmul.f32 %v2338, 1.442695
  %v2347 = vpow.pop %v2346
  %v2348 = vmul.f32 %v2339, 1.442695
  %v2349 = vpow.pop %v2348
  %v2350 = vmul.f32 %v2340, 1.442695
  %v2351 = vpow.pop %v2350
  %v2352 = vmul.f32 %v2341, 1.442695
  %v2353 = vpow.pop %v2352
  %v2354 = vmul.f32 %v2342, 1.442695
  %v2355 = vpow.pop %v2354
  %v2356 = vmul.f32 %v2343, 1.442695
  %v2357 = vpow.pop %v2356
  %v2358 = vmul.f32 %v2344, 1.442695
  %v2359 = vpow.pop %v2358
  %v2360 = vmul.f32 %v2345, 1.442695
  %v2361 = vpow.pop %v2360
  %v2362 = vadd.f32 %v2347, 1.0
  %v2363 = vadd.f32 %v2349, 1.0
  %v2364 = vadd.f32 %v2351, 1.0
  %v2365 = vadd.f32 %v2353, 1.0
  %v2366 = vadd.f32 %v2355, 1.0
  %v2367 = vadd.f32 %v2357, 1.0
  %v2368 = vadd.f32 %v2359, 1.0
  %v2369 = vadd.f32 %v2361, 1.0
  %v2370 = vrcp.pop %v2362
  %v2371 = vmul.f32 1.0, %v2370
  %v2372 = vrcp.pop %v2363
  %v2373 = vmul.f32 1.0, %v2372
  %v2374 = vrcp.pop %v2364
  %v2375 = vmul.f32 1.0, %v2374
  %v2376 = vrcp.pop %v2365
  %v2377 = vmul.f32 1.0, %v2376
  %v2378 = vrcp.pop %v2366
  %v2379 = vmul.f32 1.0, %v2378
  %v2380 = vrcp.pop %v2367
  %v2381 = vmul.f32 1.0, %v2380
  %v2382 = vrcp.pop %v2368
  %v2383 = vmul.f32 1.0, %v2382
  %v2384 = vrcp.pop %v2369
  %v2385 = vmul.f32 1.0, %v2384
  %v2386 = vadd.f32 %v2115, %v481
  %v2388 = vcombine.high %v2386, %v2386
  %v2390 = vunpack.c.l.s4 1966171168
  %v2391 = vunpack.c.0.s8 %v2390
  %v2392 = vlaneseq
  %v2393 = vshrl.u32 %v2392, 7
  %v2394 = vsub.s32 %v2391, %v2393
  %v2395 = vrot.slane %v2386, %v2394
  %v2397 = vunpack.c.l.s4 1966171168
  %v2398 = vunpack.c.0.s8 %v2397
  %v2399 = vlaneseq
  %v2400 = vshrl.u32 %v2399, 7
  %v2401 = vsub.s32 %v2398, %v2400
  %v2402 = vrot.slane %v2388, %v2401
  %v2403 = vcombine.high %v2395, %v2395
  %v2404 = vcombine.high %v2402, %v2402
  %v2406 = vunpack.c.l.s4 1966171168
  %v2407 = vunpack.c.0.s8 %v2406
  %v2408 = vlaneseq
  %v2409 = vshrl.u32 %v2408, 7
  %v2410 = vsub.s32 %v2407, %v2409
  %v2411 = vrot.slane %v2395, %v2410
  %v2413 = vunpack.c.l.s4 1966171168
  %v2414 = vunpack.c.0.s8 %v2413
  %v2415 = vlaneseq
  %v2416 = vshrl.u32 %v2415, 7
  %v2417 = vsub.s32 %v2414, %v2416
  %v2418 = vrot.slane %v2402, %v2417
  %v2420 = vunpack.c.l.s4 1966171168
  %v2421 = vunpack.c.0.s8 %v2420
  %v2422 = vlaneseq
  %v2423 = vshrl.u32 %v2422, 7
  %v2424 = vsub.s32 %v2421, %v2423
  %v2425 = vrot.slane %v2403, %v2424
  %v2427 = vunpack.c.l.s4 1966171168
  %v2428 = vunpack.c.0.s8 %v2427
  %v2429 = vlaneseq
  %v2430 = vshrl.u32 %v2429, 7
  %v2431 = vsub.s32 %v2428, %v2430
  %v2432 = vrot.slane %v2404, %v2431
  %v2433 = vcombine.high %v2411, %v2411
  %v2434 = vcombine.high %v2418, %v2418
  %v2435 = vcombine.high %v2425, %v2425
  %v2436 = vcombine.high %v2432, %v2432
  %v2445 = vmul.f32 %v2233, %v2411
  %v2446 = vmul.f32 %v2235, %v2425
  %v2447 = vmul.f32 %v2237, %v2433
  %v2448 = vmul.f32 %v2239, %v2435
  %v2449 = vmul.f32 %v2241, %v2418
  %v2450 = vmul.f32 %v2243, %v2432
  %v2451 = vmul.f32 %v2245, %v2434
  %v2452 = vmul.f32 %v2247, %v2436
  %v2453 = vrot.slane %v2119, 2
  %v2454 = vrot.slane %v2121, 2
  %v2455 = vrot.slane %v2123, 2
  %v2456 = vrot.slane %v2125, 2
  %v2457 = vrot.slane %v2127, 2
  %v2458 = vrot.slane %v2129, 2
  %v2459 = vrot.slane %v2131, 2
  %v2460 = vrot.slane %v2133, 2
  %v2469 = vadd.f32 %v2453, %v2445
  %v2470 = vadd.f32 %v2454, %v2446
  %v2471 = vadd.f32 %v2455, %v2447
  %v2472 = vadd.f32 %v2456, %v2448
  %v2473 = vadd.f32 %v2457, %v2449
  %v2474 = vadd.f32 %v2458, %v2450
  %v2475 = vadd.f32 %v2459, %v2451
  %v2476 = vadd.f32 %v2460, %v2452
  %v2477 = vtanh.pop %v2469
  %v2478 = vtanh.pop %v2470
  %v2479 = vtanh.pop %v2471
  %v2480 = vtanh.pop %v2472
  %v2481 = vtanh.pop %v2473
  %v2482 = vtanh.pop %v2474
  %v2483 = vtanh.pop %v2475
  %v2484 = vtanh.pop %v2476
  %v2485 = vsub.f32 %v1903, %v2477
  %v2486 = vsub.f32 %v1904, %v2478
  %v2487 = vsub.f32 %v1905, %v2479
  %v2488 = vsub.f32 %v1906, %v2480
  %v2489 = vsub.f32 %v1907, %v2481
  %v2490 = vsub.f32 %v1908, %v2482
  %v2491 = vsub.f32 %v1909, %v2483
  %v2492 = vsub.f32 %v1910, %v2484
  %v2493 = vmul.f32 %v2371, %v2485
  %v2494 = vmul.f32 %v2373, %v2486
  %v2495 = vmul.f32 %v2375, %v2487
  %v2496 = vmul.f32 %v2377, %v2488
  %v2497 = vmul.f32 %v2379, %v2489
  %v2498 = vmul.f32 %v2381, %v2490
  %v2499 = vmul.f32 %v2383, %v2491
  %v2500 = vmul.f32 %v2385, %v2492
  %v2501 = vadd.f32 %v2477, %v2493
  %v2502 = vadd.f32 %v2478, %v2494
  %v2503 = vadd.f32 %v2479, %v2495
  %v2504 = vadd.f32 %v2480, %v2496
  %v2505 = vadd.f32 %v2481, %v2497
  %v2506 = vadd.f32 %v2482, %v2498
  %v2507 = vadd.f32 %v2483, %v2499
  %v2508 = vadd.f32 %v2484, %v2500
  %2509 = vst [vmem:[%s3 + $0x3] sm:$0x1] %v2501
  %2510 = vst [vmem:[%s3 + $0x13] sm:$0x1] %v2502
  %2511 = vst [vmem:[%s3 + $0x23] sm:$0x1] %v2503
  %2512 = vst [vmem:[%s3 + $0x33] sm:$0x1] %v2504
  %2513 = vst [vmem:[%s3 + $0x43] sm:$0x1] %v2505
  %2514 = vst [vmem:[%s3 + $0x53] sm:$0x1] %v2506
  %2515 = vst [vmem:[%s3 + $0x63] sm:$0x1] %v2507
  %2516 = vst [vmem:[%s3 + $0x73] sm:$0x1] %v2508
  %v2525 = vcombine.low %v2501, %v2502
  %v2526 = vcombine.low %v2503, %v2504
  %v2527 = vcombine.low %v2505, %v2506
  %v2528 = vcombine.low %v2507, %v2508
  %v2530 = vunpack.c.l.s4 1966171168
  %v2531 = vunpack.c.0.s8 %v2530
  %v2532 = vlaneseq
  %v2533 = vshrl.u32 %v2532, 7
  %v2534 = vsub.s32 %v2531, %v2533
  %v2535 = vrot.slane %v2525, %v2534
  %v2537 = vunpack.c.l.s4 1966171168
  %v2538 = vunpack.c.0.s8 %v2537
  %v2539 = vlaneseq
  %v2540 = vshrl.u32 %v2539, 7
  %v2541 = vsub.s32 %v2538, %v2540
  %v2542 = vrot.slane %v2526, %v2541
  %v2544 = vunpack.c.l.s4 1966171168
  %v2545 = vunpack.c.0.s8 %v2544
  %v2546 = vlaneseq
  %v2547 = vshrl.u32 %v2546, 7
  %v2548 = vsub.s32 %v2545, %v2547
  %v2549 = vrot.slane %v2527, %v2548
  %v2551 = vunpack.c.l.s4 1966171168
  %v2552 = vunpack.c.0.s8 %v2551
  %v2553 = vlaneseq
  %v2554 = vshrl.u32 %v2553, 7
  %v2555 = vsub.s32 %v2552, %v2554
  %v2556 = vrot.slane %v2528, %v2555
  %v2557 = vcombine.low %v2535, %v2542
  %v2558 = vcombine.low %v2549, %v2556
  %v2560 = vunpack.c.l.s4 1966171168
  %v2561 = vunpack.c.0.s8 %v2560
  %v2562 = vlaneseq
  %v2563 = vshrl.u32 %v2562, 7
  %v2564 = vsub.s32 %v2561, %v2563
  %v2565 = vrot.slane %v2557, %v2564
  %v2567 = vunpack.c.l.s4 1966171168
  %v2568 = vunpack.c.0.s8 %v2567
  %v2569 = vlaneseq
  %v2570 = vshrl.u32 %v2569, 7
  %v2571 = vsub.s32 %v2568, %v2570
  %v2572 = vrot.slane %v2558, %v2571
  %v2573 = vcombine.low %v2565, %v2572
  %2575 = vmatprep.subr.mxu0 %v20
  %2576 = vmatpush1.msra.mxu0 %v19
  %2577 = vmatprep.subr.mxu0 %v23
  %2578 = vmatpush1.msra.mxu0 %v22
  %2579 = vmatprep.subr.mxu0 %v26
  %2580 = vmatpush1.msra.mxu0 %v25
  %2581 = vmatprep.subr.mxu0 %v29
  %2582 = vmatpush1.msra.mxu0 %v28
  %2583 = vmatprep.subr.mxu0 %v32
  %2584 = vmatpush1.msra.mxu0 %v31
  %2585 = vmatprep.subr.mxu0 %v35
  %2586 = vmatpush1.msra.mxu0 %v34
  %2587 = vmatprep.subr.mxu0 %v38
  %2588 = vmatpush1.msra.mxu0 %v37
  %2589 = vmatprep.subr.mxu0 %v41
  %2590 = vmatpush1.msra.mxu0 %v40
  %2591 = vmatprep.subr.mxu0 %v44
  %2592 = vmatpush1.msra.mxu0 %v43
  %2593 = vmatprep.subr.mxu0 %v47
  %2594 = vmatpush1.msra.mxu0 %v46
  %2595 = vmatprep.subr.mxu0 %v50
  %2596 = vmatpush1.msra.mxu0 %v49
  %2597 = vmatprep.subr.mxu0 %v53
  %2598 = vmatpush1.msra.mxu0 %v52
  %2599 = vmatprep.subr.mxu0 %v56
  %2600 = vmatpush1.msra.mxu0 %v55
  %2601 = vmatprep.subr.mxu0 %v59
  %2602 = vmatpush1.msra.mxu0 %v58
  %2603 = vmatprep.subr.mxu0 %v62
  %2604 = vmatpush1.msra.mxu0 %v61
  %2605 = vmatprep.subr.mxu0 %v65
  %2606 = vmatpush1.msra.mxu0 %v64
  %2607 = vmatprep.subr.mxu0 0.0
  %2608 = vmatpush1.msra.mxu0 0.0
  %2609 = vmatprep.subr.mxu0 0.0
  %2610 = vmatpush1.msra.mxu0 0.0
  %2611 = vmatprep.subr.mxu0 0.0
  %2612 = vmatpush1.msra.mxu0 0.0
  %2613 = vmatprep.subr.mxu0 0.0
  %2614 = vmatpush1.msra.mxu0 0.0
  %2615 = vmatprep.subr.mxu0 0.0
  %2616 = vmatpush1.msra.mxu0 0.0
  %2617 = vmatprep.subr.mxu0 0.0
  %2618 = vmatpush1.msra.mxu0 0.0
  %2619 = vmatprep.subr.mxu0 0.0
  %2620 = vmatpush1.msra.mxu0 0.0
  %2621 = vmatprep.subr.mxu0 0.0
  %2622 = vmatpush1.msra.mxu0 0.0
  %2623 = vmatprep.subr.mxu0 0.0
  %2624 = vmatpush1.msra.mxu0 0.0
  %2625 = vmatprep.subr.mxu0 0.0
  %2626 = vmatpush1.msra.mxu0 0.0
  %2627 = vmatprep.subr.mxu0 0.0
  %2628 = vmatpush1.msra.mxu0 0.0
  %2629 = vmatprep.subr.mxu0 0.0
  %2630 = vmatpush1.msra.mxu0 0.0
  %2631 = vmatprep.subr.mxu0 0.0
  %2632 = vmatpush1.msra.mxu0 0.0
  %2633 = vmatprep.subr.mxu0 0.0
  %2634 = vmatpush1.msra.mxu0 0.0
  %2635 = vmatprep.subr.mxu0 0.0
  %2636 = vmatpush1.msra.mxu0 0.0
  %2637 = vmatprep.subr.mxu0 0.0
  %2638 = vmatpush1.msra.mxu0 0.0
  %2639 = vmatprep.mubr.f32.mxu0 0.0
  %2640 = vmatmul.mubr.f32.gmra.mrb[0].mxu0 %v2573
  %v2641 = vpop.f32.mrb[0].mxu0
  %v2642 = vadd.f32 0.0, %v2641
  %v2643 = vpop.f32.mrb[0].mxu0
  %v2644 = vadd.f32 0.0, %v2643
  %2645 = vdwg.mxu0
  %2646 = vmatprep.subr.mxu0 0.0
  %2647 = vmatpush1.msra.mxu0 %v21
  %2648 = vmatprep.subr.mxu0 0.0
  %2649 = vmatpush1.msra.mxu0 %v24
  %2650 = vmatprep.subr.mxu0 0.0
  %2651 = vmatpush1.msra.mxu0 %v27
  %2652 = vmatprep.subr.mxu0 0.0
  %2653 = vmatpush1.msra.mxu0 %v30
  %2654 = vmatprep.subr.mxu0 0.0
  %2655 = vmatpush1.msra.mxu0 %v33
  %2656 = vmatprep.subr.mxu0 0.0
  %2657 = vmatpush1.msra.mxu0 %v36
  %2658 = vmatprep.subr.mxu0 0.0
  %2659 = vmatpush1.msra.mxu0 %v39
  %2660 = vmatprep.subr.mxu0 0.0
  %2661 = vmatpush1.msra.mxu0 %v42
  %2662 = vmatprep.subr.mxu0 0.0
  %2663 = vmatpush1.msra.mxu0 %v45
  %2664 = vmatprep.subr.mxu0 0.0
  %2665 = vmatpush1.msra.mxu0 %v48
  %2666 = vmatprep.subr.mxu0 0.0
  %2667 = vmatpush1.msra.mxu0 %v51
  %2668 = vmatprep.subr.mxu0 0.0
  %2669 = vmatpush1.msra.mxu0 %v54
  %2670 = vmatprep.subr.mxu0 0.0
  %2671 = vmatpush1.msra.mxu0 %v57
  %2672 = vmatprep.subr.mxu0 0.0
  %2673 = vmatpush1.msra.mxu0 %v60
  %2674 = vmatprep.subr.mxu0 0.0
  %2675 = vmatpush1.msra.mxu0 %v63
  %2676 = vmatprep.subr.mxu0 0.0
  %2677 = vmatpush1.msra.mxu0 %v66
  %2678 = vmatprep.subr.mxu0 0.0
  %2679 = vmatpush1.msra.mxu0 0.0
  %2680 = vmatprep.subr.mxu0 0.0
  %2681 = vmatpush1.msra.mxu0 0.0
  %2682 = vmatprep.subr.mxu0 0.0
  %2683 = vmatpush1.msra.mxu0 0.0
  %2684 = vmatprep.subr.mxu0 0.0
  %2685 = vmatpush1.msra.mxu0 0.0
  %2686 = vmatprep.subr.mxu0 0.0
  %2687 = vmatpush1.msra.mxu0 0.0
  %2688 = vmatprep.subr.mxu0 0.0
  %2689 = vmatpush1.msra.mxu0 0.0
  %2690 = vmatprep.subr.mxu0 0.0
  %2691 = vmatpush1.msra.mxu0 0.0
  %2692 = vmatprep.subr.mxu0 0.0
  %2693 = vmatpush1.msra.mxu0 0.0
  %2694 = vmatprep.subr.mxu0 0.0
  %2695 = vmatpush1.msra.mxu0 0.0
  %2696 = vmatprep.subr.mxu0 0.0
  %2697 = vmatpush1.msra.mxu0 0.0
  %2698 = vmatprep.subr.mxu0 0.0
  %2699 = vmatpush1.msra.mxu0 0.0
  %2700 = vmatprep.subr.mxu0 0.0
  %2701 = vmatpush1.msra.mxu0 0.0
  %2702 = vmatprep.subr.mxu0 0.0
  %2703 = vmatpush1.msra.mxu0 0.0
  %2704 = vmatprep.subr.mxu0 0.0
  %2705 = vmatpush1.msra.mxu0 0.0
  %2706 = vmatprep.subr.mxu0 0.0
  %2707 = vmatpush1.msra.mxu0 0.0
  %2708 = vmatprep.subr.mxu0 0.0
  %2709 = vmatpush1.msra.mxu0 0.0
  %2710 = vmatprep.mubr.f32.mxu0 0.0
  %2711 = vmatmul.mubr.f32.gmra.mrb[0].mxu0 %v2573
  %v2712 = vpop.f32.mrb[0].mxu0
  %v2713 = vadd.f32 0.0, %v2712
  %v2714 = vpop.f32.mrb[0].mxu0
  %2715 = vdwg.mxu0
  %s2716 = scalar_lea.vmem %s0, 4
  %v2717 = vld [vmem:[%s2716] ss:$8 sm:$0x7]
  %s2718 = scalar_lea.vmem %s0, 52
  %v2719 = vld [vmem:[%s2718] ss:$8 sm:$0x7]
  %s2720 = scalar_lea.vmem %s0, 100
  %v2721 = vld [vmem:[%s2720] ss:$8 sm:$0x7]
  %s2722 = scalar_lea.vmem %s0, 148
  %v2723 = vld [vmem:[%s2722] ss:$8 sm:$0x7]
  %s2724 = scalar_lea.vmem %s0, 196
  %v2725 = vld [vmem:[%s2724] ss:$8 sm:$0x7]
  %s2726 = scalar_lea.vmem %s0, 244
  %v2727 = vld [vmem:[%s2726] ss:$8 sm:$0x7]
  %s2728 = scalar_lea.vmem %s0, 292
  %v2729 = vld [vmem:[%s2728] ss:$8 sm:$0x7]
  %s2730 = scalar_lea.vmem %s0, 340
  %v2731 = vld [vmem:[%s2730] ss:$8 sm:$0x7]
  %v2733 = vcombine.high %v2642, %v2642
  %v2735 = vunpack.c.l.s4 1966171168
  %v2736 = vunpack.c.0.s8 %v2735
  %v2737 = vlaneseq
  %v2738 = vshrl.u32 %v2737, 7
  %v2739 = vsub.s32 %v2736, %v2738
  %v2740 = vrot.slane %v2642, %v2739
  %v2742 = vunpack.c.l.s4 1966171168
  %v2743 = vunpack.c.0.s8 %v2742
  %v2744 = vlaneseq
  %v2745 = vshrl.u32 %v2744, 7
  %v2746 = vsub.s32 %v2743, %v2745
  %v2747 = vrot.slane %v2733, %v2746
  %v2748 = vcombine.high %v2740, %v2740
  %v2749 = vcombine.high %v2747, %v2747
  %v2751 = vunpack.c.l.s4 1966171168
  %v2752 = vunpack.c.0.s8 %v2751
  %v2753 = vlaneseq
  %v2754 = vshrl.u32 %v2753, 7
  %v2755 = vsub.s32 %v2752, %v2754
  %v2756 = vrot.slane %v2740, %v2755
  %v2758 = vunpack.c.l.s4 1966171168
  %v2759 = vunpack.c.0.s8 %v2758
  %v2760 = vlaneseq
  %v2761 = vshrl.u32 %v2760, 7
  %v2762 = vsub.s32 %v2759, %v2761
  %v2763 = vrot.slane %v2747, %v2762
  %v2765 = vunpack.c.l.s4 1966171168
  %v2766 = vunpack.c.0.s8 %v2765
  %v2767 = vlaneseq
  %v2768 = vshrl.u32 %v2767, 7
  %v2769 = vsub.s32 %v2766, %v2768
  %v2770 = vrot.slane %v2748, %v2769
  %v2772 = vunpack.c.l.s4 1966171168
  %v2773 = vunpack.c.0.s8 %v2772
  %v2774 = vlaneseq
  %v2775 = vshrl.u32 %v2774, 7
  %v2776 = vsub.s32 %v2773, %v2775
  %v2777 = vrot.slane %v2749, %v2776
  %v2778 = vcombine.high %v2756, %v2756
  %v2779 = vcombine.high %v2763, %v2763
  %v2780 = vcombine.high %v2770, %v2770
  %v2781 = vcombine.high %v2777, %v2777
  %v2790 = vadd.f32 %v2717, %v2756
  %v2791 = vadd.f32 %v2719, %v2770
  %v2792 = vadd.f32 %v2721, %v2778
  %v2793 = vadd.f32 %v2723, %v2780
  %v2794 = vadd.f32 %v2725, %v2763
  %v2795 = vadd.f32 %v2727, %v2777
  %v2796 = vadd.f32 %v2729, %v2779
  %v2797 = vadd.f32 %v2731, %v2781
  %v2798 = vxor.u32 %v2790, 2147483648
  %v2799 = vxor.u32 %v2791, 2147483648
  %v2800 = vxor.u32 %v2792, 2147483648
  %v2801 = vxor.u32 %v2793, 2147483648
  %v2802 = vxor.u32 %v2794, 2147483648
  %v2803 = vxor.u32 %v2795, 2147483648
  %v2804 = vxor.u32 %v2796, 2147483648
  %v2805 = vxor.u32 %v2797, 2147483648
  %v2806 = vmul.f32 %v2798, 1.442695
  %v2807 = vpow.pop %v2806
  %v2808 = vmul.f32 %v2799, 1.442695
  %v2809 = vpow.pop %v2808
  %v2810 = vmul.f32 %v2800, 1.442695
  %v2811 = vpow.pop %v2810
  %v2812 = vmul.f32 %v2801, 1.442695
  %v2813 = vpow.pop %v2812
  %v2814 = vmul.f32 %v2802, 1.442695
  %v2815 = vpow.pop %v2814
  %v2816 = vmul.f32 %v2803, 1.442695
  %v2817 = vpow.pop %v2816
  %v2818 = vmul.f32 %v2804, 1.442695
  %v2819 = vpow.pop %v2818
  %v2820 = vmul.f32 %v2805, 1.442695
  %v2821 = vpow.pop %v2820
  %v2822 = vadd.f32 %v2807, 1.0
  %v2823 = vadd.f32 %v2809, 1.0
  %v2824 = vadd.f32 %v2811, 1.0
  %v2825 = vadd.f32 %v2813, 1.0
  %v2826 = vadd.f32 %v2815, 1.0
  %v2827 = vadd.f32 %v2817, 1.0
  %v2828 = vadd.f32 %v2819, 1.0
  %v2829 = vadd.f32 %v2821, 1.0
  %v2830 = vrcp.pop %v2822
  %v2831 = vmul.f32 1.0, %v2830
  %v2832 = vrcp.pop %v2823
  %v2833 = vmul.f32 1.0, %v2832
  %v2834 = vrcp.pop %v2824
  %v2835 = vmul.f32 1.0, %v2834
  %v2836 = vrcp.pop %v2825
  %v2837 = vmul.f32 1.0, %v2836
  %v2838 = vrcp.pop %v2826
  %v2839 = vmul.f32 1.0, %v2838
  %v2840 = vrcp.pop %v2827
  %v2841 = vmul.f32 1.0, %v2840
  %v2842 = vrcp.pop %v2828
  %v2843 = vmul.f32 1.0, %v2842
  %v2844 = vrcp.pop %v2829
  %v2845 = vmul.f32 1.0, %v2844
  %v2854 = vrot.slane %v2717, 1
  %v2855 = vrot.slane %v2719, 1
  %v2856 = vrot.slane %v2721, 1
  %v2857 = vrot.slane %v2723, 1
  %v2858 = vrot.slane %v2725, 1
  %v2859 = vrot.slane %v2727, 1
  %v2860 = vrot.slane %v2729, 1
  %v2861 = vrot.slane %v2731, 1
  %v2871 = vcombine.high %v2644, %v2644
  %v2873 = vunpack.c.l.s4 1966171168
  %v2874 = vunpack.c.0.s8 %v2873
  %v2875 = vlaneseq
  %v2876 = vshrl.u32 %v2875, 7
  %v2877 = vsub.s32 %v2874, %v2876
  %v2878 = vrot.slane %v2644, %v2877
  %v2880 = vunpack.c.l.s4 1966171168
  %v2881 = vunpack.c.0.s8 %v2880
  %v2882 = vlaneseq
  %v2883 = vshrl.u32 %v2882, 7
  %v2884 = vsub.s32 %v2881, %v2883
  %v2885 = vrot.slane %v2871, %v2884
  %v2886 = vcombine.high %v2878, %v2878
  %v2887 = vcombine.high %v2885, %v2885
  %v2889 = vunpack.c.l.s4 1966171168
  %v2890 = vunpack.c.0.s8 %v2889
  %v2891 = vlaneseq
  %v2892 = vshrl.u32 %v2891, 7
  %v2893 = vsub.s32 %v2890, %v2892
  %v2894 = vrot.slane %v2878, %v2893
  %v2896 = vunpack.c.l.s4 1966171168
  %v2897 = vunpack.c.0.s8 %v2896
  %v2898 = vlaneseq
  %v2899 = vshrl.u32 %v2898, 7
  %v2900 = vsub.s32 %v2897, %v2899
  %v2901 = vrot.slane %v2885, %v2900
  %v2903 = vunpack.c.l.s4 1966171168
  %v2904 = vunpack.c.0.s8 %v2903
  %v2905 = vlaneseq
  %v2906 = vshrl.u32 %v2905, 7
  %v2907 = vsub.s32 %v2904, %v2906
  %v2908 = vrot.slane %v2886, %v2907
  %v2910 = vunpack.c.l.s4 1966171168
  %v2911 = vunpack.c.0.s8 %v2910
  %v2912 = vlaneseq
  %v2913 = vshrl.u32 %v2912, 7
  %v2914 = vsub.s32 %v2911, %v2913
  %v2915 = vrot.slane %v2887, %v2914
  %v2916 = vcombine.high %v2894, %v2894
  %v2917 = vcombine.high %v2901, %v2901
  %v2918 = vcombine.high %v2908, %v2908
  %v2919 = vcombine.high %v2915, %v2915
  %v2928 = vadd.f32 %v2854, %v2894
  %v2929 = vadd.f32 %v2855, %v2908
  %v2930 = vadd.f32 %v2856, %v2916
  %v2931 = vadd.f32 %v2857, %v2918
  %v2932 = vadd.f32 %v2858, %v2901
  %v2933 = vadd.f32 %v2859, %v2915
  %v2934 = vadd.f32 %v2860, %v2917
  %v2935 = vadd.f32 %v2861, %v2919
  %v2936 = vxor.u32 %v2928, 2147483648
  %v2937 = vxor.u32 %v2929, 2147483648
  %v2938 = vxor.u32 %v2930, 2147483648
  %v2939 = vxor.u32 %v2931, 2147483648
  %v2940 = vxor.u32 %v2932, 2147483648
  %v2941 = vxor.u32 %v2933, 2147483648
  %v2942 = vxor.u32 %v2934, 2147483648
  %v2943 = vxor.u32 %v2935, 2147483648
  %v2944 = vmul.f32 %v2936, 1.442695
  %v2945 = vpow.pop %v2944
  %v2946 = vmul.f32 %v2937, 1.442695
  %v2947 = vpow.pop %v2946
  %v2948 = vmul.f32 %v2938, 1.442695
  %v2949 = vpow.pop %v2948
  %v2950 = vmul.f32 %v2939, 1.442695
  %v2951 = vpow.pop %v2950
  %v2952 = vmul.f32 %v2940, 1.442695
  %v2953 = vpow.pop %v2952
  %v2954 = vmul.f32 %v2941, 1.442695
  %v2955 = vpow.pop %v2954
  %v2956 = vmul.f32 %v2942, 1.442695
  %v2957 = vpow.pop %v2956
  %v2958 = vmul.f32 %v2943, 1.442695
  %v2959 = vpow.pop %v2958
  %v2960 = vadd.f32 %v2945, 1.0
  %v2961 = vadd.f32 %v2947, 1.0
  %v2962 = vadd.f32 %v2949, 1.0
  %v2963 = vadd.f32 %v2951, 1.0
  %v2964 = vadd.f32 %v2953, 1.0
  %v2965 = vadd.f32 %v2955, 1.0
  %v2966 = vadd.f32 %v2957, 1.0
  %v2967 = vadd.f32 %v2959, 1.0
  %v2968 = vrcp.pop %v2960
  %v2969 = vmul.f32 1.0, %v2968
  %v2970 = vrcp.pop %v2961
  %v2971 = vmul.f32 1.0, %v2970
  %v2972 = vrcp.pop %v2962
  %v2973 = vmul.f32 1.0, %v2972
  %v2974 = vrcp.pop %v2963
  %v2975 = vmul.f32 1.0, %v2974
  %v2976 = vrcp.pop %v2964
  %v2977 = vmul.f32 1.0, %v2976
  %v2978 = vrcp.pop %v2965
  %v2979 = vmul.f32 1.0, %v2978
  %v2980 = vrcp.pop %v2966
  %v2981 = vmul.f32 1.0, %v2980
  %v2982 = vrcp.pop %v2967
  %v2983 = vmul.f32 1.0, %v2982
  %v2984 = vadd.f32 %v2713, %v481
  %v2986 = vcombine.high %v2984, %v2984
  %v2988 = vunpack.c.l.s4 1966171168
  %v2989 = vunpack.c.0.s8 %v2988
  %v2990 = vlaneseq
  %v2991 = vshrl.u32 %v2990, 7
  %v2992 = vsub.s32 %v2989, %v2991
  %v2993 = vrot.slane %v2984, %v2992
  %v2995 = vunpack.c.l.s4 1966171168
  %v2996 = vunpack.c.0.s8 %v2995
  %v2997 = vlaneseq
  %v2998 = vshrl.u32 %v2997, 7
  %v2999 = vsub.s32 %v2996, %v2998
  %v3000 = vrot.slane %v2986, %v2999
  %v3001 = vcombine.high %v2993, %v2993
  %v3002 = vcombine.high %v3000, %v3000
  %v3004 = vunpack.c.l.s4 1966171168
  %v3005 = vunpack.c.0.s8 %v3004
  %v3006 = vlaneseq
  %v3007 = vshrl.u32 %v3006, 7
  %v3008 = vsub.s32 %v3005, %v3007
  %v3009 = vrot.slane %v2993, %v3008
  %v3011 = vunpack.c.l.s4 1966171168
  %v3012 = vunpack.c.0.s8 %v3011
  %v3013 = vlaneseq
  %v3014 = vshrl.u32 %v3013, 7
  %v3015 = vsub.s32 %v3012, %v3014
  %v3016 = vrot.slane %v3000, %v3015
  %v3018 = vunpack.c.l.s4 1966171168
  %v3019 = vunpack.c.0.s8 %v3018
  %v3020 = vlaneseq
  %v3021 = vshrl.u32 %v3020, 7
  %v3022 = vsub.s32 %v3019, %v3021
  %v3023 = vrot.slane %v3001, %v3022
  %v3025 = vunpack.c.l.s4 1966171168
  %v3026 = vunpack.c.0.s8 %v3025
  %v3027 = vlaneseq
  %v3028 = vshrl.u32 %v3027, 7
  %v3029 = vsub.s32 %v3026, %v3028
  %v3030 = vrot.slane %v3002, %v3029
  %v3031 = vcombine.high %v3009, %v3009
  %v3032 = vcombine.high %v3016, %v3016
  %v3033 = vcombine.high %v3023, %v3023
  %v3034 = vcombine.high %v3030, %v3030
  %v3043 = vmul.f32 %v2831, %v3009
  %v3044 = vmul.f32 %v2833, %v3023
  %v3045 = vmul.f32 %v2835, %v3031
  %v3046 = vmul.f32 %v2837, %v3033
  %v3047 = vmul.f32 %v2839, %v3016
  %v3048 = vmul.f32 %v2841, %v3030
  %v3049 = vmul.f32 %v2843, %v3032
  %v3050 = vmul.f32 %v2845, %v3034
  %v3051 = vrot.slane %v2717, 2
  %v3052 = vrot.slane %v2719, 2
  %v3053 = vrot.slane %v2721, 2
  %v3054 = vrot.slane %v2723, 2
  %v3055 = vrot.slane %v2725, 2
  %v3056 = vrot.slane %v2727, 2
  %v3057 = vrot.slane %v2729, 2
  %v3058 = vrot.slane %v2731, 2
  %v3067 = vadd.f32 %v3051, %v3043
  %v3068 = vadd.f32 %v3052, %v3044
  %v3069 = vadd.f32 %v3053, %v3045
  %v3070 = vadd.f32 %v3054, %v3046
  %v3071 = vadd.f32 %v3055, %v3047
  %v3072 = vadd.f32 %v3056, %v3048
  %v3073 = vadd.f32 %v3057, %v3049
  %v3074 = vadd.f32 %v3058, %v3050
  %v3075 = vtanh.pop %v3067
  %v3076 = vtanh.pop %v3068
  %v3077 = vtanh.pop %v3069
  %v3078 = vtanh.pop %v3070
  %v3079 = vtanh.pop %v3071
  %v3080 = vtanh.pop %v3072
  %v3081 = vtanh.pop %v3073
  %v3082 = vtanh.pop %v3074
  %v3083 = vsub.f32 %v2501, %v3075
  %v3084 = vsub.f32 %v2502, %v3076
  %v3085 = vsub.f32 %v2503, %v3077
  %v3086 = vsub.f32 %v2504, %v3078
  %v3087 = vsub.f32 %v2505, %v3079
  %v3088 = vsub.f32 %v2506, %v3080
  %v3089 = vsub.f32 %v2507, %v3081
  %v3090 = vsub.f32 %v2508, %v3082
  %v3091 = vmul.f32 %v2969, %v3083
  %v3092 = vmul.f32 %v2971, %v3084
  %v3093 = vmul.f32 %v2973, %v3085
  %v3094 = vmul.f32 %v2975, %v3086
  %v3095 = vmul.f32 %v2977, %v3087
  %v3096 = vmul.f32 %v2979, %v3088
  %v3097 = vmul.f32 %v2981, %v3089
  %v3098 = vmul.f32 %v2983, %v3090
  %v3099 = vadd.f32 %v3075, %v3091
  %v3100 = vadd.f32 %v3076, %v3092
  %v3101 = vadd.f32 %v3077, %v3093
  %v3102 = vadd.f32 %v3078, %v3094
  %v3103 = vadd.f32 %v3079, %v3095
  %v3104 = vadd.f32 %v3080, %v3096
  %v3105 = vadd.f32 %v3081, %v3097
  %v3106 = vadd.f32 %v3082, %v3098
  %3107 = vst [vmem:[%s3 + $0x4] sm:$0x1] %v3099
  %3108 = vst [vmem:[%s3 + $0x14] sm:$0x1] %v3100
  %3109 = vst [vmem:[%s3 + $0x24] sm:$0x1] %v3101
  %3110 = vst [vmem:[%s3 + $0x34] sm:$0x1] %v3102
  %3111 = vst [vmem:[%s3 + $0x44] sm:$0x1] %v3103
  %3112 = vst [vmem:[%s3 + $0x54] sm:$0x1] %v3104
  %3113 = vst [vmem:[%s3 + $0x64] sm:$0x1] %v3105
  %3114 = vst [vmem:[%s3 + $0x74] sm:$0x1] %v3106
  %v3123 = vcombine.low %v3099, %v3100
  %v3124 = vcombine.low %v3101, %v3102
  %v3125 = vcombine.low %v3103, %v3104
  %v3126 = vcombine.low %v3105, %v3106
  %v3128 = vunpack.c.l.s4 1966171168
  %v3129 = vunpack.c.0.s8 %v3128
  %v3130 = vlaneseq
  %v3131 = vshrl.u32 %v3130, 7
  %v3132 = vsub.s32 %v3129, %v3131
  %v3133 = vrot.slane %v3123, %v3132
  %v3135 = vunpack.c.l.s4 1966171168
  %v3136 = vunpack.c.0.s8 %v3135
  %v3137 = vlaneseq
  %v3138 = vshrl.u32 %v3137, 7
  %v3139 = vsub.s32 %v3136, %v3138
  %v3140 = vrot.slane %v3124, %v3139
  %v3142 = vunpack.c.l.s4 1966171168
  %v3143 = vunpack.c.0.s8 %v3142
  %v3144 = vlaneseq
  %v3145 = vshrl.u32 %v3144, 7
  %v3146 = vsub.s32 %v3143, %v3145
  %v3147 = vrot.slane %v3125, %v3146
  %v3149 = vunpack.c.l.s4 1966171168
  %v3150 = vunpack.c.0.s8 %v3149
  %v3151 = vlaneseq
  %v3152 = vshrl.u32 %v3151, 7
  %v3153 = vsub.s32 %v3150, %v3152
  %v3154 = vrot.slane %v3126, %v3153
  %v3155 = vcombine.low %v3133, %v3140
  %v3156 = vcombine.low %v3147, %v3154
  %v3158 = vunpack.c.l.s4 1966171168
  %v3159 = vunpack.c.0.s8 %v3158
  %v3160 = vlaneseq
  %v3161 = vshrl.u32 %v3160, 7
  %v3162 = vsub.s32 %v3159, %v3161
  %v3163 = vrot.slane %v3155, %v3162
  %v3165 = vunpack.c.l.s4 1966171168
  %v3166 = vunpack.c.0.s8 %v3165
  %v3167 = vlaneseq
  %v3168 = vshrl.u32 %v3167, 7
  %v3169 = vsub.s32 %v3166, %v3168
  %v3170 = vrot.slane %v3156, %v3169
  %v3171 = vcombine.low %v3163, %v3170
  %3173 = vmatprep.subr.mxu0 %v20
  %3174 = vmatpush1.msra.mxu0 %v19
  %3175 = vmatprep.subr.mxu0 %v23
  %3176 = vmatpush1.msra.mxu0 %v22
  %3177 = vmatprep.subr.mxu0 %v26
  %3178 = vmatpush1.msra.mxu0 %v25
  %3179 = vmatprep.subr.mxu0 %v29
  %3180 = vmatpush1.msra.mxu0 %v28
  %3181 = vmatprep.subr.mxu0 %v32
  %3182 = vmatpush1.msra.mxu0 %v31
  %3183 = vmatprep.subr.mxu0 %v35
  %3184 = vmatpush1.msra.mxu0 %v34
  %3185 = vmatprep.subr.mxu0 %v38
  %3186 = vmatpush1.msra.mxu0 %v37
  %3187 = vmatprep.subr.mxu0 %v41
  %3188 = vmatpush1.msra.mxu0 %v40
  %3189 = vmatprep.subr.mxu0 %v44
  %3190 = vmatpush1.msra.mxu0 %v43
  %3191 = vmatprep.subr.mxu0 %v47
  %3192 = vmatpush1.msra.mxu0 %v46
  %3193 = vmatprep.subr.mxu0 %v50
  %3194 = vmatpush1.msra.mxu0 %v49
  %3195 = vmatprep.subr.mxu0 %v53
  %3196 = vmatpush1.msra.mxu0 %v52
  %3197 = vmatprep.subr.mxu0 %v56
  %3198 = vmatpush1.msra.mxu0 %v55
  %3199 = vmatprep.subr.mxu0 %v59
  %3200 = vmatpush1.msra.mxu0 %v58
  %3201 = vmatprep.subr.mxu0 %v62
  %3202 = vmatpush1.msra.mxu0 %v61
  %3203 = vmatprep.subr.mxu0 %v65
  %3204 = vmatpush1.msra.mxu0 %v64
  %3205 = vmatprep.subr.mxu0 0.0
  %3206 = vmatpush1.msra.mxu0 0.0
  %3207 = vmatprep.subr.mxu0 0.0
  %3208 = vmatpush1.msra.mxu0 0.0
  %3209 = vmatprep.subr.mxu0 0.0
  %3210 = vmatpush1.msra.mxu0 0.0
  %3211 = vmatprep.subr.mxu0 0.0
  %3212 = vmatpush1.msra.mxu0 0.0
  %3213 = vmatprep.subr.mxu0 0.0
  %3214 = vmatpush1.msra.mxu0 0.0
  %3215 = vmatprep.subr.mxu0 0.0
  %3216 = vmatpush1.msra.mxu0 0.0
  %3217 = vmatprep.subr.mxu0 0.0
  %3218 = vmatpush1.msra.mxu0 0.0
  %3219 = vmatprep.subr.mxu0 0.0
  %3220 = vmatpush1.msra.mxu0 0.0
  %3221 = vmatprep.subr.mxu0 0.0
  %3222 = vmatpush1.msra.mxu0 0.0
  %3223 = vmatprep.subr.mxu0 0.0
  %3224 = vmatpush1.msra.mxu0 0.0
  %3225 = vmatprep.subr.mxu0 0.0
  %3226 = vmatpush1.msra.mxu0 0.0
  %3227 = vmatprep.subr.mxu0 0.0
  %3228 = vmatpush1.msra.mxu0 0.0
  %3229 = vmatprep.subr.mxu0 0.0
  %3230 = vmatpush1.msra.mxu0 0.0
  %3231 = vmatprep.subr.mxu0 0.0
  %3232 = vmatpush1.msra.mxu0 0.0
  %3233 = vmatprep.subr.mxu0 0.0
  %3234 = vmatpush1.msra.mxu0 0.0
  %3235 = vmatprep.subr.mxu0 0.0
  %3236 = vmatpush1.msra.mxu0 0.0
  %3237 = vmatprep.mubr.f32.mxu0 0.0
  %3238 = vmatmul.mubr.f32.gmra.mrb[0].mxu0 %v3171
  %v3239 = vpop.f32.mrb[0].mxu0
  %v3240 = vadd.f32 0.0, %v3239
  %v3241 = vpop.f32.mrb[0].mxu0
  %v3242 = vadd.f32 0.0, %v3241
  %3243 = vdwg.mxu0
  %3244 = vmatprep.subr.mxu0 0.0
  %3245 = vmatpush1.msra.mxu0 %v21
  %3246 = vmatprep.subr.mxu0 0.0
  %3247 = vmatpush1.msra.mxu0 %v24
  %3248 = vmatprep.subr.mxu0 0.0
  %3249 = vmatpush1.msra.mxu0 %v27
  %3250 = vmatprep.subr.mxu0 0.0
  %3251 = vmatpush1.msra.mxu0 %v30
  %3252 = vmatprep.subr.mxu0 0.0
  %3253 = vmatpush1.msra.mxu0 %v33
  %3254 = vmatprep.subr.mxu0 0.0
  %3255 = vmatpush1.msra.mxu0 %v36
  %3256 = vmatprep.subr.mxu0 0.0
  %3257 = vmatpush1.msra.mxu0 %v39
  %3258 = vmatprep.subr.mxu0 0.0
  %3259 = vmatpush1.msra.mxu0 %v42
  %3260 = vmatprep.subr.mxu0 0.0
  %3261 = vmatpush1.msra.mxu0 %v45
  %3262 = vmatprep.subr.mxu0 0.0
  %3263 = vmatpush1.msra.mxu0 %v48
  %3264 = vmatprep.subr.mxu0 0.0
  %3265 = vmatpush1.msra.mxu0 %v51
  %3266 = vmatprep.subr.mxu0 0.0
  %3267 = vmatpush1.msra.mxu0 %v54
  %3268 = vmatprep.subr.mxu0 0.0
  %3269 = vmatpush1.msra.mxu0 %v57
  %3270 = vmatprep.subr.mxu0 0.0
  %3271 = vmatpush1.msra.mxu0 %v60
  %3272 = vmatprep.subr.mxu0 0.0
  %3273 = vmatpush1.msra.mxu0 %v63
  %3274 = vmatprep.subr.mxu0 0.0
  %3275 = vmatpush1.msra.mxu0 %v66
  %3276 = vmatprep.subr.mxu0 0.0
  %3277 = vmatpush1.msra.mxu0 0.0
  %3278 = vmatprep.subr.mxu0 0.0
  %3279 = vmatpush1.msra.mxu0 0.0
  %3280 = vmatprep.subr.mxu0 0.0
  %3281 = vmatpush1.msra.mxu0 0.0
  %3282 = vmatprep.subr.mxu0 0.0
  %3283 = vmatpush1.msra.mxu0 0.0
  %3284 = vmatprep.subr.mxu0 0.0
  %3285 = vmatpush1.msra.mxu0 0.0
  %3286 = vmatprep.subr.mxu0 0.0
  %3287 = vmatpush1.msra.mxu0 0.0
  %3288 = vmatprep.subr.mxu0 0.0
  %3289 = vmatpush1.msra.mxu0 0.0
  %3290 = vmatprep.subr.mxu0 0.0
  %3291 = vmatpush1.msra.mxu0 0.0
  %3292 = vmatprep.subr.mxu0 0.0
  %3293 = vmatpush1.msra.mxu0 0.0
  %3294 = vmatprep.subr.mxu0 0.0
  %3295 = vmatpush1.msra.mxu0 0.0
  %3296 = vmatprep.subr.mxu0 0.0
  %3297 = vmatpush1.msra.mxu0 0.0
  %3298 = vmatprep.subr.mxu0 0.0
  %3299 = vmatpush1.msra.mxu0 0.0
  %3300 = vmatprep.subr.mxu0 0.0
  %3301 = vmatpush1.msra.mxu0 0.0
  %3302 = vmatprep.subr.mxu0 0.0
  %3303 = vmatpush1.msra.mxu0 0.0
  %3304 = vmatprep.subr.mxu0 0.0
  %3305 = vmatpush1.msra.mxu0 0.0
  %3306 = vmatprep.subr.mxu0 0.0
  %3307 = vmatpush1.msra.mxu0 0.0
  %3308 = vmatprep.mubr.f32.mxu0 0.0
  %3309 = vmatmul.mubr.f32.gmra.mrb[0].mxu0 %v3171
  %v3310 = vpop.f32.mrb[0].mxu0
  %v3311 = vadd.f32 0.0, %v3310
  %v3312 = vpop.f32.mrb[0].mxu0
  %3313 = vdwg.mxu0
  %s3314 = scalar_lea.vmem %s0, 5
  %v3315 = vld [vmem:[%s3314] ss:$8 sm:$0x7]
  %s3316 = scalar_lea.vmem %s0, 53
  %v3317 = vld [vmem:[%s3316] ss:$8 sm:$0x7]
  %s3318 = scalar_lea.vmem %s0, 101
  %v3319 = vld [vmem:[%s3318] ss:$8 sm:$0x7]
  %s3320 = scalar_lea.vmem %s0, 149
  %v3321 = vld [vmem:[%s3320] ss:$8 sm:$0x7]
  %s3322 = scalar_lea.vmem %s0, 197
  %v3323 = vld [vmem:[%s3322] ss:$8 sm:$0x7]
  %s3324 = scalar_lea.vmem %s0, 245
  %v3325 = vld [vmem:[%s3324] ss:$8 sm:$0x7]
  %s3326 = scalar_lea.vmem %s0, 293
  %v3327 = vld [vmem:[%s3326] ss:$8 sm:$0x7]
  %s3328 = scalar_lea.vmem %s0, 341
  %v3329 = vld [vmem:[%s3328] ss:$8 sm:$0x7]
  %v3331 = vcombine.high %v3240, %v3240
  %v3333 = vunpack.c.l.s4 1966171168
  %v3334 = vunpack.c.0.s8 %v3333
  %v3335 = vlaneseq
  %v3336 = vshrl.u32 %v3335, 7
  %v3337 = vsub.s32 %v3334, %v3336
  %v3338 = vrot.slane %v3240, %v3337
  %v3340 = vunpack.c.l.s4 1966171168
  %v3341 = vunpack.c.0.s8 %v3340
  %v3342 = vlaneseq
  %v3343 = vshrl.u32 %v3342, 7
  %v3344 = vsub.s32 %v3341, %v3343
  %v3345 = vrot.slane %v3331, %v3344
  %v3346 = vcombine.high %v3338, %v3338
  %v3347 = vcombine.high %v3345, %v3345
  %v3349 = vunpack.c.l.s4 1966171168
  %v3350 = vunpack.c.0.s8 %v3349
  %v3351 = vlaneseq
  %v3352 = vshrl.u32 %v3351, 7
  %v3353 = vsub.s32 %v3350, %v3352
  %v3354 = vrot.slane %v3338, %v3353
  %v3356 = vunpack.c.l.s4 1966171168
  %v3357 = vunpack.c.0.s8 %v3356
  %v3358 = vlaneseq
  %v3359 = vshrl.u32 %v3358, 7
  %v3360 = vsub.s32 %v3357, %v3359
  %v3361 = vrot.slane %v3345, %v3360
  %v3363 = vunpack.c.l.s4 1966171168
  %v3364 = vunpack.c.0.s8 %v3363
  %v3365 = vlaneseq
  %v3366 = vshrl.u32 %v3365, 7
  %v3367 = vsub.s32 %v3364, %v3366
  %v3368 = vrot.slane %v3346, %v3367
  %v3370 = vunpack.c.l.s4 1966171168
  %v3371 = vunpack.c.0.s8 %v3370
  %v3372 = vlaneseq
  %v3373 = vshrl.u32 %v3372, 7
  %v3374 = vsub.s32 %v3371, %v3373
  %v3375 = vrot.slane %v3347, %v3374
  %v3376 = vcombine.high %v3354, %v3354
  %v3377 = vcombine.high %v3361, %v3361
  %v3378 = vcombine.high %v3368, %v3368
  %v3379 = vcombine.high %v3375, %v3375
  %v3388 = vadd.f32 %v3315, %v3354
  %v3389 = vadd.f32 %v3317, %v3368
  %v3390 = vadd.f32 %v3319, %v3376
  %v3391 = vadd.f32 %v3321, %v3378
  %v3392 = vadd.f32 %v3323, %v3361
  %v3393 = vadd.f32 %v3325, %v3375
  %v3394 = vadd.f32 %v3327, %v3377
  %v3395 = vadd.f32 %v3329, %v3379
  %v3396 = vxor.u32 %v3388, 2147483648
  %v3397 = vxor.u32 %v3389, 2147483648
  %v3398 = vxor.u32 %v3390, 2147483648
  %v3399 = vxor.u32 %v3391, 2147483648
  %v3400 = vxor.u32 %v3392, 2147483648
  %v3401 = vxor.u32 %v3393, 2147483648
  %v3402 = vxor.u32 %v3394, 2147483648
  %v3403 = vxor.u32 %v3395, 2147483648
  %v3404 = vmul.f32 %v3396, 1.442695
  %v3405 = vpow.pop %v3404
  %v3406 = vmul.f32 %v3397, 1.442695
  %v3407 = vpow.pop %v3406
  %v3408 = vmul.f32 %v3398, 1.442695
  %v3409 = vpow.pop %v3408
  %v3410 = vmul.f32 %v3399, 1.442695
  %v3411 = vpow.pop %v3410
  %v3412 = vmul.f32 %v3400, 1.442695
  %v3413 = vpow.pop %v3412
  %v3414 = vmul.f32 %v3401, 1.442695
  %v3415 = vpow.pop %v3414
  %v3416 = vmul.f32 %v3402, 1.442695
  %v3417 = vpow.pop %v3416
  %v3418 = vmul.f32 %v3403, 1.442695
  %v3419 = vpow.pop %v3418
  %v3420 = vadd.f32 %v3405, 1.0
  %v3421 = vadd.f32 %v3407, 1.0
  %v3422 = vadd.f32 %v3409, 1.0
  %v3423 = vadd.f32 %v3411, 1.0
  %v3424 = vadd.f32 %v3413, 1.0
  %v3425 = vadd.f32 %v3415, 1.0
  %v3426 = vadd.f32 %v3417, 1.0
  %v3427 = vadd.f32 %v3419, 1.0
  %v3428 = vrcp.pop %v3420
  %v3429 = vmul.f32 1.0, %v3428
  %v3430 = vrcp.pop %v3421
  %v3431 = vmul.f32 1.0, %v3430
  %v3432 = vrcp.pop %v3422
  %v3433 = vmul.f32 1.0, %v3432
  %v3434 = vrcp.pop %v3423
  %v3435 = vmul.f32 1.0, %v3434
  %v3436 = vrcp.pop %v3424
  %v3437 = vmul.f32 1.0, %v3436
  %v3438 = vrcp.pop %v3425
  %v3439 = vmul.f32 1.0, %v3438
  %v3440 = vrcp.pop %v3426
  %v3441 = vmul.f32 1.0, %v3440
  %v3442 = vrcp.pop %v3427
  %v3443 = vmul.f32 1.0, %v3442
  %v3452 = vrot.slane %v3315, 1
  %v3453 = vrot.slane %v3317, 1
  %v3454 = vrot.slane %v3319, 1
  %v3455 = vrot.slane %v3321, 1
  %v3456 = vrot.slane %v3323, 1
  %v3457 = vrot.slane %v3325, 1
  %v3458 = vrot.slane %v3327, 1
  %v3459 = vrot.slane %v3329, 1
  %v3469 = vcombine.high %v3242, %v3242
  %v3471 = vunpack.c.l.s4 1966171168
  %v3472 = vunpack.c.0.s8 %v3471
  %v3473 = vlaneseq
  %v3474 = vshrl.u32 %v3473, 7
  %v3475 = vsub.s32 %v3472, %v3474
  %v3476 = vrot.slane %v3242, %v3475
  %v3478 = vunpack.c.l.s4 1966171168
  %v3479 = vunpack.c.0.s8 %v3478
  %v3480 = vlaneseq
  %v3481 = vshrl.u32 %v3480, 7
  %v3482 = vsub.s32 %v3479, %v3481
  %v3483 = vrot.slane %v3469, %v3482
  %v3484 = vcombine.high %v3476, %v3476
  %v3485 = vcombine.high %v3483, %v3483
  %v3487 = vunpack.c.l.s4 1966171168
  %v3488 = vunpack.c.0.s8 %v3487
  %v3489 = vlaneseq
  %v3490 = vshrl.u32 %v3489, 7
  %v3491 = vsub.s32 %v3488, %v3490
  %v3492 = vrot.slane %v3476, %v3491
  %v3494 = vunpack.c.l.s4 1966171168
  %v3495 = vunpack.c.0.s8 %v3494
  %v3496 = vlaneseq
  %v3497 = vshrl.u32 %v3496, 7
  %v3498 = vsub.s32 %v3495, %v3497
  %v3499 = vrot.slane %v3483, %v3498
  %v3501 = vunpack.c.l.s4 1966171168
  %v3502 = vunpack.c.0.s8 %v3501
  %v3503 = vlaneseq
  %v3504 = vshrl.u32 %v3503, 7
  %v3505 = vsub.s32 %v3502, %v3504
  %v3506 = vrot.slane %v3484, %v3505
  %v3508 = vunpack.c.l.s4 1966171168
  %v3509 = vunpack.c.0.s8 %v3508
  %v3510 = vlaneseq
  %v3511 = vshrl.u32 %v3510, 7
  %v3512 = vsub.s32 %v3509, %v3511
  %v3513 = vrot.slane %v3485, %v3512
  %v3514 = vcombine.high %v3492, %v3492
  %v3515 = vcombine.high %v3499, %v3499
  %v3516 = vcombine.high %v3506, %v3506
  %v3517 = vcombine.high %v3513, %v3513
  %v3526 = vadd.f32 %v3452, %v3492
  %v3527 = vadd.f32 %v3453, %v3506
  %v3528 = vadd.f32 %v3454, %v3514
  %v3529 = vadd.f32 %v3455, %v3516
  %v3530 = vadd.f32 %v3456, %v3499
  %v3531 = vadd.f32 %v3457, %v3513
  %v3532 = vadd.f32 %v3458, %v3515
  %v3533 = vadd.f32 %v3459, %v3517
  %v3534 = vxor.u32 %v3526, 2147483648
  %v3535 = vxor.u32 %v3527, 2147483648
  %v3536 = vxor.u32 %v3528, 2147483648
  %v3537 = vxor.u32 %v3529, 2147483648
  %v3538 = vxor.u32 %v3530, 2147483648
  %v3539 = vxor.u32 %v3531, 2147483648
  %v3540 = vxor.u32 %v3532, 2147483648
  %v3541 = vxor.u32 %v3533, 2147483648
  %v3542 = vmul.f32 %v3534, 1.442695
  %v3543 = vpow.pop %v3542
  %v3544 = vmul.f32 %v3535, 1.442695
  %v3545 = vpow.pop %v3544
  %v3546 = vmul.f32 %v3536, 1.442695
  %v3547 = vpow.pop %v3546
  %v3548 = vmul.f32 %v3537, 1.442695
  %v3549 = vpow.pop %v3548
  %v3550 = vmul.f32 %v3538, 1.442695
  %v3551 = vpow.pop %v3550
  %v3552 = vmul.f32 %v3539, 1.442695
  %v3553 = vpow.pop %v3552
  %v3554 = vmul.f32 %v3540, 1.442695
  %v3555 = vpow.pop %v3554
  %v3556 = vmul.f32 %v3541, 1.442695
  %v3557 = vpow.pop %v3556
  %v3558 = vadd.f32 %v3543, 1.0
  %v3559 = vadd.f32 %v3545, 1.0
  %v3560 = vadd.f32 %v3547, 1.0
  %v3561 = vadd.f32 %v3549, 1.0
  %v3562 = vadd.f32 %v3551, 1.0
  %v3563 = vadd.f32 %v3553, 1.0
  %v3564 = vadd.f32 %v3555, 1.0
  %v3565 = vadd.f32 %v3557, 1.0
  %v3566 = vrcp.pop %v3558
  %v3567 = vmul.f32 1.0, %v3566
  %v3568 = vrcp.pop %v3559
  %v3569 = vmul.f32 1.0, %v3568
  %v3570 = vrcp.pop %v3560
  %v3571 = vmul.f32 1.0, %v3570
  %v3572 = vrcp.pop %v3561
  %v3573 = vmul.f32 1.0, %v3572
  %v3574 = vrcp.pop %v3562
  %v3575 = vmul.f32 1.0, %v3574
  %v3576 = vrcp.pop %v3563
  %v3577 = vmul.f32 1.0, %v3576
  %v3578 = vrcp.pop %v3564
  %v3579 = vmul.f32 1.0, %v3578
  %v3580 = vrcp.pop %v3565
  %v3581 = vmul.f32 1.0, %v3580
  %v3582 = vadd.f32 %v3311, %v481
  %v3584 = vcombine.high %v3582, %v3582
  %v3586 = vunpack.c.l.s4 1966171168
  %v3587 = vunpack.c.0.s8 %v3586
  %v3588 = vlaneseq
  %v3589 = vshrl.u32 %v3588, 7
  %v3590 = vsub.s32 %v3587, %v3589
  %v3591 = vrot.slane %v3582, %v3590
  %v3593 = vunpack.c.l.s4 1966171168
  %v3594 = vunpack.c.0.s8 %v3593
  %v3595 = vlaneseq
  %v3596 = vshrl.u32 %v3595, 7
  %v3597 = vsub.s32 %v3594, %v3596
  %v3598 = vrot.slane %v3584, %v3597
  %v3599 = vcombine.high %v3591, %v3591
  %v3600 = vcombine.high %v3598, %v3598
  %v3602 = vunpack.c.l.s4 1966171168
  %v3603 = vunpack.c.0.s8 %v3602
  %v3604 = vlaneseq
  %v3605 = vshrl.u32 %v3604, 7
  %v3606 = vsub.s32 %v3603, %v3605
  %v3607 = vrot.slane %v3591, %v3606
  %v3609 = vunpack.c.l.s4 1966171168
  %v3610 = vunpack.c.0.s8 %v3609
  %v3611 = vlaneseq
  %v3612 = vshrl.u32 %v3611, 7
  %v3613 = vsub.s32 %v3610, %v3612
  %v3614 = vrot.slane %v3598, %v3613
  %v3616 = vunpack.c.l.s4 1966171168
  %v3617 = vunpack.c.0.s8 %v3616
  %v3618 = vlaneseq
  %v3619 = vshrl.u32 %v3618, 7
  %v3620 = vsub.s32 %v3617, %v3619
  %v3621 = vrot.slane %v3599, %v3620
  %v3623 = vunpack.c.l.s4 1966171168
  %v3624 = vunpack.c.0.s8 %v3623
  %v3625 = vlaneseq
  %v3626 = vshrl.u32 %v3625, 7
  %v3627 = vsub.s32 %v3624, %v3626
  %v3628 = vrot.slane %v3600, %v3627
  %v3629 = vcombine.high %v3607, %v3607
  %v3630 = vcombine.high %v3614, %v3614
  %v3631 = vcombine.high %v3621, %v3621
  %v3632 = vcombine.high %v3628, %v3628
  %v3641 = vmul.f32 %v3429, %v3607
  %v3642 = vmul.f32 %v3431, %v3621
  %v3643 = vmul.f32 %v3433, %v3629
  %v3644 = vmul.f32 %v3435, %v3631
  %v3645 = vmul.f32 %v3437, %v3614
  %v3646 = vmul.f32 %v3439, %v3628
  %v3647 = vmul.f32 %v3441, %v3630
  %v3648 = vmul.f32 %v3443, %v3632
  %v3649 = vrot.slane %v3315, 2
  %v3650 = vrot.slane %v3317, 2
  %v3651 = vrot.slane %v3319, 2
  %v3652 = vrot.slane %v3321, 2
  %v3653 = vrot.slane %v3323, 2
  %v3654 = vrot.slane %v3325, 2
  %v3655 = vrot.slane %v3327, 2
  %v3656 = vrot.slane %v3329, 2
  %v3665 = vadd.f32 %v3649, %v3641
  %v3666 = vadd.f32 %v3650, %v3642
  %v3667 = vadd.f32 %v3651, %v3643
  %v3668 = vadd.f32 %v3652, %v3644
  %v3669 = vadd.f32 %v3653, %v3645
  %v3670 = vadd.f32 %v3654, %v3646
  %v3671 = vadd.f32 %v3655, %v3647
  %v3672 = vadd.f32 %v3656, %v3648
  %v3673 = vtanh.pop %v3665
  %v3674 = vtanh.pop %v3666
  %v3675 = vtanh.pop %v3667
  %v3676 = vtanh.pop %v3668
  %v3677 = vtanh.pop %v3669
  %v3678 = vtanh.pop %v3670
  %v3679 = vtanh.pop %v3671
  %v3680 = vtanh.pop %v3672
  %v3681 = vsub.f32 %v3099, %v3673
  %v3682 = vsub.f32 %v3100, %v3674
  %v3683 = vsub.f32 %v3101, %v3675
  %v3684 = vsub.f32 %v3102, %v3676
  %v3685 = vsub.f32 %v3103, %v3677
  %v3686 = vsub.f32 %v3104, %v3678
  %v3687 = vsub.f32 %v3105, %v3679
  %v3688 = vsub.f32 %v3106, %v3680
  %v3689 = vmul.f32 %v3567, %v3681
  %v3690 = vmul.f32 %v3569, %v3682
  %v3691 = vmul.f32 %v3571, %v3683
  %v3692 = vmul.f32 %v3573, %v3684
  %v3693 = vmul.f32 %v3575, %v3685
  %v3694 = vmul.f32 %v3577, %v3686
  %v3695 = vmul.f32 %v3579, %v3687
  %v3696 = vmul.f32 %v3581, %v3688
  %v3697 = vadd.f32 %v3673, %v3689
  %v3698 = vadd.f32 %v3674, %v3690
  %v3699 = vadd.f32 %v3675, %v3691
  %v3700 = vadd.f32 %v3676, %v3692
  %v3701 = vadd.f32 %v3677, %v3693
  %v3702 = vadd.f32 %v3678, %v3694
  %v3703 = vadd.f32 %v3679, %v3695
  %v3704 = vadd.f32 %v3680, %v3696
  %3705 = vst [vmem:[%s3 + $0x5] sm:$0x1] %v3697
  %3706 = vst [vmem:[%s3 + $0x15] sm:$0x1] %v3698
  %3707 = vst [vmem:[%s3 + $0x25] sm:$0x1] %v3699
  %3708 = vst [vmem:[%s3 + $0x35] sm:$0x1] %v3700
  %3709 = vst [vmem:[%s3 + $0x45] sm:$0x1] %v3701
  %3710 = vst [vmem:[%s3 + $0x55] sm:$0x1] %v3702
  %3711 = vst [vmem:[%s3 + $0x65] sm:$0x1] %v3703
  %3712 = vst [vmem:[%s3 + $0x75] sm:$0x1] %v3704
  %v3721 = vcombine.low %v3697, %v3698
  %v3722 = vcombine.low %v3699, %v3700
  %v3723 = vcombine.low %v3701, %v3702
  %v3724 = vcombine.low %v3703, %v3704
  %v3726 = vunpack.c.l.s4 1966171168
  %v3727 = vunpack.c.0.s8 %v3726
  %v3728 = vlaneseq
  %v3729 = vshrl.u32 %v3728, 7
  %v3730 = vsub.s32 %v3727, %v3729
  %v3731 = vrot.slane %v3721, %v3730
  %v3733 = vunpack.c.l.s4 1966171168
  %v3734 = vunpack.c.0.s8 %v3733
  %v3735 = vlaneseq
  %v3736 = vshrl.u32 %v3735, 7
  %v3737 = vsub.s32 %v3734, %v3736
  %v3738 = vrot.slane %v3722, %v3737
  %v3740 = vunpack.c.l.s4 1966171168
  %v3741 = vunpack.c.0.s8 %v3740
  %v3742 = vlaneseq
  %v3743 = vshrl.u32 %v3742, 7
  %v3744 = vsub.s32 %v3741, %v3743
  %v3745 = vrot.slane %v3723, %v3744
  %v3747 = vunpack.c.l.s4 1966171168
  %v3748 = vunpack.c.0.s8 %v3747
  %v3749 = vlaneseq
  %v3750 = vshrl.u32 %v3749, 7
  %v3751 = vsub.s32 %v3748, %v3750
  %v3752 = vrot.slane %v3724, %v3751
  %v3753 = vcombine.low %v3731, %v3738
  %v3754 = vcombine.low %v3745, %v3752
  %v3756 = vunpack.c.l.s4 1966171168
  %v3757 = vunpack.c.0.s8 %v3756
  %v3758 = vlaneseq
  %v3759 = vshrl.u32 %v3758, 7
  %v3760 = vsub.s32 %v3757, %v3759
  %v3761 = vrot.slane %v3753, %v3760
  %v3763 = vunpack.c.l.s4 1966171168
  %v3764 = vunpack.c.0.s8 %v3763
  %v3765 = vlaneseq
  %v3766 = vshrl.u32 %v3765, 7
  %v3767 = vsub.s32 %v3764, %v3766
  %v3768 = vrot.slane %v3754, %v3767
  %v3769 = vcombine.low %v3761, %v3768
  %3771 = vmatprep.subr.mxu0 %v20
  %3772 = vmatpush1.msra.mxu0 %v19
  %3773 = vmatprep.subr.mxu0 %v23
  %3774 = vmatpush1.msra.mxu0 %v22
  %3775 = vmatprep.subr.mxu0 %v26
  %3776 = vmatpush1.msra.mxu0 %v25
  %3777 = vmatprep.subr.mxu0 %v29
  %3778 = vmatpush1.msra.mxu0 %v28
  %3779 = vmatprep.subr.mxu0 %v32
  %3780 = vmatpush1.msra.mxu0 %v31
  %3781 = vmatprep.subr.mxu0 %v35
  %3782 = vmatpush1.msra.mxu0 %v34
  %3783 = vmatprep.subr.mxu0 %v38
  %3784 = vmatpush1.msra.mxu0 %v37
  %3785 = vmatprep.subr.mxu0 %v41
  %3786 = vmatpush1.msra.mxu0 %v40
  %3787 = vmatprep.subr.mxu0 %v44
  %3788 = vmatpush1.msra.mxu0 %v43
  %3789 = vmatprep.subr.mxu0 %v47
  %3790 = vmatpush1.msra.mxu0 %v46
  %3791 = vmatprep.subr.mxu0 %v50
  %3792 = vmatpush1.msra.mxu0 %v49
  %3793 = vmatprep.subr.mxu0 %v53
  %3794 = vmatpush1.msra.mxu0 %v52
  %3795 = vmatprep.subr.mxu0 %v56
  %3796 = vmatpush1.msra.mxu0 %v55
  %3797 = vmatprep.subr.mxu0 %v59
  %3798 = vmatpush1.msra.mxu0 %v58
  %3799 = vmatprep.subr.mxu0 %v62
  %3800 = vmatpush1.msra.mxu0 %v61
  %3801 = vmatprep.subr.mxu0 %v65
  %3802 = vmatpush1.msra.mxu0 %v64
  %3803 = vmatprep.subr.mxu0 0.0
  %3804 = vmatpush1.msra.mxu0 0.0
  %3805 = vmatprep.subr.mxu0 0.0
  %3806 = vmatpush1.msra.mxu0 0.0
  %3807 = vmatprep.subr.mxu0 0.0
  %3808 = vmatpush1.msra.mxu0 0.0
  %3809 = vmatprep.subr.mxu0 0.0
  %3810 = vmatpush1.msra.mxu0 0.0
  %3811 = vmatprep.subr.mxu0 0.0
  %3812 = vmatpush1.msra.mxu0 0.0
  %3813 = vmatprep.subr.mxu0 0.0
  %3814 = vmatpush1.msra.mxu0 0.0
  %3815 = vmatprep.subr.mxu0 0.0
  %3816 = vmatpush1.msra.mxu0 0.0
  %3817 = vmatprep.subr.mxu0 0.0
  %3818 = vmatpush1.msra.mxu0 0.0
  %3819 = vmatprep.subr.mxu0 0.0
  %3820 = vmatpush1.msra.mxu0 0.0
  %3821 = vmatprep.subr.mxu0 0.0
  %3822 = vmatpush1.msra.mxu0 0.0
  %3823 = vmatprep.subr.mxu0 0.0
  %3824 = vmatpush1.msra.mxu0 0.0
  %3825 = vmatprep.subr.mxu0 0.0
  %3826 = vmatpush1.msra.mxu0 0.0
  %3827 = vmatprep.subr.mxu0 0.0
  %3828 = vmatpush1.msra.mxu0 0.0
  %3829 = vmatprep.subr.mxu0 0.0
  %3830 = vmatpush1.msra.mxu0 0.0
  %3831 = vmatprep.subr.mxu0 0.0
  %3832 = vmatpush1.msra.mxu0 0.0
  %3833 = vmatprep.subr.mxu0 0.0
  %3834 = vmatpush1.msra.mxu0 0.0
  %3835 = vmatprep.mubr.f32.mxu0 0.0
  %3836 = vmatmul.mubr.f32.gmra.mrb[0].mxu0 %v3769
  %v3837 = vpop.f32.mrb[0].mxu0
  %v3838 = vadd.f32 0.0, %v3837
  %v3839 = vpop.f32.mrb[0].mxu0
  %v3840 = vadd.f32 0.0, %v3839
  %3841 = vdwg.mxu0
  %3842 = vmatprep.subr.mxu0 0.0
  %3843 = vmatpush1.msra.mxu0 %v21
  %3844 = vmatprep.subr.mxu0 0.0
  %3845 = vmatpush1.msra.mxu0 %v24
  %3846 = vmatprep.subr.mxu0 0.0
  %3847 = vmatpush1.msra.mxu0 %v27
  %3848 = vmatprep.subr.mxu0 0.0
  %3849 = vmatpush1.msra.mxu0 %v30
  %3850 = vmatprep.subr.mxu0 0.0
  %3851 = vmatpush1.msra.mxu0 %v33
  %3852 = vmatprep.subr.mxu0 0.0
  %3853 = vmatpush1.msra.mxu0 %v36
  %3854 = vmatprep.subr.mxu0 0.0
  %3855 = vmatpush1.msra.mxu0 %v39
  %3856 = vmatprep.subr.mxu0 0.0
  %3857 = vmatpush1.msra.mxu0 %v42
  %3858 = vmatprep.subr.mxu0 0.0
  %3859 = vmatpush1.msra.mxu0 %v45
  %3860 = vmatprep.subr.mxu0 0.0
  %3861 = vmatpush1.msra.mxu0 %v48
  %3862 = vmatprep.subr.mxu0 0.0
  %3863 = vmatpush1.msra.mxu0 %v51
  %3864 = vmatprep.subr.mxu0 0.0
  %3865 = vmatpush1.msra.mxu0 %v54
  %3866 = vmatprep.subr.mxu0 0.0
  %3867 = vmatpush1.msra.mxu0 %v57
  %3868 = vmatprep.subr.mxu0 0.0
  %3869 = vmatpush1.msra.mxu0 %v60
  %3870 = vmatprep.subr.mxu0 0.0
  %3871 = vmatpush1.msra.mxu0 %v63
  %3872 = vmatprep.subr.mxu0 0.0
  %3873 = vmatpush1.msra.mxu0 %v66
  %3874 = vmatprep.subr.mxu0 0.0
  %3875 = vmatpush1.msra.mxu0 0.0
  %3876 = vmatprep.subr.mxu0 0.0
  %3877 = vmatpush1.msra.mxu0 0.0
  %3878 = vmatprep.subr.mxu0 0.0
  %3879 = vmatpush1.msra.mxu0 0.0
  %3880 = vmatprep.subr.mxu0 0.0
  %3881 = vmatpush1.msra.mxu0 0.0
  %3882 = vmatprep.subr.mxu0 0.0
  %3883 = vmatpush1.msra.mxu0 0.0
  %3884 = vmatprep.subr.mxu0 0.0
  %3885 = vmatpush1.msra.mxu0 0.0
  %3886 = vmatprep.subr.mxu0 0.0
  %3887 = vmatpush1.msra.mxu0 0.0
  %3888 = vmatprep.subr.mxu0 0.0
  %3889 = vmatpush1.msra.mxu0 0.0
  %3890 = vmatprep.subr.mxu0 0.0
  %3891 = vmatpush1.msra.mxu0 0.0
  %3892 = vmatprep.subr.mxu0 0.0
  %3893 = vmatpush1.msra.mxu0 0.0
  %3894 = vmatprep.subr.mxu0 0.0
  %3895 = vmatpush1.msra.mxu0 0.0
  %3896 = vmatprep.subr.mxu0 0.0
  %3897 = vmatpush1.msra.mxu0 0.0
  %3898 = vmatprep.subr.mxu0 0.0
  %3899 = vmatpush1.msra.mxu0 0.0
  %3900 = vmatprep.subr.mxu0 0.0
  %3901 = vmatpush1.msra.mxu0 0.0
  %3902 = vmatprep.subr.mxu0 0.0
  %3903 = vmatpush1.msra.mxu0 0.0
  %3904 = vmatprep.subr.mxu0 0.0
  %3905 = vmatpush1.msra.mxu0 0.0
  %3906 = vmatprep.mubr.f32.mxu0 0.0
  %3907 = vmatmul.mubr.f32.gmra.mrb[0].mxu0 %v3769
  %v3908 = vpop.f32.mrb[0].mxu0
  %v3909 = vadd.f32 0.0, %v3908
  %v3910 = vpop.f32.mrb[0].mxu0
  %3911 = vdwg.mxu0
  %s3912 = scalar_lea.vmem %s0, 6
  %v3913 = vld [vmem:[%s3912] ss:$8 sm:$0x7]
  %s3914 = scalar_lea.vmem %s0, 54
  %v3915 = vld [vmem:[%s3914] ss:$8 sm:$0x7]
  %s3916 = scalar_lea.vmem %s0, 102
  %v3917 = vld [vmem:[%s3916] ss:$8 sm:$0x7]
  %s3918 = scalar_lea.vmem %s0, 150
  %v3919 = vld [vmem:[%s3918] ss:$8 sm:$0x7]
  %s3920 = scalar_lea.vmem %s0, 198
  %v3921 = vld [vmem:[%s3920] ss:$8 sm:$0x7]
  %s3922 = scalar_lea.vmem %s0, 246
  %v3923 = vld [vmem:[%s3922] ss:$8 sm:$0x7]
  %s3924 = scalar_lea.vmem %s0, 294
  %v3925 = vld [vmem:[%s3924] ss:$8 sm:$0x7]
  %s3926 = scalar_lea.vmem %s0, 342
  %v3927 = vld [vmem:[%s3926] ss:$8 sm:$0x7]
  %v3929 = vcombine.high %v3838, %v3838
  %v3931 = vunpack.c.l.s4 1966171168
  %v3932 = vunpack.c.0.s8 %v3931
  %v3933 = vlaneseq
  %v3934 = vshrl.u32 %v3933, 7
  %v3935 = vsub.s32 %v3932, %v3934
  %v3936 = vrot.slane %v3838, %v3935
  %v3938 = vunpack.c.l.s4 1966171168
  %v3939 = vunpack.c.0.s8 %v3938
  %v3940 = vlaneseq
  %v3941 = vshrl.u32 %v3940, 7
  %v3942 = vsub.s32 %v3939, %v3941
  %v3943 = vrot.slane %v3929, %v3942
  %v3944 = vcombine.high %v3936, %v3936
  %v3945 = vcombine.high %v3943, %v3943
  %v3947 = vunpack.c.l.s4 1966171168
  %v3948 = vunpack.c.0.s8 %v3947
  %v3949 = vlaneseq
  %v3950 = vshrl.u32 %v3949, 7
  %v3951 = vsub.s32 %v3948, %v3950
  %v3952 = vrot.slane %v3936, %v3951
  %v3954 = vunpack.c.l.s4 1966171168
  %v3955 = vunpack.c.0.s8 %v3954
  %v3956 = vlaneseq
  %v3957 = vshrl.u32 %v3956, 7
  %v3958 = vsub.s32 %v3955, %v3957
  %v3959 = vrot.slane %v3943, %v3958
  %v3961 = vunpack.c.l.s4 1966171168
  %v3962 = vunpack.c.0.s8 %v3961
  %v3963 = vlaneseq
  %v3964 = vshrl.u32 %v3963, 7
  %v3965 = vsub.s32 %v3962, %v3964
  %v3966 = vrot.slane %v3944, %v3965
  %v3968 = vunpack.c.l.s4 1966171168
  %v3969 = vunpack.c.0.s8 %v3968
  %v3970 = vlaneseq
  %v3971 = vshrl.u32 %v3970, 7
  %v3972 = vsub.s32 %v3969, %v3971
  %v3973 = vrot.slane %v3945, %v3972
  %v3974 = vcombine.high %v3952, %v3952
  %v3975 = vcombine.high %v3959, %v3959
  %v3976 = vcombine.high %v3966, %v3966
  %v3977 = vcombine.high %v3973, %v3973
  %v3986 = vadd.f32 %v3913, %v3952
  %v3987 = vadd.f32 %v3915, %v3966
  %v3988 = vadd.f32 %v3917, %v3974
  %v3989 = vadd.f32 %v3919, %v3976
  %v3990 = vadd.f32 %v3921, %v3959
  %v3991 = vadd.f32 %v3923, %v3973
  %v3992 = vadd.f32 %v3925, %v3975
  %v3993 = vadd.f32 %v3927, %v3977
  %v3994 = vxor.u32 %v3986, 2147483648
  %v3995 = vxor.u32 %v3987, 2147483648
  %v3996 = vxor.u32 %v3988, 2147483648
  %v3997 = vxor.u32 %v3989, 2147483648
  %v3998 = vxor.u32 %v3990, 2147483648
  %v3999 = vxor.u32 %v3991, 2147483648
  %v4000 = vxor.u32 %v3992, 2147483648
  %v4001 = vxor.u32 %v3993, 2147483648
  %v4002 = vmul.f32 %v3994, 1.442695
  %v4003 = vpow.pop %v4002
  %v4004 = vmul.f32 %v3995, 1.442695
  %v4005 = vpow.pop %v4004
  %v4006 = vmul.f32 %v3996, 1.442695
  %v4007 = vpow.pop %v4006
  %v4008 = vmul.f32 %v3997, 1.442695
  %v4009 = vpow.pop %v4008
  %v4010 = vmul.f32 %v3998, 1.442695
  %v4011 = vpow.pop %v4010
  %v4012 = vmul.f32 %v3999, 1.442695
  %v4013 = vpow.pop %v4012
  %v4014 = vmul.f32 %v4000, 1.442695
  %v4015 = vpow.pop %v4014
  %v4016 = vmul.f32 %v4001, 1.442695
  %v4017 = vpow.pop %v4016
  %v4018 = vadd.f32 %v4003, 1.0
  %v4019 = vadd.f32 %v4005, 1.0
  %v4020 = vadd.f32 %v4007, 1.0
  %v4021 = vadd.f32 %v4009, 1.0
  %v4022 = vadd.f32 %v4011, 1.0
  %v4023 = vadd.f32 %v4013, 1.0
  %v4024 = vadd.f32 %v4015, 1.0
  %v4025 = vadd.f32 %v4017, 1.0
  %v4026 = vrcp.pop %v4018
  %v4027 = vmul.f32 1.0, %v4026
  %v4028 = vrcp.pop %v4019
  %v4029 = vmul.f32 1.0, %v4028
  %v4030 = vrcp.pop %v4020
  %v4031 = vmul.f32 1.0, %v4030
  %v4032 = vrcp.pop %v4021
  %v4033 = vmul.f32 1.0, %v4032
  %v4034 = vrcp.pop %v4022
  %v4035 = vmul.f32 1.0, %v4034
  %v4036 = vrcp.pop %v4023
  %v4037 = vmul.f32 1.0, %v4036
  %v4038 = vrcp.pop %v4024
  %v4039 = vmul.f32 1.0, %v4038
  %v4040 = vrcp.pop %v4025
  %v4041 = vmul.f32 1.0, %v4040
  %v4050 = vrot.slane %v3913, 1
  %v4051 = vrot.slane %v3915, 1
  %v4052 = vrot.slane %v3917, 1
  %v4053 = vrot.slane %v3919, 1
  %v4054 = vrot.slane %v3921, 1
  %v4055 = vrot.slane %v3923, 1
  %v4056 = vrot.slane %v3925, 1
  %v4057 = vrot.slane %v3927, 1
  %v4067 = vcombine.high %v3840, %v3840
  %v4069 = vunpack.c.l.s4 1966171168
  %v4070 = vunpack.c.0.s8 %v4069
  %v4071 = vlaneseq
  %v4072 = vshrl.u32 %v4071, 7
  %v4073 = vsub.s32 %v4070, %v4072
  %v4074 = vrot.slane %v3840, %v4073
  %v4076 = vunpack.c.l.s4 1966171168
  %v4077 = vunpack.c.0.s8 %v4076
  %v4078 = vlaneseq
  %v4079 = vshrl.u32 %v4078, 7
  %v4080 = vsub.s32 %v4077, %v4079
  %v4081 = vrot.slane %v4067, %v4080
  %v4082 = vcombine.high %v4074, %v4074
  %v4083 = vcombine.high %v4081, %v4081
  %v4085 = vunpack.c.l.s4 1966171168
  %v4086 = vunpack.c.0.s8 %v4085
  %v4087 = vlaneseq
  %v4088 = vshrl.u32 %v4087, 7
  %v4089 = vsub.s32 %v4086, %v4088
  %v4090 = vrot.slane %v4074, %v4089
  %v4092 = vunpack.c.l.s4 1966171168
  %v4093 = vunpack.c.0.s8 %v4092
  %v4094 = vlaneseq
  %v4095 = vshrl.u32 %v4094, 7
  %v4096 = vsub.s32 %v4093, %v4095
  %v4097 = vrot.slane %v4081, %v4096
  %v4099 = vunpack.c.l.s4 1966171168
  %v4100 = vunpack.c.0.s8 %v4099
  %v4101 = vlaneseq
  %v4102 = vshrl.u32 %v4101, 7
  %v4103 = vsub.s32 %v4100, %v4102
  %v4104 = vrot.slane %v4082, %v4103
  %v4106 = vunpack.c.l.s4 1966171168
  %v4107 = vunpack.c.0.s8 %v4106
  %v4108 = vlaneseq
  %v4109 = vshrl.u32 %v4108, 7
  %v4110 = vsub.s32 %v4107, %v4109
  %v4111 = vrot.slane %v4083, %v4110
  %v4112 = vcombine.high %v4090, %v4090
  %v4113 = vcombine.high %v4097, %v4097
  %v4114 = vcombine.high %v4104, %v4104
  %v4115 = vcombine.high %v4111, %v4111
  %v4124 = vadd.f32 %v4050, %v4090
  %v4125 = vadd.f32 %v4051, %v4104
  %v4126 = vadd.f32 %v4052, %v4112
  %v4127 = vadd.f32 %v4053, %v4114
  %v4128 = vadd.f32 %v4054, %v4097
  %v4129 = vadd.f32 %v4055, %v4111
  %v4130 = vadd.f32 %v4056, %v4113
  %v4131 = vadd.f32 %v4057, %v4115
  %v4132 = vxor.u32 %v4124, 2147483648
  %v4133 = vxor.u32 %v4125, 2147483648
  %v4134 = vxor.u32 %v4126, 2147483648
  %v4135 = vxor.u32 %v4127, 2147483648
  %v4136 = vxor.u32 %v4128, 2147483648
  %v4137 = vxor.u32 %v4129, 2147483648
  %v4138 = vxor.u32 %v4130, 2147483648
  %v4139 = vxor.u32 %v4131, 2147483648
  %v4140 = vmul.f32 %v4132, 1.442695
  %v4141 = vpow.pop %v4140
  %v4142 = vmul.f32 %v4133, 1.442695
  %v4143 = vpow.pop %v4142
  %v4144 = vmul.f32 %v4134, 1.442695
  %v4145 = vpow.pop %v4144
  %v4146 = vmul.f32 %v4135, 1.442695
  %v4147 = vpow.pop %v4146
  %v4148 = vmul.f32 %v4136, 1.442695
  %v4149 = vpow.pop %v4148
  %v4150 = vmul.f32 %v4137, 1.442695
  %v4151 = vpow.pop %v4150
  %v4152 = vmul.f32 %v4138, 1.442695
  %v4153 = vpow.pop %v4152
  %v4154 = vmul.f32 %v4139, 1.442695
  %v4155 = vpow.pop %v4154
  %v4156 = vadd.f32 %v4141, 1.0
  %v4157 = vadd.f32 %v4143, 1.0
  %v4158 = vadd.f32 %v4145, 1.0
  %v4159 = vadd.f32 %v4147, 1.0
  %v4160 = vadd.f32 %v4149, 1.0
  %v4161 = vadd.f32 %v4151, 1.0
  %v4162 = vadd.f32 %v4153, 1.0
  %v4163 = vadd.f32 %v4155, 1.0
  %v4164 = vrcp.pop %v4156
  %v4165 = vmul.f32 1.0, %v4164
  %v4166 = vrcp.pop %v4157
  %v4167 = vmul.f32 1.0, %v4166
  %v4168 = vrcp.pop %v4158
  %v4169 = vmul.f32 1.0, %v4168
  %v4170 = vrcp.pop %v4159
  %v4171 = vmul.f32 1.0, %v4170
  %v4172 = vrcp.pop %v4160
  %v4173 = vmul.f32 1.0, %v4172
  %v4174 = vrcp.pop %v4161
  %v4175 = vmul.f32 1.0, %v4174
  %v4176 = vrcp.pop %v4162
  %v4177 = vmul.f32 1.0, %v4176
  %v4178 = vrcp.pop %v4163
  %v4179 = vmul.f32 1.0, %v4178
  %v4180 = vadd.f32 %v3909, %v481
  %v4182 = vcombine.high %v4180, %v4180
  %v4184 = vunpack.c.l.s4 1966171168
  %v4185 = vunpack.c.0.s8 %v4184
  %v4186 = vlaneseq
  %v4187 = vshrl.u32 %v4186, 7
  %v4188 = vsub.s32 %v4185, %v4187
  %v4189 = vrot.slane %v4180, %v4188
  %v4191 = vunpack.c.l.s4 1966171168
  %v4192 = vunpack.c.0.s8 %v4191
  %v4193 = vlaneseq
  %v4194 = vshrl.u32 %v4193, 7
  %v4195 = vsub.s32 %v4192, %v4194
  %v4196 = vrot.slane %v4182, %v4195
  %v4197 = vcombine.high %v4189, %v4189
  %v4198 = vcombine.high %v4196, %v4196
  %v4200 = vunpack.c.l.s4 1966171168
  %v4201 = vunpack.c.0.s8 %v4200
  %v4202 = vlaneseq
  %v4203 = vshrl.u32 %v4202, 7
  %v4204 = vsub.s32 %v4201, %v4203
  %v4205 = vrot.slane %v4189, %v4204
  %v4207 = vunpack.c.l.s4 1966171168
  %v4208 = vunpack.c.0.s8 %v4207
  %v4209 = vlaneseq
  %v4210 = vshrl.u32 %v4209, 7
  %v4211 = vsub.s32 %v4208, %v4210
  %v4212 = vrot.slane %v4196, %v4211
  %v4214 = vunpack.c.l.s4 1966171168
  %v4215 = vunpack.c.0.s8 %v4214
  %v4216 = vlaneseq
  %v4217 = vshrl.u32 %v4216, 7
  %v4218 = vsub.s32 %v4215, %v4217
  %v4219 = vrot.slane %v4197, %v4218
  %v4221 = vunpack.c.l.s4 1966171168
  %v4222 = vunpack.c.0.s8 %v4221
  %v4223 = vlaneseq
  %v4224 = vshrl.u32 %v4223, 7
  %v4225 = vsub.s32 %v4222, %v4224
  %v4226 = vrot.slane %v4198, %v4225
  %v4227 = vcombine.high %v4205, %v4205
  %v4228 = vcombine.high %v4212, %v4212
  %v4229 = vcombine.high %v4219, %v4219
  %v4230 = vcombine.high %v4226, %v4226
  %v4239 = vmul.f32 %v4027, %v4205
  %v4240 = vmul.f32 %v4029, %v4219
  %v4241 = vmul.f32 %v4031, %v4227
  %v4242 = vmul.f32 %v4033, %v4229
  %v4243 = vmul.f32 %v4035, %v4212
  %v4244 = vmul.f32 %v4037, %v4226
  %v4245 = vmul.f32 %v4039, %v4228
  %v4246 = vmul.f32 %v4041, %v4230
  %v4247 = vrot.slane %v3913, 2
  %v4248 = vrot.slane %v3915, 2
  %v4249 = vrot.slane %v3917, 2
  %v4250 = vrot.slane %v3919, 2
  %v4251 = vrot.slane %v3921, 2
  %v4252 = vrot.slane %v3923, 2
  %v4253 = vrot.slane %v3925, 2
  %v4254 = vrot.slane %v3927, 2
  %v4263 = vadd.f32 %v4247, %v4239
  %v4264 = vadd.f32 %v4248, %v4240
  %v4265 = vadd.f32 %v4249, %v4241
  %v4266 = vadd.f32 %v4250, %v4242
  %v4267 = vadd.f32 %v4251, %v4243
  %v4268 = vadd.f32 %v4252, %v4244
  %v4269 = vadd.f32 %v4253, %v4245
  %v4270 = vadd.f32 %v4254, %v4246
  %v4271 = vtanh.pop %v4263
  %v4272 = vtanh.pop %v4264
  %v4273 = vtanh.pop %v4265
  %v4274 = vtanh.pop %v4266
  %v4275 = vtanh.pop %v4267
  %v4276 = vtanh.pop %v4268
  %v4277 = vtanh.pop %v4269
  %v4278 = vtanh.pop %v4270
  %v4279 = vsub.f32 %v3697, %v4271
  %v4280 = vsub.f32 %v3698, %v4272
  %v4281 = vsub.f32 %v3699, %v4273
  %v4282 = vsub.f32 %v3700, %v4274
  %v4283 = vsub.f32 %v3701, %v4275
  %v4284 = vsub.f32 %v3702, %v4276
  %v4285 = vsub.f32 %v3703, %v4277
  %v4286 = vsub.f32 %v3704, %v4278
  %v4287 = vmul.f32 %v4165, %v4279
  %v4288 = vmul.f32 %v4167, %v4280
  %v4289 = vmul.f32 %v4169, %v4281
  %v4290 = vmul.f32 %v4171, %v4282
  %v4291 = vmul.f32 %v4173, %v4283
  %v4292 = vmul.f32 %v4175, %v4284
  %v4293 = vmul.f32 %v4177, %v4285
  %v4294 = vmul.f32 %v4179, %v4286
  %v4295 = vadd.f32 %v4271, %v4287
  %v4296 = vadd.f32 %v4272, %v4288
  %v4297 = vadd.f32 %v4273, %v4289
  %v4298 = vadd.f32 %v4274, %v4290
  %v4299 = vadd.f32 %v4275, %v4291
  %v4300 = vadd.f32 %v4276, %v4292
  %v4301 = vadd.f32 %v4277, %v4293
  %v4302 = vadd.f32 %v4278, %v4294
  %4303 = vst [vmem:[%s3 + $0x6] sm:$0x1] %v4295
  %4304 = vst [vmem:[%s3 + $0x16] sm:$0x1] %v4296
  %4305 = vst [vmem:[%s3 + $0x26] sm:$0x1] %v4297
  %4306 = vst [vmem:[%s3 + $0x36] sm:$0x1] %v4298
  %4307 = vst [vmem:[%s3 + $0x46] sm:$0x1] %v4299
  %4308 = vst [vmem:[%s3 + $0x56] sm:$0x1] %v4300
  %4309 = vst [vmem:[%s3 + $0x66] sm:$0x1] %v4301
  %4310 = vst [vmem:[%s3 + $0x76] sm:$0x1] %v4302
  %v4319 = vcombine.low %v4295, %v4296
  %v4320 = vcombine.low %v4297, %v4298
  %v4321 = vcombine.low %v4299, %v4300
  %v4322 = vcombine.low %v4301, %v4302
  %v4324 = vunpack.c.l.s4 1966171168
  %v4325 = vunpack.c.0.s8 %v4324
  %v4326 = vlaneseq
  %v4327 = vshrl.u32 %v4326, 7
  %v4328 = vsub.s32 %v4325, %v4327
  %v4329 = vrot.slane %v4319, %v4328
  %v4331 = vunpack.c.l.s4 1966171168
  %v4332 = vunpack.c.0.s8 %v4331
  %v4333 = vlaneseq
  %v4334 = vshrl.u32 %v4333, 7
  %v4335 = vsub.s32 %v4332, %v4334
  %v4336 = vrot.slane %v4320, %v4335
  %v4338 = vunpack.c.l.s4 1966171168
  %v4339 = vunpack.c.0.s8 %v4338
  %v4340 = vlaneseq
  %v4341 = vshrl.u32 %v4340, 7
  %v4342 = vsub.s32 %v4339, %v4341
  %v4343 = vrot.slane %v4321, %v4342
  %v4345 = vunpack.c.l.s4 1966171168
  %v4346 = vunpack.c.0.s8 %v4345
  %v4347 = vlaneseq
  %v4348 = vshrl.u32 %v4347, 7
  %v4349 = vsub.s32 %v4346, %v4348
  %v4350 = vrot.slane %v4322, %v4349
  %v4351 = vcombine.low %v4329, %v4336
  %v4352 = vcombine.low %v4343, %v4350
  %v4354 = vunpack.c.l.s4 1966171168
  %v4355 = vunpack.c.0.s8 %v4354
  %v4356 = vlaneseq
  %v4357 = vshrl.u32 %v4356, 7
  %v4358 = vsub.s32 %v4355, %v4357
  %v4359 = vrot.slane %v4351, %v4358
  %v4361 = vunpack.c.l.s4 1966171168
  %v4362 = vunpack.c.0.s8 %v4361
  %v4363 = vlaneseq
  %v4364 = vshrl.u32 %v4363, 7
  %v4365 = vsub.s32 %v4362, %v4364
  %v4366 = vrot.slane %v4352, %v4365
  %v4367 = vcombine.low %v4359, %v4366
  %4369 = vmatprep.subr.mxu0 %v20
  %4370 = vmatpush1.msra.mxu0 %v19
  %4371 = vmatprep.subr.mxu0 %v23
  %4372 = vmatpush1.msra.mxu0 %v22
  %4373 = vmatprep.subr.mxu0 %v26
  %4374 = vmatpush1.msra.mxu0 %v25
  %4375 = vmatprep.subr.mxu0 %v29
  %4376 = vmatpush1.msra.mxu0 %v28
  %4377 = vmatprep.subr.mxu0 %v32
  %4378 = vmatpush1.msra.mxu0 %v31
  %4379 = vmatprep.subr.mxu0 %v35
  %4380 = vmatpush1.msra.mxu0 %v34
  %4381 = vmatprep.subr.mxu0 %v38
  %4382 = vmatpush1.msra.mxu0 %v37
  %4383 = vmatprep.subr.mxu0 %v41
  %4384 = vmatpush1.msra.mxu0 %v40
  %4385 = vmatprep.subr.mxu0 %v44
  %4386 = vmatpush1.msra.mxu0 %v43
  %4387 = vmatprep.subr.mxu0 %v47
  %4388 = vmatpush1.msra.mxu0 %v46
  %4389 = vmatprep.subr.mxu0 %v50
  %4390 = vmatpush1.msra.mxu0 %v49
  %4391 = vmatprep.subr.mxu0 %v53
  %4392 = vmatpush1.msra.mxu0 %v52
  %4393 = vmatprep.subr.mxu0 %v56
  %4394 = vmatpush1.msra.mxu0 %v55
  %4395 = vmatprep.subr.mxu0 %v59
  %4396 = vmatpush1.msra.mxu0 %v58
  %4397 = vmatprep.subr.mxu0 %v62
  %4398 = vmatpush1.msra.mxu0 %v61
  %4399 = vmatprep.subr.mxu0 %v65
  %4400 = vmatpush1.msra.mxu0 %v64
  %4401 = vmatprep.subr.mxu0 0.0
  %4402 = vmatpush1.msra.mxu0 0.0
  %4403 = vmatprep.subr.mxu0 0.0
  %4404 = vmatpush1.msra.mxu0 0.0
  %4405 = vmatprep.subr.mxu0 0.0
  %4406 = vmatpush1.msra.mxu0 0.0
  %4407 = vmatprep.subr.mxu0 0.0
  %4408 = vmatpush1.msra.mxu0 0.0
  %4409 = vmatprep.subr.mxu0 0.0
  %4410 = vmatpush1.msra.mxu0 0.0
  %4411 = vmatprep.subr.mxu0 0.0
  %4412 = vmatpush1.msra.mxu0 0.0
  %4413 = vmatprep.subr.mxu0 0.0
  %4414 = vmatpush1.msra.mxu0 0.0
  %4415 = vmatprep.subr.mxu0 0.0
  %4416 = vmatpush1.msra.mxu0 0.0
  %4417 = vmatprep.subr.mxu0 0.0
  %4418 = vmatpush1.msra.mxu0 0.0
  %4419 = vmatprep.subr.mxu0 0.0
  %4420 = vmatpush1.msra.mxu0 0.0
  %4421 = vmatprep.subr.mxu0 0.0
  %4422 = vmatpush1.msra.mxu0 0.0
  %4423 = vmatprep.subr.mxu0 0.0
  %4424 = vmatpush1.msra.mxu0 0.0
  %4425 = vmatprep.subr.mxu0 0.0
  %4426 = vmatpush1.msra.mxu0 0.0
  %4427 = vmatprep.subr.mxu0 0.0
  %4428 = vmatpush1.msra.mxu0 0.0
  %4429 = vmatprep.subr.mxu0 0.0
  %4430 = vmatpush1.msra.mxu0 0.0
  %4431 = vmatprep.subr.mxu0 0.0
  %4432 = vmatpush1.msra.mxu0 0.0
  %4433 = vmatprep.mubr.f32.mxu0 0.0
  %4434 = vmatmul.mubr.f32.gmra.mrb[0].mxu0 %v4367
  %v4435 = vpop.f32.mrb[0].mxu0
  %v4436 = vadd.f32 0.0, %v4435
  %v4437 = vpop.f32.mrb[0].mxu0
  %v4438 = vadd.f32 0.0, %v4437
  %4439 = vdwg.mxu0
  %4440 = vmatprep.subr.mxu0 0.0
  %4441 = vmatpush1.msra.mxu0 %v21
  %4442 = vmatprep.subr.mxu0 0.0
  %4443 = vmatpush1.msra.mxu0 %v24
  %4444 = vmatprep.subr.mxu0 0.0
  %4445 = vmatpush1.msra.mxu0 %v27
  %4446 = vmatprep.subr.mxu0 0.0
  %4447 = vmatpush1.msra.mxu0 %v30
  %4448 = vmatprep.subr.mxu0 0.0
  %4449 = vmatpush1.msra.mxu0 %v33
  %4450 = vmatprep.subr.mxu0 0.0
  %4451 = vmatpush1.msra.mxu0 %v36
  %4452 = vmatprep.subr.mxu0 0.0
  %4453 = vmatpush1.msra.mxu0 %v39
  %4454 = vmatprep.subr.mxu0 0.0
  %4455 = vmatpush1.msra.mxu0 %v42
  %4456 = vmatprep.subr.mxu0 0.0
  %4457 = vmatpush1.msra.mxu0 %v45
  %4458 = vmatprep.subr.mxu0 0.0
  %4459 = vmatpush1.msra.mxu0 %v48
  %4460 = vmatprep.subr.mxu0 0.0
  %4461 = vmatpush1.msra.mxu0 %v51
  %4462 = vmatprep.subr.mxu0 0.0
  %4463 = vmatpush1.msra.mxu0 %v54
  %4464 = vmatprep.subr.mxu0 0.0
  %4465 = vmatpush1.msra.mxu0 %v57
  %4466 = vmatprep.subr.mxu0 0.0
  %4467 = vmatpush1.msra.mxu0 %v60
  %4468 = vmatprep.subr.mxu0 0.0
  %4469 = vmatpush1.msra.mxu0 %v63
  %4470 = vmatprep.subr.mxu0 0.0
  %4471 = vmatpush1.msra.mxu0 %v66
  %4472 = vmatprep.subr.mxu0 0.0
  %4473 = vmatpush1.msra.mxu0 0.0
  %4474 = vmatprep.subr.mxu0 0.0
  %4475 = vmatpush1.msra.mxu0 0.0
  %4476 = vmatprep.subr.mxu0 0.0
  %4477 = vmatpush1.msra.mxu0 0.0
  %4478 = vmatprep.subr.mxu0 0.0
  %4479 = vmatpush1.msra.mxu0 0.0
  %4480 = vmatprep.subr.mxu0 0.0
  %4481 = vmatpush1.msra.mxu0 0.0
  %4482 = vmatprep.subr.mxu0 0.0
  %4483 = vmatpush1.msra.mxu0 0.0
  %4484 = vmatprep.subr.mxu0 0.0
  %4485 = vmatpush1.msra.mxu0 0.0
  %4486 = vmatprep.subr.mxu0 0.0
  %4487 = vmatpush1.msra.mxu0 0.0
  %4488 = vmatprep.subr.mxu0 0.0
  %4489 = vmatpush1.msra.mxu0 0.0
  %4490 = vmatprep.subr.mxu0 0.0
  %4491 = vmatpush1.msra.mxu0 0.0
  %4492 = vmatprep.subr.mxu0 0.0
  %4493 = vmatpush1.msra.mxu0 0.0
  %4494 = vmatprep.subr.mxu0 0.0
  %4495 = vmatpush1.msra.mxu0 0.0
  %4496 = vmatprep.subr.mxu0 0.0
  %4497 = vmatpush1.msra.mxu0 0.0
  %4498 = vmatprep.subr.mxu0 0.0
  %4499 = vmatpush1.msra.mxu0 0.0
  %4500 = vmatprep.subr.mxu0 0.0
  %4501 = vmatpush1.msra.mxu0 0.0
  %4502 = vmatprep.subr.mxu0 0.0
  %4503 = vmatpush1.msra.mxu0 0.0
  %4504 = vmatprep.mubr.f32.mxu0 0.0
  %4505 = vmatmul.mubr.f32.gmra.mrb[0].mxu0 %v4367
  %v4506 = vpop.f32.mrb[0].mxu0
  %v4507 = vadd.f32 0.0, %v4506
  %v4508 = vpop.f32.mrb[0].mxu0
  %4509 = vdwg.mxu0
  %s4510 = scalar_lea.vmem %s0, 7
  %v4511 = vld [vmem:[%s4510] ss:$8 sm:$0x7]
  %s4512 = scalar_lea.vmem %s0, 55
  %v4513 = vld [vmem:[%s4512] ss:$8 sm:$0x7]
  %s4514 = scalar_lea.vmem %s0, 103
  %v4515 = vld [vmem:[%s4514] ss:$8 sm:$0x7]
  %s4516 = scalar_lea.vmem %s0, 151
  %v4517 = vld [vmem:[%s4516] ss:$8 sm:$0x7]
  %s4518 = scalar_lea.vmem %s0, 199
  %v4519 = vld [vmem:[%s4518] ss:$8 sm:$0x7]
  %s4520 = scalar_lea.vmem %s0, 247
  %v4521 = vld [vmem:[%s4520] ss:$8 sm:$0x7]
  %s4522 = scalar_lea.vmem %s0, 295
  %v4523 = vld [vmem:[%s4522] ss:$8 sm:$0x7]
  %s4524 = scalar_lea.vmem %s0, 343
  %v4525 = vld [vmem:[%s4524] ss:$8 sm:$0x7]
  %v4527 = vcombine.high %v4436, %v4436
  %v4529 = vunpack.c.l.s4 1966171168
  %v4530 = vunpack.c.0.s8 %v4529
  %v4531 = vlaneseq
  %v4532 = vshrl.u32 %v4531, 7
  %v4533 = vsub.s32 %v4530, %v4532
  %v4534 = vrot.slane %v4436, %v4533
  %v4536 = vunpack.c.l.s4 1966171168
  %v4537 = vunpack.c.0.s8 %v4536
  %v4538 = vlaneseq
  %v4539 = vshrl.u32 %v4538, 7
  %v4540 = vsub.s32 %v4537, %v4539
  %v4541 = vrot.slane %v4527, %v4540
  %v4542 = vcombine.high %v4534, %v4534
  %v4543 = vcombine.high %v4541, %v4541
  %v4545 = vunpack.c.l.s4 1966171168
  %v4546 = vunpack.c.0.s8 %v4545
  %v4547 = vlaneseq
  %v4548 = vshrl.u32 %v4547, 7
  %v4549 = vsub.s32 %v4546, %v4548
  %v4550 = vrot.slane %v4534, %v4549
  %v4552 = vunpack.c.l.s4 1966171168
  %v4553 = vunpack.c.0.s8 %v4552
  %v4554 = vlaneseq
  %v4555 = vshrl.u32 %v4554, 7
  %v4556 = vsub.s32 %v4553, %v4555
  %v4557 = vrot.slane %v4541, %v4556
  %v4559 = vunpack.c.l.s4 1966171168
  %v4560 = vunpack.c.0.s8 %v4559
  %v4561 = vlaneseq
  %v4562 = vshrl.u32 %v4561, 7
  %v4563 = vsub.s32 %v4560, %v4562
  %v4564 = vrot.slane %v4542, %v4563
  %v4566 = vunpack.c.l.s4 1966171168
  %v4567 = vunpack.c.0.s8 %v4566
  %v4568 = vlaneseq
  %v4569 = vshrl.u32 %v4568, 7
  %v4570 = vsub.s32 %v4567, %v4569
  %v4571 = vrot.slane %v4543, %v4570
  %v4572 = vcombine.high %v4550, %v4550
  %v4573 = vcombine.high %v4557, %v4557
  %v4574 = vcombine.high %v4564, %v4564
  %v4575 = vcombine.high %v4571, %v4571
  %v4584 = vadd.f32 %v4511, %v4550
  %v4585 = vadd.f32 %v4513, %v4564
  %v4586 = vadd.f32 %v4515, %v4572
  %v4587 = vadd.f32 %v4517, %v4574
  %v4588 = vadd.f32 %v4519, %v4557
  %v4589 = vadd.f32 %v4521, %v4571
  %v4590 = vadd.f32 %v4523, %v4573
  %v4591 = vadd.f32 %v4525, %v4575
  %v4592 = vxor.u32 %v4584, 2147483648
  %v4593 = vxor.u32 %v4585, 2147483648
  %v4594 = vxor.u32 %v4586, 2147483648
  %v4595 = vxor.u32 %v4587, 2147483648
  %v4596 = vxor.u32 %v4588, 2147483648
  %v4597 = vxor.u32 %v4589, 2147483648
  %v4598 = vxor.u32 %v4590, 2147483648
  %v4599 = vxor.u32 %v4591, 2147483648
  %v4600 = vmul.f32 %v4592, 1.442695
  %v4601 = vpow.pop %v4600
  %v4602 = vmul.f32 %v4593, 1.442695
  %v4603 = vpow.pop %v4602
  %v4604 = vmul.f32 %v4594, 1.442695
  %v4605 = vpow.pop %v4604
  %v4606 = vmul.f32 %v4595, 1.442695
  %v4607 = vpow.pop %v4606
  %v4608 = vmul.f32 %v4596, 1.442695
  %v4609 = vpow.pop %v4608
  %v4610 = vmul.f32 %v4597, 1.442695
  %v4611 = vpow.pop %v4610
  %v4612 = vmul.f32 %v4598, 1.442695
  %v4613 = vpow.pop %v4612
  %v4614 = vmul.f32 %v4599, 1.442695
  %v4615 = vpow.pop %v4614
  %v4616 = vadd.f32 %v4601, 1.0
  %v4617 = vadd.f32 %v4603, 1.0
  %v4618 = vadd.f32 %v4605, 1.0
  %v4619 = vadd.f32 %v4607, 1.0
  %v4620 = vadd.f32 %v4609, 1.0
  %v4621 = vadd.f32 %v4611, 1.0
  %v4622 = vadd.f32 %v4613, 1.0
  %v4623 = vadd.f32 %v4615, 1.0
  %v4624 = vrcp.pop %v4616
  %v4625 = vmul.f32 1.0, %v4624
  %v4626 = vrcp.pop %v4617
  %v4627 = vmul.f32 1.0, %v4626
  %v4628 = vrcp.pop %v4618
  %v4629 = vmul.f32 1.0, %v4628
  %v4630 = vrcp.pop %v4619
  %v4631 = vmul.f32 1.0, %v4630
  %v4632 = vrcp.pop %v4620
  %v4633 = vmul.f32 1.0, %v4632
  %v4634 = vrcp.pop %v4621
  %v4635 = vmul.f32 1.0, %v4634
  %v4636 = vrcp.pop %v4622
  %v4637 = vmul.f32 1.0, %v4636
  %v4638 = vrcp.pop %v4623
  %v4639 = vmul.f32 1.0, %v4638
  %v4648 = vrot.slane %v4511, 1
  %v4649 = vrot.slane %v4513, 1
  %v4650 = vrot.slane %v4515, 1
  %v4651 = vrot.slane %v4517, 1
  %v4652 = vrot.slane %v4519, 1
  %v4653 = vrot.slane %v4521, 1
  %v4654 = vrot.slane %v4523, 1
  %v4655 = vrot.slane %v4525, 1
  %v4665 = vcombine.high %v4438, %v4438
  %v4667 = vunpack.c.l.s4 1966171168
  %v4668 = vunpack.c.0.s8 %v4667
  %v4669 = vlaneseq
  %v4670 = vshrl.u32 %v4669, 7
  %v4671 = vsub.s32 %v4668, %v4670
  %v4672 = vrot.slane %v4438, %v4671
  %v4674 = vunpack.c.l.s4 1966171168
  %v4675 = vunpack.c.0.s8 %v4674
  %v4676 = vlaneseq
  %v4677 = vshrl.u32 %v4676, 7
  %v4678 = vsub.s32 %v4675, %v4677
  %v4679 = vrot.slane %v4665, %v4678
  %v4680 = vcombine.high %v4672, %v4672
  %v4681 = vcombine.high %v4679, %v4679
  %v4683 = vunpack.c.l.s4 1966171168
  %v4684 = vunpack.c.0.s8 %v4683
  %v4685 = vlaneseq
  %v4686 = vshrl.u32 %v4685, 7
  %v4687 = vsub.s32 %v4684, %v4686
  %v4688 = vrot.slane %v4672, %v4687
  %v4690 = vunpack.c.l.s4 1966171168
  %v4691 = vunpack.c.0.s8 %v4690
  %v4692 = vlaneseq
  %v4693 = vshrl.u32 %v4692, 7
  %v4694 = vsub.s32 %v4691, %v4693
  %v4695 = vrot.slane %v4679, %v4694
  %v4697 = vunpack.c.l.s4 1966171168
  %v4698 = vunpack.c.0.s8 %v4697
  %v4699 = vlaneseq
  %v4700 = vshrl.u32 %v4699, 7
  %v4701 = vsub.s32 %v4698, %v4700
  %v4702 = vrot.slane %v4680, %v4701
  %v4704 = vunpack.c.l.s4 1966171168
  %v4705 = vunpack.c.0.s8 %v4704
  %v4706 = vlaneseq
  %v4707 = vshrl.u32 %v4706, 7
  %v4708 = vsub.s32 %v4705, %v4707
  %v4709 = vrot.slane %v4681, %v4708
  %v4710 = vcombine.high %v4688, %v4688
  %v4711 = vcombine.high %v4695, %v4695
  %v4712 = vcombine.high %v4702, %v4702
  %v4713 = vcombine.high %v4709, %v4709
  %v4722 = vadd.f32 %v4648, %v4688
  %v4723 = vadd.f32 %v4649, %v4702
  %v4724 = vadd.f32 %v4650, %v4710
  %v4725 = vadd.f32 %v4651, %v4712
  %v4726 = vadd.f32 %v4652, %v4695
  %v4727 = vadd.f32 %v4653, %v4709
  %v4728 = vadd.f32 %v4654, %v4711
  %v4729 = vadd.f32 %v4655, %v4713
  %v4730 = vxor.u32 %v4722, 2147483648
  %v4731 = vxor.u32 %v4723, 2147483648
  %v4732 = vxor.u32 %v4724, 2147483648
  %v4733 = vxor.u32 %v4725, 2147483648
  %v4734 = vxor.u32 %v4726, 2147483648
  %v4735 = vxor.u32 %v4727, 2147483648
  %v4736 = vxor.u32 %v4728, 2147483648
  %v4737 = vxor.u32 %v4729, 2147483648
  %v4738 = vmul.f32 %v4730, 1.442695
  %v4739 = vpow.pop %v4738
  %v4740 = vmul.f32 %v4731, 1.442695
  %v4741 = vpow.pop %v4740
  %v4742 = vmul.f32 %v4732, 1.442695
  %v4743 = vpow.pop %v4742
  %v4744 = vmul.f32 %v4733, 1.442695
  %v4745 = vpow.pop %v4744
  %v4746 = vmul.f32 %v4734, 1.442695
  %v4747 = vpow.pop %v4746
  %v4748 = vmul.f32 %v4735, 1.442695
  %v4749 = vpow.pop %v4748
  %v4750 = vmul.f32 %v4736, 1.442695
  %v4751 = vpow.pop %v4750
  %v4752 = vmul.f32 %v4737, 1.442695
  %v4753 = vpow.pop %v4752
  %v4754 = vadd.f32 %v4739, 1.0
  %v4755 = vadd.f32 %v4741, 1.0
  %v4756 = vadd.f32 %v4743, 1.0
  %v4757 = vadd.f32 %v4745, 1.0
  %v4758 = vadd.f32 %v4747, 1.0
  %v4759 = vadd.f32 %v4749, 1.0
  %v4760 = vadd.f32 %v4751, 1.0
  %v4761 = vadd.f32 %v4753, 1.0
  %v4762 = vrcp.pop %v4754
  %v4763 = vmul.f32 1.0, %v4762
  %v4764 = vrcp.pop %v4755
  %v4765 = vmul.f32 1.0, %v4764
  %v4766 = vrcp.pop %v4756
  %v4767 = vmul.f32 1.0, %v4766
  %v4768 = vrcp.pop %v4757
  %v4769 = vmul.f32 1.0, %v4768
  %v4770 = vrcp.pop %v4758
  %v4771 = vmul.f32 1.0, %v4770
  %v4772 = vrcp.pop %v4759
  %v4773 = vmul.f32 1.0, %v4772
  %v4774 = vrcp.pop %v4760
  %v4775 = vmul.f32 1.0, %v4774
  %v4776 = vrcp.pop %v4761
  %v4777 = vmul.f32 1.0, %v4776
  %v4778 = vadd.f32 %v4507, %v481
  %v4780 = vcombine.high %v4778, %v4778
  %v4782 = vunpack.c.l.s4 1966171168
  %v4783 = vunpack.c.0.s8 %v4782
  %v4784 = vlaneseq
  %v4785 = vshrl.u32 %v4784, 7
  %v4786 = vsub.s32 %v4783, %v4785
  %v4787 = vrot.slane %v4778, %v4786
  %v4789 = vunpack.c.l.s4 1966171168
  %v4790 = vunpack.c.0.s8 %v4789
  %v4791 = vlaneseq
  %v4792 = vshrl.u32 %v4791, 7
  %v4793 = vsub.s32 %v4790, %v4792
  %v4794 = vrot.slane %v4780, %v4793
  %v4795 = vcombine.high %v4787, %v4787
  %v4796 = vcombine.high %v4794, %v4794
  %v4798 = vunpack.c.l.s4 1966171168
  %v4799 = vunpack.c.0.s8 %v4798
  %v4800 = vlaneseq
  %v4801 = vshrl.u32 %v4800, 7
  %v4802 = vsub.s32 %v4799, %v4801
  %v4803 = vrot.slane %v4787, %v4802
  %v4805 = vunpack.c.l.s4 1966171168
  %v4806 = vunpack.c.0.s8 %v4805
  %v4807 = vlaneseq
  %v4808 = vshrl.u32 %v4807, 7
  %v4809 = vsub.s32 %v4806, %v4808
  %v4810 = vrot.slane %v4794, %v4809
  %v4812 = vunpack.c.l.s4 1966171168
  %v4813 = vunpack.c.0.s8 %v4812
  %v4814 = vlaneseq
  %v4815 = vshrl.u32 %v4814, 7
  %v4816 = vsub.s32 %v4813, %v4815
  %v4817 = vrot.slane %v4795, %v4816
  %v4819 = vunpack.c.l.s4 1966171168
  %v4820 = vunpack.c.0.s8 %v4819
  %v4821 = vlaneseq
  %v4822 = vshrl.u32 %v4821, 7
  %v4823 = vsub.s32 %v4820, %v4822
  %v4824 = vrot.slane %v4796, %v4823
  %v4825 = vcombine.high %v4803, %v4803
  %v4826 = vcombine.high %v4810, %v4810
  %v4827 = vcombine.high %v4817, %v4817
  %v4828 = vcombine.high %v4824, %v4824
  %v4837 = vmul.f32 %v4625, %v4803
  %v4838 = vmul.f32 %v4627, %v4817
  %v4839 = vmul.f32 %v4629, %v4825
  %v4840 = vmul.f32 %v4631, %v4827
  %v4841 = vmul.f32 %v4633, %v4810
  %v4842 = vmul.f32 %v4635, %v4824
  %v4843 = vmul.f32 %v4637, %v4826
  %v4844 = vmul.f32 %v4639, %v4828
  %v4845 = vrot.slane %v4511, 2
  %v4846 = vrot.slane %v4513, 2
  %v4847 = vrot.slane %v4515, 2
  %v4848 = vrot.slane %v4517, 2
  %v4849 = vrot.slane %v4519, 2
  %v4850 = vrot.slane %v4521, 2
  %v4851 = vrot.slane %v4523, 2
  %v4852 = vrot.slane %v4525, 2
  %v4861 = vadd.f32 %v4845, %v4837
  %v4862 = vadd.f32 %v4846, %v4838
  %v4863 = vadd.f32 %v4847, %v4839
  %v4864 = vadd.f32 %v4848, %v4840
  %v4865 = vadd.f32 %v4849, %v4841
  %v4866 = vadd.f32 %v4850, %v4842
  %v4867 = vadd.f32 %v4851, %v4843
  %v4868 = vadd.f32 %v4852, %v4844
  %v4869 = vtanh.pop %v4861
  %v4870 = vtanh.pop %v4862
  %v4871 = vtanh.pop %v4863
  %v4872 = vtanh.pop %v4864
  %v4873 = vtanh.pop %v4865
  %v4874 = vtanh.pop %v4866
  %v4875 = vtanh.pop %v4867
  %v4876 = vtanh.pop %v4868
  %v4877 = vsub.f32 %v4295, %v4869
  %v4878 = vsub.f32 %v4296, %v4870
  %v4879 = vsub.f32 %v4297, %v4871
  %v4880 = vsub.f32 %v4298, %v4872
  %v4881 = vsub.f32 %v4299, %v4873
  %v4882 = vsub.f32 %v4300, %v4874
  %v4883 = vsub.f32 %v4301, %v4875
  %v4884 = vsub.f32 %v4302, %v4876
  %v4885 = vmul.f32 %v4763, %v4877
  %v4886 = vmul.f32 %v4765, %v4878
  %v4887 = vmul.f32 %v4767, %v4879
  %v4888 = vmul.f32 %v4769, %v4880
  %v4889 = vmul.f32 %v4771, %v4881
  %v4890 = vmul.f32 %v4773, %v4882
  %v4891 = vmul.f32 %v4775, %v4883
  %v4892 = vmul.f32 %v4777, %v4884
  %v4893 = vadd.f32 %v4869, %v4885
  %v4894 = vadd.f32 %v4870, %v4886
  %v4895 = vadd.f32 %v4871, %v4887
  %v4896 = vadd.f32 %v4872, %v4888
  %v4897 = vadd.f32 %v4873, %v4889
  %v4898 = vadd.f32 %v4874, %v4890
  %v4899 = vadd.f32 %v4875, %v4891
  %v4900 = vadd.f32 %v4876, %v4892
  %4901 = vst [vmem:[%s3 + $0x7] sm:$0x1] %v4893
  %4902 = vst [vmem:[%s3 + $0x17] sm:$0x1] %v4894
  %4903 = vst [vmem:[%s3 + $0x27] sm:$0x1] %v4895
  %4904 = vst [vmem:[%s3 + $0x37] sm:$0x1] %v4896
  %4905 = vst [vmem:[%s3 + $0x47] sm:$0x1] %v4897
  %4906 = vst [vmem:[%s3 + $0x57] sm:$0x1] %v4898
  %4907 = vst [vmem:[%s3 + $0x67] sm:$0x1] %v4899
  %4908 = vst [vmem:[%s3 + $0x77] sm:$0x1] %v4900
  %v4917 = vcombine.low %v4893, %v4894
  %v4918 = vcombine.low %v4895, %v4896
  %v4919 = vcombine.low %v4897, %v4898
  %v4920 = vcombine.low %v4899, %v4900
  %v4922 = vunpack.c.l.s4 1966171168
  %v4923 = vunpack.c.0.s8 %v4922
  %v4924 = vlaneseq
  %v4925 = vshrl.u32 %v4924, 7
  %v4926 = vsub.s32 %v4923, %v4925
  %v4927 = vrot.slane %v4917, %v4926
  %v4929 = vunpack.c.l.s4 1966171168
  %v4930 = vunpack.c.0.s8 %v4929
  %v4931 = vlaneseq
  %v4932 = vshrl.u32 %v4931, 7
  %v4933 = vsub.s32 %v4930, %v4932
  %v4934 = vrot.slane %v4918, %v4933
  %v4936 = vunpack.c.l.s4 1966171168
  %v4937 = vunpack.c.0.s8 %v4936
  %v4938 = vlaneseq
  %v4939 = vshrl.u32 %v4938, 7
  %v4940 = vsub.s32 %v4937, %v4939
  %v4941 = vrot.slane %v4919, %v4940
  %v4943 = vunpack.c.l.s4 1966171168
  %v4944 = vunpack.c.0.s8 %v4943
  %v4945 = vlaneseq
  %v4946 = vshrl.u32 %v4945, 7
  %v4947 = vsub.s32 %v4944, %v4946
  %v4948 = vrot.slane %v4920, %v4947
  %v4949 = vcombine.low %v4927, %v4934
  %v4950 = vcombine.low %v4941, %v4948
  %v4952 = vunpack.c.l.s4 1966171168
  %v4953 = vunpack.c.0.s8 %v4952
  %v4954 = vlaneseq
  %v4955 = vshrl.u32 %v4954, 7
  %v4956 = vsub.s32 %v4953, %v4955
  %v4957 = vrot.slane %v4949, %v4956
  %v4959 = vunpack.c.l.s4 1966171168
  %v4960 = vunpack.c.0.s8 %v4959
  %v4961 = vlaneseq
  %v4962 = vshrl.u32 %v4961, 7
  %v4963 = vsub.s32 %v4960, %v4962
  %v4964 = vrot.slane %v4950, %v4963
  %v4965 = vcombine.low %v4957, %v4964
  %4967 = vmatprep.subr.mxu0 %v20
  %4968 = vmatpush1.msra.mxu0 %v19
  %4969 = vmatprep.subr.mxu0 %v23
  %4970 = vmatpush1.msra.mxu0 %v22
  %4971 = vmatprep.subr.mxu0 %v26
  %4972 = vmatpush1.msra.mxu0 %v25
  %4973 = vmatprep.subr.mxu0 %v29
  %4974 = vmatpush1.msra.mxu0 %v28
  %4975 = vmatprep.subr.mxu0 %v32
  %4976 = vmatpush1.msra.mxu0 %v31
  %4977 = vmatprep.subr.mxu0 %v35
  %4978 = vmatpush1.msra.mxu0 %v34
  %4979 = vmatprep.subr.mxu0 %v38
  %4980 = vmatpush1.msra.mxu0 %v37
  %4981 = vmatprep.subr.mxu0 %v41
  %4982 = vmatpush1.msra.mxu0 %v40
  %4983 = vmatprep.subr.mxu0 %v44
  %4984 = vmatpush1.msra.mxu0 %v43
  %4985 = vmatprep.subr.mxu0 %v47
  %4986 = vmatpush1.msra.mxu0 %v46
  %4987 = vmatprep.subr.mxu0 %v50
  %4988 = vmatpush1.msra.mxu0 %v49
  %4989 = vmatprep.subr.mxu0 %v53
  %4990 = vmatpush1.msra.mxu0 %v52
  %4991 = vmatprep.subr.mxu0 %v56
  %4992 = vmatpush1.msra.mxu0 %v55
  %4993 = vmatprep.subr.mxu0 %v59
  %4994 = vmatpush1.msra.mxu0 %v58
  %4995 = vmatprep.subr.mxu0 %v62
  %4996 = vmatpush1.msra.mxu0 %v61
  %4997 = vmatprep.subr.mxu0 %v65
  %4998 = vmatpush1.msra.mxu0 %v64
  %4999 = vmatprep.subr.mxu0 0.0
  %5000 = vmatpush1.msra.mxu0 0.0
  %5001 = vmatprep.subr.mxu0 0.0
  %5002 = vmatpush1.msra.mxu0 0.0
  %5003 = vmatprep.subr.mxu0 0.0
  %5004 = vmatpush1.msra.mxu0 0.0
  %5005 = vmatprep.subr.mxu0 0.0
  %5006 = vmatpush1.msra.mxu0 0.0
  %5007 = vmatprep.subr.mxu0 0.0
  %5008 = vmatpush1.msra.mxu0 0.0
  %5009 = vmatprep.subr.mxu0 0.0
  %5010 = vmatpush1.msra.mxu0 0.0
  %5011 = vmatprep.subr.mxu0 0.0
  %5012 = vmatpush1.msra.mxu0 0.0
  %5013 = vmatprep.subr.mxu0 0.0
  %5014 = vmatpush1.msra.mxu0 0.0
  %5015 = vmatprep.subr.mxu0 0.0
  %5016 = vmatpush1.msra.mxu0 0.0
  %5017 = vmatprep.subr.mxu0 0.0
  %5018 = vmatpush1.msra.mxu0 0.0
  %5019 = vmatprep.subr.mxu0 0.0
  %5020 = vmatpush1.msra.mxu0 0.0
  %5021 = vmatprep.subr.mxu0 0.0
  %5022 = vmatpush1.msra.mxu0 0.0
  %5023 = vmatprep.subr.mxu0 0.0
  %5024 = vmatpush1.msra.mxu0 0.0
  %5025 = vmatprep.subr.mxu0 0.0
  %5026 = vmatpush1.msra.mxu0 0.0
  %5027 = vmatprep.subr.mxu0 0.0
  %5028 = vmatpush1.msra.mxu0 0.0
  %5029 = vmatprep.subr.mxu0 0.0
  %5030 = vmatpush1.msra.mxu0 0.0
  %5031 = vmatprep.mubr.f32.mxu0 0.0
  %5032 = vmatmul.mubr.f32.gmra.mrb[0].mxu0 %v4965
  %v5033 = vpop.f32.mrb[0].mxu0
  %v5034 = vadd.f32 0.0, %v5033
  %v5035 = vpop.f32.mrb[0].mxu0
  %v5036 = vadd.f32 0.0, %v5035
  %5037 = vdwg.mxu0
  %5038 = vmatprep.subr.mxu0 0.0
  %5039 = vmatpush1.msra.mxu0 %v21
  %5040 = vmatprep.subr.mxu0 0.0
  %5041 = vmatpush1.msra.mxu0 %v24
  %5042 = vmatprep.subr.mxu0 0.0
  %5043 = vmatpush1.msra.mxu0 %v27
  %5044 = vmatprep.subr.mxu0 0.0
  %5045 = vmatpush1.msra.mxu0 %v30
  %5046 = vmatprep.subr.mxu0 0.0
  %5047 = vmatpush1.msra.mxu0 %v33
  %5048 = vmatprep.subr.mxu0 0.0
  %5049 = vmatpush1.msra.mxu0 %v36
  %5050 = vmatprep.subr.mxu0 0.0
  %5051 = vmatpush1.msra.mxu0 %v39
  %5052 = vmatprep.subr.mxu0 0.0
  %5053 = vmatpush1.msra.mxu0 %v42
  %5054 = vmatprep.subr.mxu0 0.0
  %5055 = vmatpush1.msra.mxu0 %v45
  %5056 = vmatprep.subr.mxu0 0.0
  %5057 = vmatpush1.msra.mxu0 %v48
  %5058 = vmatprep.subr.mxu0 0.0
  %5059 = vmatpush1.msra.mxu0 %v51
  %5060 = vmatprep.subr.mxu0 0.0
  %5061 = vmatpush1.msra.mxu0 %v54
  %5062 = vmatprep.subr.mxu0 0.0
  %5063 = vmatpush1.msra.mxu0 %v57
  %5064 = vmatprep.subr.mxu0 0.0
  %5065 = vmatpush1.msra.mxu0 %v60
  %5066 = vmatprep.subr.mxu0 0.0
  %5067 = vmatpush1.msra.mxu0 %v63
  %5068 = vmatprep.subr.mxu0 0.0
  %5069 = vmatpush1.msra.mxu0 %v66
  %5070 = vmatprep.subr.mxu0 0.0
  %5071 = vmatpush1.msra.mxu0 0.0
  %5072 = vmatprep.subr.mxu0 0.0
  %5073 = vmatpush1.msra.mxu0 0.0
  %5074 = vmatprep.subr.mxu0 0.0
  %5075 = vmatpush1.msra.mxu0 0.0
  %5076 = vmatprep.subr.mxu0 0.0
  %5077 = vmatpush1.msra.mxu0 0.0
  %5078 = vmatprep.subr.mxu0 0.0
  %5079 = vmatpush1.msra.mxu0 0.0
  %5080 = vmatprep.subr.mxu0 0.0
  %5081 = vmatpush1.msra.mxu0 0.0
  %5082 = vmatprep.subr.mxu0 0.0
  %5083 = vmatpush1.msra.mxu0 0.0
  %5084 = vmatprep.subr.mxu0 0.0
  %5085 = vmatpush1.msra.mxu0 0.0
  %5086 = vmatprep.subr.mxu0 0.0
  %5087 = vmatpush1.msra.mxu0 0.0
  %5088 = vmatprep.subr.mxu0 0.0
  %5089 = vmatpush1.msra.mxu0 0.0
  %5090 = vmatprep.subr.mxu0 0.0
  %5091 = vmatpush1.msra.mxu0 0.0
  %5092 = vmatprep.subr.mxu0 0.0
  %5093 = vmatpush1.msra.mxu0 0.0
  %5094 = vmatprep.subr.mxu0 0.0
  %5095 = vmatpush1.msra.mxu0 0.0
  %5096 = vmatprep.subr.mxu0 0.0
  %5097 = vmatpush1.msra.mxu0 0.0
  %5098 = vmatprep.subr.mxu0 0.0
  %5099 = vmatpush1.msra.mxu0 0.0
  %5100 = vmatprep.subr.mxu0 0.0
  %5101 = vmatpush1.msra.mxu0 0.0
  %5102 = vmatprep.mubr.f32.mxu0 0.0
  %5103 = vmatmul.mubr.f32.gmra.mrb[0].mxu0 %v4965
  %v5104 = vpop.f32.mrb[0].mxu0
  %v5105 = vadd.f32 0.0, %v5104
  %v5106 = vpop.f32.mrb[0].mxu0
  %5107 = vdwg.mxu0
  %s5108 = scalar_lea.vmem %s0, 24
  %v5109 = vld [vmem:[%s5108] ss:$8 sm:$0x7]
  %s5110 = scalar_lea.vmem %s0, 72
  %v5111 = vld [vmem:[%s5110] ss:$8 sm:$0x7]
  %s5112 = scalar_lea.vmem %s0, 120
  %v5113 = vld [vmem:[%s5112] ss:$8 sm:$0x7]
  %s5114 = scalar_lea.vmem %s0, 168
  %v5115 = vld [vmem:[%s5114] ss:$8 sm:$0x7]
  %s5116 = scalar_lea.vmem %s0, 216
  %v5117 = vld [vmem:[%s5116] ss:$8 sm:$0x7]
  %s5118 = scalar_lea.vmem %s0, 264
  %v5119 = vld [vmem:[%s5118] ss:$8 sm:$0x7]
  %s5120 = scalar_lea.vmem %s0, 312
  %v5121 = vld [vmem:[%s5120] ss:$8 sm:$0x7]
  %s5122 = scalar_lea.vmem %s0, 360
  %v5123 = vld [vmem:[%s5122] ss:$8 sm:$0x7]
  %v5125 = vcombine.high %v5034, %v5034
  %v5127 = vunpack.c.l.s4 1966171168
  %v5128 = vunpack.c.0.s8 %v5127
  %v5129 = vlaneseq
  %v5130 = vshrl.u32 %v5129, 7
  %v5131 = vsub.s32 %v5128, %v5130
  %v5132 = vrot.slane %v5034, %v5131
  %v5134 = vunpack.c.l.s4 1966171168
  %v5135 = vunpack.c.0.s8 %v5134
  %v5136 = vlaneseq
  %v5137 = vshrl.u32 %v5136, 7
  %v5138 = vsub.s32 %v5135, %v5137
  %v5139 = vrot.slane %v5125, %v5138
  %v5140 = vcombine.high %v5132, %v5132
  %v5141 = vcombine.high %v5139, %v5139
  %v5143 = vunpack.c.l.s4 1966171168
  %v5144 = vunpack.c.0.s8 %v5143
  %v5145 = vlaneseq
  %v5146 = vshrl.u32 %v5145, 7
  %v5147 = vsub.s32 %v5144, %v5146
  %v5148 = vrot.slane %v5132, %v5147
  %v5150 = vunpack.c.l.s4 1966171168
  %v5151 = vunpack.c.0.s8 %v5150
  %v5152 = vlaneseq
  %v5153 = vshrl.u32 %v5152, 7
  %v5154 = vsub.s32 %v5151, %v5153
  %v5155 = vrot.slane %v5139, %v5154
  %v5157 = vunpack.c.l.s4 1966171168
  %v5158 = vunpack.c.0.s8 %v5157
  %v5159 = vlaneseq
  %v5160 = vshrl.u32 %v5159, 7
  %v5161 = vsub.s32 %v5158, %v5160
  %v5162 = vrot.slane %v5140, %v5161
  %v5164 = vunpack.c.l.s4 1966171168
  %v5165 = vunpack.c.0.s8 %v5164
  %v5166 = vlaneseq
  %v5167 = vshrl.u32 %v5166, 7
  %v5168 = vsub.s32 %v5165, %v5167
  %v5169 = vrot.slane %v5141, %v5168
  %v5170 = vcombine.high %v5148, %v5148
  %v5171 = vcombine.high %v5155, %v5155
  %v5172 = vcombine.high %v5162, %v5162
  %v5173 = vcombine.high %v5169, %v5169
  %v5182 = vadd.f32 %v5109, %v5148
  %v5183 = vadd.f32 %v5111, %v5162
  %v5184 = vadd.f32 %v5113, %v5170
  %v5185 = vadd.f32 %v5115, %v5172
  %v5186 = vadd.f32 %v5117, %v5155
  %v5187 = vadd.f32 %v5119, %v5169
  %v5188 = vadd.f32 %v5121, %v5171
  %v5189 = vadd.f32 %v5123, %v5173
  %v5190 = vxor.u32 %v5182, 2147483648
  %v5191 = vxor.u32 %v5183, 2147483648
  %v5192 = vxor.u32 %v5184, 2147483648
  %v5193 = vxor.u32 %v5185, 2147483648
  %v5194 = vxor.u32 %v5186, 2147483648
  %v5195 = vxor.u32 %v5187, 2147483648
  %v5196 = vxor.u32 %v5188, 2147483648
  %v5197 = vxor.u32 %v5189, 2147483648
  %v5198 = vmul.f32 %v5190, 1.442695
  %v5199 = vpow.pop %v5198
  %v5200 = vmul.f32 %v5191, 1.442695
  %v5201 = vpow.pop %v5200
  %v5202 = vmul.f32 %v5192, 1.442695
  %v5203 = vpow.pop %v5202
  %v5204 = vmul.f32 %v5193, 1.442695
  %v5205 = vpow.pop %v5204
  %v5206 = vmul.f32 %v5194, 1.442695
  %v5207 = vpow.pop %v5206
  %v5208 = vmul.f32 %v5195, 1.442695
  %v5209 = vpow.pop %v5208
  %v5210 = vmul.f32 %v5196, 1.442695
  %v5211 = vpow.pop %v5210
  %v5212 = vmul.f32 %v5197, 1.442695
  %v5213 = vpow.pop %v5212
  %v5214 = vadd.f32 %v5199, 1.0
  %v5215 = vadd.f32 %v5201, 1.0
  %v5216 = vadd.f32 %v5203, 1.0
  %v5217 = vadd.f32 %v5205, 1.0
  %v5218 = vadd.f32 %v5207, 1.0
  %v5219 = vadd.f32 %v5209, 1.0
  %v5220 = vadd.f32 %v5211, 1.0
  %v5221 = vadd.f32 %v5213, 1.0
  %v5222 = vrcp.pop %v5214
  %v5223 = vmul.f32 1.0, %v5222
  %v5224 = vrcp.pop %v5215
  %v5225 = vmul.f32 1.0, %v5224
  %v5226 = vrcp.pop %v5216
  %v5227 = vmul.f32 1.0, %v5226
  %v5228 = vrcp.pop %v5217
  %v5229 = vmul.f32 1.0, %v5228
  %v5230 = vrcp.pop %v5218
  %v5231 = vmul.f32 1.0, %v5230
  %v5232 = vrcp.pop %v5219
  %v5233 = vmul.f32 1.0, %v5232
  %v5234 = vrcp.pop %v5220
  %v5235 = vmul.f32 1.0, %v5234
  %v5236 = vrcp.pop %v5221
  %v5237 = vmul.f32 1.0, %v5236
  %v5246 = vrot.slane %v5109, 1
  %v5247 = vrot.slane %v5111, 1
  %v5248 = vrot.slane %v5113, 1
  %v5249 = vrot.slane %v5115, 1
  %v5250 = vrot.slane %v5117, 1
  %v5251 = vrot.slane %v5119, 1
  %v5252 = vrot.slane %v5121, 1
  %v5253 = vrot.slane %v5123, 1
  %v5263 = vcombine.high %v5036, %v5036
  %v5265 = vunpack.c.l.s4 1966171168
  %v5266 = vunpack.c.0.s8 %v5265
  %v5267 = vlaneseq
  %v5268 = vshrl.u32 %v5267, 7
  %v5269 = vsub.s32 %v5266, %v5268
  %v5270 = vrot.slane %v5036, %v5269
  %v5272 = vunpack.c.l.s4 1966171168
  %v5273 = vunpack.c.0.s8 %v5272
  %v5274 = vlaneseq
  %v5275 = vshrl.u32 %v5274, 7
  %v5276 = vsub.s32 %v5273, %v5275
  %v5277 = vrot.slane %v5263, %v5276
  %v5278 = vcombine.high %v5270, %v5270
  %v5279 = vcombine.high %v5277, %v5277
  %v5281 = vunpack.c.l.s4 1966171168
  %v5282 = vunpack.c.0.s8 %v5281
  %v5283 = vlaneseq
  %v5284 = vshrl.u32 %v5283, 7
  %v5285 = vsub.s32 %v5282, %v5284
  %v5286 = vrot.slane %v5270, %v5285
  %v5288 = vunpack.c.l.s4 1966171168
  %v5289 = vunpack.c.0.s8 %v5288
  %v5290 = vlaneseq
  %v5291 = vshrl.u32 %v5290, 7
  %v5292 = vsub.s32 %v5289, %v5291
  %v5293 = vrot.slane %v5277, %v5292
  %v5295 = vunpack.c.l.s4 1966171168
  %v5296 = vunpack.c.0.s8 %v5295
  %v5297 = vlaneseq
  %v5298 = vshrl.u32 %v5297, 7
  %v5299 = vsub.s32 %v5296, %v5298
  %v5300 = vrot.slane %v5278, %v5299
  %v5302 = vunpack.c.l.s4 1966171168
  %v5303 = vunpack.c.0.s8 %v5302
  %v5304 = vlaneseq
  %v5305 = vshrl.u32 %v5304, 7
  %v5306 = vsub.s32 %v5303, %v5305
  %v5307 = vrot.slane %v5279, %v5306
  %v5308 = vcombine.high %v5286, %v5286
  %v5309 = vcombine.high %v5293, %v5293
  %v5310 = vcombine.high %v5300, %v5300
  %v5311 = vcombine.high %v5307, %v5307
  %v5320 = vadd.f32 %v5246, %v5286
  %v5321 = vadd.f32 %v5247, %v5300
  %v5322 = vadd.f32 %v5248, %v5308
  %v5323 = vadd.f32 %v5249, %v5310
  %v5324 = vadd.f32 %v5250, %v5293
  %v5325 = vadd.f32 %v5251, %v5307
  %v5326 = vadd.f32 %v5252, %v5309
  %v5327 = vadd.f32 %v5253, %v5311
  %v5328 = vxor.u32 %v5320, 2147483648
  %v5329 = vxor.u32 %v5321, 2147483648
  %v5330 = vxor.u32 %v5322, 2147483648
  %v5331 = vxor.u32 %v5323, 2147483648
  %v5332 = vxor.u32 %v5324, 2147483648
  %v5333 = vxor.u32 %v5325, 2147483648
  %v5334 = vxor.u32 %v5326, 2147483648
  %v5335 = vxor.u32 %v5327, 2147483648
  %v5336 = vmul.f32 %v5328, 1.442695
  %v5337 = vpow.pop %v5336
  %v5338 = vmul.f32 %v5329, 1.442695
  %v5339 = vpow.pop %v5338
  %v5340 = vmul.f32 %v5330, 1.442695
  %v5341 = vpow.pop %v5340
  %v5342 = vmul.f32 %v5331, 1.442695
  %v5343 = vpow.pop %v5342
  %v5344 = vmul.f32 %v5332, 1.442695
  %v5345 = vpow.pop %v5344
  %v5346 = vmul.f32 %v5333, 1.442695
  %v5347 = vpow.pop %v5346
  %v5348 = vmul.f32 %v5334, 1.442695
  %v5349 = vpow.pop %v5348
  %v5350 = vmul.f32 %v5335, 1.442695
  %v5351 = vpow.pop %v5350
  %v5352 = vadd.f32 %v5337, 1.0
  %v5353 = vadd.f32 %v5339, 1.0
  %v5354 = vadd.f32 %v5341, 1.0
  %v5355 = vadd.f32 %v5343, 1.0
  %v5356 = vadd.f32 %v5345, 1.0
  %v5357 = vadd.f32 %v5347, 1.0
  %v5358 = vadd.f32 %v5349, 1.0
  %v5359 = vadd.f32 %v5351, 1.0
  %v5360 = vrcp.pop %v5352
  %v5361 = vmul.f32 1.0, %v5360
  %v5362 = vrcp.pop %v5353
  %v5363 = vmul.f32 1.0, %v5362
  %v5364 = vrcp.pop %v5354
  %v5365 = vmul.f32 1.0, %v5364
  %v5366 = vrcp.pop %v5355
  %v5367 = vmul.f32 1.0, %v5366
  %v5368 = vrcp.pop %v5356
  %v5369 = vmul.f32 1.0, %v5368
  %v5370 = vrcp.pop %v5357
  %v5371 = vmul.f32 1.0, %v5370
  %v5372 = vrcp.pop %v5358
  %v5373 = vmul.f32 1.0, %v5372
  %v5374 = vrcp.pop %v5359
  %v5375 = vmul.f32 1.0, %v5374
  %v5376 = vadd.f32 %v5105, %v481
  %v5378 = vcombine.high %v5376, %v5376
  %v5380 = vunpack.c.l.s4 1966171168
  %v5381 = vunpack.c.0.s8 %v5380
  %v5382 = vlaneseq
  %v5383 = vshrl.u32 %v5382, 7
  %v5384 = vsub.s32 %v5381, %v5383
  %v5385 = vrot.slane %v5376, %v5384
  %v5387 = vunpack.c.l.s4 1966171168
  %v5388 = vunpack.c.0.s8 %v5387
  %v5389 = vlaneseq
  %v5390 = vshrl.u32 %v5389, 7
  %v5391 = vsub.s32 %v5388, %v5390
  %v5392 = vrot.slane %v5378, %v5391
  %v5393 = vcombine.high %v5385, %v5385
  %v5394 = vcombine.high %v5392, %v5392
  %v5396 = vunpack.c.l.s4 1966171168
  %v5397 = vunpack.c.0.s8 %v5396
  %v5398 = vlaneseq
  %v5399 = vshrl.u32 %v5398, 7
  %v5400 = vsub.s32 %v5397, %v5399
  %v5401 = vrot.slane %v5385, %v5400
  %v5403 = vunpack.c.l.s4 1966171168
  %v5404 = vunpack.c.0.s8 %v5403
  %v5405 = vlaneseq
  %v5406 = vshrl.u32 %v5405, 7
  %v5407 = vsub.s32 %v5404, %v5406
  %v5408 = vrot.slane %v5392, %v5407
  %v5410 = vunpack.c.l.s4 1966171168
  %v5411 = vunpack.c.0.s8 %v5410
  %v5412 = vlaneseq
  %v5413 = vshrl.u32 %v5412, 7
  %v5414 = vsub.s32 %v5411, %v5413
  %v5415 = vrot.slane %v5393, %v5414
  %v5417 = vunpack.c.l.s4 1966171168
  %v5418 = vunpack.c.0.s8 %v5417
  %v5419 = vlaneseq
  %v5420 = vshrl.u32 %v5419, 7
  %v5421 = vsub.s32 %v5418, %v5420
  %v5422 = vrot.slane %v5394, %v5421
  %v5423 = vcombine.high %v5401, %v5401
  %v5424 = vcombine.high %v5408, %v5408
  %v5425 = vcombine.high %v5415, %v5415
  %v5426 = vcombine.high %v5422, %v5422
  %v5435 = vmul.f32 %v5223, %v5401
  %v5436 = vmul.f32 %v5225, %v5415
  %v5437 = vmul.f32 %v5227, %v5423
  %v5438 = vmul.f32 %v5229, %v5425
  %v5439 = vmul.f32 %v5231, %v5408
  %v5440 = vmul.f32 %v5233, %v5422
  %v5441 = vmul.f32 %v5235, %v5424
  %v5442 = vmul.f32 %v5237, %v5426
  %v5443 = vrot.slane %v5109, 2
  %v5444 = vrot.slane %v5111, 2
  %v5445 = vrot.slane %v5113, 2
  %v5446 = vrot.slane %v5115, 2
  %v5447 = vrot.slane %v5117, 2
  %v5448 = vrot.slane %v5119, 2
  %v5449 = vrot.slane %v5121, 2
  %v5450 = vrot.slane %v5123, 2
  %v5459 = vadd.f32 %v5443, %v5435
  %v5460 = vadd.f32 %v5444, %v5436
  %v5461 = vadd.f32 %v5445, %v5437
  %v5462 = vadd.f32 %v5446, %v5438
  %v5463 = vadd.f32 %v5447, %v5439
  %v5464 = vadd.f32 %v5448, %v5440
  %v5465 = vadd.f32 %v5449, %v5441
  %v5466 = vadd.f32 %v5450, %v5442
  %v5467 = vtanh.pop %v5459
  %v5468 = vtanh.pop %v5460
  %v5469 = vtanh.pop %v5461
  %v5470 = vtanh.pop %v5462
  %v5471 = vtanh.pop %v5463
  %v5472 = vtanh.pop %v5464
  %v5473 = vtanh.pop %v5465
  %v5474 = vtanh.pop %v5466
  %v5475 = vsub.f32 %v4893, %v5467
  %v5476 = vsub.f32 %v4894, %v5468
  %v5477 = vsub.f32 %v4895, %v5469
  %v5478 = vsub.f32 %v4896, %v5470
  %v5479 = vsub.f32 %v4897, %v5471
  %v5480 = vsub.f32 %v4898, %v5472
  %v5481 = vsub.f32 %v4899, %v5473
  %v5482 = vsub.f32 %v4900, %v5474
  %v5483 = vmul.f32 %v5361, %v5475
  %v5484 = vmul.f32 %v5363, %v5476
  %v5485 = vmul.f32 %v5365, %v5477
  %v5486 = vmul.f32 %v5367, %v5478
  %v5487 = vmul.f32 %v5369, %v5479
  %v5488 = vmul.f32 %v5371, %v5480
  %v5489 = vmul.f32 %v5373, %v5481
  %v5490 = vmul.f32 %v5375, %v5482
  %v5491 = vadd.f32 %v5467, %v5483
  %v5492 = vadd.f32 %v5468, %v5484
  %v5493 = vadd.f32 %v5469, %v5485
  %v5494 = vadd.f32 %v5470, %v5486
  %v5495 = vadd.f32 %v5471, %v5487
  %v5496 = vadd.f32 %v5472, %v5488
  %v5497 = vadd.f32 %v5473, %v5489
  %v5498 = vadd.f32 %v5474, %v5490
  %5499 = vst [vmem:[%s3 + $0x8] sm:$0x1] %v5491
  %5500 = vst [vmem:[%s3 + $0x18] sm:$0x1] %v5492
  %5501 = vst [vmem:[%s3 + $0x28] sm:$0x1] %v5493
  %5502 = vst [vmem:[%s3 + $0x38] sm:$0x1] %v5494
  %5503 = vst [vmem:[%s3 + $0x48] sm:$0x1] %v5495
  %5504 = vst [vmem:[%s3 + $0x58] sm:$0x1] %v5496
  %5505 = vst [vmem:[%s3 + $0x68] sm:$0x1] %v5497
  %5506 = vst [vmem:[%s3 + $0x78] sm:$0x1] %v5498
  %v5515 = vcombine.low %v5491, %v5492
  %v5516 = vcombine.low %v5493, %v5494
  %v5517 = vcombine.low %v5495, %v5496
  %v5518 = vcombine.low %v5497, %v5498
  %v5520 = vunpack.c.l.s4 1966171168
  %v5521 = vunpack.c.0.s8 %v5520
  %v5522 = vlaneseq
  %v5523 = vshrl.u32 %v5522, 7
  %v5524 = vsub.s32 %v5521, %v5523
  %v5525 = vrot.slane %v5515, %v5524
  %v5527 = vunpack.c.l.s4 1966171168
  %v5528 = vunpack.c.0.s8 %v5527
  %v5529 = vlaneseq
  %v5530 = vshrl.u32 %v5529, 7
  %v5531 = vsub.s32 %v5528, %v5530
  %v5532 = vrot.slane %v5516, %v5531
  %v5534 = vunpack.c.l.s4 1966171168
  %v5535 = vunpack.c.0.s8 %v5534
  %v5536 = vlaneseq
  %v5537 = vshrl.u32 %v5536, 7
  %v5538 = vsub.s32 %v5535, %v5537
  %v5539 = vrot.slane %v5517, %v5538
  %v5541 = vunpack.c.l.s4 1966171168
  %v5542 = vunpack.c.0.s8 %v5541
  %v5543 = vlaneseq
  %v5544 = vshrl.u32 %v5543, 7
  %v5545 = vsub.s32 %v5542, %v5544
  %v5546 = vrot.slane %v5518, %v5545
  %v5547 = vcombine.low %v5525, %v5532
  %v5548 = vcombine.low %v5539, %v5546
  %v5550 = vunpack.c.l.s4 1966171168
  %v5551 = vunpack.c.0.s8 %v5550
  %v5552 = vlaneseq
  %v5553 = vshrl.u32 %v5552, 7
  %v5554 = vsub.s32 %v5551, %v5553
  %v5555 = vrot.slane %v5547, %v5554
  %v5557 = vunpack.c.l.s4 1966171168
  %v5558 = vunpack.c.0.s8 %v5557
  %v5559 = vlaneseq
  %v5560 = vshrl.u32 %v5559, 7
  %v5561 = vsub.s32 %v5558, %v5560
  %v5562 = vrot.slane %v5548, %v5561
  %v5563 = vcombine.low %v5555, %v5562
  %5565 = vmatprep.subr.mxu0 %v20
  %5566 = vmatpush1.msra.mxu0 %v19
  %5567 = vmatprep.subr.mxu0 %v23
  %5568 = vmatpush1.msra.mxu0 %v22
  %5569 = vmatprep.subr.mxu0 %v26
  %5570 = vmatpush1.msra.mxu0 %v25
  %5571 = vmatprep.subr.mxu0 %v29
  %5572 = vmatpush1.msra.mxu0 %v28
  %5573 = vmatprep.subr.mxu0 %v32
  %5574 = vmatpush1.msra.mxu0 %v31
  %5575 = vmatprep.subr.mxu0 %v35
  %5576 = vmatpush1.msra.mxu0 %v34
  %5577 = vmatprep.subr.mxu0 %v38
  %5578 = vmatpush1.msra.mxu0 %v37
  %5579 = vmatprep.subr.mxu0 %v41
  %5580 = vmatpush1.msra.mxu0 %v40
  %5581 = vmatprep.subr.mxu0 %v44
  %5582 = vmatpush1.msra.mxu0 %v43
  %5583 = vmatprep.subr.mxu0 %v47
  %5584 = vmatpush1.msra.mxu0 %v46
  %5585 = vmatprep.subr.mxu0 %v50
  %5586 = vmatpush1.msra.mxu0 %v49
  %5587 = vmatprep.subr.mxu0 %v53
  %5588 = vmatpush1.msra.mxu0 %v52
  %5589 = vmatprep.subr.mxu0 %v56
  %5590 = vmatpush1.msra.mxu0 %v55
  %5591 = vmatprep.subr.mxu0 %v59
  %5592 = vmatpush1.msra.mxu0 %v58
  %5593 = vmatprep.subr.mxu0 %v62
  %5594 = vmatpush1.msra.mxu0 %v61
  %5595 = vmatprep.subr.mxu0 %v65
  %5596 = vmatpush1.msra.mxu0 %v64
  %5597 = vmatprep.subr.mxu0 0.0
  %5598 = vmatpush1.msra.mxu0 0.0
  %5599 = vmatprep.subr.mxu0 0.0
  %5600 = vmatpush1.msra.mxu0 0.0
  %5601 = vmatprep.subr.mxu0 0.0
  %5602 = vmatpush1.msra.mxu0 0.0
  %5603 = vmatprep.subr.mxu0 0.0
  %5604 = vmatpush1.msra.mxu0 0.0
  %5605 = vmatprep.subr.mxu0 0.0
  %5606 = vmatpush1.msra.mxu0 0.0
  %5607 = vmatprep.subr.mxu0 0.0
  %5608 = vmatpush1.msra.mxu0 0.0
  %5609 = vmatprep.subr.mxu0 0.0
  %5610 = vmatpush1.msra.mxu0 0.0
  %5611 = vmatprep.subr.mxu0 0.0
  %5612 = vmatpush1.msra.mxu0 0.0
  %5613 = vmatprep.subr.mxu0 0.0
  %5614 = vmatpush1.msra.mxu0 0.0
  %5615 = vmatprep.subr.mxu0 0.0
  %5616 = vmatpush1.msra.mxu0 0.0
  %5617 = vmatprep.subr.mxu0 0.0
  %5618 = vmatpush1.msra.mxu0 0.0
  %5619 = vmatprep.subr.mxu0 0.0
  %5620 = vmatpush1.msra.mxu0 0.0
  %5621 = vmatprep.subr.mxu0 0.0
  %5622 = vmatpush1.msra.mxu0 0.0
  %5623 = vmatprep.subr.mxu0 0.0
  %5624 = vmatpush1.msra.mxu0 0.0
  %5625 = vmatprep.subr.mxu0 0.0
  %5626 = vmatpush1.msra.mxu0 0.0
  %5627 = vmatprep.subr.mxu0 0.0
  %5628 = vmatpush1.msra.mxu0 0.0
  %5629 = vmatprep.mubr.f32.mxu0 0.0
  %5630 = vmatmul.mubr.f32.gmra.mrb[0].mxu0 %v5563
  %v5631 = vpop.f32.mrb[0].mxu0
  %v5632 = vadd.f32 0.0, %v5631
  %v5633 = vpop.f32.mrb[0].mxu0
  %v5634 = vadd.f32 0.0, %v5633
  %5635 = vdwg.mxu0
  %5636 = vmatprep.subr.mxu0 0.0
  %5637 = vmatpush1.msra.mxu0 %v21
  %5638 = vmatprep.subr.mxu0 0.0
  %5639 = vmatpush1.msra.mxu0 %v24
  %5640 = vmatprep.subr.mxu0 0.0
  %5641 = vmatpush1.msra.mxu0 %v27
  %5642 = vmatprep.subr.mxu0 0.0
  %5643 = vmatpush1.msra.mxu0 %v30
  %5644 = vmatprep.subr.mxu0 0.0
  %5645 = vmatpush1.msra.mxu0 %v33
  %5646 = vmatprep.subr.mxu0 0.0
  %5647 = vmatpush1.msra.mxu0 %v36
  %5648 = vmatprep.subr.mxu0 0.0
  %5649 = vmatpush1.msra.mxu0 %v39
  %5650 = vmatprep.subr.mxu0 0.0
  %5651 = vmatpush1.msra.mxu0 %v42
  %5652 = vmatprep.subr.mxu0 0.0
  %5653 = vmatpush1.msra.mxu0 %v45
  %5654 = vmatprep.subr.mxu0 0.0
  %5655 = vmatpush1.msra.mxu0 %v48
  %5656 = vmatprep.subr.mxu0 0.0
  %5657 = vmatpush1.msra.mxu0 %v51
  %5658 = vmatprep.subr.mxu0 0.0
  %5659 = vmatpush1.msra.mxu0 %v54
  %5660 = vmatprep.subr.mxu0 0.0
  %5661 = vmatpush1.msra.mxu0 %v57
  %5662 = vmatprep.subr.mxu0 0.0
  %5663 = vmatpush1.msra.mxu0 %v60
  %5664 = vmatprep.subr.mxu0 0.0
  %5665 = vmatpush1.msra.mxu0 %v63
  %5666 = vmatprep.subr.mxu0 0.0
  %5667 = vmatpush1.msra.mxu0 %v66
  %5668 = vmatprep.subr.mxu0 0.0
  %5669 = vmatpush1.msra.mxu0 0.0
  %5670 = vmatprep.subr.mxu0 0.0
  %5671 = vmatpush1.msra.mxu0 0.0
  %5672 = vmatprep.subr.mxu0 0.0
  %5673 = vmatpush1.msra.mxu0 0.0
  %5674 = vmatprep.subr.mxu0 0.0
  %5675 = vmatpush1.msra.mxu0 0.0
  %5676 = vmatprep.subr.mxu0 0.0
  %5677 = vmatpush1.msra.mxu0 0.0
  %5678 = vmatprep.subr.mxu0 0.0
  %5679 = vmatpush1.msra.mxu0 0.0
  %5680 = vmatprep.subr.mxu0 0.0
  %5681 = vmatpush1.msra.mxu0 0.0
  %5682 = vmatprep.subr.mxu0 0.0
  %5683 = vmatpush1.msra.mxu0 0.0
  %5684 = vmatprep.subr.mxu0 0.0
  %5685 = vmatpush1.msra.mxu0 0.0
  %5686 = vmatprep.subr.mxu0 0.0
  %5687 = vmatpush1.msra.mxu0 0.0
  %5688 = vmatprep.subr.mxu0 0.0
  %5689 = vmatpush1.msra.mxu0 0.0
  %5690 = vmatprep.subr.mxu0 0.0
  %5691 = vmatpush1.msra.mxu0 0.0
  %5692 = vmatprep.subr.mxu0 0.0
  %5693 = vmatpush1.msra.mxu0 0.0
  %5694 = vmatprep.subr.mxu0 0.0
  %5695 = vmatpush1.msra.mxu0 0.0
  %5696 = vmatprep.subr.mxu0 0.0
  %5697 = vmatpush1.msra.mxu0 0.0
  %5698 = vmatprep.subr.mxu0 0.0
  %5699 = vmatpush1.msra.mxu0 0.0
  %5700 = vmatprep.mubr.f32.mxu0 0.0
  %5701 = vmatmul.mubr.f32.gmra.mrb[0].mxu0 %v5563
  %v5702 = vpop.f32.mrb[0].mxu0
  %v5703 = vadd.f32 0.0, %v5702
  %v5704 = vpop.f32.mrb[0].mxu0
  %5705 = vdwg.mxu0
  %s5706 = scalar_lea.vmem %s0, 25
  %v5707 = vld [vmem:[%s5706] ss:$8 sm:$0x7]
  %s5708 = scalar_lea.vmem %s0, 73
  %v5709 = vld [vmem:[%s5708] ss:$8 sm:$0x7]
  %s5710 = scalar_lea.vmem %s0, 121
  %v5711 = vld [vmem:[%s5710] ss:$8 sm:$0x7]
  %s5712 = scalar_lea.vmem %s0, 169
  %v5713 = vld [vmem:[%s5712] ss:$8 sm:$0x7]
  %s5714 = scalar_lea.vmem %s0, 217
  %v5715 = vld [vmem:[%s5714] ss:$8 sm:$0x7]
  %s5716 = scalar_lea.vmem %s0, 265
  %v5717 = vld [vmem:[%s5716] ss:$8 sm:$0x7]
  %s5718 = scalar_lea.vmem %s0, 313
  %v5719 = vld [vmem:[%s5718] ss:$8 sm:$0x7]
  %s5720 = scalar_lea.vmem %s0, 361
  %v5721 = vld [vmem:[%s5720] ss:$8 sm:$0x7]
  %v5723 = vcombine.high %v5632, %v5632
  %v5725 = vunpack.c.l.s4 1966171168
  %v5726 = vunpack.c.0.s8 %v5725
  %v5727 = vlaneseq
  %v5728 = vshrl.u32 %v5727, 7
  %v5729 = vsub.s32 %v5726, %v5728
  %v5730 = vrot.slane %v5632, %v5729
  %v5732 = vunpack.c.l.s4 1966171168
  %v5733 = vunpack.c.0.s8 %v5732
  %v5734 = vlaneseq
  %v5735 = vshrl.u32 %v5734, 7
  %v5736 = vsub.s32 %v5733, %v5735
  %v5737 = vrot.slane %v5723, %v5736
  %v5738 = vcombine.high %v5730, %v5730
  %v5739 = vcombine.high %v5737, %v5737
  %v5741 = vunpack.c.l.s4 1966171168
  %v5742 = vunpack.c.0.s8 %v5741
  %v5743 = vlaneseq
  %v5744 = vshrl.u32 %v5743, 7
  %v5745 = vsub.s32 %v5742, %v5744
  %v5746 = vrot.slane %v5730, %v5745
  %v5748 = vunpack.c.l.s4 1966171168
  %v5749 = vunpack.c.0.s8 %v5748
  %v5750 = vlaneseq
  %v5751 = vshrl.u32 %v5750, 7
  %v5752 = vsub.s32 %v5749, %v5751
  %v5753 = vrot.slane %v5737, %v5752
  %v5755 = vunpack.c.l.s4 1966171168
  %v5756 = vunpack.c.0.s8 %v5755
  %v5757 = vlaneseq
  %v5758 = vshrl.u32 %v5757, 7
  %v5759 = vsub.s32 %v5756, %v5758
  %v5760 = vrot.slane %v5738, %v5759
  %v5762 = vunpack.c.l.s4 1966171168
  %v5763 = vunpack.c.0.s8 %v5762
  %v5764 = vlaneseq
  %v5765 = vshrl.u32 %v5764, 7
  %v5766 = vsub.s32 %v5763, %v5765
  %v5767 = vrot.slane %v5739, %v5766
  %v5768 = vcombine.high %v5746, %v5746
  %v5769 = vcombine.high %v5753, %v5753
  %v5770 = vcombine.high %v5760, %v5760
  %v5771 = vcombine.high %v5767, %v5767
  %v5780 = vadd.f32 %v5707, %v5746
  %v5781 = vadd.f32 %v5709, %v5760
  %v5782 = vadd.f32 %v5711, %v5768
  %v5783 = vadd.f32 %v5713, %v5770
  %v5784 = vadd.f32 %v5715, %v5753
  %v5785 = vadd.f32 %v5717, %v5767
  %v5786 = vadd.f32 %v5719, %v5769
  %v5787 = vadd.f32 %v5721, %v5771
  %v5788 = vxor.u32 %v5780, 2147483648
  %v5789 = vxor.u32 %v5781, 2147483648
  %v5790 = vxor.u32 %v5782, 2147483648
  %v5791 = vxor.u32 %v5783, 2147483648
  %v5792 = vxor.u32 %v5784, 2147483648
  %v5793 = vxor.u32 %v5785, 2147483648
  %v5794 = vxor.u32 %v5786, 2147483648
  %v5795 = vxor.u32 %v5787, 2147483648
  %v5796 = vmul.f32 %v5788, 1.442695
  %v5797 = vpow.pop %v5796
  %v5798 = vmul.f32 %v5789, 1.442695
  %v5799 = vpow.pop %v5798
  %v5800 = vmul.f32 %v5790, 1.442695
  %v5801 = vpow.pop %v5800
  %v5802 = vmul.f32 %v5791, 1.442695
  %v5803 = vpow.pop %v5802
  %v5804 = vmul.f32 %v5792, 1.442695
  %v5805 = vpow.pop %v5804
  %v5806 = vmul.f32 %v5793, 1.442695
  %v5807 = vpow.pop %v5806
  %v5808 = vmul.f32 %v5794, 1.442695
  %v5809 = vpow.pop %v5808
  %v5810 = vmul.f32 %v5795, 1.442695
  %v5811 = vpow.pop %v5810
  %v5812 = vadd.f32 %v5797, 1.0
  %v5813 = vadd.f32 %v5799, 1.0
  %v5814 = vadd.f32 %v5801, 1.0
  %v5815 = vadd.f32 %v5803, 1.0
  %v5816 = vadd.f32 %v5805, 1.0
  %v5817 = vadd.f32 %v5807, 1.0
  %v5818 = vadd.f32 %v5809, 1.0
  %v5819 = vadd.f32 %v5811, 1.0
  %v5820 = vrcp.pop %v5812
  %v5821 = vmul.f32 1.0, %v5820
  %v5822 = vrcp.pop %v5813
  %v5823 = vmul.f32 1.0, %v5822
  %v5824 = vrcp.pop %v5814
  %v5825 = vmul.f32 1.0, %v5824
  %v5826 = vrcp.pop %v5815
  %v5827 = vmul.f32 1.0, %v5826
  %v5828 = vrcp.pop %v5816
  %v5829 = vmul.f32 1.0, %v5828
  %v5830 = vrcp.pop %v5817
  %v5831 = vmul.f32 1.0, %v5830
  %v5832 = vrcp.pop %v5818
  %v5833 = vmul.f32 1.0, %v5832
  %v5834 = vrcp.pop %v5819
  %v5835 = vmul.f32 1.0, %v5834
  %v5844 = vrot.slane %v5707, 1
  %v5845 = vrot.slane %v5709, 1
  %v5846 = vrot.slane %v5711, 1
  %v5847 = vrot.slane %v5713, 1
  %v5848 = vrot.slane %v5715, 1
  %v5849 = vrot.slane %v5717, 1
  %v5850 = vrot.slane %v5719, 1
  %v5851 = vrot.slane %v5721, 1
  %v5861 = vcombine.high %v5634, %v5634
  %v5863 = vunpack.c.l.s4 1966171168
  %v5864 = vunpack.c.0.s8 %v5863
  %v5865 = vlaneseq
  %v5866 = vshrl.u32 %v5865, 7
  %v5867 = vsub.s32 %v5864, %v5866
  %v5868 = vrot.slane %v5634, %v5867
  %v5870 = vunpack.c.l.s4 1966171168
  %v5871 = vunpack.c.0.s8 %v5870
  %v5872 = vlaneseq
  %v5873 = vshrl.u32 %v5872, 7
  %v5874 = vsub.s32 %v5871, %v5873
  %v5875 = vrot.slane %v5861, %v5874
  %v5876 = vcombine.high %v5868, %v5868
  %v5877 = vcombine.high %v5875, %v5875
  %v5879 = vunpack.c.l.s4 1966171168
  %v5880 = vunpack.c.0.s8 %v5879
  %v5881 = vlaneseq
  %v5882 = vshrl.u32 %v5881, 7
  %v5883 = vsub.s32 %v5880, %v5882
  %v5884 = vrot.slane %v5868, %v5883
  %v5886 = vunpack.c.l.s4 1966171168
  %v5887 = vunpack.c.0.s8 %v5886
  %v5888 = vlaneseq
  %v5889 = vshrl.u32 %v5888, 7
  %v5890 = vsub.s32 %v5887, %v5889
  %v5891 = vrot.slane %v5875, %v5890
  %v5893 = vunpack.c.l.s4 1966171168
  %v5894 = vunpack.c.0.s8 %v5893
  %v5895 = vlaneseq
  %v5896 = vshrl.u32 %v5895, 7
  %v5897 = vsub.s32 %v5894, %v5896
  %v5898 = vrot.slane %v5876, %v5897
  %v5900 = vunpack.c.l.s4 1966171168
  %v5901 = vunpack.c.0.s8 %v5900
  %v5902 = vlaneseq
  %v5903 = vshrl.u32 %v5902, 7
  %v5904 = vsub.s32 %v5901, %v5903
  %v5905 = vrot.slane %v5877, %v5904
  %v5906 = vcombine.high %v5884, %v5884
  %v5907 = vcombine.high %v5891, %v5891
  %v5908 = vcombine.high %v5898, %v5898
  %v5909 = vcombine.high %v5905, %v5905
  %v5918 = vadd.f32 %v5844, %v5884
  %v5919 = vadd.f32 %v5845, %v5898
  %v5920 = vadd.f32 %v5846, %v5906
  %v5921 = vadd.f32 %v5847, %v5908
  %v5922 = vadd.f32 %v5848, %v5891
  %v5923 = vadd.f32 %v5849, %v5905
  %v5924 = vadd.f32 %v5850, %v5907
  %v5925 = vadd.f32 %v5851, %v5909
  %v5926 = vxor.u32 %v5918, 2147483648
  %v5927 = vxor.u32 %v5919, 2147483648
  %v5928 = vxor.u32 %v5920, 2147483648
  %v5929 = vxor.u32 %v5921, 2147483648
  %v5930 = vxor.u32 %v5922, 2147483648
  %v5931 = vxor.u32 %v5923, 2147483648
  %v5932 = vxor.u32 %v5924, 2147483648
  %v5933 = vxor.u32 %v5925, 2147483648
  %v5934 = vmul.f32 %v5926, 1.442695
  %v5935 = vpow.pop %v5934
  %v5936 = vmul.f32 %v5927, 1.442695
  %v5937 = vpow.pop %v5936
  %v5938 = vmul.f32 %v5928, 1.442695
  %v5939 = vpow.pop %v5938
  %v5940 = vmul.f32 %v5929, 1.442695
  %v5941 = vpow.pop %v5940
  %v5942 = vmul.f32 %v5930, 1.442695
  %v5943 = vpow.pop %v5942
  %v5944 = vmul.f32 %v5931, 1.442695
  %v5945 = vpow.pop %v5944
  %v5946 = vmul.f32 %v5932, 1.442695
  %v5947 = vpow.pop %v5946
  %v5948 = vmul.f32 %v5933, 1.442695
  %v5949 = vpow.pop %v5948
  %v5950 = vadd.f32 %v5935, 1.0
  %v5951 = vadd.f32 %v5937, 1.0
  %v5952 = vadd.f32 %v5939, 1.0
  %v5953 = vadd.f32 %v5941, 1.0
  %v5954 = vadd.f32 %v5943, 1.0
  %v5955 = vadd.f32 %v5945, 1.0
  %v5956 = vadd.f32 %v5947, 1.0
  %v5957 = vadd.f32 %v5949, 1.0
  %v5958 = vrcp.pop %v5950
  %v5959 = vmul.f32 1.0, %v5958
  %v5960 = vrcp.pop %v5951
  %v5961 = vmul.f32 1.0, %v5960
  %v5962 = vrcp.pop %v5952
  %v5963 = vmul.f32 1.0, %v5962
  %v5964 = vrcp.pop %v5953
  %v5965 = vmul.f32 1.0, %v5964
  %v5966 = vrcp.pop %v5954
  %v5967 = vmul.f32 1.0, %v5966
  %v5968 = vrcp.pop %v5955
  %v5969 = vmul.f32 1.0, %v5968
  %v5970 = vrcp.pop %v5956
  %v5971 = vmul.f32 1.0, %v5970
  %v5972 = vrcp.pop %v5957
  %v5973 = vmul.f32 1.0, %v5972
  %v5974 = vadd.f32 %v5703, %v481
  %v5976 = vcombine.high %v5974, %v5974
  %v5978 = vunpack.c.l.s4 1966171168
  %v5979 = vunpack.c.0.s8 %v5978
  %v5980 = vlaneseq
  %v5981 = vshrl.u32 %v5980, 7
  %v5982 = vsub.s32 %v5979, %v5981
  %v5983 = vrot.slane %v5974, %v5982
  %v5985 = vunpack.c.l.s4 1966171168
  %v5986 = vunpack.c.0.s8 %v5985
  %v5987 = vlaneseq
  %v5988 = vshrl.u32 %v5987, 7
  %v5989 = vsub.s32 %v5986, %v5988
  %v5990 = vrot.slane %v5976, %v5989
  %v5991 = vcombine.high %v5983, %v5983
  %v5992 = vcombine.high %v5990, %v5990
  %v5994 = vunpack.c.l.s4 1966171168
  %v5995 = vunpack.c.0.s8 %v5994
  %v5996 = vlaneseq
  %v5997 = vshrl.u32 %v5996, 7
  %v5998 = vsub.s32 %v5995, %v5997
  %v5999 = vrot.slane %v5983, %v5998
  %v6001 = vunpack.c.l.s4 1966171168
  %v6002 = vunpack.c.0.s8 %v6001
  %v6003 = vlaneseq
  %v6004 = vshrl.u32 %v6003, 7
  %v6005 = vsub.s32 %v6002, %v6004
  %v6006 = vrot.slane %v5990, %v6005
  %v6008 = vunpack.c.l.s4 1966171168
  %v6009 = vunpack.c.0.s8 %v6008
  %v6010 = vlaneseq
  %v6011 = vshrl.u32 %v6010, 7
  %v6012 = vsub.s32 %v6009, %v6011
  %v6013 = vrot.slane %v5991, %v6012
  %v6015 = vunpack.c.l.s4 1966171168
  %v6016 = vunpack.c.0.s8 %v6015
  %v6017 = vlaneseq
  %v6018 = vshrl.u32 %v6017, 7
  %v6019 = vsub.s32 %v6016, %v6018
  %v6020 = vrot.slane %v5992, %v6019
  %v6021 = vcombine.high %v5999, %v5999
  %v6022 = vcombine.high %v6006, %v6006
  %v6023 = vcombine.high %v6013, %v6013
  %v6024 = vcombine.high %v6020, %v6020
  %v6033 = vmul.f32 %v5821, %v5999
  %v6034 = vmul.f32 %v5823, %v6013
  %v6035 = vmul.f32 %v5825, %v6021
  %v6036 = vmul.f32 %v5827, %v6023
  %v6037 = vmul.f32 %v5829, %v6006
  %v6038 = vmul.f32 %v5831, %v6020
  %v6039 = vmul.f32 %v5833, %v6022
  %v6040 = vmul.f32 %v5835, %v6024
  %v6041 = vrot.slane %v5707, 2
  %v6042 = vrot.slane %v5709, 2
  %v6043 = vrot.slane %v5711, 2
  %v6044 = vrot.slane %v5713, 2
  %v6045 = vrot.slane %v5715, 2
  %v6046 = vrot.slane %v5717, 2
  %v6047 = vrot.slane %v5719, 2
  %v6048 = vrot.slane %v5721, 2
  %v6057 = vadd.f32 %v6041, %v6033
  %v6058 = vadd.f32 %v6042, %v6034
  %v6059 = vadd.f32 %v6043, %v6035
  %v6060 = vadd.f32 %v6044, %v6036
  %v6061 = vadd.f32 %v6045, %v6037
  %v6062 = vadd.f32 %v6046, %v6038
  %v6063 = vadd.f32 %v6047, %v6039
  %v6064 = vadd.f32 %v6048, %v6040
  %v6065 = vtanh.pop %v6057
  %v6066 = vtanh.pop %v6058
  %v6067 = vtanh.pop %v6059
  %v6068 = vtanh.pop %v6060
  %v6069 = vtanh.pop %v6061
  %v6070 = vtanh.pop %v6062
  %v6071 = vtanh.pop %v6063
  %v6072 = vtanh.pop %v6064
  %v6073 = vsub.f32 %v5491, %v6065
  %v6074 = vsub.f32 %v5492, %v6066
  %v6075 = vsub.f32 %v5493, %v6067
  %v6076 = vsub.f32 %v5494, %v6068
  %v6077 = vsub.f32 %v5495, %v6069
  %v6078 = vsub.f32 %v5496, %v6070
  %v6079 = vsub.f32 %v5497, %v6071
  %v6080 = vsub.f32 %v5498, %v6072
  %v6081 = vmul.f32 %v5959, %v6073
  %v6082 = vmul.f32 %v5961, %v6074
  %v6083 = vmul.f32 %v5963, %v6075
  %v6084 = vmul.f32 %v5965, %v6076
  %v6085 = vmul.f32 %v5967, %v6077
  %v6086 = vmul.f32 %v5969, %v6078
  %v6087 = vmul.f32 %v5971, %v6079
  %v6088 = vmul.f32 %v5973, %v6080
  %v6089 = vadd.f32 %v6065, %v6081
  %v6090 = vadd.f32 %v6066, %v6082
  %v6091 = vadd.f32 %v6067, %v6083
  %v6092 = vadd.f32 %v6068, %v6084
  %v6093 = vadd.f32 %v6069, %v6085
  %v6094 = vadd.f32 %v6070, %v6086
  %v6095 = vadd.f32 %v6071, %v6087
  %v6096 = vadd.f32 %v6072, %v6088
  %6097 = vst [vmem:[%s3 + $0x9] sm:$0x1] %v6089
  %6098 = vst [vmem:[%s3 + $0x19] sm:$0x1] %v6090
  %6099 = vst [vmem:[%s3 + $0x29] sm:$0x1] %v6091
  %6100 = vst [vmem:[%s3 + $0x39] sm:$0x1] %v6092
  %6101 = vst [vmem:[%s3 + $0x49] sm:$0x1] %v6093
  %6102 = vst [vmem:[%s3 + $0x59] sm:$0x1] %v6094
  %6103 = vst [vmem:[%s3 + $0x69] sm:$0x1] %v6095
  %6104 = vst [vmem:[%s3 + $0x79] sm:$0x1] %v6096
  %v6113 = vcombine.low %v6089, %v6090
  %v6114 = vcombine.low %v6091, %v6092
  %v6115 = vcombine.low %v6093, %v6094
  %v6116 = vcombine.low %v6095, %v6096
  %v6118 = vunpack.c.l.s4 1966171168
  %v6119 = vunpack.c.0.s8 %v6118
  %v6120 = vlaneseq
  %v6121 = vshrl.u32 %v6120, 7
  %v6122 = vsub.s32 %v6119, %v6121
  %v6123 = vrot.slane %v6113, %v6122
  %v6125 = vunpack.c.l.s4 1966171168
  %v6126 = vunpack.c.0.s8 %v6125
  %v6127 = vlaneseq
  %v6128 = vshrl.u32 %v6127, 7
  %v6129 = vsub.s32 %v6126, %v6128
  %v6130 = vrot.slane %v6114, %v6129
  %v6132 = vunpack.c.l.s4 1966171168
  %v6133 = vunpack.c.0.s8 %v6132
  %v6134 = vlaneseq
  %v6135 = vshrl.u32 %v6134, 7
  %v6136 = vsub.s32 %v6133, %v6135
  %v6137 = vrot.slane %v6115, %v6136
  %v6139 = vunpack.c.l.s4 1966171168
  %v6140 = vunpack.c.0.s8 %v6139
  %v6141 = vlaneseq
  %v6142 = vshrl.u32 %v6141, 7
  %v6143 = vsub.s32 %v6140, %v6142
  %v6144 = vrot.slane %v6116, %v6143
  %v6145 = vcombine.low %v6123, %v6130
  %v6146 = vcombine.low %v6137, %v6144
  %v6148 = vunpack.c.l.s4 1966171168
  %v6149 = vunpack.c.0.s8 %v6148
  %v6150 = vlaneseq
  %v6151 = vshrl.u32 %v6150, 7
  %v6152 = vsub.s32 %v6149, %v6151
  %v6153 = vrot.slane %v6145, %v6152
  %v6155 = vunpack.c.l.s4 1966171168
  %v6156 = vunpack.c.0.s8 %v6155
  %v6157 = vlaneseq
  %v6158 = vshrl.u32 %v6157, 7
  %v6159 = vsub.s32 %v6156, %v6158
  %v6160 = vrot.slane %v6146, %v6159
  %v6161 = vcombine.low %v6153, %v6160
  %6163 = vmatprep.subr.mxu0 %v20
  %6164 = vmatpush1.msra.mxu0 %v19
  %6165 = vmatprep.subr.mxu0 %v23
  %6166 = vmatpush1.msra.mxu0 %v22
  %6167 = vmatprep.subr.mxu0 %v26
  %6168 = vmatpush1.msra.mxu0 %v25
  %6169 = vmatprep.subr.mxu0 %v29
  %6170 = vmatpush1.msra.mxu0 %v28
  %6171 = vmatprep.subr.mxu0 %v32
  %6172 = vmatpush1.msra.mxu0 %v31
  %6173 = vmatprep.subr.mxu0 %v35
  %6174 = vmatpush1.msra.mxu0 %v34
  %6175 = vmatprep.subr.mxu0 %v38
  %6176 = vmatpush1.msra.mxu0 %v37
  %6177 = vmatprep.subr.mxu0 %v41
  %6178 = vmatpush1.msra.mxu0 %v40
  %6179 = vmatprep.subr.mxu0 %v44
  %6180 = vmatpush1.msra.mxu0 %v43
  %6181 = vmatprep.subr.mxu0 %v47
  %6182 = vmatpush1.msra.mxu0 %v46
  %6183 = vmatprep.subr.mxu0 %v50
  %6184 = vmatpush1.msra.mxu0 %v49
  %6185 = vmatprep.subr.mxu0 %v53
  %6186 = vmatpush1.msra.mxu0 %v52
  %6187 = vmatprep.subr.mxu0 %v56
  %6188 = vmatpush1.msra.mxu0 %v55
  %6189 = vmatprep.subr.mxu0 %v59
  %6190 = vmatpush1.msra.mxu0 %v58
  %6191 = vmatprep.subr.mxu0 %v62
  %6192 = vmatpush1.msra.mxu0 %v61
  %6193 = vmatprep.subr.mxu0 %v65
  %6194 = vmatpush1.msra.mxu0 %v64
  %6195 = vmatprep.subr.mxu0 0.0
  %6196 = vmatpush1.msra.mxu0 0.0
  %6197 = vmatprep.subr.mxu0 0.0
  %6198 = vmatpush1.msra.mxu0 0.0
  %6199 = vmatprep.subr.mxu0 0.0
  %6200 = vmatpush1.msra.mxu0 0.0
  %6201 = vmatprep.subr.mxu0 0.0
  %6202 = vmatpush1.msra.mxu0 0.0
  %6203 = vmatprep.subr.mxu0 0.0
  %6204 = vmatpush1.msra.mxu0 0.0
  %6205 = vmatprep.subr.mxu0 0.0
  %6206 = vmatpush1.msra.mxu0 0.0
  %6207 = vmatprep.subr.mxu0 0.0
  %6208 = vmatpush1.msra.mxu0 0.0
  %6209 = vmatprep.subr.mxu0 0.0
  %6210 = vmatpush1.msra.mxu0 0.0
  %6211 = vmatprep.subr.mxu0 0.0
  %6212 = vmatpush1.msra.mxu0 0.0
  %6213 = vmatprep.subr.mxu0 0.0
  %6214 = vmatpush1.msra.mxu0 0.0
  %6215 = vmatprep.subr.mxu0 0.0
  %6216 = vmatpush1.msra.mxu0 0.0
  %6217 = vmatprep.subr.mxu0 0.0
  %6218 = vmatpush1.msra.mxu0 0.0
  %6219 = vmatprep.subr.mxu0 0.0
  %6220 = vmatpush1.msra.mxu0 0.0
  %6221 = vmatprep.subr.mxu0 0.0
  %6222 = vmatpush1.msra.mxu0 0.0
  %6223 = vmatprep.subr.mxu0 0.0
  %6224 = vmatpush1.msra.mxu0 0.0
  %6225 = vmatprep.subr.mxu0 0.0
  %6226 = vmatpush1.msra.mxu0 0.0
  %6227 = vmatprep.mubr.f32.mxu0 0.0
  %6228 = vmatmul.mubr.f32.gmra.mrb[0].mxu0 %v6161
  %v6229 = vpop.f32.mrb[0].mxu0
  %v6230 = vadd.f32 0.0, %v6229
  %v6231 = vpop.f32.mrb[0].mxu0
  %v6232 = vadd.f32 0.0, %v6231
  %6233 = vdwg.mxu0
  %6234 = vmatprep.subr.mxu0 0.0
  %6235 = vmatpush1.msra.mxu0 %v21
  %6236 = vmatprep.subr.mxu0 0.0
  %6237 = vmatpush1.msra.mxu0 %v24
  %6238 = vmatprep.subr.mxu0 0.0
  %6239 = vmatpush1.msra.mxu0 %v27
  %6240 = vmatprep.subr.mxu0 0.0
  %6241 = vmatpush1.msra.mxu0 %v30
  %6242 = vmatprep.subr.mxu0 0.0
  %6243 = vmatpush1.msra.mxu0 %v33
  %6244 = vmatprep.subr.mxu0 0.0
  %6245 = vmatpush1.msra.mxu0 %v36
  %6246 = vmatprep.subr.mxu0 0.0
  %6247 = vmatpush1.msra.mxu0 %v39
  %6248 = vmatprep.subr.mxu0 0.0
  %6249 = vmatpush1.msra.mxu0 %v42
  %6250 = vmatprep.subr.mxu0 0.0
  %6251 = vmatpush1.msra.mxu0 %v45
  %6252 = vmatprep.subr.mxu0 0.0
  %6253 = vmatpush1.msra.mxu0 %v48
  %6254 = vmatprep.subr.mxu0 0.0
  %6255 = vmatpush1.msra.mxu0 %v51
  %6256 = vmatprep.subr.mxu0 0.0
  %6257 = vmatpush1.msra.mxu0 %v54
  %6258 = vmatprep.subr.mxu0 0.0
  %6259 = vmatpush1.msra.mxu0 %v57
  %6260 = vmatprep.subr.mxu0 0.0
  %6261 = vmatpush1.msra.mxu0 %v60
  %6262 = vmatprep.subr.mxu0 0.0
  %6263 = vmatpush1.msra.mxu0 %v63
  %6264 = vmatprep.subr.mxu0 0.0
  %6265 = vmatpush1.msra.mxu0 %v66
  %6266 = vmatprep.subr.mxu0 0.0
  %6267 = vmatpush1.msra.mxu0 0.0
  %6268 = vmatprep.subr.mxu0 0.0
  %6269 = vmatpush1.msra.mxu0 0.0
  %6270 = vmatprep.subr.mxu0 0.0
  %6271 = vmatpush1.msra.mxu0 0.0
  %6272 = vmatprep.subr.mxu0 0.0
  %6273 = vmatpush1.msra.mxu0 0.0
  %6274 = vmatprep.subr.mxu0 0.0
  %6275 = vmatpush1.msra.mxu0 0.0
  %6276 = vmatprep.subr.mxu0 0.0
  %6277 = vmatpush1.msra.mxu0 0.0
  %6278 = vmatprep.subr.mxu0 0.0
  %6279 = vmatpush1.msra.mxu0 0.0
  %6280 = vmatprep.subr.mxu0 0.0
  %6281 = vmatpush1.msra.mxu0 0.0
  %6282 = vmatprep.subr.mxu0 0.0
  %6283 = vmatpush1.msra.mxu0 0.0
  %6284 = vmatprep.subr.mxu0 0.0
  %6285 = vmatpush1.msra.mxu0 0.0
  %6286 = vmatprep.subr.mxu0 0.0
  %6287 = vmatpush1.msra.mxu0 0.0
  %6288 = vmatprep.subr.mxu0 0.0
  %6289 = vmatpush1.msra.mxu0 0.0
  %6290 = vmatprep.subr.mxu0 0.0
  %6291 = vmatpush1.msra.mxu0 0.0
  %6292 = vmatprep.subr.mxu0 0.0
  %6293 = vmatpush1.msra.mxu0 0.0
  %6294 = vmatprep.subr.mxu0 0.0
  %6295 = vmatpush1.msra.mxu0 0.0
  %6296 = vmatprep.subr.mxu0 0.0
  %6297 = vmatpush1.msra.mxu0 0.0
  %6298 = vmatprep.mubr.f32.mxu0 0.0
  %6299 = vmatmul.mubr.f32.gmra.mrb[0].mxu0 %v6161
  %v6300 = vpop.f32.mrb[0].mxu0
  %v6301 = vadd.f32 0.0, %v6300
  %v6302 = vpop.f32.mrb[0].mxu0
  %6303 = vdwg.mxu0
  %s6304 = scalar_lea.vmem %s0, 26
  %v6305 = vld [vmem:[%s6304] ss:$8 sm:$0x7]
  %s6306 = scalar_lea.vmem %s0, 74
  %v6307 = vld [vmem:[%s6306] ss:$8 sm:$0x7]
  %s6308 = scalar_lea.vmem %s0, 122
  %v6309 = vld [vmem:[%s6308] ss:$8 sm:$0x7]
  %s6310 = scalar_lea.vmem %s0, 170
  %v6311 = vld [vmem:[%s6310] ss:$8 sm:$0x7]
  %s6312 = scalar_lea.vmem %s0, 218
  %v6313 = vld [vmem:[%s6312] ss:$8 sm:$0x7]
  %s6314 = scalar_lea.vmem %s0, 266
  %v6315 = vld [vmem:[%s6314] ss:$8 sm:$0x7]
  %s6316 = scalar_lea.vmem %s0, 314
  %v6317 = vld [vmem:[%s6316] ss:$8 sm:$0x7]
  %s6318 = scalar_lea.vmem %s0, 362
  %v6319 = vld [vmem:[%s6318] ss:$8 sm:$0x7]
  %v6321 = vcombine.high %v6230, %v6230
  %v6323 = vunpack.c.l.s4 1966171168
  %v6324 = vunpack.c.0.s8 %v6323
  %v6325 = vlaneseq
  %v6326 = vshrl.u32 %v6325, 7
  %v6327 = vsub.s32 %v6324, %v6326
  %v6328 = vrot.slane %v6230, %v6327
  %v6330 = vunpack.c.l.s4 1966171168
  %v6331 = vunpack.c.0.s8 %v6330
  %v6332 = vlaneseq
  %v6333 = vshrl.u32 %v6332, 7
  %v6334 = vsub.s32 %v6331, %v6333
  %v6335 = vrot.slane %v6321, %v6334
  %v6336 = vcombine.high %v6328, %v6328
  %v6337 = vcombine.high %v6335, %v6335
  %v6339 = vunpack.c.l.s4 1966171168
  %v6340 = vunpack.c.0.s8 %v6339
  %v6341 = vlaneseq
  %v6342 = vshrl.u32 %v6341, 7
  %v6343 = vsub.s32 %v6340, %v6342
  %v6344 = vrot.slane %v6328, %v6343
  %v6346 = vunpack.c.l.s4 1966171168
  %v6347 = vunpack.c.0.s8 %v6346
  %v6348 = vlaneseq
  %v6349 = vshrl.u32 %v6348, 7
  %v6350 = vsub.s32 %v6347, %v6349
  %v6351 = vrot.slane %v6335, %v6350
  %v6353 = vunpack.c.l.s4 1966171168
  %v6354 = vunpack.c.0.s8 %v6353
  %v6355 = vlaneseq
  %v6356 = vshrl.u32 %v6355, 7
  %v6357 = vsub.s32 %v6354, %v6356
  %v6358 = vrot.slane %v6336, %v6357
  %v6360 = vunpack.c.l.s4 1966171168
  %v6361 = vunpack.c.0.s8 %v6360
  %v6362 = vlaneseq
  %v6363 = vshrl.u32 %v6362, 7
  %v6364 = vsub.s32 %v6361, %v6363
  %v6365 = vrot.slane %v6337, %v6364
  %v6366 = vcombine.high %v6344, %v6344
  %v6367 = vcombine.high %v6351, %v6351
  %v6368 = vcombine.high %v6358, %v6358
  %v6369 = vcombine.high %v6365, %v6365
  %v6378 = vadd.f32 %v6305, %v6344
  %v6379 = vadd.f32 %v6307, %v6358
  %v6380 = vadd.f32 %v6309, %v6366
  %v6381 = vadd.f32 %v6311, %v6368
  %v6382 = vadd.f32 %v6313, %v6351
  %v6383 = vadd.f32 %v6315, %v6365
  %v6384 = vadd.f32 %v6317, %v6367
  %v6385 = vadd.f32 %v6319, %v6369
  %v6386 = vxor.u32 %v6378, 2147483648
  %v6387 = vxor.u32 %v6379, 2147483648
  %v6388 = vxor.u32 %v6380, 2147483648
  %v6389 = vxor.u32 %v6381, 2147483648
  %v6390 = vxor.u32 %v6382, 2147483648
  %v6391 = vxor.u32 %v6383, 2147483648
  %v6392 = vxor.u32 %v6384, 2147483648
  %v6393 = vxor.u32 %v6385, 2147483648
  %v6394 = vmul.f32 %v6386, 1.442695
  %v6395 = vpow.pop %v6394
  %v6396 = vmul.f32 %v6387, 1.442695
  %v6397 = vpow.pop %v6396
  %v6398 = vmul.f32 %v6388, 1.442695
  %v6399 = vpow.pop %v6398
  %v6400 = vmul.f32 %v6389, 1.442695
  %v6401 = vpow.pop %v6400
  %v6402 = vmul.f32 %v6390, 1.442695
  %v6403 = vpow.pop %v6402
  %v6404 = vmul.f32 %v6391, 1.442695
  %v6405 = vpow.pop %v6404
  %v6406 = vmul.f32 %v6392, 1.442695
  %v6407 = vpow.pop %v6406
  %v6408 = vmul.f32 %v6393, 1.442695
  %v6409 = vpow.pop %v6408
  %v6410 = vadd.f32 %v6395, 1.0
  %v6411 = vadd.f32 %v6397, 1.0
  %v6412 = vadd.f32 %v6399, 1.0
  %v6413 = vadd.f32 %v6401, 1.0
  %v6414 = vadd.f32 %v6403, 1.0
  %v6415 = vadd.f32 %v6405, 1.0
  %v6416 = vadd.f32 %v6407, 1.0
  %v6417 = vadd.f32 %v6409, 1.0
  %v6418 = vrcp.pop %v6410
  %v6419 = vmul.f32 1.0, %v6418
  %v6420 = vrcp.pop %v6411
  %v6421 = vmul.f32 1.0, %v6420
  %v6422 = vrcp.pop %v6412
  %v6423 = vmul.f32 1.0, %v6422
  %v6424 = vrcp.pop %v6413
  %v6425 = vmul.f32 1.0, %v6424
  %v6426 = vrcp.pop %v6414
  %v6427 = vmul.f32 1.0, %v6426
  %v6428 = vrcp.pop %v6415
  %v6429 = vmul.f32 1.0, %v6428
  %v6430 = vrcp.pop %v6416
  %v6431 = vmul.f32 1.0, %v6430
  %v6432 = vrcp.pop %v6417
  %v6433 = vmul.f32 1.0, %v6432
  %v6442 = vrot.slane %v6305, 1
  %v6443 = vrot.slane %v6307, 1
  %v6444 = vrot.slane %v6309, 1
  %v6445 = vrot.slane %v6311, 1
  %v6446 = vrot.slane %v6313, 1
  %v6447 = vrot.slane %v6315, 1
  %v6448 = vrot.slane %v6317, 1
  %v6449 = vrot.slane %v6319, 1
  %v6459 = vcombine.high %v6232, %v6232
  %v6461 = vunpack.c.l.s4 1966171168
  %v6462 = vunpack.c.0.s8 %v6461
  %v6463 = vlaneseq
  %v6464 = vshrl.u32 %v6463, 7
  %v6465 = vsub.s32 %v6462, %v6464
  %v6466 = vrot.slane %v6232, %v6465
  %v6468 = vunpack.c.l.s4 1966171168
  %v6469 = vunpack.c.0.s8 %v6468
  %v6470 = vlaneseq
  %v6471 = vshrl.u32 %v6470, 7
  %v6472 = vsub.s32 %v6469, %v6471
  %v6473 = vrot.slane %v6459, %v6472
  %v6474 = vcombine.high %v6466, %v6466
  %v6475 = vcombine.high %v6473, %v6473
  %v6477 = vunpack.c.l.s4 1966171168
  %v6478 = vunpack.c.0.s8 %v6477
  %v6479 = vlaneseq
  %v6480 = vshrl.u32 %v6479, 7
  %v6481 = vsub.s32 %v6478, %v6480
  %v6482 = vrot.slane %v6466, %v6481
  %v6484 = vunpack.c.l.s4 1966171168
  %v6485 = vunpack.c.0.s8 %v6484
  %v6486 = vlaneseq
  %v6487 = vshrl.u32 %v6486, 7
  %v6488 = vsub.s32 %v6485, %v6487
  %v6489 = vrot.slane %v6473, %v6488
  %v6491 = vunpack.c.l.s4 1966171168
  %v6492 = vunpack.c.0.s8 %v6491
  %v6493 = vlaneseq
  %v6494 = vshrl.u32 %v6493, 7
  %v6495 = vsub.s32 %v6492, %v6494
  %v6496 = vrot.slane %v6474, %v6495
  %v6498 = vunpack.c.l.s4 1966171168
  %v6499 = vunpack.c.0.s8 %v6498
  %v6500 = vlaneseq
  %v6501 = vshrl.u32 %v6500, 7
  %v6502 = vsub.s32 %v6499, %v6501
  %v6503 = vrot.slane %v6475, %v6502
  %v6504 = vcombine.high %v6482, %v6482
  %v6505 = vcombine.high %v6489, %v6489
  %v6506 = vcombine.high %v6496, %v6496
  %v6507 = vcombine.high %v6503, %v6503
  %v6516 = vadd.f32 %v6442, %v6482
  %v6517 = vadd.f32 %v6443, %v6496
  %v6518 = vadd.f32 %v6444, %v6504
  %v6519 = vadd.f32 %v6445, %v6506
  %v6520 = vadd.f32 %v6446, %v6489
  %v6521 = vadd.f32 %v6447, %v6503
  %v6522 = vadd.f32 %v6448, %v6505
  %v6523 = vadd.f32 %v6449, %v6507
  %v6524 = vxor.u32 %v6516, 2147483648
  %v6525 = vxor.u32 %v6517, 2147483648
  %v6526 = vxor.u32 %v6518, 2147483648
  %v6527 = vxor.u32 %v6519, 2147483648
  %v6528 = vxor.u32 %v6520, 2147483648
  %v6529 = vxor.u32 %v6521, 2147483648
  %v6530 = vxor.u32 %v6522, 2147483648
  %v6531 = vxor.u32 %v6523, 2147483648
  %v6532 = vmul.f32 %v6524, 1.442695
  %v6533 = vpow.pop %v6532
  %v6534 = vmul.f32 %v6525, 1.442695
  %v6535 = vpow.pop %v6534
  %v6536 = vmul.f32 %v6526, 1.442695
  %v6537 = vpow.pop %v6536
  %v6538 = vmul.f32 %v6527, 1.442695
  %v6539 = vpow.pop %v6538
  %v6540 = vmul.f32 %v6528, 1.442695
  %v6541 = vpow.pop %v6540
  %v6542 = vmul.f32 %v6529, 1.442695
  %v6543 = vpow.pop %v6542
  %v6544 = vmul.f32 %v6530, 1.442695
  %v6545 = vpow.pop %v6544
  %v6546 = vmul.f32 %v6531, 1.442695
  %v6547 = vpow.pop %v6546
  %v6548 = vadd.f32 %v6533, 1.0
  %v6549 = vadd.f32 %v6535, 1.0
  %v6550 = vadd.f32 %v6537, 1.0
  %v6551 = vadd.f32 %v6539, 1.0
  %v6552 = vadd.f32 %v6541, 1.0
  %v6553 = vadd.f32 %v6543, 1.0
  %v6554 = vadd.f32 %v6545, 1.0
  %v6555 = vadd.f32 %v6547, 1.0
  %v6556 = vrcp.pop %v6548
  %v6557 = vmul.f32 1.0, %v6556
  %v6558 = vrcp.pop %v6549
  %v6559 = vmul.f32 1.0, %v6558
  %v6560 = vrcp.pop %v6550
  %v6561 = vmul.f32 1.0, %v6560
  %v6562 = vrcp.pop %v6551
  %v6563 = vmul.f32 1.0, %v6562
  %v6564 = vrcp.pop %v6552
  %v6565 = vmul.f32 1.0, %v6564
  %v6566 = vrcp.pop %v6553
  %v6567 = vmul.f32 1.0, %v6566
  %v6568 = vrcp.pop %v6554
  %v6569 = vmul.f32 1.0, %v6568
  %v6570 = vrcp.pop %v6555
  %v6571 = vmul.f32 1.0, %v6570
  %v6572 = vadd.f32 %v6301, %v481
  %v6574 = vcombine.high %v6572, %v6572
  %v6576 = vunpack.c.l.s4 1966171168
  %v6577 = vunpack.c.0.s8 %v6576
  %v6578 = vlaneseq
  %v6579 = vshrl.u32 %v6578, 7
  %v6580 = vsub.s32 %v6577, %v6579
  %v6581 = vrot.slane %v6572, %v6580
  %v6583 = vunpack.c.l.s4 1966171168
  %v6584 = vunpack.c.0.s8 %v6583
  %v6585 = vlaneseq
  %v6586 = vshrl.u32 %v6585, 7
  %v6587 = vsub.s32 %v6584, %v6586
  %v6588 = vrot.slane %v6574, %v6587
  %v6589 = vcombine.high %v6581, %v6581
  %v6590 = vcombine.high %v6588, %v6588
  %v6592 = vunpack.c.l.s4 1966171168
  %v6593 = vunpack.c.0.s8 %v6592
  %v6594 = vlaneseq
  %v6595 = vshrl.u32 %v6594, 7
  %v6596 = vsub.s32 %v6593, %v6595
  %v6597 = vrot.slane %v6581, %v6596
  %v6599 = vunpack.c.l.s4 1966171168
  %v6600 = vunpack.c.0.s8 %v6599
  %v6601 = vlaneseq
  %v6602 = vshrl.u32 %v6601, 7
  %v6603 = vsub.s32 %v6600, %v6602
  %v6604 = vrot.slane %v6588, %v6603
  %v6606 = vunpack.c.l.s4 1966171168
  %v6607 = vunpack.c.0.s8 %v6606
  %v6608 = vlaneseq
  %v6609 = vshrl.u32 %v6608, 7
  %v6610 = vsub.s32 %v6607, %v6609
  %v6611 = vrot.slane %v6589, %v6610
  %v6613 = vunpack.c.l.s4 1966171168
  %v6614 = vunpack.c.0.s8 %v6613
  %v6615 = vlaneseq
  %v6616 = vshrl.u32 %v6615, 7
  %v6617 = vsub.s32 %v6614, %v6616
  %v6618 = vrot.slane %v6590, %v6617
  %v6619 = vcombine.high %v6597, %v6597
  %v6620 = vcombine.high %v6604, %v6604
  %v6621 = vcombine.high %v6611, %v6611
  %v6622 = vcombine.high %v6618, %v6618
  %v6631 = vmul.f32 %v6419, %v6597
  %v6632 = vmul.f32 %v6421, %v6611
  %v6633 = vmul.f32 %v6423, %v6619
  %v6634 = vmul.f32 %v6425, %v6621
  %v6635 = vmul.f32 %v6427, %v6604
  %v6636 = vmul.f32 %v6429, %v6618
  %v6637 = vmul.f32 %v6431, %v6620
  %v6638 = vmul.f32 %v6433, %v6622
  %v6639 = vrot.slane %v6305, 2
  %v6640 = vrot.slane %v6307, 2
  %v6641 = vrot.slane %v6309, 2
  %v6642 = vrot.slane %v6311, 2
  %v6643 = vrot.slane %v6313, 2
  %v6644 = vrot.slane %v6315, 2
  %v6645 = vrot.slane %v6317, 2
  %v6646 = vrot.slane %v6319, 2
  %v6655 = vadd.f32 %v6639, %v6631
  %v6656 = vadd.f32 %v6640, %v6632
  %v6657 = vadd.f32 %v6641, %v6633
  %v6658 = vadd.f32 %v6642, %v6634
  %v6659 = vadd.f32 %v6643, %v6635
  %v6660 = vadd.f32 %v6644, %v6636
  %v6661 = vadd.f32 %v6645, %v6637
  %v6662 = vadd.f32 %v6646, %v6638
  %v6663 = vtanh.pop %v6655
  %v6664 = vtanh.pop %v6656
  %v6665 = vtanh.pop %v6657
  %v6666 = vtanh.pop %v6658
  %v6667 = vtanh.pop %v6659
  %v6668 = vtanh.pop %v6660
  %v6669 = vtanh.pop %v6661
  %v6670 = vtanh.pop %v6662
  %v6671 = vsub.f32 %v6089, %v6663
  %v6672 = vsub.f32 %v6090, %v6664
  %v6673 = vsub.f32 %v6091, %v6665
  %v6674 = vsub.f32 %v6092, %v6666
  %v6675 = vsub.f32 %v6093, %v6667
  %v6676 = vsub.f32 %v6094, %v6668
  %v6677 = vsub.f32 %v6095, %v6669
  %v6678 = vsub.f32 %v6096, %v6670
  %v6679 = vmul.f32 %v6557, %v6671
  %v6680 = vmul.f32 %v6559, %v6672
  %v6681 = vmul.f32 %v6561, %v6673
  %v6682 = vmul.f32 %v6563, %v6674
  %v6683 = vmul.f32 %v6565, %v6675
  %v6684 = vmul.f32 %v6567, %v6676
  %v6685 = vmul.f32 %v6569, %v6677
  %v6686 = vmul.f32 %v6571, %v6678
  %v6687 = vadd.f32 %v6663, %v6679
  %v6688 = vadd.f32 %v6664, %v6680
  %v6689 = vadd.f32 %v6665, %v6681
  %v6690 = vadd.f32 %v6666, %v6682
  %v6691 = vadd.f32 %v6667, %v6683
  %v6692 = vadd.f32 %v6668, %v6684
  %v6693 = vadd.f32 %v6669, %v6685
  %v6694 = vadd.f32 %v6670, %v6686
  %6695 = vst [vmem:[%s3 + $0xa] sm:$0x1] %v6687
  %6696 = vst [vmem:[%s3 + $0x1a] sm:$0x1] %v6688
  %6697 = vst [vmem:[%s3 + $0x2a] sm:$0x1] %v6689
  %6698 = vst [vmem:[%s3 + $0x3a] sm:$0x1] %v6690
  %6699 = vst [vmem:[%s3 + $0x4a] sm:$0x1] %v6691
  %6700 = vst [vmem:[%s3 + $0x5a] sm:$0x1] %v6692
  %6701 = vst [vmem:[%s3 + $0x6a] sm:$0x1] %v6693
  %6702 = vst [vmem:[%s3 + $0x7a] sm:$0x1] %v6694
  %v6711 = vcombine.low %v6687, %v6688
  %v6712 = vcombine.low %v6689, %v6690
  %v6713 = vcombine.low %v6691, %v6692
  %v6714 = vcombine.low %v6693, %v6694
  %v6716 = vunpack.c.l.s4 1966171168
  %v6717 = vunpack.c.0.s8 %v6716
  %v6718 = vlaneseq
  %v6719 = vshrl.u32 %v6718, 7
  %v6720 = vsub.s32 %v6717, %v6719
  %v6721 = vrot.slane %v6711, %v6720
  %v6723 = vunpack.c.l.s4 1966171168
  %v6724 = vunpack.c.0.s8 %v6723
  %v6725 = vlaneseq
  %v6726 = vshrl.u32 %v6725, 7
  %v6727 = vsub.s32 %v6724, %v6726
  %v6728 = vrot.slane %v6712, %v6727
  %v6730 = vunpack.c.l.s4 1966171168
  %v6731 = vunpack.c.0.s8 %v6730
  %v6732 = vlaneseq
  %v6733 = vshrl.u32 %v6732, 7
  %v6734 = vsub.s32 %v6731, %v6733
  %v6735 = vrot.slane %v6713, %v6734
  %v6737 = vunpack.c.l.s4 1966171168
  %v6738 = vunpack.c.0.s8 %v6737
  %v6739 = vlaneseq
  %v6740 = vshrl.u32 %v6739, 7
  %v6741 = vsub.s32 %v6738, %v6740
  %v6742 = vrot.slane %v6714, %v6741
  %v6743 = vcombine.low %v6721, %v6728
  %v6744 = vcombine.low %v6735, %v6742
  %v6746 = vunpack.c.l.s4 1966171168
  %v6747 = vunpack.c.0.s8 %v6746
  %v6748 = vlaneseq
  %v6749 = vshrl.u32 %v6748, 7
  %v6750 = vsub.s32 %v6747, %v6749
  %v6751 = vrot.slane %v6743, %v6750
  %v6753 = vunpack.c.l.s4 1966171168
  %v6754 = vunpack.c.0.s8 %v6753
  %v6755 = vlaneseq
  %v6756 = vshrl.u32 %v6755, 7
  %v6757 = vsub.s32 %v6754, %v6756
  %v6758 = vrot.slane %v6744, %v6757
  %v6759 = vcombine.low %v6751, %v6758
  %6761 = vmatprep.subr.mxu0 %v20
  %6762 = vmatpush1.msra.mxu0 %v19
  %6763 = vmatprep.subr.mxu0 %v23
  %6764 = vmatpush1.msra.mxu0 %v22
  %6765 = vmatprep.subr.mxu0 %v26
  %6766 = vmatpush1.msra.mxu0 %v25
  %6767 = vmatprep.subr.mxu0 %v29
  %6768 = vmatpush1.msra.mxu0 %v28
  %6769 = vmatprep.subr.mxu0 %v32
  %6770 = vmatpush1.msra.mxu0 %v31
  %6771 = vmatprep.subr.mxu0 %v35
  %6772 = vmatpush1.msra.mxu0 %v34
  %6773 = vmatprep.subr.mxu0 %v38
  %6774 = vmatpush1.msra.mxu0 %v37
  %6775 = vmatprep.subr.mxu0 %v41
  %6776 = vmatpush1.msra.mxu0 %v40
  %6777 = vmatprep.subr.mxu0 %v44
  %6778 = vmatpush1.msra.mxu0 %v43
  %6779 = vmatprep.subr.mxu0 %v47
  %6780 = vmatpush1.msra.mxu0 %v46
  %6781 = vmatprep.subr.mxu0 %v50
  %6782 = vmatpush1.msra.mxu0 %v49
  %6783 = vmatprep.subr.mxu0 %v53
  %6784 = vmatpush1.msra.mxu0 %v52
  %6785 = vmatprep.subr.mxu0 %v56
  %6786 = vmatpush1.msra.mxu0 %v55
  %6787 = vmatprep.subr.mxu0 %v59
  %6788 = vmatpush1.msra.mxu0 %v58
  %6789 = vmatprep.subr.mxu0 %v62
  %6790 = vmatpush1.msra.mxu0 %v61
  %6791 = vmatprep.subr.mxu0 %v65
  %6792 = vmatpush1.msra.mxu0 %v64
  %6793 = vmatprep.subr.mxu0 0.0
  %6794 = vmatpush1.msra.mxu0 0.0
  %6795 = vmatprep.subr.mxu0 0.0
  %6796 = vmatpush1.msra.mxu0 0.0
  %6797 = vmatprep.subr.mxu0 0.0
  %6798 = vmatpush1.msra.mxu0 0.0
  %6799 = vmatprep.subr.mxu0 0.0
  %6800 = vmatpush1.msra.mxu0 0.0
  %6801 = vmatprep.subr.mxu0 0.0
  %6802 = vmatpush1.msra.mxu0 0.0
  %6803 = vmatprep.subr.mxu0 0.0
  %6804 = vmatpush1.msra.mxu0 0.0
  %6805 = vmatprep.subr.mxu0 0.0
  %6806 = vmatpush1.msra.mxu0 0.0
  %6807 = vmatprep.subr.mxu0 0.0
  %6808 = vmatpush1.msra.mxu0 0.0
  %6809 = vmatprep.subr.mxu0 0.0
  %6810 = vmatpush1.msra.mxu0 0.0
  %6811 = vmatprep.subr.mxu0 0.0
  %6812 = vmatpush1.msra.mxu0 0.0
  %6813 = vmatprep.subr.mxu0 0.0
  %6814 = vmatpush1.msra.mxu0 0.0
  %6815 = vmatprep.subr.mxu0 0.0
  %6816 = vmatpush1.msra.mxu0 0.0
  %6817 = vmatprep.subr.mxu0 0.0
  %6818 = vmatpush1.msra.mxu0 0.0
  %6819 = vmatprep.subr.mxu0 0.0
  %6820 = vmatpush1.msra.mxu0 0.0
  %6821 = vmatprep.subr.mxu0 0.0
  %6822 = vmatpush1.msra.mxu0 0.0
  %6823 = vmatprep.subr.mxu0 0.0
  %6824 = vmatpush1.msra.mxu0 0.0
  %6825 = vmatprep.mubr.f32.mxu0 0.0
  %6826 = vmatmul.mubr.f32.gmra.mrb[0].mxu0 %v6759
  %v6827 = vpop.f32.mrb[0].mxu0
  %v6828 = vadd.f32 0.0, %v6827
  %v6829 = vpop.f32.mrb[0].mxu0
  %v6830 = vadd.f32 0.0, %v6829
  %6831 = vdwg.mxu0
  %6832 = vmatprep.subr.mxu0 0.0
  %6833 = vmatpush1.msra.mxu0 %v21
  %6834 = vmatprep.subr.mxu0 0.0
  %6835 = vmatpush1.msra.mxu0 %v24
  %6836 = vmatprep.subr.mxu0 0.0
  %6837 = vmatpush1.msra.mxu0 %v27
  %6838 = vmatprep.subr.mxu0 0.0
  %6839 = vmatpush1.msra.mxu0 %v30
  %6840 = vmatprep.subr.mxu0 0.0
  %6841 = vmatpush1.msra.mxu0 %v33
  %6842 = vmatprep.subr.mxu0 0.0
  %6843 = vmatpush1.msra.mxu0 %v36
  %6844 = vmatprep.subr.mxu0 0.0
  %6845 = vmatpush1.msra.mxu0 %v39
  %6846 = vmatprep.subr.mxu0 0.0
  %6847 = vmatpush1.msra.mxu0 %v42
  %6848 = vmatprep.subr.mxu0 0.0
  %6849 = vmatpush1.msra.mxu0 %v45
  %6850 = vmatprep.subr.mxu0 0.0
  %6851 = vmatpush1.msra.mxu0 %v48
  %6852 = vmatprep.subr.mxu0 0.0
  %6853 = vmatpush1.msra.mxu0 %v51
  %6854 = vmatprep.subr.mxu0 0.0
  %6855 = vmatpush1.msra.mxu0 %v54
  %6856 = vmatprep.subr.mxu0 0.0
  %6857 = vmatpush1.msra.mxu0 %v57
  %6858 = vmatprep.subr.mxu0 0.0
  %6859 = vmatpush1.msra.mxu0 %v60
  %6860 = vmatprep.subr.mxu0 0.0
  %6861 = vmatpush1.msra.mxu0 %v63
  %6862 = vmatprep.subr.mxu0 0.0
  %6863 = vmatpush1.msra.mxu0 %v66
  %6864 = vmatprep.subr.mxu0 0.0
  %6865 = vmatpush1.msra.mxu0 0.0
  %6866 = vmatprep.subr.mxu0 0.0
  %6867 = vmatpush1.msra.mxu0 0.0
  %6868 = vmatprep.subr.mxu0 0.0
  %6869 = vmatpush1.msra.mxu0 0.0
  %6870 = vmatprep.subr.mxu0 0.0
  %6871 = vmatpush1.msra.mxu0 0.0
  %6872 = vmatprep.subr.mxu0 0.0
  %6873 = vmatpush1.msra.mxu0 0.0
  %6874 = vmatprep.subr.mxu0 0.0
  %6875 = vmatpush1.msra.mxu0 0.0
  %6876 = vmatprep.subr.mxu0 0.0
  %6877 = vmatpush1.msra.mxu0 0.0
  %6878 = vmatprep.subr.mxu0 0.0
  %6879 = vmatpush1.msra.mxu0 0.0
  %6880 = vmatprep.subr.mxu0 0.0
  %6881 = vmatpush1.msra.mxu0 0.0
  %6882 = vmatprep.subr.mxu0 0.0
  %6883 = vmatpush1.msra.mxu0 0.0
  %6884 = vmatprep.subr.mxu0 0.0
  %6885 = vmatpush1.msra.mxu0 0.0
  %6886 = vmatprep.subr.mxu0 0.0
  %6887 = vmatpush1.msra.mxu0 0.0
  %6888 = vmatprep.subr.mxu0 0.0
  %6889 = vmatpush1.msra.mxu0 0.0
  %6890 = vmatprep.subr.mxu0 0.0
  %6891 = vmatpush1.msra.mxu0 0.0
  %6892 = vmatprep.subr.mxu0 0.0
  %6893 = vmatpush1.msra.mxu0 0.0
  %6894 = vmatprep.subr.mxu0 0.0
  %6895 = vmatpush1.msra.mxu0 0.0
  %6896 = vmatprep.mubr.f32.mxu0 0.0
  %6897 = vmatmul.mubr.f32.gmra.mrb[0].mxu0 %v6759
  %v6898 = vpop.f32.mrb[0].mxu0
  %v6899 = vadd.f32 0.0, %v6898
  %v6900 = vpop.f32.mrb[0].mxu0
  %6901 = vdwg.mxu0
  %s6902 = scalar_lea.vmem %s0, 27
  %v6903 = vld [vmem:[%s6902] ss:$8 sm:$0x7]
  %s6904 = scalar_lea.vmem %s0, 75
  %v6905 = vld [vmem:[%s6904] ss:$8 sm:$0x7]
  %s6906 = scalar_lea.vmem %s0, 123
  %v6907 = vld [vmem:[%s6906] ss:$8 sm:$0x7]
  %s6908 = scalar_lea.vmem %s0, 171
  %v6909 = vld [vmem:[%s6908] ss:$8 sm:$0x7]
  %s6910 = scalar_lea.vmem %s0, 219
  %v6911 = vld [vmem:[%s6910] ss:$8 sm:$0x7]
  %s6912 = scalar_lea.vmem %s0, 267
  %v6913 = vld [vmem:[%s6912] ss:$8 sm:$0x7]
  %s6914 = scalar_lea.vmem %s0, 315
  %v6915 = vld [vmem:[%s6914] ss:$8 sm:$0x7]
  %s6916 = scalar_lea.vmem %s0, 363
  %v6917 = vld [vmem:[%s6916] ss:$8 sm:$0x7]
  %v6919 = vcombine.high %v6828, %v6828
  %v6921 = vunpack.c.l.s4 1966171168
  %v6922 = vunpack.c.0.s8 %v6921
  %v6923 = vlaneseq
  %v6924 = vshrl.u32 %v6923, 7
  %v6925 = vsub.s32 %v6922, %v6924
  %v6926 = vrot.slane %v6828, %v6925
  %v6928 = vunpack.c.l.s4 1966171168
  %v6929 = vunpack.c.0.s8 %v6928
  %v6930 = vlaneseq
  %v6931 = vshrl.u32 %v6930, 7
  %v6932 = vsub.s32 %v6929, %v6931
  %v6933 = vrot.slane %v6919, %v6932
  %v6934 = vcombine.high %v6926, %v6926
  %v6935 = vcombine.high %v6933, %v6933
  %v6937 = vunpack.c.l.s4 1966171168
  %v6938 = vunpack.c.0.s8 %v6937
  %v6939 = vlaneseq
  %v6940 = vshrl.u32 %v6939, 7
  %v6941 = vsub.s32 %v6938, %v6940
  %v6942 = vrot.slane %v6926, %v6941
  %v6944 = vunpack.c.l.s4 1966171168
  %v6945 = vunpack.c.0.s8 %v6944
  %v6946 = vlaneseq
  %v6947 = vshrl.u32 %v6946, 7
  %v6948 = vsub.s32 %v6945, %v6947
  %v6949 = vrot.slane %v6933, %v6948
  %v6951 = vunpack.c.l.s4 1966171168
  %v6952 = vunpack.c.0.s8 %v6951
  %v6953 = vlaneseq
  %v6954 = vshrl.u32 %v6953, 7
  %v6955 = vsub.s32 %v6952, %v6954
  %v6956 = vrot.slane %v6934, %v6955
  %v6958 = vunpack.c.l.s4 1966171168
  %v6959 = vunpack.c.0.s8 %v6958
  %v6960 = vlaneseq
  %v6961 = vshrl.u32 %v6960, 7
  %v6962 = vsub.s32 %v6959, %v6961
  %v6963 = vrot.slane %v6935, %v6962
  %v6964 = vcombine.high %v6942, %v6942
  %v6965 = vcombine.high %v6949, %v6949
  %v6966 = vcombine.high %v6956, %v6956
  %v6967 = vcombine.high %v6963, %v6963
  %v6976 = vadd.f32 %v6903, %v6942
  %v6977 = vadd.f32 %v6905, %v6956
  %v6978 = vadd.f32 %v6907, %v6964
  %v6979 = vadd.f32 %v6909, %v6966
  %v6980 = vadd.f32 %v6911, %v6949
  %v6981 = vadd.f32 %v6913, %v6963
  %v6982 = vadd.f32 %v6915, %v6965
  %v6983 = vadd.f32 %v6917, %v6967
  %v6984 = vxor.u32 %v6976, 2147483648
  %v6985 = vxor.u32 %v6977, 2147483648
  %v6986 = vxor.u32 %v6978, 2147483648
  %v6987 = vxor.u32 %v6979, 2147483648
  %v6988 = vxor.u32 %v6980, 2147483648
  %v6989 = vxor.u32 %v6981, 2147483648
  %v6990 = vxor.u32 %v6982, 2147483648
  %v6991 = vxor.u32 %v6983, 2147483648
  %v6992 = vmul.f32 %v6984, 1.442695
  %v6993 = vpow.pop %v6992
  %v6994 = vmul.f32 %v6985, 1.442695
  %v6995 = vpow.pop %v6994
  %v6996 = vmul.f32 %v6986, 1.442695
  %v6997 = vpow.pop %v6996
  %v6998 = vmul.f32 %v6987, 1.442695
  %v6999 = vpow.pop %v6998
  %v7000 = vmul.f32 %v6988, 1.442695
  %v7001 = vpow.pop %v7000
  %v7002 = vmul.f32 %v6989, 1.442695
  %v7003 = vpow.pop %v7002
  %v7004 = vmul.f32 %v6990, 1.442695
  %v7005 = vpow.pop %v7004
  %v7006 = vmul.f32 %v6991, 1.442695
  %v7007 = vpow.pop %v7006
  %v7008 = vadd.f32 %v6993, 1.0
  %v7009 = vadd.f32 %v6995, 1.0
  %v7010 = vadd.f32 %v6997, 1.0
  %v7011 = vadd.f32 %v6999, 1.0
  %v7012 = vadd.f32 %v7001, 1.0
  %v7013 = vadd.f32 %v7003, 1.0
  %v7014 = vadd.f32 %v7005, 1.0
  %v7015 = vadd.f32 %v7007, 1.0
  %v7016 = vrcp.pop %v7008
  %v7017 = vmul.f32 1.0, %v7016
  %v7018 = vrcp.pop %v7009
  %v7019 = vmul.f32 1.0, %v7018
  %v7020 = vrcp.pop %v7010
  %v7021 = vmul.f32 1.0, %v7020
  %v7022 = vrcp.pop %v7011
  %v7023 = vmul.f32 1.0, %v7022
  %v7024 = vrcp.pop %v7012
  %v7025 = vmul.f32 1.0, %v7024
  %v7026 = vrcp.pop %v7013
  %v7027 = vmul.f32 1.0, %v7026
  %v7028 = vrcp.pop %v7014
  %v7029 = vmul.f32 1.0, %v7028
  %v7030 = vrcp.pop %v7015
  %v7031 = vmul.f32 1.0, %v7030
  %v7040 = vrot.slane %v6903, 1
  %v7041 = vrot.slane %v6905, 1
  %v7042 = vrot.slane %v6907, 1
  %v7043 = vrot.slane %v6909, 1
  %v7044 = vrot.slane %v6911, 1
  %v7045 = vrot.slane %v6913, 1
  %v7046 = vrot.slane %v6915, 1
  %v7047 = vrot.slane %v6917, 1
  %v7057 = vcombine.high %v6830, %v6830
  %v7059 = vunpack.c.l.s4 1966171168
  %v7060 = vunpack.c.0.s8 %v7059
  %v7061 = vlaneseq
  %v7062 = vshrl.u32 %v7061, 7
  %v7063 = vsub.s32 %v7060, %v7062
  %v7064 = vrot.slane %v6830, %v7063
  %v7066 = vunpack.c.l.s4 1966171168
  %v7067 = vunpack.c.0.s8 %v7066
  %v7068 = vlaneseq
  %v7069 = vshrl.u32 %v7068, 7
  %v7070 = vsub.s32 %v7067, %v7069
  %v7071 = vrot.slane %v7057, %v7070
  %v7072 = vcombine.high %v7064, %v7064
  %v7073 = vcombine.high %v7071, %v7071
  %v7075 = vunpack.c.l.s4 1966171168
  %v7076 = vunpack.c.0.s8 %v7075
  %v7077 = vlaneseq
  %v7078 = vshrl.u32 %v7077, 7
  %v7079 = vsub.s32 %v7076, %v7078
  %v7080 = vrot.slane %v7064, %v7079
  %v7082 = vunpack.c.l.s4 1966171168
  %v7083 = vunpack.c.0.s8 %v7082
  %v7084 = vlaneseq
  %v7085 = vshrl.u32 %v7084, 7
  %v7086 = vsub.s32 %v7083, %v7085
  %v7087 = vrot.slane %v7071, %v7086
  %v7089 = vunpack.c.l.s4 1966171168
  %v7090 = vunpack.c.0.s8 %v7089
  %v7091 = vlaneseq
  %v7092 = vshrl.u32 %v7091, 7
  %v7093 = vsub.s32 %v7090, %v7092
  %v7094 = vrot.slane %v7072, %v7093
  %v7096 = vunpack.c.l.s4 1966171168
  %v7097 = vunpack.c.0.s8 %v7096
  %v7098 = vlaneseq
  %v7099 = vshrl.u32 %v7098, 7
  %v7100 = vsub.s32 %v7097, %v7099
  %v7101 = vrot.slane %v7073, %v7100
  %v7102 = vcombine.high %v7080, %v7080
  %v7103 = vcombine.high %v7087, %v7087
  %v7104 = vcombine.high %v7094, %v7094
  %v7105 = vcombine.high %v7101, %v7101
  %v7114 = vadd.f32 %v7040, %v7080
  %v7115 = vadd.f32 %v7041, %v7094
  %v7116 = vadd.f32 %v7042, %v7102
  %v7117 = vadd.f32 %v7043, %v7104
  %v7118 = vadd.f32 %v7044, %v7087
  %v7119 = vadd.f32 %v7045, %v7101
  %v7120 = vadd.f32 %v7046, %v7103
  %v7121 = vadd.f32 %v7047, %v7105
  %v7122 = vxor.u32 %v7114, 2147483648
  %v7123 = vxor.u32 %v7115, 2147483648
  %v7124 = vxor.u32 %v7116, 2147483648
  %v7125 = vxor.u32 %v7117, 2147483648
  %v7126 = vxor.u32 %v7118, 2147483648
  %v7127 = vxor.u32 %v7119, 2147483648
  %v7128 = vxor.u32 %v7120, 2147483648
  %v7129 = vxor.u32 %v7121, 2147483648
  %v7130 = vmul.f32 %v7122, 1.442695
  %v7131 = vpow.pop %v7130
  %v7132 = vmul.f32 %v7123, 1.442695
  %v7133 = vpow.pop %v7132
  %v7134 = vmul.f32 %v7124, 1.442695
  %v7135 = vpow.pop %v7134
  %v7136 = vmul.f32 %v7125, 1.442695
  %v7137 = vpow.pop %v7136
  %v7138 = vmul.f32 %v7126, 1.442695
  %v7139 = vpow.pop %v7138
  %v7140 = vmul.f32 %v7127, 1.442695
  %v7141 = vpow.pop %v7140
  %v7142 = vmul.f32 %v7128, 1.442695
  %v7143 = vpow.pop %v7142
  %v7144 = vmul.f32 %v7129, 1.442695
  %v7145 = vpow.pop %v7144
  %v7146 = vadd.f32 %v7131, 1.0
  %v7147 = vadd.f32 %v7133, 1.0
  %v7148 = vadd.f32 %v7135, 1.0
  %v7149 = vadd.f32 %v7137, 1.0
  %v7150 = vadd.f32 %v7139, 1.0
  %v7151 = vadd.f32 %v7141, 1.0
  %v7152 = vadd.f32 %v7143, 1.0
  %v7153 = vadd.f32 %v7145, 1.0
  %v7154 = vrcp.pop %v7146
  %v7155 = vmul.f32 1.0, %v7154
  %v7156 = vrcp.pop %v7147
  %v7157 = vmul.f32 1.0, %v7156
  %v7158 = vrcp.pop %v7148
  %v7159 = vmul.f32 1.0, %v7158
  %v7160 = vrcp.pop %v7149
  %v7161 = vmul.f32 1.0, %v7160
  %v7162 = vrcp.pop %v7150
  %v7163 = vmul.f32 1.0, %v7162
  %v7164 = vrcp.pop %v7151
  %v7165 = vmul.f32 1.0, %v7164
  %v7166 = vrcp.pop %v7152
  %v7167 = vmul.f32 1.0, %v7166
  %v7168 = vrcp.pop %v7153
  %v7169 = vmul.f32 1.0, %v7168
  %v7170 = vadd.f32 %v6899, %v481
  %v7172 = vcombine.high %v7170, %v7170
  %v7174 = vunpack.c.l.s4 1966171168
  %v7175 = vunpack.c.0.s8 %v7174
  %v7176 = vlaneseq
  %v7177 = vshrl.u32 %v7176, 7
  %v7178 = vsub.s32 %v7175, %v7177
  %v7179 = vrot.slane %v7170, %v7178
  %v7181 = vunpack.c.l.s4 1966171168
  %v7182 = vunpack.c.0.s8 %v7181
  %v7183 = vlaneseq
  %v7184 = vshrl.u32 %v7183, 7
  %v7185 = vsub.s32 %v7182, %v7184
  %v7186 = vrot.slane %v7172, %v7185
  %v7187 = vcombine.high %v7179, %v7179
  %v7188 = vcombine.high %v7186, %v7186
  %v7190 = vunpack.c.l.s4 1966171168
  %v7191 = vunpack.c.0.s8 %v7190
  %v7192 = vlaneseq
  %v7193 = vshrl.u32 %v7192, 7
  %v7194 = vsub.s32 %v7191, %v7193
  %v7195 = vrot.slane %v7179, %v7194
  %v7197 = vunpack.c.l.s4 1966171168
  %v7198 = vunpack.c.0.s8 %v7197
  %v7199 = vlaneseq
  %v7200 = vshrl.u32 %v7199, 7
  %v7201 = vsub.s32 %v7198, %v7200
  %v7202 = vrot.slane %v7186, %v7201
  %v7204 = vunpack.c.l.s4 1966171168
  %v7205 = vunpack.c.0.s8 %v7204
  %v7206 = vlaneseq
  %v7207 = vshrl.u32 %v7206, 7
  %v7208 = vsub.s32 %v7205, %v7207
  %v7209 = vrot.slane %v7187, %v7208
  %v7211 = vunpack.c.l.s4 1966171168
  %v7212 = vunpack.c.0.s8 %v7211
  %v7213 = vlaneseq
  %v7214 = vshrl.u32 %v7213, 7
  %v7215 = vsub.s32 %v7212, %v7214
  %v7216 = vrot.slane %v7188, %v7215
  %v7217 = vcombine.high %v7195, %v7195
  %v7218 = vcombine.high %v7202, %v7202
  %v7219 = vcombine.high %v7209, %v7209
  %v7220 = vcombine.high %v7216, %v7216
  %v7229 = vmul.f32 %v7017, %v7195
  %v7230 = vmul.f32 %v7019, %v7209
  %v7231 = vmul.f32 %v7021, %v7217
  %v7232 = vmul.f32 %v7023, %v7219
  %v7233 = vmul.f32 %v7025, %v7202
  %v7234 = vmul.f32 %v7027, %v7216
  %v7235 = vmul.f32 %v7029, %v7218
  %v7236 = vmul.f32 %v7031, %v7220
  %v7237 = vrot.slane %v6903, 2
  %v7238 = vrot.slane %v6905, 2
  %v7239 = vrot.slane %v6907, 2
  %v7240 = vrot.slane %v6909, 2
  %v7241 = vrot.slane %v6911, 2
  %v7242 = vrot.slane %v6913, 2
  %v7243 = vrot.slane %v6915, 2
  %v7244 = vrot.slane %v6917, 2
  %v7253 = vadd.f32 %v7237, %v7229
  %v7254 = vadd.f32 %v7238, %v7230
  %v7255 = vadd.f32 %v7239, %v7231
  %v7256 = vadd.f32 %v7240, %v7232
  %v7257 = vadd.f32 %v7241, %v7233
  %v7258 = vadd.f32 %v7242, %v7234
  %v7259 = vadd.f32 %v7243, %v7235
  %v7260 = vadd.f32 %v7244, %v7236
  %v7261 = vtanh.pop %v7253
  %v7262 = vtanh.pop %v7254
  %v7263 = vtanh.pop %v7255
  %v7264 = vtanh.pop %v7256
  %v7265 = vtanh.pop %v7257
  %v7266 = vtanh.pop %v7258
  %v7267 = vtanh.pop %v7259
  %v7268 = vtanh.pop %v7260
  %v7269 = vsub.f32 %v6687, %v7261
  %v7270 = vsub.f32 %v6688, %v7262
  %v7271 = vsub.f32 %v6689, %v7263
  %v7272 = vsub.f32 %v6690, %v7264
  %v7273 = vsub.f32 %v6691, %v7265
  %v7274 = vsub.f32 %v6692, %v7266
  %v7275 = vsub.f32 %v6693, %v7267
  %v7276 = vsub.f32 %v6694, %v7268
  %v7277 = vmul.f32 %v7155, %v7269
  %v7278 = vmul.f32 %v7157, %v7270
  %v7279 = vmul.f32 %v7159, %v7271
  %v7280 = vmul.f32 %v7161, %v7272
  %v7281 = vmul.f32 %v7163, %v7273
  %v7282 = vmul.f32 %v7165, %v7274
  %v7283 = vmul.f32 %v7167, %v7275
  %v7284 = vmul.f32 %v7169, %v7276
  %v7285 = vadd.f32 %v7261, %v7277
  %v7286 = vadd.f32 %v7262, %v7278
  %v7287 = vadd.f32 %v7263, %v7279
  %v7288 = vadd.f32 %v7264, %v7280
  %v7289 = vadd.f32 %v7265, %v7281
  %v7290 = vadd.f32 %v7266, %v7282
  %v7291 = vadd.f32 %v7267, %v7283
  %v7292 = vadd.f32 %v7268, %v7284
  %7293 = vst [vmem:[%s3 + $0xb] sm:$0x1] %v7285
  %7294 = vst [vmem:[%s3 + $0x1b] sm:$0x1] %v7286
  %7295 = vst [vmem:[%s3 + $0x2b] sm:$0x1] %v7287
  %7296 = vst [vmem:[%s3 + $0x3b] sm:$0x1] %v7288
  %7297 = vst [vmem:[%s3 + $0x4b] sm:$0x1] %v7289
  %7298 = vst [vmem:[%s3 + $0x5b] sm:$0x1] %v7290
  %7299 = vst [vmem:[%s3 + $0x6b] sm:$0x1] %v7291
  %7300 = vst [vmem:[%s3 + $0x7b] sm:$0x1] %v7292
  %v7309 = vcombine.low %v7285, %v7286
  %v7310 = vcombine.low %v7287, %v7288
  %v7311 = vcombine.low %v7289, %v7290
  %v7312 = vcombine.low %v7291, %v7292
  %v7314 = vunpack.c.l.s4 1966171168
  %v7315 = vunpack.c.0.s8 %v7314
  %v7316 = vlaneseq
  %v7317 = vshrl.u32 %v7316, 7
  %v7318 = vsub.s32 %v7315, %v7317
  %v7319 = vrot.slane %v7309, %v7318
  %v7321 = vunpack.c.l.s4 1966171168
  %v7322 = vunpack.c.0.s8 %v7321
  %v7323 = vlaneseq
  %v7324 = vshrl.u32 %v7323, 7
  %v7325 = vsub.s32 %v7322, %v7324
  %v7326 = vrot.slane %v7310, %v7325
  %v7328 = vunpack.c.l.s4 1966171168
  %v7329 = vunpack.c.0.s8 %v7328
  %v7330 = vlaneseq
  %v7331 = vshrl.u32 %v7330, 7
  %v7332 = vsub.s32 %v7329, %v7331
  %v7333 = vrot.slane %v7311, %v7332
  %v7335 = vunpack.c.l.s4 1966171168
  %v7336 = vunpack.c.0.s8 %v7335
  %v7337 = vlaneseq
  %v7338 = vshrl.u32 %v7337, 7
  %v7339 = vsub.s32 %v7336, %v7338
  %v7340 = vrot.slane %v7312, %v7339
  %v7341 = vcombine.low %v7319, %v7326
  %v7342 = vcombine.low %v7333, %v7340
  %v7344 = vunpack.c.l.s4 1966171168
  %v7345 = vunpack.c.0.s8 %v7344
  %v7346 = vlaneseq
  %v7347 = vshrl.u32 %v7346, 7
  %v7348 = vsub.s32 %v7345, %v7347
  %v7349 = vrot.slane %v7341, %v7348
  %v7351 = vunpack.c.l.s4 1966171168
  %v7352 = vunpack.c.0.s8 %v7351
  %v7353 = vlaneseq
  %v7354 = vshrl.u32 %v7353, 7
  %v7355 = vsub.s32 %v7352, %v7354
  %v7356 = vrot.slane %v7342, %v7355
  %v7357 = vcombine.low %v7349, %v7356
  %7359 = vmatprep.subr.mxu0 %v20
  %7360 = vmatpush1.msra.mxu0 %v19
  %7361 = vmatprep.subr.mxu0 %v23
  %7362 = vmatpush1.msra.mxu0 %v22
  %7363 = vmatprep.subr.mxu0 %v26
  %7364 = vmatpush1.msra.mxu0 %v25
  %7365 = vmatprep.subr.mxu0 %v29
  %7366 = vmatpush1.msra.mxu0 %v28
  %7367 = vmatprep.subr.mxu0 %v32
  %7368 = vmatpush1.msra.mxu0 %v31
  %7369 = vmatprep.subr.mxu0 %v35
  %7370 = vmatpush1.msra.mxu0 %v34
  %7371 = vmatprep.subr.mxu0 %v38
  %7372 = vmatpush1.msra.mxu0 %v37
  %7373 = vmatprep.subr.mxu0 %v41
  %7374 = vmatpush1.msra.mxu0 %v40
  %7375 = vmatprep.subr.mxu0 %v44
  %7376 = vmatpush1.msra.mxu0 %v43
  %7377 = vmatprep.subr.mxu0 %v47
  %7378 = vmatpush1.msra.mxu0 %v46
  %7379 = vmatprep.subr.mxu0 %v50
  %7380 = vmatpush1.msra.mxu0 %v49
  %7381 = vmatprep.subr.mxu0 %v53
  %7382 = vmatpush1.msra.mxu0 %v52
  %7383 = vmatprep.subr.mxu0 %v56
  %7384 = vmatpush1.msra.mxu0 %v55
  %7385 = vmatprep.subr.mxu0 %v59
  %7386 = vmatpush1.msra.mxu0 %v58
  %7387 = vmatprep.subr.mxu0 %v62
  %7388 = vmatpush1.msra.mxu0 %v61
  %7389 = vmatprep.subr.mxu0 %v65
  %7390 = vmatpush1.msra.mxu0 %v64
  %7391 = vmatprep.subr.mxu0 0.0
  %7392 = vmatpush1.msra.mxu0 0.0
  %7393 = vmatprep.subr.mxu0 0.0
  %7394 = vmatpush1.msra.mxu0 0.0
  %7395 = vmatprep.subr.mxu0 0.0
  %7396 = vmatpush1.msra.mxu0 0.0
  %7397 = vmatprep.subr.mxu0 0.0
  %7398 = vmatpush1.msra.mxu0 0.0
  %7399 = vmatprep.subr.mxu0 0.0
  %7400 = vmatpush1.msra.mxu0 0.0
  %7401 = vmatprep.subr.mxu0 0.0
  %7402 = vmatpush1.msra.mxu0 0.0
  %7403 = vmatprep.subr.mxu0 0.0
  %7404 = vmatpush1.msra.mxu0 0.0
  %7405 = vmatprep.subr.mxu0 0.0
  %7406 = vmatpush1.msra.mxu0 0.0
  %7407 = vmatprep.subr.mxu0 0.0
  %7408 = vmatpush1.msra.mxu0 0.0
  %7409 = vmatprep.subr.mxu0 0.0
  %7410 = vmatpush1.msra.mxu0 0.0
  %7411 = vmatprep.subr.mxu0 0.0
  %7412 = vmatpush1.msra.mxu0 0.0
  %7413 = vmatprep.subr.mxu0 0.0
  %7414 = vmatpush1.msra.mxu0 0.0
  %7415 = vmatprep.subr.mxu0 0.0
  %7416 = vmatpush1.msra.mxu0 0.0
  %7417 = vmatprep.subr.mxu0 0.0
  %7418 = vmatpush1.msra.mxu0 0.0
  %7419 = vmatprep.subr.mxu0 0.0
  %7420 = vmatpush1.msra.mxu0 0.0
  %7421 = vmatprep.subr.mxu0 0.0
  %7422 = vmatpush1.msra.mxu0 0.0
  %7423 = vmatprep.mubr.f32.mxu0 0.0
  %7424 = vmatmul.mubr.f32.gmra.mrb[0].mxu0 %v7357
  %v7425 = vpop.f32.mrb[0].mxu0
  %v7426 = vadd.f32 0.0, %v7425
  %v7427 = vpop.f32.mrb[0].mxu0
  %v7428 = vadd.f32 0.0, %v7427
  %7429 = vdwg.mxu0
  %7430 = vmatprep.subr.mxu0 0.0
  %7431 = vmatpush1.msra.mxu0 %v21
  %7432 = vmatprep.subr.mxu0 0.0
  %7433 = vmatpush1.msra.mxu0 %v24
  %7434 = vmatprep.subr.mxu0 0.0
  %7435 = vmatpush1.msra.mxu0 %v27
  %7436 = vmatprep.subr.mxu0 0.0
  %7437 = vmatpush1.msra.mxu0 %v30
  %7438 = vmatprep.subr.mxu0 0.0
  %7439 = vmatpush1.msra.mxu0 %v33
  %7440 = vmatprep.subr.mxu0 0.0
  %7441 = vmatpush1.msra.mxu0 %v36
  %7442 = vmatprep.subr.mxu0 0.0
  %7443 = vmatpush1.msra.mxu0 %v39
  %7444 = vmatprep.subr.mxu0 0.0
  %7445 = vmatpush1.msra.mxu0 %v42
  %7446 = vmatprep.subr.mxu0 0.0
  %7447 = vmatpush1.msra.mxu0 %v45
  %7448 = vmatprep.subr.mxu0 0.0
  %7449 = vmatpush1.msra.mxu0 %v48
  %7450 = vmatprep.subr.mxu0 0.0
  %7451 = vmatpush1.msra.mxu0 %v51
  %7452 = vmatprep.subr.mxu0 0.0
  %7453 = vmatpush1.msra.mxu0 %v54
  %7454 = vmatprep.subr.mxu0 0.0
  %7455 = vmatpush1.msra.mxu0 %v57
  %7456 = vmatprep.subr.mxu0 0.0
  %7457 = vmatpush1.msra.mxu0 %v60
  %7458 = vmatprep.subr.mxu0 0.0
  %7459 = vmatpush1.msra.mxu0 %v63
  %7460 = vmatprep.subr.mxu0 0.0
  %7461 = vmatpush1.msra.mxu0 %v66
  %7462 = vmatprep.subr.mxu0 0.0
  %7463 = vmatpush1.msra.mxu0 0.0
  %7464 = vmatprep.subr.mxu0 0.0
  %7465 = vmatpush1.msra.mxu0 0.0
  %7466 = vmatprep.subr.mxu0 0.0
  %7467 = vmatpush1.msra.mxu0 0.0
  %7468 = vmatprep.subr.mxu0 0.0
  %7469 = vmatpush1.msra.mxu0 0.0
  %7470 = vmatprep.subr.mxu0 0.0
  %7471 = vmatpush1.msra.mxu0 0.0
  %7472 = vmatprep.subr.mxu0 0.0
  %7473 = vmatpush1.msra.mxu0 0.0
  %7474 = vmatprep.subr.mxu0 0.0
  %7475 = vmatpush1.msra.mxu0 0.0
  %7476 = vmatprep.subr.mxu0 0.0
  %7477 = vmatpush1.msra.mxu0 0.0
  %7478 = vmatprep.subr.mxu0 0.0
  %7479 = vmatpush1.msra.mxu0 0.0
  %7480 = vmatprep.subr.mxu0 0.0
  %7481 = vmatpush1.msra.mxu0 0.0
  %7482 = vmatprep.subr.mxu0 0.0
  %7483 = vmatpush1.msra.mxu0 0.0
  %7484 = vmatprep.subr.mxu0 0.0
  %7485 = vmatpush1.msra.mxu0 0.0
  %7486 = vmatprep.subr.mxu0 0.0
  %7487 = vmatpush1.msra.mxu0 0.0
  %7488 = vmatprep.subr.mxu0 0.0
  %7489 = vmatpush1.msra.mxu0 0.0
  %7490 = vmatprep.subr.mxu0 0.0
  %7491 = vmatpush1.msra.mxu0 0.0
  %7492 = vmatprep.subr.mxu0 0.0
  %7493 = vmatpush1.msra.mxu0 0.0
  %7494 = vmatprep.mubr.f32.mxu0 0.0
  %7495 = vmatmul.mubr.f32.gmra.mrb[0].mxu0 %v7357
  %v7496 = vpop.f32.mrb[0].mxu0
  %v7497 = vadd.f32 0.0, %v7496
  %v7498 = vpop.f32.mrb[0].mxu0
  %7499 = vdwg.mxu0
  %s7500 = scalar_lea.vmem %s0, 28
  %v7501 = vld [vmem:[%s7500] ss:$8 sm:$0x7]
  %s7502 = scalar_lea.vmem %s0, 76
  %v7503 = vld [vmem:[%s7502] ss:$8 sm:$0x7]
  %s7504 = scalar_lea.vmem %s0, 124
  %v7505 = vld [vmem:[%s7504] ss:$8 sm:$0x7]
  %s7506 = scalar_lea.vmem %s0, 172
  %v7507 = vld [vmem:[%s7506] ss:$8 sm:$0x7]
  %s7508 = scalar_lea.vmem %s0, 220
  %v7509 = vld [vmem:[%s7508] ss:$8 sm:$0x7]
  %s7510 = scalar_lea.vmem %s0, 268
  %v7511 = vld [vmem:[%s7510] ss:$8 sm:$0x7]
  %s7512 = scalar_lea.vmem %s0, 316
  %v7513 = vld [vmem:[%s7512] ss:$8 sm:$0x7]
  %s7514 = scalar_lea.vmem %s0, 364
  %v7515 = vld [vmem:[%s7514] ss:$8 sm:$0x7]
  %v7517 = vcombine.high %v7426, %v7426
  %v7519 = vunpack.c.l.s4 1966171168
  %v7520 = vunpack.c.0.s8 %v7519
  %v7521 = vlaneseq
  %v7522 = vshrl.u32 %v7521, 7
  %v7523 = vsub.s32 %v7520, %v7522
  %v7524 = vrot.slane %v7426, %v7523
  %v7526 = vunpack.c.l.s4 1966171168
  %v7527 = vunpack.c.0.s8 %v7526
  %v7528 = vlaneseq
  %v7529 = vshrl.u32 %v7528, 7
  %v7530 = vsub.s32 %v7527, %v7529
  %v7531 = vrot.slane %v7517, %v7530
  %v7532 = vcombine.high %v7524, %v7524
  %v7533 = vcombine.high %v7531, %v7531
  %v7535 = vunpack.c.l.s4 1966171168
  %v7536 = vunpack.c.0.s8 %v7535
  %v7537 = vlaneseq
  %v7538 = vshrl.u32 %v7537, 7
  %v7539 = vsub.s32 %v7536, %v7538
  %v7540 = vrot.slane %v7524, %v7539
  %v7542 = vunpack.c.l.s4 1966171168
  %v7543 = vunpack.c.0.s8 %v7542
  %v7544 = vlaneseq
  %v7545 = vshrl.u32 %v7544, 7
  %v7546 = vsub.s32 %v7543, %v7545
  %v7547 = vrot.slane %v7531, %v7546
  %v7549 = vunpack.c.l.s4 1966171168
  %v7550 = vunpack.c.0.s8 %v7549
  %v7551 = vlaneseq
  %v7552 = vshrl.u32 %v7551, 7
  %v7553 = vsub.s32 %v7550, %v7552
  %v7554 = vrot.slane %v7532, %v7553
  %v7556 = vunpack.c.l.s4 1966171168
  %v7557 = vunpack.c.0.s8 %v7556
  %v7558 = vlaneseq
  %v7559 = vshrl.u32 %v7558, 7
  %v7560 = vsub.s32 %v7557, %v7559
  %v7561 = vrot.slane %v7533, %v7560
  %v7562 = vcombine.high %v7540, %v7540
  %v7563 = vcombine.high %v7547, %v7547
  %v7564 = vcombine.high %v7554, %v7554
  %v7565 = vcombine.high %v7561, %v7561
  %v7574 = vadd.f32 %v7501, %v7540
  %v7575 = vadd.f32 %v7503, %v7554
  %v7576 = vadd.f32 %v7505, %v7562
  %v7577 = vadd.f32 %v7507, %v7564
  %v7578 = vadd.f32 %v7509, %v7547
  %v7579 = vadd.f32 %v7511, %v7561
  %v7580 = vadd.f32 %v7513, %v7563
  %v7581 = vadd.f32 %v7515, %v7565
  %v7582 = vxor.u32 %v7574, 2147483648
  %v7583 = vxor.u32 %v7575, 2147483648
  %v7584 = vxor.u32 %v7576, 2147483648
  %v7585 = vxor.u32 %v7577, 2147483648
  %v7586 = vxor.u32 %v7578, 2147483648
  %v7587 = vxor.u32 %v7579, 2147483648
  %v7588 = vxor.u32 %v7580, 2147483648
  %v7589 = vxor.u32 %v7581, 2147483648
  %v7590 = vmul.f32 %v7582, 1.442695
  %v7591 = vpow.pop %v7590
  %v7592 = vmul.f32 %v7583, 1.442695
  %v7593 = vpow.pop %v7592
  %v7594 = vmul.f32 %v7584, 1.442695
  %v7595 = vpow.pop %v7594
  %v7596 = vmul.f32 %v7585, 1.442695
  %v7597 = vpow.pop %v7596
  %v7598 = vmul.f32 %v7586, 1.442695
  %v7599 = vpow.pop %v7598
  %v7600 = vmul.f32 %v7587, 1.442695
  %v7601 = vpow.pop %v7600
  %v7602 = vmul.f32 %v7588, 1.442695
  %v7603 = vpow.pop %v7602
  %v7604 = vmul.f32 %v7589, 1.442695
  %v7605 = vpow.pop %v7604
  %v7606 = vadd.f32 %v7591, 1.0
  %v7607 = vadd.f32 %v7593, 1.0
  %v7608 = vadd.f32 %v7595, 1.0
  %v7609 = vadd.f32 %v7597, 1.0
  %v7610 = vadd.f32 %v7599, 1.0
  %v7611 = vadd.f32 %v7601, 1.0
  %v7612 = vadd.f32 %v7603, 1.0
  %v7613 = vadd.f32 %v7605, 1.0
  %v7614 = vrcp.pop %v7606
  %v7615 = vmul.f32 1.0, %v7614
  %v7616 = vrcp.pop %v7607
  %v7617 = vmul.f32 1.0, %v7616
  %v7618 = vrcp.pop %v7608
  %v7619 = vmul.f32 1.0, %v7618
  %v7620 = vrcp.pop %v7609
  %v7621 = vmul.f32 1.0, %v7620
  %v7622 = vrcp.pop %v7610
  %v7623 = vmul.f32 1.0, %v7622
  %v7624 = vrcp.pop %v7611
  %v7625 = vmul.f32 1.0, %v7624
  %v7626 = vrcp.pop %v7612
  %v7627 = vmul.f32 1.0, %v7626
  %v7628 = vrcp.pop %v7613
  %v7629 = vmul.f32 1.0, %v7628
  %v7638 = vrot.slane %v7501, 1
  %v7639 = vrot.slane %v7503, 1
  %v7640 = vrot.slane %v7505, 1
  %v7641 = vrot.slane %v7507, 1
  %v7642 = vrot.slane %v7509, 1
  %v7643 = vrot.slane %v7511, 1
  %v7644 = vrot.slane %v7513, 1
  %v7645 = vrot.slane %v7515, 1
  %v7655 = vcombine.high %v7428, %v7428
  %v7657 = vunpack.c.l.s4 1966171168
  %v7658 = vunpack.c.0.s8 %v7657
  %v7659 = vlaneseq
  %v7660 = vshrl.u32 %v7659, 7
  %v7661 = vsub.s32 %v7658, %v7660
  %v7662 = vrot.slane %v7428, %v7661
  %v7664 = vunpack.c.l.s4 1966171168
  %v7665 = vunpack.c.0.s8 %v7664
  %v7666 = vlaneseq
  %v7667 = vshrl.u32 %v7666, 7
  %v7668 = vsub.s32 %v7665, %v7667
  %v7669 = vrot.slane %v7655, %v7668
  %v7670 = vcombine.high %v7662, %v7662
  %v7671 = vcombine.high %v7669, %v7669
  %v7673 = vunpack.c.l.s4 1966171168
  %v7674 = vunpack.c.0.s8 %v7673
  %v7675 = vlaneseq
  %v7676 = vshrl.u32 %v7675, 7
  %v7677 = vsub.s32 %v7674, %v7676
  %v7678 = vrot.slane %v7662, %v7677
  %v7680 = vunpack.c.l.s4 1966171168
  %v7681 = vunpack.c.0.s8 %v7680
  %v7682 = vlaneseq
  %v7683 = vshrl.u32 %v7682, 7
  %v7684 = vsub.s32 %v7681, %v7683
  %v7685 = vrot.slane %v7669, %v7684
  %v7687 = vunpack.c.l.s4 1966171168
  %v7688 = vunpack.c.0.s8 %v7687
  %v7689 = vlaneseq
  %v7690 = vshrl.u32 %v7689, 7
  %v7691 = vsub.s32 %v7688, %v7690
  %v7692 = vrot.slane %v7670, %v7691
  %v7694 = vunpack.c.l.s4 1966171168
  %v7695 = vunpack.c.0.s8 %v7694
  %v7696 = vlaneseq
  %v7697 = vshrl.u32 %v7696, 7
  %v7698 = vsub.s32 %v7695, %v7697
  %v7699 = vrot.slane %v7671, %v7698
  %v7700 = vcombine.high %v7678, %v7678
  %v7701 = vcombine.high %v7685, %v7685
  %v7702 = vcombine.high %v7692, %v7692
  %v7703 = vcombine.high %v7699, %v7699
  %v7712 = vadd.f32 %v7638, %v7678
  %v7713 = vadd.f32 %v7639, %v7692
  %v7714 = vadd.f32 %v7640, %v7700
  %v7715 = vadd.f32 %v7641, %v7702
  %v7716 = vadd.f32 %v7642, %v7685
  %v7717 = vadd.f32 %v7643, %v7699
  %v7718 = vadd.f32 %v7644, %v7701
  %v7719 = vadd.f32 %v7645, %v7703
  %v7720 = vxor.u32 %v7712, 2147483648
  %v7721 = vxor.u32 %v7713, 2147483648
  %v7722 = vxor.u32 %v7714, 2147483648
  %v7723 = vxor.u32 %v7715, 2147483648
  %v7724 = vxor.u32 %v7716, 2147483648
  %v7725 = vxor.u32 %v7717, 2147483648
  %v7726 = vxor.u32 %v7718, 2147483648
  %v7727 = vxor.u32 %v7719, 2147483648
  %v7728 = vmul.f32 %v7720, 1.442695
  %v7729 = vpow.pop %v7728
  %v7730 = vmul.f32 %v7721, 1.442695
  %v7731 = vpow.pop %v7730
  %v7732 = vmul.f32 %v7722, 1.442695
  %v7733 = vpow.pop %v7732
  %v7734 = vmul.f32 %v7723, 1.442695
  %v7735 = vpow.pop %v7734
  %v7736 = vmul.f32 %v7724, 1.442695
  %v7737 = vpow.pop %v7736
  %v7738 = vmul.f32 %v7725, 1.442695
  %v7739 = vpow.pop %v7738
  %v7740 = vmul.f32 %v7726, 1.442695
  %v7741 = vpow.pop %v7740
  %v7742 = vmul.f32 %v7727, 1.442695
  %v7743 = vpow.pop %v7742
  %v7744 = vadd.f32 %v7729, 1.0
  %v7745 = vadd.f32 %v7731, 1.0
  %v7746 = vadd.f32 %v7733, 1.0
  %v7747 = vadd.f32 %v7735, 1.0
  %v7748 = vadd.f32 %v7737, 1.0
  %v7749 = vadd.f32 %v7739, 1.0
  %v7750 = vadd.f32 %v7741, 1.0
  %v7751 = vadd.f32 %v7743, 1.0
  %v7752 = vrcp.pop %v7744
  %v7753 = vmul.f32 1.0, %v7752
  %v7754 = vrcp.pop %v7745
  %v7755 = vmul.f32 1.0, %v7754
  %v7756 = vrcp.pop %v7746
  %v7757 = vmul.f32 1.0, %v7756
  %v7758 = vrcp.pop %v7747
  %v7759 = vmul.f32 1.0, %v7758
  %v7760 = vrcp.pop %v7748
  %v7761 = vmul.f32 1.0, %v7760
  %v7762 = vrcp.pop %v7749
  %v7763 = vmul.f32 1.0, %v7762
  %v7764 = vrcp.pop %v7750
  %v7765 = vmul.f32 1.0, %v7764
  %v7766 = vrcp.pop %v7751
  %v7767 = vmul.f32 1.0, %v7766
  %v7768 = vadd.f32 %v7497, %v481
  %v7770 = vcombine.high %v7768, %v7768
  %v7772 = vunpack.c.l.s4 1966171168
  %v7773 = vunpack.c.0.s8 %v7772
  %v7774 = vlaneseq
  %v7775 = vshrl.u32 %v7774, 7
  %v7776 = vsub.s32 %v7773, %v7775
  %v7777 = vrot.slane %v7768, %v7776
  %v7779 = vunpack.c.l.s4 1966171168
  %v7780 = vunpack.c.0.s8 %v7779
  %v7781 = vlaneseq
  %v7782 = vshrl.u32 %v7781, 7
  %v7783 = vsub.s32 %v7780, %v7782
  %v7784 = vrot.slane %v7770, %v7783
  %v7785 = vcombine.high %v7777, %v7777
  %v7786 = vcombine.high %v7784, %v7784
  %v7788 = vunpack.c.l.s4 1966171168
  %v7789 = vunpack.c.0.s8 %v7788
  %v7790 = vlaneseq
  %v7791 = vshrl.u32 %v7790, 7
  %v7792 = vsub.s32 %v7789, %v7791
  %v7793 = vrot.slane %v7777, %v7792
  %v7795 = vunpack.c.l.s4 1966171168
  %v7796 = vunpack.c.0.s8 %v7795
  %v7797 = vlaneseq
  %v7798 = vshrl.u32 %v7797, 7
  %v7799 = vsub.s32 %v7796, %v7798
  %v7800 = vrot.slane %v7784, %v7799
  %v7802 = vunpack.c.l.s4 1966171168
  %v7803 = vunpack.c.0.s8 %v7802
  %v7804 = vlaneseq
  %v7805 = vshrl.u32 %v7804, 7
  %v7806 = vsub.s32 %v7803, %v7805
  %v7807 = vrot.slane %v7785, %v7806
  %v7809 = vunpack.c.l.s4 1966171168
  %v7810 = vunpack.c.0.s8 %v7809
  %v7811 = vlaneseq
  %v7812 = vshrl.u32 %v7811, 7
  %v7813 = vsub.s32 %v7810, %v7812
  %v7814 = vrot.slane %v7786, %v7813
  %v7815 = vcombine.high %v7793, %v7793
  %v7816 = vcombine.high %v7800, %v7800
  %v7817 = vcombine.high %v7807, %v7807
  %v7818 = vcombine.high %v7814, %v7814
  %v7827 = vmul.f32 %v7615, %v7793
  %v7828 = vmul.f32 %v7617, %v7807
  %v7829 = vmul.f32 %v7619, %v7815
  %v7830 = vmul.f32 %v7621, %v7817
  %v7831 = vmul.f32 %v7623, %v7800
  %v7832 = vmul.f32 %v7625, %v7814
  %v7833 = vmul.f32 %v7627, %v7816
  %v7834 = vmul.f32 %v7629, %v7818
  %v7835 = vrot.slane %v7501, 2
  %v7836 = vrot.slane %v7503, 2
  %v7837 = vrot.slane %v7505, 2
  %v7838 = vrot.slane %v7507, 2
  %v7839 = vrot.slane %v7509, 2
  %v7840 = vrot.slane %v7511, 2
  %v7841 = vrot.slane %v7513, 2
  %v7842 = vrot.slane %v7515, 2
  %v7851 = vadd.f32 %v7835, %v7827
  %v7852 = vadd.f32 %v7836, %v7828
  %v7853 = vadd.f32 %v7837, %v7829
  %v7854 = vadd.f32 %v7838, %v7830
  %v7855 = vadd.f32 %v7839, %v7831
  %v7856 = vadd.f32 %v7840, %v7832
  %v7857 = vadd.f32 %v7841, %v7833
  %v7858 = vadd.f32 %v7842, %v7834
  %v7859 = vtanh.pop %v7851
  %v7860 = vtanh.pop %v7852
  %v7861 = vtanh.pop %v7853
  %v7862 = vtanh.pop %v7854
  %v7863 = vtanh.pop %v7855
  %v7864 = vtanh.pop %v7856
  %v7865 = vtanh.pop %v7857
  %v7866 = vtanh.pop %v7858
  %v7867 = vsub.f32 %v7285, %v7859
  %v7868 = vsub.f32 %v7286, %v7860
  %v7869 = vsub.f32 %v7287, %v7861
  %v7870 = vsub.f32 %v7288, %v7862
  %v7871 = vsub.f32 %v7289, %v7863
  %v7872 = vsub.f32 %v7290, %v7864
  %v7873 = vsub.f32 %v7291, %v7865
  %v7874 = vsub.f32 %v7292, %v7866
  %v7875 = vmul.f32 %v7753, %v7867
  %v7876 = vmul.f32 %v7755, %v7868
  %v7877 = vmul.f32 %v7757, %v7869
  %v7878 = vmul.f32 %v7759, %v7870
  %v7879 = vmul.f32 %v7761, %v7871
  %v7880 = vmul.f32 %v7763, %v7872
  %v7881 = vmul.f32 %v7765, %v7873
  %v7882 = vmul.f32 %v7767, %v7874
  %v7883 = vadd.f32 %v7859, %v7875
  %v7884 = vadd.f32 %v7860, %v7876
  %v7885 = vadd.f32 %v7861, %v7877
  %v7886 = vadd.f32 %v7862, %v7878
  %v7887 = vadd.f32 %v7863, %v7879
  %v7888 = vadd.f32 %v7864, %v7880
  %v7889 = vadd.f32 %v7865, %v7881
  %v7890 = vadd.f32 %v7866, %v7882
  %7891 = vst [vmem:[%s3 + $0xc] sm:$0x1] %v7883
  %7892 = vst [vmem:[%s3 + $0x1c] sm:$0x1] %v7884
  %7893 = vst [vmem:[%s3 + $0x2c] sm:$0x1] %v7885
  %7894 = vst [vmem:[%s3 + $0x3c] sm:$0x1] %v7886
  %7895 = vst [vmem:[%s3 + $0x4c] sm:$0x1] %v7887
  %7896 = vst [vmem:[%s3 + $0x5c] sm:$0x1] %v7888
  %7897 = vst [vmem:[%s3 + $0x6c] sm:$0x1] %v7889
  %7898 = vst [vmem:[%s3 + $0x7c] sm:$0x1] %v7890
  %v7907 = vcombine.low %v7883, %v7884
  %v7908 = vcombine.low %v7885, %v7886
  %v7909 = vcombine.low %v7887, %v7888
  %v7910 = vcombine.low %v7889, %v7890
  %v7912 = vunpack.c.l.s4 1966171168
  %v7913 = vunpack.c.0.s8 %v7912
  %v7914 = vlaneseq
  %v7915 = vshrl.u32 %v7914, 7
  %v7916 = vsub.s32 %v7913, %v7915
  %v7917 = vrot.slane %v7907, %v7916
  %v7919 = vunpack.c.l.s4 1966171168
  %v7920 = vunpack.c.0.s8 %v7919
  %v7921 = vlaneseq
  %v7922 = vshrl.u32 %v7921, 7
  %v7923 = vsub.s32 %v7920, %v7922
  %v7924 = vrot.slane %v7908, %v7923
  %v7926 = vunpack.c.l.s4 1966171168
  %v7927 = vunpack.c.0.s8 %v7926
  %v7928 = vlaneseq
  %v7929 = vshrl.u32 %v7928, 7
  %v7930 = vsub.s32 %v7927, %v7929
  %v7931 = vrot.slane %v7909, %v7930
  %v7933 = vunpack.c.l.s4 1966171168
  %v7934 = vunpack.c.0.s8 %v7933
  %v7935 = vlaneseq
  %v7936 = vshrl.u32 %v7935, 7
  %v7937 = vsub.s32 %v7934, %v7936
  %v7938 = vrot.slane %v7910, %v7937
  %v7939 = vcombine.low %v7917, %v7924
  %v7940 = vcombine.low %v7931, %v7938
  %v7942 = vunpack.c.l.s4 1966171168
  %v7943 = vunpack.c.0.s8 %v7942
  %v7944 = vlaneseq
  %v7945 = vshrl.u32 %v7944, 7
  %v7946 = vsub.s32 %v7943, %v7945
  %v7947 = vrot.slane %v7939, %v7946
  %v7949 = vunpack.c.l.s4 1966171168
  %v7950 = vunpack.c.0.s8 %v7949
  %v7951 = vlaneseq
  %v7952 = vshrl.u32 %v7951, 7
  %v7953 = vsub.s32 %v7950, %v7952
  %v7954 = vrot.slane %v7940, %v7953
  %v7955 = vcombine.low %v7947, %v7954
  %7957 = vmatprep.subr.mxu0 %v20
  %7958 = vmatpush1.msra.mxu0 %v19
  %7959 = vmatprep.subr.mxu0 %v23
  %7960 = vmatpush1.msra.mxu0 %v22
  %7961 = vmatprep.subr.mxu0 %v26
  %7962 = vmatpush1.msra.mxu0 %v25
  %7963 = vmatprep.subr.mxu0 %v29
  %7964 = vmatpush1.msra.mxu0 %v28
  %7965 = vmatprep.subr.mxu0 %v32
  %7966 = vmatpush1.msra.mxu0 %v31
  %7967 = vmatprep.subr.mxu0 %v35
  %7968 = vmatpush1.msra.mxu0 %v34
  %7969 = vmatprep.subr.mxu0 %v38
  %7970 = vmatpush1.msra.mxu0 %v37
  %7971 = vmatprep.subr.mxu0 %v41
  %7972 = vmatpush1.msra.mxu0 %v40
  %7973 = vmatprep.subr.mxu0 %v44
  %7974 = vmatpush1.msra.mxu0 %v43
  %7975 = vmatprep.subr.mxu0 %v47
  %7976 = vmatpush1.msra.mxu0 %v46
  %7977 = vmatprep.subr.mxu0 %v50
  %7978 = vmatpush1.msra.mxu0 %v49
  %7979 = vmatprep.subr.mxu0 %v53
  %7980 = vmatpush1.msra.mxu0 %v52
  %7981 = vmatprep.subr.mxu0 %v56
  %7982 = vmatpush1.msra.mxu0 %v55
  %7983 = vmatprep.subr.mxu0 %v59
  %7984 = vmatpush1.msra.mxu0 %v58
  %7985 = vmatprep.subr.mxu0 %v62
  %7986 = vmatpush1.msra.mxu0 %v61
  %7987 = vmatprep.subr.mxu0 %v65
  %7988 = vmatpush1.msra.mxu0 %v64
  %7989 = vmatprep.subr.mxu0 0.0
  %7990 = vmatpush1.msra.mxu0 0.0
  %7991 = vmatprep.subr.mxu0 0.0
  %7992 = vmatpush1.msra.mxu0 0.0
  %7993 = vmatprep.subr.mxu0 0.0
  %7994 = vmatpush1.msra.mxu0 0.0
  %7995 = vmatprep.subr.mxu0 0.0
  %7996 = vmatpush1.msra.mxu0 0.0
  %7997 = vmatprep.subr.mxu0 0.0
  %7998 = vmatpush1.msra.mxu0 0.0
  %7999 = vmatprep.subr.mxu0 0.0
  %8000 = vmatpush1.msra.mxu0 0.0
  %8001 = vmatprep.subr.mxu0 0.0
  %8002 = vmatpush1.msra.mxu0 0.0
  %8003 = vmatprep.subr.mxu0 0.0
  %8004 = vmatpush1.msra.mxu0 0.0
  %8005 = vmatprep.subr.mxu0 0.0
  %8006 = vmatpush1.msra.mxu0 0.0
  %8007 = vmatprep.subr.mxu0 0.0
  %8008 = vmatpush1.msra.mxu0 0.0
  %8009 = vmatprep.subr.mxu0 0.0
  %8010 = vmatpush1.msra.mxu0 0.0
  %8011 = vmatprep.subr.mxu0 0.0
  %8012 = vmatpush1.msra.mxu0 0.0
  %8013 = vmatprep.subr.mxu0 0.0
  %8014 = vmatpush1.msra.mxu0 0.0
  %8015 = vmatprep.subr.mxu0 0.0
  %8016 = vmatpush1.msra.mxu0 0.0
  %8017 = vmatprep.subr.mxu0 0.0
  %8018 = vmatpush1.msra.mxu0 0.0
  %8019 = vmatprep.subr.mxu0 0.0
  %8020 = vmatpush1.msra.mxu0 0.0
  %8021 = vmatprep.mubr.f32.mxu0 0.0
  %8022 = vmatmul.mubr.f32.gmra.mrb[0].mxu0 %v7955
  %v8023 = vpop.f32.mrb[0].mxu0
  %v8024 = vadd.f32 0.0, %v8023
  %v8025 = vpop.f32.mrb[0].mxu0
  %v8026 = vadd.f32 0.0, %v8025
  %8027 = vdwg.mxu0
  %8028 = vmatprep.subr.mxu0 0.0
  %8029 = vmatpush1.msra.mxu0 %v21
  %8030 = vmatprep.subr.mxu0 0.0
  %8031 = vmatpush1.msra.mxu0 %v24
  %8032 = vmatprep.subr.mxu0 0.0
  %8033 = vmatpush1.msra.mxu0 %v27
  %8034 = vmatprep.subr.mxu0 0.0
  %8035 = vmatpush1.msra.mxu0 %v30
  %8036 = vmatprep.subr.mxu0 0.0
  %8037 = vmatpush1.msra.mxu0 %v33
  %8038 = vmatprep.subr.mxu0 0.0
  %8039 = vmatpush1.msra.mxu0 %v36
  %8040 = vmatprep.subr.mxu0 0.0
  %8041 = vmatpush1.msra.mxu0 %v39
  %8042 = vmatprep.subr.mxu0 0.0
  %8043 = vmatpush1.msra.mxu0 %v42
  %8044 = vmatprep.subr.mxu0 0.0
  %8045 = vmatpush1.msra.mxu0 %v45
  %8046 = vmatprep.subr.mxu0 0.0
  %8047 = vmatpush1.msra.mxu0 %v48
  %8048 = vmatprep.subr.mxu0 0.0
  %8049 = vmatpush1.msra.mxu0 %v51
  %8050 = vmatprep.subr.mxu0 0.0
  %8051 = vmatpush1.msra.mxu0 %v54
  %8052 = vmatprep.subr.mxu0 0.0
  %8053 = vmatpush1.msra.mxu0 %v57
  %8054 = vmatprep.subr.mxu0 0.0
  %8055 = vmatpush1.msra.mxu0 %v60
  %8056 = vmatprep.subr.mxu0 0.0
  %8057 = vmatpush1.msra.mxu0 %v63
  %8058 = vmatprep.subr.mxu0 0.0
  %8059 = vmatpush1.msra.mxu0 %v66
  %8060 = vmatprep.subr.mxu0 0.0
  %8061 = vmatpush1.msra.mxu0 0.0
  %8062 = vmatprep.subr.mxu0 0.0
  %8063 = vmatpush1.msra.mxu0 0.0
  %8064 = vmatprep.subr.mxu0 0.0
  %8065 = vmatpush1.msra.mxu0 0.0
  %8066 = vmatprep.subr.mxu0 0.0
  %8067 = vmatpush1.msra.mxu0 0.0
  %8068 = vmatprep.subr.mxu0 0.0
  %8069 = vmatpush1.msra.mxu0 0.0
  %8070 = vmatprep.subr.mxu0 0.0
  %8071 = vmatpush1.msra.mxu0 0.0
  %8072 = vmatprep.subr.mxu0 0.0
  %8073 = vmatpush1.msra.mxu0 0.0
  %8074 = vmatprep.subr.mxu0 0.0
  %8075 = vmatpush1.msra.mxu0 0.0
  %8076 = vmatprep.subr.mxu0 0.0
  %8077 = vmatpush1.msra.mxu0 0.0
  %8078 = vmatprep.subr.mxu0 0.0
  %8079 = vmatpush1.msra.mxu0 0.0
  %8080 = vmatprep.subr.mxu0 0.0
  %8081 = vmatpush1.msra.mxu0 0.0
  %8082 = vmatprep.subr.mxu0 0.0
  %8083 = vmatpush1.msra.mxu0 0.0
  %8084 = vmatprep.subr.mxu0 0.0
  %8085 = vmatpush1.msra.mxu0 0.0
  %8086 = vmatprep.subr.mxu0 0.0
  %8087 = vmatpush1.msra.mxu0 0.0
  %8088 = vmatprep.subr.mxu0 0.0
  %8089 = vmatpush1.msra.mxu0 0.0
  %8090 = vmatprep.subr.mxu0 0.0
  %8091 = vmatpush1.msra.mxu0 0.0
  %8092 = vmatprep.mubr.f32.mxu0 0.0
  %8093 = vmatmul.mubr.f32.gmra.mrb[0].mxu0 %v7955
  %v8094 = vpop.f32.mrb[0].mxu0
  %v8095 = vadd.f32 0.0, %v8094
  %v8096 = vpop.f32.mrb[0].mxu0
  %8097 = vdwg.mxu0
  %s8098 = scalar_lea.vmem %s0, 29
  %v8099 = vld [vmem:[%s8098] ss:$8 sm:$0x7]
  %s8100 = scalar_lea.vmem %s0, 77
  %v8101 = vld [vmem:[%s8100] ss:$8 sm:$0x7]
  %s8102 = scalar_lea.vmem %s0, 125
  %v8103 = vld [vmem:[%s8102] ss:$8 sm:$0x7]
  %s8104 = scalar_lea.vmem %s0, 173
  %v8105 = vld [vmem:[%s8104] ss:$8 sm:$0x7]
  %s8106 = scalar_lea.vmem %s0, 221
  %v8107 = vld [vmem:[%s8106] ss:$8 sm:$0x7]
  %s8108 = scalar_lea.vmem %s0, 269
  %v8109 = vld [vmem:[%s8108] ss:$8 sm:$0x7]
  %s8110 = scalar_lea.vmem %s0, 317
  %v8111 = vld [vmem:[%s8110] ss:$8 sm:$0x7]
  %s8112 = scalar_lea.vmem %s0, 365
  %v8113 = vld [vmem:[%s8112] ss:$8 sm:$0x7]
  %v8115 = vcombine.high %v8024, %v8024
  %v8117 = vunpack.c.l.s4 1966171168
  %v8118 = vunpack.c.0.s8 %v8117
  %v8119 = vlaneseq
  %v8120 = vshrl.u32 %v8119, 7
  %v8121 = vsub.s32 %v8118, %v8120
  %v8122 = vrot.slane %v8024, %v8121
  %v8124 = vunpack.c.l.s4 1966171168
  %v8125 = vunpack.c.0.s8 %v8124
  %v8126 = vlaneseq
  %v8127 = vshrl.u32 %v8126, 7
  %v8128 = vsub.s32 %v8125, %v8127
  %v8129 = vrot.slane %v8115, %v8128
  %v8130 = vcombine.high %v8122, %v8122
  %v8131 = vcombine.high %v8129, %v8129
  %v8133 = vunpack.c.l.s4 1966171168
  %v8134 = vunpack.c.0.s8 %v8133
  %v8135 = vlaneseq
  %v8136 = vshrl.u32 %v8135, 7
  %v8137 = vsub.s32 %v8134, %v8136
  %v8138 = vrot.slane %v8122, %v8137
  %v8140 = vunpack.c.l.s4 1966171168
  %v8141 = vunpack.c.0.s8 %v8140
  %v8142 = vlaneseq
  %v8143 = vshrl.u32 %v8142, 7
  %v8144 = vsub.s32 %v8141, %v8143
  %v8145 = vrot.slane %v8129, %v8144
  %v8147 = vunpack.c.l.s4 1966171168
  %v8148 = vunpack.c.0.s8 %v8147
  %v8149 = vlaneseq
  %v8150 = vshrl.u32 %v8149, 7
  %v8151 = vsub.s32 %v8148, %v8150
  %v8152 = vrot.slane %v8130, %v8151
  %v8154 = vunpack.c.l.s4 1966171168
  %v8155 = vunpack.c.0.s8 %v8154
  %v8156 = vlaneseq
  %v8157 = vshrl.u32 %v8156, 7
  %v8158 = vsub.s32 %v8155, %v8157
  %v8159 = vrot.slane %v8131, %v8158
  %v8160 = vcombine.high %v8138, %v8138
  %v8161 = vcombine.high %v8145, %v8145
  %v8162 = vcombine.high %v8152, %v8152
  %v8163 = vcombine.high %v8159, %v8159
  %v8172 = vadd.f32 %v8099, %v8138
  %v8173 = vadd.f32 %v8101, %v8152
  %v8174 = vadd.f32 %v8103, %v8160
  %v8175 = vadd.f32 %v8105, %v8162
  %v8176 = vadd.f32 %v8107, %v8145
  %v8177 = vadd.f32 %v8109, %v8159
  %v8178 = vadd.f32 %v8111, %v8161
  %v8179 = vadd.f32 %v8113, %v8163
  %v8180 = vxor.u32 %v8172, 2147483648
  %v8181 = vxor.u32 %v8173, 2147483648
  %v8182 = vxor.u32 %v8174, 2147483648
  %v8183 = vxor.u32 %v8175, 2147483648
  %v8184 = vxor.u32 %v8176, 2147483648
  %v8185 = vxor.u32 %v8177, 2147483648
  %v8186 = vxor.u32 %v8178, 2147483648
  %v8187 = vxor.u32 %v8179, 2147483648
  %v8188 = vmul.f32 %v8180, 1.442695
  %v8189 = vpow.pop %v8188
  %v8190 = vmul.f32 %v8181, 1.442695
  %v8191 = vpow.pop %v8190
  %v8192 = vmul.f32 %v8182, 1.442695
  %v8193 = vpow.pop %v8192
  %v8194 = vmul.f32 %v8183, 1.442695
  %v8195 = vpow.pop %v8194
  %v8196 = vmul.f32 %v8184, 1.442695
  %v8197 = vpow.pop %v8196
  %v8198 = vmul.f32 %v8185, 1.442695
  %v8199 = vpow.pop %v8198
  %v8200 = vmul.f32 %v8186, 1.442695
  %v8201 = vpow.pop %v8200
  %v8202 = vmul.f32 %v8187, 1.442695
  %v8203 = vpow.pop %v8202
  %v8204 = vadd.f32 %v8189, 1.0
  %v8205 = vadd.f32 %v8191, 1.0
  %v8206 = vadd.f32 %v8193, 1.0
  %v8207 = vadd.f32 %v8195, 1.0
  %v8208 = vadd.f32 %v8197, 1.0
  %v8209 = vadd.f32 %v8199, 1.0
  %v8210 = vadd.f32 %v8201, 1.0
  %v8211 = vadd.f32 %v8203, 1.0
  %v8212 = vrcp.pop %v8204
  %v8213 = vmul.f32 1.0, %v8212
  %v8214 = vrcp.pop %v8205
  %v8215 = vmul.f32 1.0, %v8214
  %v8216 = vrcp.pop %v8206
  %v8217 = vmul.f32 1.0, %v8216
  %v8218 = vrcp.pop %v8207
  %v8219 = vmul.f32 1.0, %v8218
  %v8220 = vrcp.pop %v8208
  %v8221 = vmul.f32 1.0, %v8220
  %v8222 = vrcp.pop %v8209
  %v8223 = vmul.f32 1.0, %v8222
  %v8224 = vrcp.pop %v8210
  %v8225 = vmul.f32 1.0, %v8224
  %v8226 = vrcp.pop %v8211
  %v8227 = vmul.f32 1.0, %v8226
  %v8236 = vrot.slane %v8099, 1
  %v8237 = vrot.slane %v8101, 1
  %v8238 = vrot.slane %v8103, 1
  %v8239 = vrot.slane %v8105, 1
  %v8240 = vrot.slane %v8107, 1
  %v8241 = vrot.slane %v8109, 1
  %v8242 = vrot.slane %v8111, 1
  %v8243 = vrot.slane %v8113, 1
  %v8253 = vcombine.high %v8026, %v8026
  %v8255 = vunpack.c.l.s4 1966171168
  %v8256 = vunpack.c.0.s8 %v8255
  %v8257 = vlaneseq
  %v8258 = vshrl.u32 %v8257, 7
  %v8259 = vsub.s32 %v8256, %v8258
  %v8260 = vrot.slane %v8026, %v8259
  %v8262 = vunpack.c.l.s4 1966171168
  %v8263 = vunpack.c.0.s8 %v8262
  %v8264 = vlaneseq
  %v8265 = vshrl.u32 %v8264, 7
  %v8266 = vsub.s32 %v8263, %v8265
  %v8267 = vrot.slane %v8253, %v8266
  %v8268 = vcombine.high %v8260, %v8260
  %v8269 = vcombine.high %v8267, %v8267
  %v8271 = vunpack.c.l.s4 1966171168
  %v8272 = vunpack.c.0.s8 %v8271
  %v8273 = vlaneseq
  %v8274 = vshrl.u32 %v8273, 7
  %v8275 = vsub.s32 %v8272, %v8274
  %v8276 = vrot.slane %v8260, %v8275
  %v8278 = vunpack.c.l.s4 1966171168
  %v8279 = vunpack.c.0.s8 %v8278
  %v8280 = vlaneseq
  %v8281 = vshrl.u32 %v8280, 7
  %v8282 = vsub.s32 %v8279, %v8281
  %v8283 = vrot.slane %v8267, %v8282
  %v8285 = vunpack.c.l.s4 1966171168
  %v8286 = vunpack.c.0.s8 %v8285
  %v8287 = vlaneseq
  %v8288 = vshrl.u32 %v8287, 7
  %v8289 = vsub.s32 %v8286, %v8288
  %v8290 = vrot.slane %v8268, %v8289
  %v8292 = vunpack.c.l.s4 1966171168
  %v8293 = vunpack.c.0.s8 %v8292
  %v8294 = vlaneseq
  %v8295 = vshrl.u32 %v8294, 7
  %v8296 = vsub.s32 %v8293, %v8295
  %v8297 = vrot.slane %v8269, %v8296
  %v8298 = vcombine.high %v8276, %v8276
  %v8299 = vcombine.high %v8283, %v8283
  %v8300 = vcombine.high %v8290, %v8290
  %v8301 = vcombine.high %v8297, %v8297
  %v8310 = vadd.f32 %v8236, %v8276
  %v8311 = vadd.f32 %v8237, %v8290
  %v8312 = vadd.f32 %v8238, %v8298
  %v8313 = vadd.f32 %v8239, %v8300
  %v8314 = vadd.f32 %v8240, %v8283
  %v8315 = vadd.f32 %v8241, %v8297
  %v8316 = vadd.f32 %v8242, %v8299
  %v8317 = vadd.f32 %v8243, %v8301
  %v8318 = vxor.u32 %v8310, 2147483648
  %v8319 = vxor.u32 %v8311, 2147483648
  %v8320 = vxor.u32 %v8312, 2147483648
  %v8321 = vxor.u32 %v8313, 2147483648
  %v8322 = vxor.u32 %v8314, 2147483648
  %v8323 = vxor.u32 %v8315, 2147483648
  %v8324 = vxor.u32 %v8316, 2147483648
  %v8325 = vxor.u32 %v8317, 2147483648
  %v8326 = vmul.f32 %v8318, 1.442695
  %v8327 = vpow.pop %v8326
  %v8328 = vmul.f32 %v8319, 1.442695
  %v8329 = vpow.pop %v8328
  %v8330 = vmul.f32 %v8320, 1.442695
  %v8331 = vpow.pop %v8330
  %v8332 = vmul.f32 %v8321, 1.442695
  %v8333 = vpow.pop %v8332
  %v8334 = vmul.f32 %v8322, 1.442695
  %v8335 = vpow.pop %v8334
  %v8336 = vmul.f32 %v8323, 1.442695
  %v8337 = vpow.pop %v8336
  %v8338 = vmul.f32 %v8324, 1.442695
  %v8339 = vpow.pop %v8338
  %v8340 = vmul.f32 %v8325, 1.442695
  %v8341 = vpow.pop %v8340
  %v8342 = vadd.f32 %v8327, 1.0
  %v8343 = vadd.f32 %v8329, 1.0
  %v8344 = vadd.f32 %v8331, 1.0
  %v8345 = vadd.f32 %v8333, 1.0
  %v8346 = vadd.f32 %v8335, 1.0
  %v8347 = vadd.f32 %v8337, 1.0
  %v8348 = vadd.f32 %v8339, 1.0
  %v8349 = vadd.f32 %v8341, 1.0
  %v8350 = vrcp.pop %v8342
  %v8351 = vmul.f32 1.0, %v8350
  %v8352 = vrcp.pop %v8343
  %v8353 = vmul.f32 1.0, %v8352
  %v8354 = vrcp.pop %v8344
  %v8355 = vmul.f32 1.0, %v8354
  %v8356 = vrcp.pop %v8345
  %v8357 = vmul.f32 1.0, %v8356
  %v8358 = vrcp.pop %v8346
  %v8359 = vmul.f32 1.0, %v8358
  %v8360 = vrcp.pop %v8347
  %v8361 = vmul.f32 1.0, %v8360
  %v8362 = vrcp.pop %v8348
  %v8363 = vmul.f32 1.0, %v8362
  %v8364 = vrcp.pop %v8349
  %v8365 = vmul.f32 1.0, %v8364
  %v8366 = vadd.f32 %v8095, %v481
  %v8368 = vcombine.high %v8366, %v8366
  %v8370 = vunpack.c.l.s4 1966171168
  %v8371 = vunpack.c.0.s8 %v8370
  %v8372 = vlaneseq
  %v8373 = vshrl.u32 %v8372, 7
  %v8374 = vsub.s32 %v8371, %v8373
  %v8375 = vrot.slane %v8366, %v8374
  %v8377 = vunpack.c.l.s4 1966171168
  %v8378 = vunpack.c.0.s8 %v8377
  %v8379 = vlaneseq
  %v8380 = vshrl.u32 %v8379, 7
  %v8381 = vsub.s32 %v8378, %v8380
  %v8382 = vrot.slane %v8368, %v8381
  %v8383 = vcombine.high %v8375, %v8375
  %v8384 = vcombine.high %v8382, %v8382
  %v8386 = vunpack.c.l.s4 1966171168
  %v8387 = vunpack.c.0.s8 %v8386
  %v8388 = vlaneseq
  %v8389 = vshrl.u32 %v8388, 7
  %v8390 = vsub.s32 %v8387, %v8389
  %v8391 = vrot.slane %v8375, %v8390
  %v8393 = vunpack.c.l.s4 1966171168
  %v8394 = vunpack.c.0.s8 %v8393
  %v8395 = vlaneseq
  %v8396 = vshrl.u32 %v8395, 7
  %v8397 = vsub.s32 %v8394, %v8396
  %v8398 = vrot.slane %v8382, %v8397
  %v8400 = vunpack.c.l.s4 1966171168
  %v8401 = vunpack.c.0.s8 %v8400
  %v8402 = vlaneseq
  %v8403 = vshrl.u32 %v8402, 7
  %v8404 = vsub.s32 %v8401, %v8403
  %v8405 = vrot.slane %v8383, %v8404
  %v8407 = vunpack.c.l.s4 1966171168
  %v8408 = vunpack.c.0.s8 %v8407
  %v8409 = vlaneseq
  %v8410 = vshrl.u32 %v8409, 7
  %v8411 = vsub.s32 %v8408, %v8410
  %v8412 = vrot.slane %v8384, %v8411
  %v8413 = vcombine.high %v8391, %v8391
  %v8414 = vcombine.high %v8398, %v8398
  %v8415 = vcombine.high %v8405, %v8405
  %v8416 = vcombine.high %v8412, %v8412
  %v8425 = vmul.f32 %v8213, %v8391
  %v8426 = vmul.f32 %v8215, %v8405
  %v8427 = vmul.f32 %v8217, %v8413
  %v8428 = vmul.f32 %v8219, %v8415
  %v8429 = vmul.f32 %v8221, %v8398
  %v8430 = vmul.f32 %v8223, %v8412
  %v8431 = vmul.f32 %v8225, %v8414
  %v8432 = vmul.f32 %v8227, %v8416
  %v8433 = vrot.slane %v8099, 2
  %v8434 = vrot.slane %v8101, 2
  %v8435 = vrot.slane %v8103, 2
  %v8436 = vrot.slane %v8105, 2
  %v8437 = vrot.slane %v8107, 2
  %v8438 = vrot.slane %v8109, 2
  %v8439 = vrot.slane %v8111, 2
  %v8440 = vrot.slane %v8113, 2
  %v8449 = vadd.f32 %v8433, %v8425
  %v8450 = vadd.f32 %v8434, %v8426
  %v8451 = vadd.f32 %v8435, %v8427
  %v8452 = vadd.f32 %v8436, %v8428
  %v8453 = vadd.f32 %v8437, %v8429
  %v8454 = vadd.f32 %v8438, %v8430
  %v8455 = vadd.f32 %v8439, %v8431
  %v8456 = vadd.f32 %v8440, %v8432
  %v8457 = vtanh.pop %v8449
  %v8458 = vtanh.pop %v8450
  %v8459 = vtanh.pop %v8451
  %v8460 = vtanh.pop %v8452
  %v8461 = vtanh.pop %v8453
  %v8462 = vtanh.pop %v8454
  %v8463 = vtanh.pop %v8455
  %v8464 = vtanh.pop %v8456
  %v8465 = vsub.f32 %v7883, %v8457
  %v8466 = vsub.f32 %v7884, %v8458
  %v8467 = vsub.f32 %v7885, %v8459
  %v8468 = vsub.f32 %v7886, %v8460
  %v8469 = vsub.f32 %v7887, %v8461
  %v8470 = vsub.f32 %v7888, %v8462
  %v8471 = vsub.f32 %v7889, %v8463
  %v8472 = vsub.f32 %v7890, %v8464
  %v8473 = vmul.f32 %v8351, %v8465
  %v8474 = vmul.f32 %v8353, %v8466
  %v8475 = vmul.f32 %v8355, %v8467
  %v8476 = vmul.f32 %v8357, %v8468
  %v8477 = vmul.f32 %v8359, %v8469
  %v8478 = vmul.f32 %v8361, %v8470
  %v8479 = vmul.f32 %v8363, %v8471
  %v8480 = vmul.f32 %v8365, %v8472
  %v8481 = vadd.f32 %v8457, %v8473
  %v8482 = vadd.f32 %v8458, %v8474
  %v8483 = vadd.f32 %v8459, %v8475
  %v8484 = vadd.f32 %v8460, %v8476
  %v8485 = vadd.f32 %v8461, %v8477
  %v8486 = vadd.f32 %v8462, %v8478
  %v8487 = vadd.f32 %v8463, %v8479
  %v8488 = vadd.f32 %v8464, %v8480
  %8489 = vst [vmem:[%s3 + $0xd] sm:$0x1] %v8481
  %8490 = vst [vmem:[%s3 + $0x1d] sm:$0x1] %v8482
  %8491 = vst [vmem:[%s3 + $0x2d] sm:$0x1] %v8483
  %8492 = vst [vmem:[%s3 + $0x3d] sm:$0x1] %v8484
  %8493 = vst [vmem:[%s3 + $0x4d] sm:$0x1] %v8485
  %8494 = vst [vmem:[%s3 + $0x5d] sm:$0x1] %v8486
  %8495 = vst [vmem:[%s3 + $0x6d] sm:$0x1] %v8487
  %8496 = vst [vmem:[%s3 + $0x7d] sm:$0x1] %v8488
  %v8505 = vcombine.low %v8481, %v8482
  %v8506 = vcombine.low %v8483, %v8484
  %v8507 = vcombine.low %v8485, %v8486
  %v8508 = vcombine.low %v8487, %v8488
  %v8510 = vunpack.c.l.s4 1966171168
  %v8511 = vunpack.c.0.s8 %v8510
  %v8512 = vlaneseq
  %v8513 = vshrl.u32 %v8512, 7
  %v8514 = vsub.s32 %v8511, %v8513
  %v8515 = vrot.slane %v8505, %v8514
  %v8517 = vunpack.c.l.s4 1966171168
  %v8518 = vunpack.c.0.s8 %v8517
  %v8519 = vlaneseq
  %v8520 = vshrl.u32 %v8519, 7
  %v8521 = vsub.s32 %v8518, %v8520
  %v8522 = vrot.slane %v8506, %v8521
  %v8524 = vunpack.c.l.s4 1966171168
  %v8525 = vunpack.c.0.s8 %v8524
  %v8526 = vlaneseq
  %v8527 = vshrl.u32 %v8526, 7
  %v8528 = vsub.s32 %v8525, %v8527
  %v8529 = vrot.slane %v8507, %v8528
  %v8531 = vunpack.c.l.s4 1966171168
  %v8532 = vunpack.c.0.s8 %v8531
  %v8533 = vlaneseq
  %v8534 = vshrl.u32 %v8533, 7
  %v8535 = vsub.s32 %v8532, %v8534
  %v8536 = vrot.slane %v8508, %v8535
  %v8537 = vcombine.low %v8515, %v8522
  %v8538 = vcombine.low %v8529, %v8536
  %v8540 = vunpack.c.l.s4 1966171168
  %v8541 = vunpack.c.0.s8 %v8540
  %v8542 = vlaneseq
  %v8543 = vshrl.u32 %v8542, 7
  %v8544 = vsub.s32 %v8541, %v8543
  %v8545 = vrot.slane %v8537, %v8544
  %v8547 = vunpack.c.l.s4 1966171168
  %v8548 = vunpack.c.0.s8 %v8547
  %v8549 = vlaneseq
  %v8550 = vshrl.u32 %v8549, 7
  %v8551 = vsub.s32 %v8548, %v8550
  %v8552 = vrot.slane %v8538, %v8551
  %v8553 = vcombine.low %v8545, %v8552
  %8555 = vmatprep.subr.mxu0 %v20
  %8556 = vmatpush1.msra.mxu0 %v19
  %8557 = vmatprep.subr.mxu0 %v23
  %8558 = vmatpush1.msra.mxu0 %v22
  %8559 = vmatprep.subr.mxu0 %v26
  %8560 = vmatpush1.msra.mxu0 %v25
  %8561 = vmatprep.subr.mxu0 %v29
  %8562 = vmatpush1.msra.mxu0 %v28
  %8563 = vmatprep.subr.mxu0 %v32
  %8564 = vmatpush1.msra.mxu0 %v31
  %8565 = vmatprep.subr.mxu0 %v35
  %8566 = vmatpush1.msra.mxu0 %v34
  %8567 = vmatprep.subr.mxu0 %v38
  %8568 = vmatpush1.msra.mxu0 %v37
  %8569 = vmatprep.subr.mxu0 %v41
  %8570 = vmatpush1.msra.mxu0 %v40
  %8571 = vmatprep.subr.mxu0 %v44
  %8572 = vmatpush1.msra.mxu0 %v43
  %8573 = vmatprep.subr.mxu0 %v47
  %8574 = vmatpush1.msra.mxu0 %v46
  %8575 = vmatprep.subr.mxu0 %v50
  %8576 = vmatpush1.msra.mxu0 %v49
  %8577 = vmatprep.subr.mxu0 %v53
  %8578 = vmatpush1.msra.mxu0 %v52
  %8579 = vmatprep.subr.mxu0 %v56
  %8580 = vmatpush1.msra.mxu0 %v55
  %8581 = vmatprep.subr.mxu0 %v59
  %8582 = vmatpush1.msra.mxu0 %v58
  %8583 = vmatprep.subr.mxu0 %v62
  %8584 = vmatpush1.msra.mxu0 %v61
  %8585 = vmatprep.subr.mxu0 %v65
  %8586 = vmatpush1.msra.mxu0 %v64
  %8587 = vmatprep.subr.mxu0 0.0
  %8588 = vmatpush1.msra.mxu0 0.0
  %8589 = vmatprep.subr.mxu0 0.0
  %8590 = vmatpush1.msra.mxu0 0.0
  %8591 = vmatprep.subr.mxu0 0.0
  %8592 = vmatpush1.msra.mxu0 0.0
  %8593 = vmatprep.subr.mxu0 0.0
  %8594 = vmatpush1.msra.mxu0 0.0
  %8595 = vmatprep.subr.mxu0 0.0
  %8596 = vmatpush1.msra.mxu0 0.0
  %8597 = vmatprep.subr.mxu0 0.0
  %8598 = vmatpush1.msra.mxu0 0.0
  %8599 = vmatprep.subr.mxu0 0.0
  %8600 = vmatpush1.msra.mxu0 0.0
  %8601 = vmatprep.subr.mxu0 0.0
  %8602 = vmatpush1.msra.mxu0 0.0
  %8603 = vmatprep.subr.mxu0 0.0
  %8604 = vmatpush1.msra.mxu0 0.0
  %8605 = vmatprep.subr.mxu0 0.0
  %8606 = vmatpush1.msra.mxu0 0.0
  %8607 = vmatprep.subr.mxu0 0.0
  %8608 = vmatpush1.msra.mxu0 0.0
  %8609 = vmatprep.subr.mxu0 0.0
  %8610 = vmatpush1.msra.mxu0 0.0
  %8611 = vmatprep.subr.mxu0 0.0
  %8612 = vmatpush1.msra.mxu0 0.0
  %8613 = vmatprep.subr.mxu0 0.0
  %8614 = vmatpush1.msra.mxu0 0.0
  %8615 = vmatprep.subr.mxu0 0.0
  %8616 = vmatpush1.msra.mxu0 0.0
  %8617 = vmatprep.subr.mxu0 0.0
  %8618 = vmatpush1.msra.mxu0 0.0
  %8619 = vmatprep.mubr.f32.mxu0 0.0
  %8620 = vmatmul.mubr.f32.gmra.mrb[0].mxu0 %v8553
  %v8621 = vpop.f32.mrb[0].mxu0
  %v8622 = vadd.f32 0.0, %v8621
  %v8623 = vpop.f32.mrb[0].mxu0
  %v8624 = vadd.f32 0.0, %v8623
  %8625 = vdwg.mxu0
  %8626 = vmatprep.subr.mxu0 0.0
  %8627 = vmatpush1.msra.mxu0 %v21
  %8628 = vmatprep.subr.mxu0 0.0
  %8629 = vmatpush1.msra.mxu0 %v24
  %8630 = vmatprep.subr.mxu0 0.0
  %8631 = vmatpush1.msra.mxu0 %v27
  %8632 = vmatprep.subr.mxu0 0.0
  %8633 = vmatpush1.msra.mxu0 %v30
  %8634 = vmatprep.subr.mxu0 0.0
  %8635 = vmatpush1.msra.mxu0 %v33
  %8636 = vmatprep.subr.mxu0 0.0
  %8637 = vmatpush1.msra.mxu0 %v36
  %8638 = vmatprep.subr.mxu0 0.0
  %8639 = vmatpush1.msra.mxu0 %v39
  %8640 = vmatprep.subr.mxu0 0.0
  %8641 = vmatpush1.msra.mxu0 %v42
  %8642 = vmatprep.subr.mxu0 0.0
  %8643 = vmatpush1.msra.mxu0 %v45
  %8644 = vmatprep.subr.mxu0 0.0
  %8645 = vmatpush1.msra.mxu0 %v48
  %8646 = vmatprep.subr.mxu0 0.0
  %8647 = vmatpush1.msra.mxu0 %v51
  %8648 = vmatprep.subr.mxu0 0.0
  %8649 = vmatpush1.msra.mxu0 %v54
  %8650 = vmatprep.subr.mxu0 0.0
  %8651 = vmatpush1.msra.mxu0 %v57
  %8652 = vmatprep.subr.mxu0 0.0
  %8653 = vmatpush1.msra.mxu0 %v60
  %8654 = vmatprep.subr.mxu0 0.0
  %8655 = vmatpush1.msra.mxu0 %v63
  %8656 = vmatprep.subr.mxu0 0.0
  %8657 = vmatpush1.msra.mxu0 %v66
  %8658 = vmatprep.subr.mxu0 0.0
  %8659 = vmatpush1.msra.mxu0 0.0
  %8660 = vmatprep.subr.mxu0 0.0
  %8661 = vmatpush1.msra.mxu0 0.0
  %8662 = vmatprep.subr.mxu0 0.0
  %8663 = vmatpush1.msra.mxu0 0.0
  %8664 = vmatprep.subr.mxu0 0.0
  %8665 = vmatpush1.msra.mxu0 0.0
  %8666 = vmatprep.subr.mxu0 0.0
  %8667 = vmatpush1.msra.mxu0 0.0
  %8668 = vmatprep.subr.mxu0 0.0
  %8669 = vmatpush1.msra.mxu0 0.0
  %8670 = vmatprep.subr.mxu0 0.0
  %8671 = vmatpush1.msra.mxu0 0.0
  %8672 = vmatprep.subr.mxu0 0.0
  %8673 = vmatpush1.msra.mxu0 0.0
  %8674 = vmatprep.subr.mxu0 0.0
  %8675 = vmatpush1.msra.mxu0 0.0
  %8676 = vmatprep.subr.mxu0 0.0
  %8677 = vmatpush1.msra.mxu0 0.0
  %8678 = vmatprep.subr.mxu0 0.0
  %8679 = vmatpush1.msra.mxu0 0.0
  %8680 = vmatprep.subr.mxu0 0.0
  %8681 = vmatpush1.msra.mxu0 0.0
  %8682 = vmatprep.subr.mxu0 0.0
  %8683 = vmatpush1.msra.mxu0 0.0
  %8684 = vmatprep.subr.mxu0 0.0
  %8685 = vmatpush1.msra.mxu0 0.0
  %8686 = vmatprep.subr.mxu0 0.0
  %8687 = vmatpush1.msra.mxu0 0.0
  %8688 = vmatprep.subr.mxu0 0.0
  %8689 = vmatpush1.msra.mxu0 0.0
  %8690 = vmatprep.mubr.f32.mxu0 0.0
  %8691 = vmatmul.mubr.f32.gmra.mrb[0].mxu0 %v8553
  %v8692 = vpop.f32.mrb[0].mxu0
  %v8693 = vadd.f32 0.0, %v8692
  %v8694 = vpop.f32.mrb[0].mxu0
  %8695 = vdwg.mxu0
  %s8696 = scalar_lea.vmem %s0, 30
  %v8697 = vld [vmem:[%s8696] ss:$8 sm:$0x7]
  %s8698 = scalar_lea.vmem %s0, 78
  %v8699 = vld [vmem:[%s8698] ss:$8 sm:$0x7]
  %s8700 = scalar_lea.vmem %s0, 126
  %v8701 = vld [vmem:[%s8700] ss:$8 sm:$0x7]
  %s8702 = scalar_lea.vmem %s0, 174
  %v8703 = vld [vmem:[%s8702] ss:$8 sm:$0x7]
  %s8704 = scalar_lea.vmem %s0, 222
  %v8705 = vld [vmem:[%s8704] ss:$8 sm:$0x7]
  %s8706 = scalar_lea.vmem %s0, 270
  %v8707 = vld [vmem:[%s8706] ss:$8 sm:$0x7]
  %s8708 = scalar_lea.vmem %s0, 318
  %v8709 = vld [vmem:[%s8708] ss:$8 sm:$0x7]
  %s8710 = scalar_lea.vmem %s0, 366
  %v8711 = vld [vmem:[%s8710] ss:$8 sm:$0x7]
  %v8713 = vcombine.high %v8622, %v8622
  %v8715 = vunpack.c.l.s4 1966171168
  %v8716 = vunpack.c.0.s8 %v8715
  %v8717 = vlaneseq
  %v8718 = vshrl.u32 %v8717, 7
  %v8719 = vsub.s32 %v8716, %v8718
  %v8720 = vrot.slane %v8622, %v8719
  %v8722 = vunpack.c.l.s4 1966171168
  %v8723 = vunpack.c.0.s8 %v8722
  %v8724 = vlaneseq
  %v8725 = vshrl.u32 %v8724, 7
  %v8726 = vsub.s32 %v8723, %v8725
  %v8727 = vrot.slane %v8713, %v8726
  %v8728 = vcombine.high %v8720, %v8720
  %v8729 = vcombine.high %v8727, %v8727
  %v8731 = vunpack.c.l.s4 1966171168
  %v8732 = vunpack.c.0.s8 %v8731
  %v8733 = vlaneseq
  %v8734 = vshrl.u32 %v8733, 7
  %v8735 = vsub.s32 %v8732, %v8734
  %v8736 = vrot.slane %v8720, %v8735
  %v8738 = vunpack.c.l.s4 1966171168
  %v8739 = vunpack.c.0.s8 %v8738
  %v8740 = vlaneseq
  %v8741 = vshrl.u32 %v8740, 7
  %v8742 = vsub.s32 %v8739, %v8741
  %v8743 = vrot.slane %v8727, %v8742
  %v8745 = vunpack.c.l.s4 1966171168
  %v8746 = vunpack.c.0.s8 %v8745
  %v8747 = vlaneseq
  %v8748 = vshrl.u32 %v8747, 7
  %v8749 = vsub.s32 %v8746, %v8748
  %v8750 = vrot.slane %v8728, %v8749
  %v8752 = vunpack.c.l.s4 1966171168
  %v8753 = vunpack.c.0.s8 %v8752
  %v8754 = vlaneseq
  %v8755 = vshrl.u32 %v8754, 7
  %v8756 = vsub.s32 %v8753, %v8755
  %v8757 = vrot.slane %v8729, %v8756
  %v8758 = vcombine.high %v8736, %v8736
  %v8759 = vcombine.high %v8743, %v8743
  %v8760 = vcombine.high %v8750, %v8750
  %v8761 = vcombine.high %v8757, %v8757
  %v8770 = vadd.f32 %v8697, %v8736
  %v8771 = vadd.f32 %v8699, %v8750
  %v8772 = vadd.f32 %v8701, %v8758
  %v8773 = vadd.f32 %v8703, %v8760
  %v8774 = vadd.f32 %v8705, %v8743
  %v8775 = vadd.f32 %v8707, %v8757
  %v8776 = vadd.f32 %v8709, %v8759
  %v8777 = vadd.f32 %v8711, %v8761
  %v8778 = vxor.u32 %v8770, 2147483648
  %v8779 = vxor.u32 %v8771, 2147483648
  %v8780 = vxor.u32 %v8772, 2147483648
  %v8781 = vxor.u32 %v8773, 2147483648
  %v8782 = vxor.u32 %v8774, 2147483648
  %v8783 = vxor.u32 %v8775, 2147483648
  %v8784 = vxor.u32 %v8776, 2147483648
  %v8785 = vxor.u32 %v8777, 2147483648
  %v8786 = vmul.f32 %v8778, 1.442695
  %v8787 = vpow.pop %v8786
  %v8788 = vmul.f32 %v8779, 1.442695
  %v8789 = vpow.pop %v8788
  %v8790 = vmul.f32 %v8780, 1.442695
  %v8791 = vpow.pop %v8790
  %v8792 = vmul.f32 %v8781, 1.442695
  %v8793 = vpow.pop %v8792
  %v8794 = vmul.f32 %v8782, 1.442695
  %v8795 = vpow.pop %v8794
  %v8796 = vmul.f32 %v8783, 1.442695
  %v8797 = vpow.pop %v8796
  %v8798 = vmul.f32 %v8784, 1.442695
  %v8799 = vpow.pop %v8798
  %v8800 = vmul.f32 %v8785, 1.442695
  %v8801 = vpow.pop %v8800
  %v8802 = vadd.f32 %v8787, 1.0
  %v8803 = vadd.f32 %v8789, 1.0
  %v8804 = vadd.f32 %v8791, 1.0
  %v8805 = vadd.f32 %v8793, 1.0
  %v8806 = vadd.f32 %v8795, 1.0
  %v8807 = vadd.f32 %v8797, 1.0
  %v8808 = vadd.f32 %v8799, 1.0
  %v8809 = vadd.f32 %v8801, 1.0
  %v8810 = vrcp.pop %v8802
  %v8811 = vmul.f32 1.0, %v8810
  %v8812 = vrcp.pop %v8803
  %v8813 = vmul.f32 1.0, %v8812
  %v8814 = vrcp.pop %v8804
  %v8815 = vmul.f32 1.0, %v8814
  %v8816 = vrcp.pop %v8805
  %v8817 = vmul.f32 1.0, %v8816
  %v8818 = vrcp.pop %v8806
  %v8819 = vmul.f32 1.0, %v8818
  %v8820 = vrcp.pop %v8807
  %v8821 = vmul.f32 1.0, %v8820
  %v8822 = vrcp.pop %v8808
  %v8823 = vmul.f32 1.0, %v8822
  %v8824 = vrcp.pop %v8809
  %v8825 = vmul.f32 1.0, %v8824
  %v8834 = vrot.slane %v8697, 1
  %v8835 = vrot.slane %v8699, 1
  %v8836 = vrot.slane %v8701, 1
  %v8837 = vrot.slane %v8703, 1
  %v8838 = vrot.slane %v8705, 1
  %v8839 = vrot.slane %v8707, 1
  %v8840 = vrot.slane %v8709, 1
  %v8841 = vrot.slane %v8711, 1
  %v8851 = vcombine.high %v8624, %v8624
  %v8853 = vunpack.c.l.s4 1966171168
  %v8854 = vunpack.c.0.s8 %v8853
  %v8855 = vlaneseq
  %v8856 = vshrl.u32 %v8855, 7
  %v8857 = vsub.s32 %v8854, %v8856
  %v8858 = vrot.slane %v8624, %v8857
  %v8860 = vunpack.c.l.s4 1966171168
  %v8861 = vunpack.c.0.s8 %v8860
  %v8862 = vlaneseq
  %v8863 = vshrl.u32 %v8862, 7
  %v8864 = vsub.s32 %v8861, %v8863
  %v8865 = vrot.slane %v8851, %v8864
  %v8866 = vcombine.high %v8858, %v8858
  %v8867 = vcombine.high %v8865, %v8865
  %v8869 = vunpack.c.l.s4 1966171168
  %v8870 = vunpack.c.0.s8 %v8869
  %v8871 = vlaneseq
  %v8872 = vshrl.u32 %v8871, 7
  %v8873 = vsub.s32 %v8870, %v8872
  %v8874 = vrot.slane %v8858, %v8873
  %v8876 = vunpack.c.l.s4 1966171168
  %v8877 = vunpack.c.0.s8 %v8876
  %v8878 = vlaneseq
  %v8879 = vshrl.u32 %v8878, 7
  %v8880 = vsub.s32 %v8877, %v8879
  %v8881 = vrot.slane %v8865, %v8880
  %v8883 = vunpack.c.l.s4 1966171168
  %v8884 = vunpack.c.0.s8 %v8883
  %v8885 = vlaneseq
  %v8886 = vshrl.u32 %v8885, 7
  %v8887 = vsub.s32 %v8884, %v8886
  %v8888 = vrot.slane %v8866, %v8887
  %v8890 = vunpack.c.l.s4 1966171168
  %v8891 = vunpack.c.0.s8 %v8890
  %v8892 = vlaneseq
  %v8893 = vshrl.u32 %v8892, 7
  %v8894 = vsub.s32 %v8891, %v8893
  %v8895 = vrot.slane %v8867, %v8894
  %v8896 = vcombine.high %v8874, %v8874
  %v8897 = vcombine.high %v8881, %v8881
  %v8898 = vcombine.high %v8888, %v8888
  %v8899 = vcombine.high %v8895, %v8895
  %v8908 = vadd.f32 %v8834, %v8874
  %v8909 = vadd.f32 %v8835, %v8888
  %v8910 = vadd.f32 %v8836, %v8896
  %v8911 = vadd.f32 %v8837, %v8898
  %v8912 = vadd.f32 %v8838, %v8881
  %v8913 = vadd.f32 %v8839, %v8895
  %v8914 = vadd.f32 %v8840, %v8897
  %v8915 = vadd.f32 %v8841, %v8899
  %v8916 = vxor.u32 %v8908, 2147483648
  %v8917 = vxor.u32 %v8909, 2147483648
  %v8918 = vxor.u32 %v8910, 2147483648
  %v8919 = vxor.u32 %v8911, 2147483648
  %v8920 = vxor.u32 %v8912, 2147483648
  %v8921 = vxor.u32 %v8913, 2147483648
  %v8922 = vxor.u32 %v8914, 2147483648
  %v8923 = vxor.u32 %v8915, 2147483648
  %v8924 = vmul.f32 %v8916, 1.442695
  %v8925 = vpow.pop %v8924
  %v8926 = vmul.f32 %v8917, 1.442695
  %v8927 = vpow.pop %v8926
  %v8928 = vmul.f32 %v8918, 1.442695
  %v8929 = vpow.pop %v8928
  %v8930 = vmul.f32 %v8919, 1.442695
  %v8931 = vpow.pop %v8930
  %v8932 = vmul.f32 %v8920, 1.442695
  %v8933 = vpow.pop %v8932
  %v8934 = vmul.f32 %v8921, 1.442695
  %v8935 = vpow.pop %v8934
  %v8936 = vmul.f32 %v8922, 1.442695
  %v8937 = vpow.pop %v8936
  %v8938 = vmul.f32 %v8923, 1.442695
  %v8939 = vpow.pop %v8938
  %v8940 = vadd.f32 %v8925, 1.0
  %v8941 = vadd.f32 %v8927, 1.0
  %v8942 = vadd.f32 %v8929, 1.0
  %v8943 = vadd.f32 %v8931, 1.0
  %v8944 = vadd.f32 %v8933, 1.0
  %v8945 = vadd.f32 %v8935, 1.0
  %v8946 = vadd.f32 %v8937, 1.0
  %v8947 = vadd.f32 %v8939, 1.0
  %v8948 = vrcp.pop %v8940
  %v8949 = vmul.f32 1.0, %v8948
  %v8950 = vrcp.pop %v8941
  %v8951 = vmul.f32 1.0, %v8950
  %v8952 = vrcp.pop %v8942
  %v8953 = vmul.f32 1.0, %v8952
  %v8954 = vrcp.pop %v8943
  %v8955 = vmul.f32 1.0, %v8954
  %v8956 = vrcp.pop %v8944
  %v8957 = vmul.f32 1.0, %v8956
  %v8958 = vrcp.pop %v8945
  %v8959 = vmul.f32 1.0, %v8958
  %v8960 = vrcp.pop %v8946
  %v8961 = vmul.f32 1.0, %v8960
  %v8962 = vrcp.pop %v8947
  %v8963 = vmul.f32 1.0, %v8962
  %v8964 = vadd.f32 %v8693, %v481
  %v8966 = vcombine.high %v8964, %v8964
  %v8968 = vunpack.c.l.s4 1966171168
  %v8969 = vunpack.c.0.s8 %v8968
  %v8970 = vlaneseq
  %v8971 = vshrl.u32 %v8970, 7
  %v8972 = vsub.s32 %v8969, %v8971
  %v8973 = vrot.slane %v8964, %v8972
  %v8975 = vunpack.c.l.s4 1966171168
  %v8976 = vunpack.c.0.s8 %v8975
  %v8977 = vlaneseq
  %v8978 = vshrl.u32 %v8977, 7
  %v8979 = vsub.s32 %v8976, %v8978
  %v8980 = vrot.slane %v8966, %v8979
  %v8981 = vcombine.high %v8973, %v8973
  %v8982 = vcombine.high %v8980, %v8980
  %v8984 = vunpack.c.l.s4 1966171168
  %v8985 = vunpack.c.0.s8 %v8984
  %v8986 = vlaneseq
  %v8987 = vshrl.u32 %v8986, 7
  %v8988 = vsub.s32 %v8985, %v8987
  %v8989 = vrot.slane %v8973, %v8988
  %v8991 = vunpack.c.l.s4 1966171168
  %v8992 = vunpack.c.0.s8 %v8991
  %v8993 = vlaneseq
  %v8994 = vshrl.u32 %v8993, 7
  %v8995 = vsub.s32 %v8992, %v8994
  %v8996 = vrot.slane %v8980, %v8995
  %v8998 = vunpack.c.l.s4 1966171168
  %v8999 = vunpack.c.0.s8 %v8998
  %v9000 = vlaneseq
  %v9001 = vshrl.u32 %v9000, 7
  %v9002 = vsub.s32 %v8999, %v9001
  %v9003 = vrot.slane %v8981, %v9002
  %v9005 = vunpack.c.l.s4 1966171168
  %v9006 = vunpack.c.0.s8 %v9005
  %v9007 = vlaneseq
  %v9008 = vshrl.u32 %v9007, 7
  %v9009 = vsub.s32 %v9006, %v9008
  %v9010 = vrot.slane %v8982, %v9009
  %v9011 = vcombine.high %v8989, %v8989
  %v9012 = vcombine.high %v8996, %v8996
  %v9013 = vcombine.high %v9003, %v9003
  %v9014 = vcombine.high %v9010, %v9010
  %v9023 = vmul.f32 %v8811, %v8989
  %v9024 = vmul.f32 %v8813, %v9003
  %v9025 = vmul.f32 %v8815, %v9011
  %v9026 = vmul.f32 %v8817, %v9013
  %v9027 = vmul.f32 %v8819, %v8996
  %v9028 = vmul.f32 %v8821, %v9010
  %v9029 = vmul.f32 %v8823, %v9012
  %v9030 = vmul.f32 %v8825, %v9014
  %v9031 = vrot.slane %v8697, 2
  %v9032 = vrot.slane %v8699, 2
  %v9033 = vrot.slane %v8701, 2
  %v9034 = vrot.slane %v8703, 2
  %v9035 = vrot.slane %v8705, 2
  %v9036 = vrot.slane %v8707, 2
  %v9037 = vrot.slane %v8709, 2
  %v9038 = vrot.slane %v8711, 2
  %v9047 = vadd.f32 %v9031, %v9023
  %v9048 = vadd.f32 %v9032, %v9024
  %v9049 = vadd.f32 %v9033, %v9025
  %v9050 = vadd.f32 %v9034, %v9026
  %v9051 = vadd.f32 %v9035, %v9027
  %v9052 = vadd.f32 %v9036, %v9028
  %v9053 = vadd.f32 %v9037, %v9029
  %v9054 = vadd.f32 %v9038, %v9030
  %v9055 = vtanh.pop %v9047
  %v9056 = vtanh.pop %v9048
  %v9057 = vtanh.pop %v9049
  %v9058 = vtanh.pop %v9050
  %v9059 = vtanh.pop %v9051
  %v9060 = vtanh.pop %v9052
  %v9061 = vtanh.pop %v9053
  %v9062 = vtanh.pop %v9054
  %v9063 = vsub.f32 %v8481, %v9055
  %v9064 = vsub.f32 %v8482, %v9056
  %v9065 = vsub.f32 %v8483, %v9057
  %v9066 = vsub.f32 %v8484, %v9058
  %v9067 = vsub.f32 %v8485, %v9059
  %v9068 = vsub.f32 %v8486, %v9060
  %v9069 = vsub.f32 %v8487, %v9061
  %v9070 = vsub.f32 %v8488, %v9062
  %v9071 = vmul.f32 %v8949, %v9063
  %v9072 = vmul.f32 %v8951, %v9064
  %v9073 = vmul.f32 %v8953, %v9065
  %v9074 = vmul.f32 %v8955, %v9066
  %v9075 = vmul.f32 %v8957, %v9067
  %v9076 = vmul.f32 %v8959, %v9068
  %v9077 = vmul.f32 %v8961, %v9069
  %v9078 = vmul.f32 %v8963, %v9070
  %v9079 = vadd.f32 %v9055, %v9071
  %v9080 = vadd.f32 %v9056, %v9072
  %v9081 = vadd.f32 %v9057, %v9073
  %v9082 = vadd.f32 %v9058, %v9074
  %v9083 = vadd.f32 %v9059, %v9075
  %v9084 = vadd.f32 %v9060, %v9076
  %v9085 = vadd.f32 %v9061, %v9077
  %v9086 = vadd.f32 %v9062, %v9078
  %9087 = vst [vmem:[%s3 + $0xe] sm:$0x1] %v9079
  %9088 = vst [vmem:[%s3 + $0x1e] sm:$0x1] %v9080
  %9089 = vst [vmem:[%s3 + $0x2e] sm:$0x1] %v9081
  %9090 = vst [vmem:[%s3 + $0x3e] sm:$0x1] %v9082
  %9091 = vst [vmem:[%s3 + $0x4e] sm:$0x1] %v9083
  %9092 = vst [vmem:[%s3 + $0x5e] sm:$0x1] %v9084
  %9093 = vst [vmem:[%s3 + $0x6e] sm:$0x1] %v9085
  %9094 = vst [vmem:[%s3 + $0x7e] sm:$0x1] %v9086
  %v9103 = vcombine.low %v9079, %v9080
  %v9104 = vcombine.low %v9081, %v9082
  %v9105 = vcombine.low %v9083, %v9084
  %v9106 = vcombine.low %v9085, %v9086
  %v9108 = vunpack.c.l.s4 1966171168
  %v9109 = vunpack.c.0.s8 %v9108
  %v9110 = vlaneseq
  %v9111 = vshrl.u32 %v9110, 7
  %v9112 = vsub.s32 %v9109, %v9111
  %v9113 = vrot.slane %v9103, %v9112
  %v9115 = vunpack.c.l.s4 1966171168
  %v9116 = vunpack.c.0.s8 %v9115
  %v9117 = vlaneseq
  %v9118 = vshrl.u32 %v9117, 7
  %v9119 = vsub.s32 %v9116, %v9118
  %v9120 = vrot.slane %v9104, %v9119
  %v9122 = vunpack.c.l.s4 1966171168
  %v9123 = vunpack.c.0.s8 %v9122
  %v9124 = vlaneseq
  %v9125 = vshrl.u32 %v9124, 7
  %v9126 = vsub.s32 %v9123, %v9125
  %v9127 = vrot.slane %v9105, %v9126
  %v9129 = vunpack.c.l.s4 1966171168
  %v9130 = vunpack.c.0.s8 %v9129
  %v9131 = vlaneseq
  %v9132 = vshrl.u32 %v9131, 7
  %v9133 = vsub.s32 %v9130, %v9132
  %v9134 = vrot.slane %v9106, %v9133
  %v9135 = vcombine.low %v9113, %v9120
  %v9136 = vcombine.low %v9127, %v9134
  %v9138 = vunpack.c.l.s4 1966171168
  %v9139 = vunpack.c.0.s8 %v9138
  %v9140 = vlaneseq
  %v9141 = vshrl.u32 %v9140, 7
  %v9142 = vsub.s32 %v9139, %v9141
  %v9143 = vrot.slane %v9135, %v9142
  %v9145 = vunpack.c.l.s4 1966171168
  %v9146 = vunpack.c.0.s8 %v9145
  %v9147 = vlaneseq
  %v9148 = vshrl.u32 %v9147, 7
  %v9149 = vsub.s32 %v9146, %v9148
  %v9150 = vrot.slane %v9136, %v9149
  %v9151 = vcombine.low %v9143, %v9150
  %9153 = vmatprep.subr.mxu0 %v20
  %9154 = vmatpush1.msra.mxu0 %v19
  %9155 = vmatprep.subr.mxu0 %v23
  %9156 = vmatpush1.msra.mxu0 %v22
  %9157 = vmatprep.subr.mxu0 %v26
  %9158 = vmatpush1.msra.mxu0 %v25
  %9159 = vmatprep.subr.mxu0 %v29
  %9160 = vmatpush1.msra.mxu0 %v28
  %9161 = vmatprep.subr.mxu0 %v32
  %9162 = vmatpush1.msra.mxu0 %v31
  %9163 = vmatprep.subr.mxu0 %v35
  %9164 = vmatpush1.msra.mxu0 %v34
  %9165 = vmatprep.subr.mxu0 %v38
  %9166 = vmatpush1.msra.mxu0 %v37
  %9167 = vmatprep.subr.mxu0 %v41
  %9168 = vmatpush1.msra.mxu0 %v40
  %9169 = vmatprep.subr.mxu0 %v44
  %9170 = vmatpush1.msra.mxu0 %v43
  %9171 = vmatprep.subr.mxu0 %v47
  %9172 = vmatpush1.msra.mxu0 %v46
  %9173 = vmatprep.subr.mxu0 %v50
  %9174 = vmatpush1.msra.mxu0 %v49
  %9175 = vmatprep.subr.mxu0 %v53
  %9176 = vmatpush1.msra.mxu0 %v52
  %9177 = vmatprep.subr.mxu0 %v56
  %9178 = vmatpush1.msra.mxu0 %v55
  %9179 = vmatprep.subr.mxu0 %v59
  %9180 = vmatpush1.msra.mxu0 %v58
  %9181 = vmatprep.subr.mxu0 %v62
  %9182 = vmatpush1.msra.mxu0 %v61
  %9183 = vmatprep.subr.mxu0 %v65
  %9184 = vmatpush1.msra.mxu0 %v64
  %9185 = vmatprep.subr.mxu0 0.0
  %9186 = vmatpush1.msra.mxu0 0.0
  %9187 = vmatprep.subr.mxu0 0.0
  %9188 = vmatpush1.msra.mxu0 0.0
  %9189 = vmatprep.subr.mxu0 0.0
  %9190 = vmatpush1.msra.mxu0 0.0
  %9191 = vmatprep.subr.mxu0 0.0
  %9192 = vmatpush1.msra.mxu0 0.0
  %9193 = vmatprep.subr.mxu0 0.0
  %9194 = vmatpush1.msra.mxu0 0.0
  %9195 = vmatprep.subr.mxu0 0.0
  %9196 = vmatpush1.msra.mxu0 0.0
  %9197 = vmatprep.subr.mxu0 0.0
  %9198 = vmatpush1.msra.mxu0 0.0
  %9199 = vmatprep.subr.mxu0 0.0
  %9200 = vmatpush1.msra.mxu0 0.0
  %9201 = vmatprep.subr.mxu0 0.0
  %9202 = vmatpush1.msra.mxu0 0.0
  %9203 = vmatprep.subr.mxu0 0.0
  %9204 = vmatpush1.msra.mxu0 0.0
  %9205 = vmatprep.subr.mxu0 0.0
  %9206 = vmatpush1.msra.mxu0 0.0
  %9207 = vmatprep.subr.mxu0 0.0
  %9208 = vmatpush1.msra.mxu0 0.0
  %9209 = vmatprep.subr.mxu0 0.0
  %9210 = vmatpush1.msra.mxu0 0.0
  %9211 = vmatprep.subr.mxu0 0.0
  %9212 = vmatpush1.msra.mxu0 0.0
  %9213 = vmatprep.subr.mxu0 0.0
  %9214 = vmatpush1.msra.mxu0 0.0
  %9215 = vmatprep.subr.mxu0 0.0
  %9216 = vmatpush1.msra.mxu0 0.0
  %9217 = vmatprep.mubr.f32.mxu0 0.0
  %9218 = vmatmul.mubr.f32.gmra.mrb[0].mxu0 %v9151
  %v9219 = vpop.f32.mrb[0].mxu0
  %v9220 = vadd.f32 0.0, %v9219
  %v9221 = vpop.f32.mrb[0].mxu0
  %v9222 = vadd.f32 0.0, %v9221
  %9223 = vdwg.mxu0
  %9224 = vmatprep.subr.mxu0 0.0
  %9225 = vmatpush1.msra.mxu0 %v21
  %9226 = vmatprep.subr.mxu0 0.0
  %9227 = vmatpush1.msra.mxu0 %v24
  %9228 = vmatprep.subr.mxu0 0.0
  %9229 = vmatpush1.msra.mxu0 %v27
  %9230 = vmatprep.subr.mxu0 0.0
  %9231 = vmatpush1.msra.mxu0 %v30
  %9232 = vmatprep.subr.mxu0 0.0
  %9233 = vmatpush1.msra.mxu0 %v33
  %9234 = vmatprep.subr.mxu0 0.0
  %9235 = vmatpush1.msra.mxu0 %v36
  %9236 = vmatprep.subr.mxu0 0.0
  %9237 = vmatpush1.msra.mxu0 %v39
  %9238 = vmatprep.subr.mxu0 0.0
  %9239 = vmatpush1.msra.mxu0 %v42
  %9240 = vmatprep.subr.mxu0 0.0
  %9241 = vmatpush1.msra.mxu0 %v45
  %9242 = vmatprep.subr.mxu0 0.0
  %9243 = vmatpush1.msra.mxu0 %v48
  %9244 = vmatprep.subr.mxu0 0.0
  %9245 = vmatpush1.msra.mxu0 %v51
  %9246 = vmatprep.subr.mxu0 0.0
  %9247 = vmatpush1.msra.mxu0 %v54
  %9248 = vmatprep.subr.mxu0 0.0
  %9249 = vmatpush1.msra.mxu0 %v57
  %9250 = vmatprep.subr.mxu0 0.0
  %9251 = vmatpush1.msra.mxu0 %v60
  %9252 = vmatprep.subr.mxu0 0.0
  %9253 = vmatpush1.msra.mxu0 %v63
  %9254 = vmatprep.subr.mxu0 0.0
  %9255 = vmatpush1.msra.mxu0 %v66
  %9256 = vmatprep.subr.mxu0 0.0
  %9257 = vmatpush1.msra.mxu0 0.0
  %9258 = vmatprep.subr.mxu0 0.0
  %9259 = vmatpush1.msra.mxu0 0.0
  %9260 = vmatprep.subr.mxu0 0.0
  %9261 = vmatpush1.msra.mxu0 0.0
  %9262 = vmatprep.subr.mxu0 0.0
  %9263 = vmatpush1.msra.mxu0 0.0
  %9264 = vmatprep.subr.mxu0 0.0
  %9265 = vmatpush1.msra.mxu0 0.0
  %9266 = vmatprep.subr.mxu0 0.0
  %9267 = vmatpush1.msra.mxu0 0.0
  %9268 = vmatprep.subr.mxu0 0.0
  %9269 = vmatpush1.msra.mxu0 0.0
  %9270 = vmatprep.subr.mxu0 0.0
  %9271 = vmatpush1.msra.mxu0 0.0
  %9272 = vmatprep.subr.mxu0 0.0
  %9273 = vmatpush1.msra.mxu0 0.0
  %9274 = vmatprep.subr.mxu0 0.0
  %9275 = vmatpush1.msra.mxu0 0.0
  %9276 = vmatprep.subr.mxu0 0.0
  %9277 = vmatpush1.msra.mxu0 0.0
  %9278 = vmatprep.subr.mxu0 0.0
  %9279 = vmatpush1.msra.mxu0 0.0
  %9280 = vmatprep.subr.mxu0 0.0
  %9281 = vmatpush1.msra.mxu0 0.0
  %9282 = vmatprep.subr.mxu0 0.0
  %9283 = vmatpush1.msra.mxu0 0.0
  %9284 = vmatprep.subr.mxu0 0.0
  %9285 = vmatpush1.msra.mxu0 0.0
  %9286 = vmatprep.subr.mxu0 0.0
  %9287 = vmatpush1.msra.mxu0 0.0
  %9288 = vmatprep.mubr.f32.mxu0 0.0
  %9289 = vmatmul.mubr.f32.gmra.mrb[0].mxu0 %v9151
  %v9290 = vpop.f32.mrb[0].mxu0
  %v9291 = vadd.f32 0.0, %v9290
  %v9292 = vpop.f32.mrb[0].mxu0
  %9293 = vdwg.mxu0
  %s9294 = scalar_lea.vmem %s0, 31
  %v9295 = vld [vmem:[%s9294] ss:$8 sm:$0x7]
  %s9296 = scalar_lea.vmem %s0, 79
  %v9297 = vld [vmem:[%s9296] ss:$8 sm:$0x7]
  %s9298 = scalar_lea.vmem %s0, 127
  %v9299 = vld [vmem:[%s9298] ss:$8 sm:$0x7]
  %s9300 = scalar_lea.vmem %s0, 175
  %v9301 = vld [vmem:[%s9300] ss:$8 sm:$0x7]
  %s9302 = scalar_lea.vmem %s0, 223
  %v9303 = vld [vmem:[%s9302] ss:$8 sm:$0x7]
  %s9304 = scalar_lea.vmem %s0, 271
  %v9305 = vld [vmem:[%s9304] ss:$8 sm:$0x7]
  %s9306 = scalar_lea.vmem %s0, 319
  %v9307 = vld [vmem:[%s9306] ss:$8 sm:$0x7]
  %s9308 = scalar_lea.vmem %s0, 367
  %v9309 = vld [vmem:[%s9308] ss:$8 sm:$0x7]
  %v9311 = vcombine.high %v9220, %v9220
  %v9313 = vunpack.c.l.s4 1966171168
  %v9314 = vunpack.c.0.s8 %v9313
  %v9315 = vlaneseq
  %v9316 = vshrl.u32 %v9315, 7
  %v9317 = vsub.s32 %v9314, %v9316
  %v9318 = vrot.slane %v9220, %v9317
  %v9320 = vunpack.c.l.s4 1966171168
  %v9321 = vunpack.c.0.s8 %v9320
  %v9322 = vlaneseq
  %v9323 = vshrl.u32 %v9322, 7
  %v9324 = vsub.s32 %v9321, %v9323
  %v9325 = vrot.slane %v9311, %v9324
  %v9326 = vcombine.high %v9318, %v9318
  %v9327 = vcombine.high %v9325, %v9325
  %v9329 = vunpack.c.l.s4 1966171168
  %v9330 = vunpack.c.0.s8 %v9329
  %v9331 = vlaneseq
  %v9332 = vshrl.u32 %v9331, 7
  %v9333 = vsub.s32 %v9330, %v9332
  %v9334 = vrot.slane %v9318, %v9333
  %v9336 = vunpack.c.l.s4 1966171168
  %v9337 = vunpack.c.0.s8 %v9336
  %v9338 = vlaneseq
  %v9339 = vshrl.u32 %v9338, 7
  %v9340 = vsub.s32 %v9337, %v9339
  %v9341 = vrot.slane %v9325, %v9340
  %v9343 = vunpack.c.l.s4 1966171168
  %v9344 = vunpack.c.0.s8 %v9343
  %v9345 = vlaneseq
  %v9346 = vshrl.u32 %v9345, 7
  %v9347 = vsub.s32 %v9344, %v9346
  %v9348 = vrot.slane %v9326, %v9347
  %v9350 = vunpack.c.l.s4 1966171168
  %v9351 = vunpack.c.0.s8 %v9350
  %v9352 = vlaneseq
  %v9353 = vshrl.u32 %v9352, 7
  %v9354 = vsub.s32 %v9351, %v9353
  %v9355 = vrot.slane %v9327, %v9354
  %v9356 = vcombine.high %v9334, %v9334
  %v9357 = vcombine.high %v9341, %v9341
  %v9358 = vcombine.high %v9348, %v9348
  %v9359 = vcombine.high %v9355, %v9355
  %v9368 = vadd.f32 %v9295, %v9334
  %v9369 = vadd.f32 %v9297, %v9348
  %v9370 = vadd.f32 %v9299, %v9356
  %v9371 = vadd.f32 %v9301, %v9358
  %v9372 = vadd.f32 %v9303, %v9341
  %v9373 = vadd.f32 %v9305, %v9355
  %v9374 = vadd.f32 %v9307, %v9357
  %v9375 = vadd.f32 %v9309, %v9359
  %v9376 = vxor.u32 %v9368, 2147483648
  %v9377 = vxor.u32 %v9369, 2147483648
  %v9378 = vxor.u32 %v9370, 2147483648
  %v9379 = vxor.u32 %v9371, 2147483648
  %v9380 = vxor.u32 %v9372, 2147483648
  %v9381 = vxor.u32 %v9373, 2147483648
  %v9382 = vxor.u32 %v9374, 2147483648
  %v9383 = vxor.u32 %v9375, 2147483648
  %v9384 = vmul.f32 %v9376, 1.442695
  %v9385 = vpow.pop %v9384
  %v9386 = vmul.f32 %v9377, 1.442695
  %v9387 = vpow.pop %v9386
  %v9388 = vmul.f32 %v9378, 1.442695
  %v9389 = vpow.pop %v9388
  %v9390 = vmul.f32 %v9379, 1.442695
  %v9391 = vpow.pop %v9390
  %v9392 = vmul.f32 %v9380, 1.442695
  %v9393 = vpow.pop %v9392
  %v9394 = vmul.f32 %v9381, 1.442695
  %v9395 = vpow.pop %v9394
  %v9396 = vmul.f32 %v9382, 1.442695
  %v9397 = vpow.pop %v9396
  %v9398 = vmul.f32 %v9383, 1.442695
  %v9399 = vpow.pop %v9398
  %v9400 = vadd.f32 %v9385, 1.0
  %v9401 = vadd.f32 %v9387, 1.0
  %v9402 = vadd.f32 %v9389, 1.0
  %v9403 = vadd.f32 %v9391, 1.0
  %v9404 = vadd.f32 %v9393, 1.0
  %v9405 = vadd.f32 %v9395, 1.0
  %v9406 = vadd.f32 %v9397, 1.0
  %v9407 = vadd.f32 %v9399, 1.0
  %v9408 = vrcp.pop %v9400
  %v9409 = vmul.f32 1.0, %v9408
  %v9410 = vrcp.pop %v9401
  %v9411 = vmul.f32 1.0, %v9410
  %v9412 = vrcp.pop %v9402
  %v9413 = vmul.f32 1.0, %v9412
  %v9414 = vrcp.pop %v9403
  %v9415 = vmul.f32 1.0, %v9414
  %v9416 = vrcp.pop %v9404
  %v9417 = vmul.f32 1.0, %v9416
  %v9418 = vrcp.pop %v9405
  %v9419 = vmul.f32 1.0, %v9418
  %v9420 = vrcp.pop %v9406
  %v9421 = vmul.f32 1.0, %v9420
  %v9422 = vrcp.pop %v9407
  %v9423 = vmul.f32 1.0, %v9422
  %v9432 = vrot.slane %v9295, 1
  %v9433 = vrot.slane %v9297, 1
  %v9434 = vrot.slane %v9299, 1
  %v9435 = vrot.slane %v9301, 1
  %v9436 = vrot.slane %v9303, 1
  %v9437 = vrot.slane %v9305, 1
  %v9438 = vrot.slane %v9307, 1
  %v9439 = vrot.slane %v9309, 1
  %v9449 = vcombine.high %v9222, %v9222
  %v9451 = vunpack.c.l.s4 1966171168
  %v9452 = vunpack.c.0.s8 %v9451
  %v9453 = vlaneseq
  %v9454 = vshrl.u32 %v9453, 7
  %v9455 = vsub.s32 %v9452, %v9454
  %v9456 = vrot.slane %v9222, %v9455
  %v9458 = vunpack.c.l.s4 1966171168
  %v9459 = vunpack.c.0.s8 %v9458
  %v9460 = vlaneseq
  %v9461 = vshrl.u32 %v9460, 7
  %v9462 = vsub.s32 %v9459, %v9461
  %v9463 = vrot.slane %v9449, %v9462
  %v9464 = vcombine.high %v9456, %v9456
  %v9465 = vcombine.high %v9463, %v9463
  %v9467 = vunpack.c.l.s4 1966171168
  %v9468 = vunpack.c.0.s8 %v9467
  %v9469 = vlaneseq
  %v9470 = vshrl.u32 %v9469, 7
  %v9471 = vsub.s32 %v9468, %v9470
  %v9472 = vrot.slane %v9456, %v9471
  %v9474 = vunpack.c.l.s4 1966171168
  %v9475 = vunpack.c.0.s8 %v9474
  %v9476 = vlaneseq
  %v9477 = vshrl.u32 %v9476, 7
  %v9478 = vsub.s32 %v9475, %v9477
  %v9479 = vrot.slane %v9463, %v9478
  %v9481 = vunpack.c.l.s4 1966171168
  %v9482 = vunpack.c.0.s8 %v9481
  %v9483 = vlaneseq
  %v9484 = vshrl.u32 %v9483, 7
  %v9485 = vsub.s32 %v9482, %v9484
  %v9486 = vrot.slane %v9464, %v9485
  %v9488 = vunpack.c.l.s4 1966171168
  %v9489 = vunpack.c.0.s8 %v9488
  %v9490 = vlaneseq
  %v9491 = vshrl.u32 %v9490, 7
  %v9492 = vsub.s32 %v9489, %v9491
  %v9493 = vrot.slane %v9465, %v9492
  %v9494 = vcombine.high %v9472, %v9472
  %v9495 = vcombine.high %v9479, %v9479
  %v9496 = vcombine.high %v9486, %v9486
  %v9497 = vcombine.high %v9493, %v9493
  %v9506 = vadd.f32 %v9432, %v9472
  %v9507 = vadd.f32 %v9433, %v9486
  %v9508 = vadd.f32 %v9434, %v9494
  %v9509 = vadd.f32 %v9435, %v9496
  %v9510 = vadd.f32 %v9436, %v9479
  %v9511 = vadd.f32 %v9437, %v9493
  %v9512 = vadd.f32 %v9438, %v9495
  %v9513 = vadd.f32 %v9439, %v9497
  %v9514 = vxor.u32 %v9506, 2147483648
  %v9515 = vxor.u32 %v9507, 2147483648
  %v9516 = vxor.u32 %v9508, 2147483648
  %v9517 = vxor.u32 %v9509, 2147483648
  %v9518 = vxor.u32 %v9510, 2147483648
  %v9519 = vxor.u32 %v9511, 2147483648
  %v9520 = vxor.u32 %v9512, 2147483648
  %v9521 = vxor.u32 %v9513, 2147483648
  %v9522 = vmul.f32 %v9514, 1.442695
  %v9523 = vpow.pop %v9522
  %v9524 = vmul.f32 %v9515, 1.442695
  %v9525 = vpow.pop %v9524
  %v9526 = vmul.f32 %v9516, 1.442695
  %v9527 = vpow.pop %v9526
  %v9528 = vmul.f32 %v9517, 1.442695
  %v9529 = vpow.pop %v9528
  %v9530 = vmul.f32 %v9518, 1.442695
  %v9531 = vpow.pop %v9530
  %v9532 = vmul.f32 %v9519, 1.442695
  %v9533 = vpow.pop %v9532
  %v9534 = vmul.f32 %v9520, 1.442695
  %v9535 = vpow.pop %v9534
  %v9536 = vmul.f32 %v9521, 1.442695
  %v9537 = vpow.pop %v9536
  %v9538 = vadd.f32 %v9523, 1.0
  %v9539 = vadd.f32 %v9525, 1.0
  %v9540 = vadd.f32 %v9527, 1.0
  %v9541 = vadd.f32 %v9529, 1.0
  %v9542 = vadd.f32 %v9531, 1.0
  %v9543 = vadd.f32 %v9533, 1.0
  %v9544 = vadd.f32 %v9535, 1.0
  %v9545 = vadd.f32 %v9537, 1.0
  %v9546 = vrcp.pop %v9538
  %v9547 = vmul.f32 1.0, %v9546
  %v9548 = vrcp.pop %v9539
  %v9549 = vmul.f32 1.0, %v9548
  %v9550 = vrcp.pop %v9540
  %v9551 = vmul.f32 1.0, %v9550
  %v9552 = vrcp.pop %v9541
  %v9553 = vmul.f32 1.0, %v9552
  %v9554 = vrcp.pop %v9542
  %v9555 = vmul.f32 1.0, %v9554
  %v9556 = vrcp.pop %v9543
  %v9557 = vmul.f32 1.0, %v9556
  %v9558 = vrcp.pop %v9544
  %v9559 = vmul.f32 1.0, %v9558
  %v9560 = vrcp.pop %v9545
  %v9561 = vmul.f32 1.0, %v9560
  %v9562 = vadd.f32 %v9291, %v481
  %v9564 = vcombine.high %v9562, %v9562
  %v9566 = vunpack.c.l.s4 1966171168
  %v9567 = vunpack.c.0.s8 %v9566
  %v9568 = vlaneseq
  %v9569 = vshrl.u32 %v9568, 7
  %v9570 = vsub.s32 %v9567, %v9569
  %v9571 = vrot.slane %v9562, %v9570
  %v9573 = vunpack.c.l.s4 1966171168
  %v9574 = vunpack.c.0.s8 %v9573
  %v9575 = vlaneseq
  %v9576 = vshrl.u32 %v9575, 7
  %v9577 = vsub.s32 %v9574, %v9576
  %v9578 = vrot.slane %v9564, %v9577
  %v9579 = vcombine.high %v9571, %v9571
  %v9580 = vcombine.high %v9578, %v9578
  %v9582 = vunpack.c.l.s4 1966171168
  %v9583 = vunpack.c.0.s8 %v9582
  %v9584 = vlaneseq
  %v9585 = vshrl.u32 %v9584, 7
  %v9586 = vsub.s32 %v9583, %v9585
  %v9587 = vrot.slane %v9571, %v9586
  %v9589 = vunpack.c.l.s4 1966171168
  %v9590 = vunpack.c.0.s8 %v9589
  %v9591 = vlaneseq
  %v9592 = vshrl.u32 %v9591, 7
  %v9593 = vsub.s32 %v9590, %v9592
  %v9594 = vrot.slane %v9578, %v9593
  %v9596 = vunpack.c.l.s4 1966171168
  %v9597 = vunpack.c.0.s8 %v9596
  %v9598 = vlaneseq
  %v9599 = vshrl.u32 %v9598, 7
  %v9600 = vsub.s32 %v9597, %v9599
  %v9601 = vrot.slane %v9579, %v9600
  %v9603 = vunpack.c.l.s4 1966171168
  %v9604 = vunpack.c.0.s8 %v9603
  %v9605 = vlaneseq
  %v9606 = vshrl.u32 %v9605, 7
  %v9607 = vsub.s32 %v9604, %v9606
  %v9608 = vrot.slane %v9580, %v9607
  %v9609 = vcombine.high %v9587, %v9587
  %v9610 = vcombine.high %v9594, %v9594
  %v9611 = vcombine.high %v9601, %v9601
  %v9612 = vcombine.high %v9608, %v9608
  %v9621 = vmul.f32 %v9409, %v9587
  %v9622 = vmul.f32 %v9411, %v9601
  %v9623 = vmul.f32 %v9413, %v9609
  %v9624 = vmul.f32 %v9415, %v9611
  %v9625 = vmul.f32 %v9417, %v9594
  %v9626 = vmul.f32 %v9419, %v9608
  %v9627 = vmul.f32 %v9421, %v9610
  %v9628 = vmul.f32 %v9423, %v9612
  %v9629 = vrot.slane %v9295, 2
  %v9630 = vrot.slane %v9297, 2
  %v9631 = vrot.slane %v9299, 2
  %v9632 = vrot.slane %v9301, 2
  %v9633 = vrot.slane %v9303, 2
  %v9634 = vrot.slane %v9305, 2
  %v9635 = vrot.slane %v9307, 2
  %v9636 = vrot.slane %v9309, 2
  %v9645 = vadd.f32 %v9629, %v9621
  %v9646 = vadd.f32 %v9630, %v9622
  %v9647 = vadd.f32 %v9631, %v9623
  %v9648 = vadd.f32 %v9632, %v9624
  %v9649 = vadd.f32 %v9633, %v9625
  %v9650 = vadd.f32 %v9634, %v9626
  %v9651 = vadd.f32 %v9635, %v9627
  %v9652 = vadd.f32 %v9636, %v9628
  %v9653 = vtanh.pop %v9645
  %v9654 = vtanh.pop %v9646
  %v9655 = vtanh.pop %v9647
  %v9656 = vtanh.pop %v9648
  %v9657 = vtanh.pop %v9649
  %v9658 = vtanh.pop %v9650
  %v9659 = vtanh.pop %v9651
  %v9660 = vtanh.pop %v9652
  %v9661 = vsub.f32 %v9079, %v9653
  %v9662 = vsub.f32 %v9080, %v9654
  %v9663 = vsub.f32 %v9081, %v9655
  %v9664 = vsub.f32 %v9082, %v9656
  %v9665 = vsub.f32 %v9083, %v9657
  %v9666 = vsub.f32 %v9084, %v9658
  %v9667 = vsub.f32 %v9085, %v9659
  %v9668 = vsub.f32 %v9086, %v9660
  %v9669 = vmul.f32 %v9547, %v9661
  %v9670 = vmul.f32 %v9549, %v9662
  %v9671 = vmul.f32 %v9551, %v9663
  %v9672 = vmul.f32 %v9553, %v9664
  %v9673 = vmul.f32 %v9555, %v9665
  %v9674 = vmul.f32 %v9557, %v9666
  %v9675 = vmul.f32 %v9559, %v9667
  %v9676 = vmul.f32 %v9561, %v9668
  %v9677 = vadd.f32 %v9653, %v9669
  %v9678 = vadd.f32 %v9654, %v9670
  %v9679 = vadd.f32 %v9655, %v9671
  %v9680 = vadd.f32 %v9656, %v9672
  %v9681 = vadd.f32 %v9657, %v9673
  %v9682 = vadd.f32 %v9658, %v9674
  %v9683 = vadd.f32 %v9659, %v9675
  %v9684 = vadd.f32 %v9660, %v9676
  %9685 = vst [vmem:[%s3 + $0xf] sm:$0x1] %v9677
  %9686 = vst [vmem:[%s3 + $0x1f] sm:$0x1] %v9678
  %9687 = vst [vmem:[%s3 + $0x2f] sm:$0x1] %v9679
  %9688 = vst [vmem:[%s3 + $0x3f] sm:$0x1] %v9680
  %9689 = vst [vmem:[%s3 + $0x4f] sm:$0x1] %v9681
  %9690 = vst [vmem:[%s3 + $0x5f] sm:$0x1] %v9682
  %9691 = vst [vmem:[%s3 + $0x6f] sm:$0x1] %v9683
  %9692 = vst [vmem:[%s3 + $0x7f] sm:$0x1] %v9684
  %v9701 = vcombine.low %v9677, %v9678
  %v9702 = vcombine.low %v9679, %v9680
  %v9703 = vcombine.low %v9681, %v9682
  %v9704 = vcombine.low %v9683, %v9684
  %v9706 = vunpack.c.l.s4 1966171168
  %v9707 = vunpack.c.0.s8 %v9706
  %v9708 = vlaneseq
  %v9709 = vshrl.u32 %v9708, 7
  %v9710 = vsub.s32 %v9707, %v9709
  %v9711 = vrot.slane %v9701, %v9710
  %v9713 = vunpack.c.l.s4 1966171168
  %v9714 = vunpack.c.0.s8 %v9713
  %v9715 = vlaneseq
  %v9716 = vshrl.u32 %v9715, 7
  %v9717 = vsub.s32 %v9714, %v9716
  %v9718 = vrot.slane %v9702, %v9717
  %v9720 = vunpack.c.l.s4 1966171168
  %v9721 = vunpack.c.0.s8 %v9720
  %v9722 = vlaneseq
  %v9723 = vshrl.u32 %v9722, 7
  %v9724 = vsub.s32 %v9721, %v9723
  %v9725 = vrot.slane %v9703, %v9724
  %v9727 = vunpack.c.l.s4 1966171168
  %v9728 = vunpack.c.0.s8 %v9727
  %v9729 = vlaneseq
  %v9730 = vshrl.u32 %v9729, 7
  %v9731 = vsub.s32 %v9728, %v9730
  %v9732 = vrot.slane %v9704, %v9731
  %v9733 = vcombine.low %v9711, %v9718
  %v9734 = vcombine.low %v9725, %v9732
  %v9736 = vunpack.c.l.s4 1966171168
  %v9737 = vunpack.c.0.s8 %v9736
  %v9738 = vlaneseq
  %v9739 = vshrl.u32 %v9738, 7
  %v9740 = vsub.s32 %v9737, %v9739
  %v9741 = vrot.slane %v9733, %v9740
  %v9743 = vunpack.c.l.s4 1966171168
  %v9744 = vunpack.c.0.s8 %v9743
  %v9745 = vlaneseq
  %v9746 = vshrl.u32 %v9745, 7
  %v9747 = vsub.s32 %v9744, %v9746
  %v9748 = vrot.slane %v9734, %v9747
  %v9749 = vcombine.low %v9741, %v9748
  %9751 = vst [vmem:[#allocation2] sm:$0xff] %v9749
  // Predicated region
  $region18: #{gru_forward.1} parent=0 // pred_check
    _
  $region19: #{gru_forward.1} parent=0 // pred_check_branch
    %9753 = sbr.rel (0) target = $region21
  $region20: #{gru_forward.1} parent=0 // pred_region
    _
  $region21: #{gru_forward.1} parent=0 // pred_fallthru
    _
  // Predicated region
  $region22: #{gru_forward.1} parent=0 // pred_check
    _
  $region23: #{gru_forward.1} parent=0 // pred_check_branch
    %9755 = sbr.rel (0) target = $region25
  $region24: #{gru_forward.1} parent=0 // pred_region
    _
  $region25: #{gru_forward.1} parent=0 // pred_fallthru
    _

</llo_original>
